<compile_context>
chip_gen: v7x
topology: tpu7x:2x2x1
jax: 0.10.0
libtpu: 0.0.40
codegen_flags: <defaults>
</compile_context>

<pallas_src>
import jax
import jax.numpy as jnp
from jax import lax
from jax.experimental import pallas as pl
from jax.experimental.pallas import tpu as pltpu

BN_EPS = 1e-5
_WPAD = 8   # sublane-aligned left offset of the interior inside the W-padded canvas


# ----------------------------- fused Pallas kernel -----------------------------
def _inception_d_kernel(x_ref,
                        w10_ref, b10_ref, w20_ref, b20_ref,
                        w11_ref, b11_ref, w21_ref, b21_ref,
                        w22_ref, b22_ref, w23_ref, b23_ref,
                        o_ref,
                        c1_ref, padw_ref, padh_ref, c22_ref):
    _, h, w, cin = x_ref.shape
    h2 = (h - 3) // 2 + 1
    w2 = (w - 3) // 2 + 1
    rows = h * w
    rows2 = h2 * w2
    c1 = w10_ref.shape[1]              # branch-1 1x1 out channels
    c2 = w20_ref.shape[1]              # branch-2 1x1 out channels
    c11 = w11_ref.shape[1]             # branch-1 3x3 out channels
    c21 = w21_ref.shape[1]             # 1x7 out channels
    c22 = w22_ref.shape[1]             # 7x1 out channels
    c23 = w23_ref.shape[1]             # branch-2 3x3 out channels

    # --- zero only the pad-border strips (interiors are fully overwritten below;
    #     done every step so the kernel is safe when the batch grid is split
    #     across TensorCores and each core never sees program_id 0). ---
    padw_ref[:, 0:_WPAD, :] = jnp.zeros((h, _WPAD, c2), padw_ref.dtype)
    padw_ref[:, _WPAD + w:2 * _WPAD + w, :] = jnp.zeros((h, _WPAD, c2), padw_ref.dtype)
    padh_ref[0:3, :, :] = jnp.zeros((3, w, c21), padh_ref.dtype)
    padh_ref[3 + h:6 + h, :, :] = jnp.zeros((3, w, c21), padh_ref.dtype)

    # ---- the two leading 1x1 convs (kept separate: no zero-extended weights) ----
    xb = x_ref[...].reshape(rows, cin).astype(jnp.bfloat16)
    y1 = jnp.maximum(
        jnp.dot(xb, w10_ref[...], preferred_element_type=jnp.float32) + b10_ref[...],
        0.0)                                                        # (rows, c1)
    y2 = jnp.maximum(
        jnp.dot(xb, w20_ref[...], preferred_element_type=jnp.float32) + b20_ref[...],
        0.0)                                                        # (rows, c2)
    c1_ref[...] = y1.reshape(h, w, c1)
    padw_ref[:, _WPAD:_WPAD + w, :] = y2.reshape(h, w, c2)

    # ---- branch 1: 3x3 stride-2 conv — strided patch reads + single im2col matmul ----
    taps = [c1_ref[pl.ds(di, h2, stride=2), pl.ds(dj, w2, stride=2), :]
            for di in range(3) for dj in range(3)]
    im = jnp.concatenate(taps, axis=-1).reshape(rows2, 9 * c1).astype(jnp.bfloat16)
    x1 = jnp.maximum(
        jnp.dot(im, w11_ref[...], preferred_element_type=jnp.float32) + b11_ref[...],
        0.0)                                                        # (rows2, c11)

    # ---- branch 2: 1x7 conv, padding (0, 3) — single im2col matmul ----
    taps = [padw_ref[:, _WPAD - 3 + j:_WPAD - 3 + j + w, :] for j in range(7)]
    im = jnp.concatenate(taps, axis=-1).reshape(rows, 7 * c2).astype(jnp.bfloat16)
    z = jnp.maximum(
        jnp.dot(im, w21_ref[...], preferred_element_type=jnp.float32) + b21_ref[...],
        0.0)                                                        # (rows, c21)
    padh_ref[3:3 + h, :, :] = z.reshape(h, w, c21)

    # ---- branch 2: 7x1 conv, padding (3, 0) — single im2col matmul ----
    taps = [padh_ref[i:i + h, :, :] for i in range(7)]
    im = jnp.concatenate(taps, axis=-1).reshape(rows, 7 * c21).astype(jnp.bfloat16)
    z = jnp.maximum(
        jnp.dot(im, w22_ref[...], preferred_element_type=jnp.float32) + b22_ref[...],
        0.0)                                                        # (rows, c22)
    c22_ref[...] = z.reshape(h, w, c22)

    # ---- branch 2: 3x3 stride-2 conv — strided patch reads + single im2col matmul ----
    taps = [c22_ref[pl.ds(di, h2, stride=2), pl.ds(dj, w2, stride=2), :]
            for di in range(3) for dj in range(3)]
    im = jnp.concatenate(taps, axis=-1).reshape(rows2, 9 * c22).astype(jnp.bfloat16)
    x2 = jnp.maximum(
        jnp.dot(im, w23_ref[...], preferred_element_type=jnp.float32) + b23_ref[...],
        0.0)                                                        # (rows2, c23)

    # ---- branch 3: 3x3 / stride-2 max pool, directly at output positions (no MXU) ----
    m = x_ref[:, pl.ds(0, h2, stride=2), pl.ds(0, w2, stride=2), :]
    for di in range(3):
        for dj in range(3):
            if di == 0 and dj == 0:
                continue
            m = jnp.maximum(
                m, x_ref[:, pl.ds(di, h2, stride=2), pl.ds(dj, w2, stride=2), :])
    x3 = m.reshape(rows2, cin)                                      # (rows2, cin)

    # ---- in-kernel channel concat: one contiguous channel slab ----
    o_ref[:, :, 0:c11] = x1[None]
    o_ref[:, :, c11:c11 + c23] = x2[None]
    o_ref[:, :, c11 + c23:c11 + c23 + cin] = x3[None]


# ------------------------------ module forward ------------------------------
def inception_block_d(x_nchw, kp):
    x = jnp.transpose(x_nchw, (0, 2, 3, 1)).astype(jnp.float32)    # NCHW -> NHWC
    n, h, w, cin = x.shape
    h2, w2 = (h - 3) // 2 + 1, (w - 3) // 2 + 1

    c1 = kp["w10"].shape[1]
    c2 = kp["w20"].shape[1]
    c11 = kp["w11"].shape[1]
    c21 = kp["w21"].shape[1]
    c22 = kp["w22"].shape[1]
    c23 = kp["w23"].shape[1]
    ctot = c11 + c23 + cin

    args = (x,
            kp["w10"], kp["b10"], kp["w20"], kp["b20"],
            kp["w11"], kp["b11"], kp["w21"], kp["b21"],
            kp["w22"], kp["b22"], kp["w23"], kp["b23"])
    in_specs = [pl.BlockSpec((1, h, w, cin), lambda i: (i, 0, 0, 0))]
    in_specs += [pl.BlockSpec(a.shape, lambda i: (0, 0)) for a in args[1:]]

    out = pl.pallas_call(
        _inception_d_kernel,
        out_shape=jax.ShapeDtypeStruct((n, h2 * w2, ctot), jnp.float32),
        grid=(n,),
        in_specs=in_specs,
        out_specs=pl.BlockSpec((1, h2 * w2, ctot), lambda i: (i, 0, 0)),
        scratch_shapes=[
            pltpu.VMEM((h, w, c1), jnp.float32),                # branch-1 1x1 output
            pltpu.VMEM((h, w + 2 * _WPAD, c2), jnp.float32),    # W-padded canvas (1x7)
            pltpu.VMEM((h + 6, w, c21), jnp.float32),           # H-padded canvas (7x1)
            pltpu.VMEM((h, w, c22), jnp.float32),               # 7x1 output stash
        ],
        compiler_params=pltpu.CompilerParams(
            dimension_semantics=("parallel",),
            vmem_limit_bytes=32 * 1024 * 1024),
    )(*args)

    out = out.reshape(n, h2, w2, ctot)                             # pure metadata
    return jnp.transpose(out, (0, 3, 1, 2))                        # NHWC -> NCHW


# ------------------------------ parameter prep ------------------------------
def _init_conv_bn(key, cin, cout, kh, kw):
    ks = jax.random.split(key, 6)
    fan_in = cin * kh * kw
    w = jax.random.normal(ks[0], (kh, kw, cin, cout), jnp.float32) / jnp.sqrt(fan_in)
    b = 0.1 * jax.random.normal(ks[1], (cout,), jnp.float32)
    gamma = 1.0 + 0.1 * jax.random.normal(ks[2], (cout,), jnp.float32)
    beta = 0.1 * jax.random.normal(ks[3], (cout,), jnp.float32)
    mean = 0.1 * jax.random.normal(ks[4], (cout,), jnp.float32)
    var = 0.5 + jax.nn.softplus(jax.random.normal(ks[5], (cout,), jnp.float32))
    return dict(w=w, b=b, gamma=gamma, beta=beta, mean=mean, var=var)


def _fold_bn(raw):
    """Fold eval-mode BN into conv weights + bias: y = conv(x; w*s) + bias."""
    s = raw["gamma"] / jnp.sqrt(raw["var"] + BN_EPS)
    w = raw["w"] * s                                   # scale per output channel
    bias = (raw["b"] - raw["mean"]) * s + raw["beta"]
    return w, bias


def _prepare_kernel_params(raws):
    """Fold BN, flatten each conv weight to its im2col matrix (tap-major, then
    input channel — matching the in-kernel concat order) and pre-cast to bf16."""
    w10, b10 = _fold_bn(raws["b1_0"])                  # (1,1,cin,c1)
    w20, b20 = _fold_bn(raws["b2_0"])                  # (1,1,cin,c2)
    w11, b11 = _fold_bn(raws["b1_1"])                  # (3,3,c1,c11)
    w21, b21 = _fold_bn(raws["b2_1"])                  # (1,7,c2,c21)
    w22, b22 = _fold_bn(raws["b2_2"])                  # (7,1,c21,c22)
    w23, b23 = _fold_bn(raws["b2_3"])                  # (3,3,c22,c23)

    def mat(wgt):
        return wgt.reshape(-1, wgt.shape[-1]).astype(jnp.bfloat16)

    return dict(
        w10=mat(w10), b10=b10.reshape(1, -1),
        w20=mat(w20), b20=b20.reshape(1, -1),
        w11=mat(w11), b11=b11.reshape(1, -1),
        w21=mat(w21), b21=b21.reshape(1, -1),
        w22=mat(w22), b22=b22.reshape(1, -1),
        w23=mat(w23), b23=b23.reshape(1, -1),
    )


# ------------------------------ pure-JAX reference ------------------------------
def _ref_conv_bn_relu(x_nchw, raw, stride, padding):
    w = jnp.transpose(raw["w"], (3, 2, 0, 1))          # HWIO -> OIHW
    y = lax.conv_general_dilated(x_nchw, w, (stride, stride), padding,
                                 dimension_numbers=("NCHW", "OIHW", "NCHW"))
    y = y + raw["b"][None, :, None, None]
    y = (y - raw["mean"][None, :, None, None]) / \
        jnp.sqrt(raw["var"] + BN_EPS)[None, :, None, None]
    y = y * raw["gamma"][None, :, None, None] + raw["beta"][None, :, None, None]
    return jnp.maximum(y, 0.0)


def inception_block_d_ref(x, raws):
    x1 = _ref_conv_bn_relu(x, raws["b1_0"], 1, [(0, 0), (0, 0)])
    x1 = _ref_conv_bn_relu(x1, raws["b1_1"], 2, [(0, 0), (0, 0)])
    x2 = _ref_conv_bn_relu(x, raws["b2_0"], 1, [(0, 0), (0, 0)])
    x2 = _ref_conv_bn_relu(x2, raws["b2_1"], 1, [(0, 0), (3, 3)])
    x2 = _ref_conv_bn_relu(x2, raws["b2_2"], 1, [(3, 3), (0, 0)])
    x2 = _ref_conv_bn_relu(x2, raws["b2_3"], 2, [(0, 0), (0, 0)])
    x3 = lax.reduce_window(x, -jnp.inf, lax.max, (1, 1, 3, 3), (1, 1, 2, 2), "VALID")
    return jnp.concatenate([x1, x2, x3], axis=1)


# ------------------------------ main ------------------------------
if __name__ == "__main__":
    key = jax.random.PRNGKey(0)
    k_x, k_p = jax.random.split(key)

    in_channels = 4
    out_1 = (8, 16)
    out_2 = (8, 12, 12, 16)
    N, H, W = 2, 16, 16

    x = jax.random.normal(k_x, (N, in_channels, H, W), jnp.float32)

    specs = {
        "b1_0": (in_channels, out_1[0], 1, 1),
        "b1_1": (out_1[0], out_1[1], 3, 3),
        "b2_0": (in_channels, out_2[0], 1, 1),
        "b2_1": (out_2[0], out_2[1], 1, 7),
        "b2_2": (out_2[1], out_2[2], 7, 1),
        "b2_3": (out_2[2], out_2[3], 3, 3),
    }
    raws = {}
    for k, (name, (ci, co, kh, kw)) in zip(jax.random.split(k_p, len(specs)),
                                           specs.items()):
        raws[name] = _init_conv_bn(k, ci, co, kh, kw)
    kparams = _prepare_kernel_params(raws)

    out = jax.jit(inception_block_d)(x, kparams)
    out = jax.block_until_ready(out)

    ref = inception_block_d_ref(x, raws)
    expected_shape = (N, out_1[1] + out_2[3] + in_channels,
                      (H - 3) // 2 + 1, (W - 3) // 2 + 1)
    assert out.shape == expected_shape, (out.shape, expected_shape)
    assert ref.shape == expected_shape, (ref.shape, expected_shape)
    max_err = float(jnp.max(jnp.abs(out - ref)))
    # bf16 MXU operands (f32 accumulation): tolerance loosened vs. the f32 kernel.
    assert jnp.allclose(out, ref, rtol=5e-2, atol=5e-2), f"max_err={max_err}"

    print("KERNEL_OK")
</pallas_src>

<mosaic_0001>
module attributes {stable_mosaic.version = 11 : i64} {
  func.func @_inception_d_kernel(%arg0: i32, %arg1: memref<1x16x16x4xf32, #tpu.memory_space<vmem>>, %arg2: memref<4x8xbf16, #tpu.memory_space<vmem>>, %arg3: memref<1x8xf32, #tpu.memory_space<vmem>>, %arg4: memref<4x8xbf16, #tpu.memory_space<vmem>>, %arg5: memref<1x8xf32, #tpu.memory_space<vmem>>, %arg6: memref<72x16xbf16, #tpu.memory_space<vmem>>, %arg7: memref<1x16xf32, #tpu.memory_space<vmem>>, %arg8: memref<56x12xbf16, #tpu.memory_space<vmem>>, %arg9: memref<1x12xf32, #tpu.memory_space<vmem>>, %arg10: memref<84x12xbf16, #tpu.memory_space<vmem>>, %arg11: memref<1x12xf32, #tpu.memory_space<vmem>>, %arg12: memref<108x16xbf16, #tpu.memory_space<vmem>>, %arg13: memref<1x16xf32, #tpu.memory_space<vmem>>, %arg14: memref<1x49x36xf32, #tpu.memory_space<vmem>>, %arg15: memref<16x16x8xf32, #tpu.memory_space<vmem>>, %arg16: memref<16x32x8xf32, #tpu.memory_space<vmem>>, %arg17: memref<22x16x12xf32, #tpu.memory_space<vmem>>, %arg18: memref<16x16x12xf32, #tpu.memory_space<vmem>>) attributes {dimension_semantics = [#tpu.dimension_semantics<parallel>], iteration_bounds = array<i64: 2>, scalar_prefetch = 0 : i64, scratch_operands = 4 : i64, tpu.core_type = #tpu.core_type<tc>, window_params = [{transform_indices = @transform_0, window_bounds = array<i64: 1, 16, 16, 4>}, {pipeline_mode = #tpu.pipeline_mode<synchronous>, transform_indices = @transform_1, window_bounds = array<i64: 4, 8>}, {pipeline_mode = #tpu.pipeline_mode<synchronous>, transform_indices = @transform_2, window_bounds = array<i64: 1, 8>}, {pipeline_mode = #tpu.pipeline_mode<synchronous>, transform_indices = @transform_3, window_bounds = array<i64: 4, 8>}, {pipeline_mode = #tpu.pipeline_mode<synchronous>, transform_indices = @transform_4, window_bounds = array<i64: 1, 8>}, {pipeline_mode = #tpu.pipeline_mode<synchronous>, transform_indices = @transform_5, window_bounds = array<i64: 72, 16>}, {pipeline_mode = #tpu.pipeline_mode<synchronous>, transform_indices = @transform_6, window_bounds = array<i64: 1, 16>}, {pipeline_mode = #tpu.pipeline_mode<synchronous>, transform_indices = @transform_7, window_bounds = array<i64: 56, 12>}, {pipeline_mode = #tpu.pipeline_mode<synchronous>, transform_indices = @transform_8, window_bounds = array<i64: 1, 12>}, {pipeline_mode = #tpu.pipeline_mode<synchronous>, transform_indices = @transform_9, window_bounds = array<i64: 84, 12>}, {pipeline_mode = #tpu.pipeline_mode<synchronous>, transform_indices = @transform_10, window_bounds = array<i64: 1, 12>}, {pipeline_mode = #tpu.pipeline_mode<synchronous>, transform_indices = @transform_11, window_bounds = array<i64: 108, 16>}, {pipeline_mode = #tpu.pipeline_mode<synchronous>, transform_indices = @transform_12, window_bounds = array<i64: 1, 16>}, {transform_indices = @transform_13, window_bounds = array<i64: 1, 49, 36>}]} {
    %cst = arith.constant 0.000000e+00 : f32
    %0 = vector.broadcast %cst : f32 to vector<16x8x8xf32>
    %c0 = arith.constant 0 : index
    %c0_0 = arith.constant 0 : index
    %c0_1 = arith.constant 0 : index
    %1 = vector.load %arg16[%c0, %c0_0, %c0_1] : memref<16x32x8xf32, #tpu.memory_space<vmem>>, vector<16x8x8xf32>
    tpu.vector_store %arg16[%c0, %c0_0, %c0_1], %0 {strides = array<i32>} : memref<16x32x8xf32, #tpu.memory_space<vmem>>, vector<16x8x8xf32>,
    %cst_2 = arith.constant 0.000000e+00 : f32
    %2 = vector.broadcast %cst_2 : f32 to vector<16x8x8xf32>
    %c0_3 = arith.constant 0 : index
    %c24 = arith.constant 24 : index
    %c0_4 = arith.constant 0 : index
    %3 = vector.load %arg16[%c0_3, %c24, %c0_4] : memref<16x32x8xf32, #tpu.memory_space<vmem>>, vector<16x8x8xf32>
    tpu.vector_store %arg16[%c0_3, %c24, %c0_4], %2 {strides = array<i32>} : memref<16x32x8xf32, #tpu.memory_space<vmem>>, vector<16x8x8xf32>,
    %cst_5 = arith.constant 0.000000e+00 : f32
    %4 = vector.broadcast %cst_5 : f32 to vector<3x16x12xf32>
    %c0_6 = arith.constant 0 : index
    %c0_7 = arith.constant 0 : index
    %c0_8 = arith.constant 0 : index
    %5 = vector.load %arg17[%c0_6, %c0_7, %c0_8] : memref<22x16x12xf32, #tpu.memory_space<vmem>>, vector<3x16x12xf32>
    tpu.vector_store %arg17[%c0_6, %c0_7, %c0_8], %4 {strides = array<i32>} : memref<22x16x12xf32, #tpu.memory_space<vmem>>, vector<3x16x12xf32>,
    %cst_9 = arith.constant 0.000000e+00 : f32
    %6 = vector.broadcast %cst_9 : f32 to vector<3x16x12xf32>
    %c19 = arith.constant 19 : index
    %c0_10 = arith.constant 0 : index
    %c0_11 = arith.constant 0 : index
    %7 = vector.load %arg17[%c19, %c0_10, %c0_11] : memref<22x16x12xf32, #tpu.memory_space<vmem>>, vector<3x16x12xf32>
    tpu.vector_store %arg17[%c19, %c0_10, %c0_11], %6 {strides = array<i32>} : memref<22x16x12xf32, #tpu.memory_space<vmem>>, vector<3x16x12xf32>,
    %c0_12 = arith.constant 0 : index
    %c0_13 = arith.constant 0 : index
    %c0_14 = arith.constant 0 : index
    %c0_15 = arith.constant 0 : index
    %8 = vector.load %arg1[%c0_12, %c0_13, %c0_14, %c0_15] : memref<1x16x16x4xf32, #tpu.memory_space<vmem>>, vector<1x16x16x4xf32>
    %9 = vector.shape_cast %8 : vector<1x16x16x4xf32> to vector<256x4xf32>
    %10 = arith.truncf %9 : vector<256x4xf32> to vector<256x4xbf16>
    %c0_16 = arith.constant 0 : index
    %c0_17 = arith.constant 0 : index
    %11 = vector.load %arg2[%c0_16, %c0_17] : memref<4x8xbf16, #tpu.memory_space<vmem>>, vector<4x8xbf16>
    %cst_18 = arith.constant dense<0.000000e+00> : vector<256x8xf32>
    %12 = tpu.matmul %10, %11, %cst_18 {dimension_numbers = #tpu.dot_dimension_numbers<[1], [0], [0], [1], [0, 0, 1, 1], [], []>} : vector<256x4xbf16>, vector<4x8xbf16>, vector<256x8xf32> -> vector<256x8xf32>
    %c0_19 = arith.constant 0 : index
    %c0_20 = arith.constant 0 : index
    %13 = vector.load %arg3[%c0_19, %c0_20] : memref<1x8xf32, #tpu.memory_space<vmem>>, vector<1x8xf32>
    %14 = vector.broadcast %13 : vector<1x8xf32> to vector<256x8xf32>
    %15 = arith.addf %12, %14 : vector<256x8xf32>
    %cst_21 = arith.constant 0.000000e+00 : f32
    %16 = vector.broadcast %cst_21 : f32 to vector<256x8xf32>
    %17 = arith.maximumf %15, %16 : vector<256x8xf32>
    %c0_22 = arith.constant 0 : index
    %c0_23 = arith.constant 0 : index
    %18 = vector.load %arg4[%c0_22, %c0_23] : memref<4x8xbf16, #tpu.memory_space<vmem>>, vector<4x8xbf16>
    %cst_24 = arith.constant dense<0.000000e+00> : vector<256x8xf32>
    %19 = tpu.matmul %10, %18, %cst_24 {dimension_numbers = #tpu.dot_dimension_numbers<[1], [0], [0], [1], [0, 0, 1, 1], [], []>} : vector<256x4xbf16>, vector<4x8xbf16>, vector<256x8xf32> -> vector<256x8xf32>
    %c0_25 = arith.constant 0 : index
    %c0_26 = arith.constant 0 : index
    %20 = vector.load %arg5[%c0_25, %c0_26] : memref<1x8xf32, #tpu.memory_space<vmem>>, vector<1x8xf32>
    %21 = vector.broadcast %20 : vector<1x8xf32> to vector<256x8xf32>
    %22 = arith.addf %19, %21 : vector<256x8xf32>
    %cst_27 = arith.constant 0.000000e+00 : f32
    %23 = vector.broadcast %cst_27 : f32 to vector<256x8xf32>
    %24 = arith.maximumf %22, %23 : vector<256x8xf32>
    %25 = vector.shape_cast %17 : vector<256x8xf32> to vector<16x16x8xf32>
    %c0_28 = arith.constant 0 : index
    %c0_29 = arith.constant 0 : index
    %c0_30 = arith.constant 0 : index
    %26 = vector.load %arg15[%c0_28, %c0_29, %c0_30] : memref<16x16x8xf32, #tpu.memory_space<vmem>>, vector<16x16x8xf32>
    tpu.vector_store %arg15[%c0_28, %c0_29, %c0_30], %25 {strides = array<i32>} : memref<16x16x8xf32, #tpu.memory_space<vmem>>, vector<16x16x8xf32>,
    %27 = vector.shape_cast %24 : vector<256x8xf32> to vector<16x16x8xf32>
    %c0_31 = arith.constant 0 : index
    %c8 = arith.constant 8 : index
    %c0_32 = arith.constant 0 : index
    %28 = vector.load %arg16[%c0_31, %c8, %c0_32] : memref<16x32x8xf32, #tpu.memory_space<vmem>>, vector<16x16x8xf32>
    tpu.vector_store %arg16[%c0_31, %c8, %c0_32], %27 {strides = array<i32>} : memref<16x32x8xf32, #tpu.memory_space<vmem>>, vector<16x16x8xf32>,
    %c0_33 = arith.constant 0 : index
    %c0_34 = arith.constant 0 : index
    %c0_35 = arith.constant 0 : index
    %29 = tpu.strided_load %arg15[%c0_33, %c0_34, %c0_35] {strides = array<i32: 2, 2, 1>} : memref<16x16x8xf32, #tpu.memory_space<vmem>>, vector<7x7x8xf32>
    %c0_36 = arith.constant 0 : index
    %c1 = arith.constant 1 : index
    %c0_37 = arith.constant 0 : index
    %30 = tpu.strided_load %arg15[%c0_36, %c1, %c0_37] {strides = array<i32: 2, 2, 1>} : memref<16x16x8xf32, #tpu.memory_space<vmem>>, vector<7x7x8xf32>
    %c0_38 = arith.constant 0 : index
    %c2 = arith.constant 2 : index
    %c0_39 = arith.constant 0 : index
    %31 = tpu.strided_load %arg15[%c0_38, %c2, %c0_39] {strides = array<i32: 2, 2, 1>} : memref<16x16x8xf32, #tpu.memory_space<vmem>>, vector<7x7x8xf32>
    %c1_40 = arith.constant 1 : index
    %c0_41 = arith.constant 0 : index
    %c0_42 = arith.constant 0 : index
    %32 = tpu.strided_load %arg15[%c1_40, %c0_41, %c0_42] {strides = array<i32: 2, 2, 1>} : memref<16x16x8xf32, #tpu.memory_space<vmem>>, vector<7x7x8xf32>
    %c1_43 = arith.constant 1 : index
    %c1_44 = arith.constant 1 : index
    %c0_45 = arith.constant 0 : index
    %33 = tpu.strided_load %arg15[%c1_43, %c1_44, %c0_45] {strides = array<i32: 2, 2, 1>} : memref<16x16x8xf32, #tpu.memory_space<vmem>>, vector<7x7x8xf32>
    %c1_46 = arith.constant 1 : index
    %c2_47 = arith.constant 2 : index
    %c0_48 = arith.constant 0 : index
    %34 = tpu.strided_load %arg15[%c1_46, %c2_47, %c0_48] {strides = array<i32: 2, 2, 1>} : memref<16x16x8xf32, #tpu.memory_space<vmem>>, vector<7x7x8xf32>
    %c2_49 = arith.constant 2 : index
    %c0_50 = arith.constant 0 : index
    %c0_51 = arith.constant 0 : index
    %35 = tpu.strided_load %arg15[%c2_49, %c0_50, %c0_51] {strides = array<i32: 2, 2, 1>} : memref<16x16x8xf32, #tpu.memory_space<vmem>>, vector<7x7x8xf32>
    %c2_52 = arith.constant 2 : index
    %c1_53 = arith.constant 1 : index
    %c0_54 = arith.constant 0 : index
    %36 = tpu.strided_load %arg15[%c2_52, %c1_53, %c0_54] {strides = array<i32: 2, 2, 1>} : memref<16x16x8xf32, #tpu.memory_space<vmem>>, vector<7x7x8xf32>
    %c2_55 = arith.constant 2 : index
    %c2_56 = arith.constant 2 : index
    %c0_57 = arith.constant 0 : index
    %37 = tpu.strided_load %arg15[%c2_55, %c2_56, %c0_57] {strides = array<i32: 2, 2, 1>} : memref<16x16x8xf32, #tpu.memory_space<vmem>>, vector<7x7x8xf32>
    %38 = tpu.concatenate %29, %30, %31, %32, %33, %34, %35, %36, %37 in 2 : vector<7x7x8xf32>, vector<7x7x8xf32>, vector<7x7x8xf32>, vector<7x7x8xf32>, vector<7x7x8xf32>, vector<7x7x8xf32>, vector<7x7x8xf32>, vector<7x7x8xf32>, vector<7x7x8xf32> -> vector<7x7x72xf32>
    %39 = vector.shape_cast %38 : vector<7x7x72xf32> to vector<49x72xf32>
    %40 = arith.truncf %39 : vector<49x72xf32> to vector<49x72xbf16>
    %c0_58 = arith.constant 0 : index
    %c0_59 = arith.constant 0 : index
    %41 = vector.load %arg6[%c0_58, %c0_59] : memref<72x16xbf16, #tpu.memory_space<vmem>>, vector<72x16xbf16>
    %cst_60 = arith.constant dense<0.000000e+00> : vector<49x16xf32>
    %42 = tpu.matmul %40, %41, %cst_60 {dimension_numbers = #tpu.dot_dimension_numbers<[1], [0], [0], [1], [0, 0, 1, 1], [], []>} : vector<49x72xbf16>, vector<72x16xbf16>, vector<49x16xf32> -> vector<49x16xf32>
    %c0_61 = arith.constant 0 : index
    %c0_62 = arith.constant 0 : index
    %43 = vector.load %arg7[%c0_61, %c0_62] : memref<1x16xf32, #tpu.memory_space<vmem>>, vector<1x16xf32>
    %44 = vector.broadcast %43 : vector<1x16xf32> to vector<49x16xf32>
    %45 = arith.addf %42, %44 : vector<49x16xf32>
    %cst_63 = arith.constant 0.000000e+00 : f32
    %46 = vector.broadcast %cst_63 : f32 to vector<49x16xf32>
    %47 = arith.maximumf %45, %46 : vector<49x16xf32>
    %c0_64 = arith.constant 0 : index
    %c5 = arith.constant 5 : index
    %c0_65 = arith.constant 0 : index
    %48 = vector.load %arg16[%c0_64, %c5, %c0_65] : memref<16x32x8xf32, #tpu.memory_space<vmem>>, vector<16x16x8xf32>
    %c0_66 = arith.constant 0 : index
    %c6 = arith.constant 6 : index
    %c0_67 = arith.constant 0 : index
    %49 = vector.load %arg16[%c0_66, %c6, %c0_67] : memref<16x32x8xf32, #tpu.memory_space<vmem>>, vector<16x16x8xf32>
    %c0_68 = arith.constant 0 : index
    %c7 = arith.constant 7 : index
    %c0_69 = arith.constant 0 : index
    %50 = vector.load %arg16[%c0_68, %c7, %c0_69] : memref<16x32x8xf32, #tpu.memory_space<vmem>>, vector<16x16x8xf32>
    %c0_70 = arith.constant 0 : index
    %c8_71 = arith.constant 8 : index
    %c0_72 = arith.constant 0 : index
    %51 = vector.load %arg16[%c0_70, %c8_71, %c0_72] : memref<16x32x8xf32, #tpu.memory_space<vmem>>, vector<16x16x8xf32>
    %c0_73 = arith.constant 0 : index
    %c9 = arith.constant 9 : index
    %c0_74 = arith.constant 0 : index
    %52 = vector.load %arg16[%c0_73, %c9, %c0_74] : memref<16x32x8xf32, #tpu.memory_space<vmem>>, vector<16x16x8xf32>
    %c0_75 = arith.constant 0 : index
    %c10 = arith.constant 10 : index
    %c0_76 = arith.constant 0 : index
    %53 = vector.load %arg16[%c0_75, %c10, %c0_76] : memref<16x32x8xf32, #tpu.memory_space<vmem>>, vector<16x16x8xf32>
    %c0_77 = arith.constant 0 : index
    %c11 = arith.constant 11 : index
    %c0_78 = arith.constant 0 : index
    %54 = vector.load %arg16[%c0_77, %c11, %c0_78] : memref<16x32x8xf32, #tpu.memory_space<vmem>>, vector<16x16x8xf32>
    %55 = tpu.concatenate %48, %49, %50, %51, %52, %53, %54 in 2 : vector<16x16x8xf32>, vector<16x16x8xf32>, vector<16x16x8xf32>, vector<16x16x8xf32>, vector<16x16x8xf32>, vector<16x16x8xf32>, vector<16x16x8xf32> -> vector<16x16x56xf32>
    %56 = vector.shape_cast %55 : vector<16x16x56xf32> to vector<256x56xf32>
    %57 = arith.truncf %56 : vector<256x56xf32> to vector<256x56xbf16>
    %c0_79 = arith.constant 0 : index
    %c0_80 = arith.constant 0 : index
    %58 = vector.load %arg8[%c0_79, %c0_80] : memref<56x12xbf16, #tpu.memory_space<vmem>>, vector<56x12xbf16>
    %cst_81 = arith.constant dense<0.000000e+00> : vector<256x12xf32>
    %59 = tpu.matmul %57, %58, %cst_81 {dimension_numbers = #tpu.dot_dimension_numbers<[1], [0], [0], [1], [0, 0, 1, 1], [], []>} : vector<256x56xbf16>, vector<56x12xbf16>, vector<256x12xf32> -> vector<256x12xf32>
    %c0_82 = arith.constant 0 : index
    %c0_83 = arith.constant 0 : index
    %60 = vector.load %arg9[%c0_82, %c0_83] : memref<1x12xf32, #tpu.memory_space<vmem>>, vector<1x12xf32>
    %61 = vector.broadcast %60 : vector<1x12xf32> to vector<256x12xf32>
    %62 = arith.addf %59, %61 : vector<256x12xf32>
    %cst_84 = arith.constant 0.000000e+00 : f32
    %63 = vector.broadcast %cst_84 : f32 to vector<256x12xf32>
    %64 = arith.maximumf %62, %63 : vector<256x12xf32>
    %65 = vector.shape_cast %64 : vector<256x12xf32> to vector<16x16x12xf32>
    %c3 = arith.constant 3 : index
    %c0_85 = arith.constant 0 : index
    %c0_86 = arith.constant 0 : index
    %66 = vector.load %arg17[%c3, %c0_85, %c0_86] : memref<22x16x12xf32, #tpu.memory_space<vmem>>, vector<16x16x12xf32>
    tpu.vector_store %arg17[%c3, %c0_85, %c0_86], %65 {strides = array<i32>} : memref<22x16x12xf32, #tpu.memory_space<vmem>>, vector<16x16x12xf32>,
    %c0_87 = arith.constant 0 : index
    %c0_88 = arith.constant 0 : index
    %c0_89 = arith.constant 0 : index
    %67 = vector.load %arg17[%c0_87, %c0_88, %c0_89] : memref<22x16x12xf32, #tpu.memory_space<vmem>>, vector<16x16x12xf32>
    %c1_90 = arith.constant 1 : index
    %c0_91 = arith.constant 0 : index
    %c0_92 = arith.constant 0 : index
    %68 = vector.load %arg17[%c1_90, %c0_91, %c0_92] : memref<22x16x12xf32, #tpu.memory_space<vmem>>, vector<16x16x12xf32>
    %c2_93 = arith.constant 2 : index
    %c0_94 = arith.constant 0 : index
    %c0_95 = arith.constant 0 : index
    %69 = vector.load %arg17[%c2_93, %c0_94, %c0_95] : memref<22x16x12xf32, #tpu.memory_space<vmem>>, vector<16x16x12xf32>
    %c3_96 = arith.constant 3 : index
    %c0_97 = arith.constant 0 : index
    %c0_98 = arith.constant 0 : index
    %70 = vector.load %arg17[%c3_96, %c0_97, %c0_98] : memref<22x16x12xf32, #tpu.memory_space<vmem>>, vector<16x16x12xf32>
    %c4 = arith.constant 4 : index
    %c0_99 = arith.constant 0 : index
    %c0_100 = arith.constant 0 : index
    %71 = vector.load %arg17[%c4, %c0_99, %c0_100] : memref<22x16x12xf32, #tpu.memory_space<vmem>>, vector<16x16x12xf32>
    %c5_101 = arith.constant 5 : index
    %c0_102 = arith.constant 0 : index
    %c0_103 = arith.constant 0 : index
    %72 = vector.load %arg17[%c5_101, %c0_102, %c0_103] : memref<22x16x12xf32, #tpu.memory_space<vmem>>, vector<16x16x12xf32>
    %c6_104 = arith.constant 6 : index
    %c0_105 = arith.constant 0 : index
    %c0_106 = arith.constant 0 : index
    %73 = vector.load %arg17[%c6_104, %c0_105, %c0_106] : memref<22x16x12xf32, #tpu.memory_space<vmem>>, vector<16x16x12xf32>
    %74 = tpu.concatenate %67, %68, %69, %70, %71, %72, %73 in 2 : vector<16x16x12xf32>, vector<16x16x12xf32>, vector<16x16x12xf32>, vector<16x16x12xf32>, vector<16x16x12xf32>, vector<16x16x12xf32>, vector<16x16x12xf32> -> vector<16x16x84xf32>
    %75 = vector.shape_cast %74 : vector<16x16x84xf32> to vector<256x84xf32>
    %76 = arith.truncf %75 : vector<256x84xf32> to vector<256x84xbf16>
    %c0_107 = arith.constant 0 : index
    %c0_108 = arith.constant 0 : index
    %77 = vector.load %arg10[%c0_107, %c0_108] : memref<84x12xbf16, #tpu.memory_space<vmem>>, vector<84x12xbf16>
    %cst_109 = arith.constant dense<0.000000e+00> : vector<256x12xf32>
    %78 = tpu.matmul %76, %77, %cst_109 {dimension_numbers = #tpu.dot_dimension_numbers<[1], [0], [0], [1], [0, 0, 1, 1], [], []>} : vector<256x84xbf16>, vector<84x12xbf16>, vector<256x12xf32> -> vector<256x12xf32>
    %c0_110 = arith.constant 0 : index
    %c0_111 = arith.constant 0 : index
    %79 = vector.load %arg11[%c0_110, %c0_111] : memref<1x12xf32, #tpu.memory_space<vmem>>, vector<1x12xf32>
    %80 = vector.broadcast %79 : vector<1x12xf32> to vector<256x12xf32>
    %81 = arith.addf %78, %80 : vector<256x12xf32>
    %cst_112 = arith.constant 0.000000e+00 : f32
    %82 = vector.broadcast %cst_112 : f32 to vector<256x12xf32>
    %83 = arith.maximumf %81, %82 : vector<256x12xf32>
    %84 = vector.shape_cast %83 : vector<256x12xf32> to vector<16x16x12xf32>
    %c0_113 = arith.constant 0 : index
    %c0_114 = arith.constant 0 : index
    %c0_115 = arith.constant 0 : index
    %85 = vector.load %arg18[%c0_113, %c0_114, %c0_115] : memref<16x16x12xf32, #tpu.memory_space<vmem>>, vector<16x16x12xf32>
    tpu.vector_store %arg18[%c0_113, %c0_114, %c0_115], %84 {strides = array<i32>} : memref<16x16x12xf32, #tpu.memory_space<vmem>>, vector<16x16x12xf32>,
    %c0_116 = arith.constant 0 : index
    %c0_117 = arith.constant 0 : index
    %c0_118 = arith.constant 0 : index
    %86 = tpu.strided_load %arg18[%c0_116, %c0_117, %c0_118] {strides = array<i32: 2, 2, 1>} : memref<16x16x12xf32, #tpu.memory_space<vmem>>, vector<7x7x12xf32>
    %c0_119 = arith.constant 0 : index
    %c1_120 = arith.constant 1 : index
    %c0_121 = arith.constant 0 : index
    %87 = tpu.strided_load %arg18[%c0_119, %c1_120, %c0_121] {strides = array<i32: 2, 2, 1>} : memref<16x16x12xf32, #tpu.memory_space<vmem>>, vector<7x7x12xf32>
    %c0_122 = arith.constant 0 : index
    %c2_123 = arith.constant 2 : index
    %c0_124 = arith.constant 0 : index
    %88 = tpu.strided_load %arg18[%c0_122, %c2_123, %c0_124] {strides = array<i32: 2, 2, 1>} : memref<16x16x12xf32, #tpu.memory_space<vmem>>, vector<7x7x12xf32>
    %c1_125 = arith.constant 1 : index
    %c0_126 = arith.constant 0 : index
    %c0_127 = arith.constant 0 : index
    %89 = tpu.strided_load %arg18[%c1_125, %c0_126, %c0_127] {strides = array<i32: 2, 2, 1>} : memref<16x16x12xf32, #tpu.memory_space<vmem>>, vector<7x7x12xf32>
    %c1_128 = arith.constant 1 : index
    %c1_129 = arith.constant 1 : index
    %c0_130 = arith.constant 0 : index
    %90 = tpu.strided_load %arg18[%c1_128, %c1_129, %c0_130] {strides = array<i32: 2, 2, 1>} : memref<16x16x12xf32, #tpu.memory_space<vmem>>, vector<7x7x12xf32>
    %c1_131 = arith.constant 1 : index
    %c2_132 = arith.constant 2 : index
    %c0_133 = arith.constant 0 : index
    %91 = tpu.strided_load %arg18[%c1_131, %c2_132, %c0_133] {strides = array<i32: 2, 2, 1>} : memref<16x16x12xf32, #tpu.memory_space<vmem>>, vector<7x7x12xf32>
    %c2_134 = arith.constant 2 : index
    %c0_135 = arith.constant 0 : index
    %c0_136 = arith.constant 0 : index
    %92 = tpu.strided_load %arg18[%c2_134, %c0_135, %c0_136] {strides = array<i32: 2, 2, 1>} : memref<16x16x12xf32, #tpu.memory_space<vmem>>, vector<7x7x12xf32>
    %c2_137 = arith.constant 2 : index
    %c1_138 = arith.constant 1 : index
    %c0_139 = arith.constant 0 : index
    %93 = tpu.strided_load %arg18[%c2_137, %c1_138, %c0_139] {strides = array<i32: 2, 2, 1>} : memref<16x16x12xf32, #tpu.memory_space<vmem>>, vector<7x7x12xf32>
    %c2_140 = arith.constant 2 : index
    %c2_141 = arith.constant 2 : index
    %c0_142 = arith.constant 0 : index
    %94 = tpu.strided_load %arg18[%c2_140, %c2_141, %c0_142] {strides = array<i32: 2, 2, 1>} : memref<16x16x12xf32, #tpu.memory_space<vmem>>, vector<7x7x12xf32>
    %95 = tpu.concatenate %86, %87, %88, %89, %90, %91, %92, %93, %94 in 2 : vector<7x7x12xf32>, vector<7x7x12xf32>, vector<7x7x12xf32>, vector<7x7x12xf32>, vector<7x7x12xf32>, vector<7x7x12xf32>, vector<7x7x12xf32>, vector<7x7x12xf32>, vector<7x7x12xf32> -> vector<7x7x108xf32>
    %96 = vector.shape_cast %95 : vector<7x7x108xf32> to vector<49x108xf32>
    %97 = arith.truncf %96 : vector<49x108xf32> to vector<49x108xbf16>
    %c0_143 = arith.constant 0 : index
    %c0_144 = arith.constant 0 : index
    %98 = vector.load %arg12[%c0_143, %c0_144] : memref<108x16xbf16, #tpu.memory_space<vmem>>, vector<108x16xbf16>
    %cst_145 = arith.constant dense<0.000000e+00> : vector<49x16xf32>
    %99 = tpu.matmul %97, %98, %cst_145 {dimension_numbers = #tpu.dot_dimension_numbers<[1], [0], [0], [1], [0, 0, 1, 1], [], []>} : vector<49x108xbf16>, vector<108x16xbf16>, vector<49x16xf32> -> vector<49x16xf32>
    %c0_146 = arith.constant 0 : index
    %c0_147 = arith.constant 0 : index
    %100 = vector.load %arg13[%c0_146, %c0_147] : memref<1x16xf32, #tpu.memory_space<vmem>>, vector<1x16xf32>
    %101 = vector.broadcast %100 : vector<1x16xf32> to vector<49x16xf32>
    %102 = arith.addf %99, %101 : vector<49x16xf32>
    %cst_148 = arith.constant 0.000000e+00 : f32
    %103 = vector.broadcast %cst_148 : f32 to vector<49x16xf32>
    %104 = arith.maximumf %102, %103 : vector<49x16xf32>
    %c0_149 = arith.constant 0 : index
    %c0_150 = arith.constant 0 : index
    %c0_151 = arith.constant 0 : index
    %c0_152 = arith.constant 0 : index
    %105 = tpu.strided_load %arg1[%c0_149, %c0_150, %c0_151, %c0_152] {strides = array<i32: 1, 2, 2, 1>} : memref<1x16x16x4xf32, #tpu.memory_space<vmem>>, vector<1x7x7x4xf32>
    %c0_153 = arith.constant 0 : index
    %c0_154 = arith.constant 0 : index
    %c1_155 = arith.constant 1 : index
    %c0_156 = arith.constant 0 : index
    %106 = tpu.strided_load %arg1[%c0_153, %c0_154, %c1_155, %c0_156] {strides = array<i32: 1, 2, 2, 1>} : memref<1x16x16x4xf32, #tpu.memory_space<vmem>>, vector<1x7x7x4xf32>
    %107 = arith.maximumf %105, %106 : vector<1x7x7x4xf32>
    %c0_157 = arith.constant 0 : index
    %c0_158 = arith.constant 0 : index
    %c2_159 = arith.constant 2 : index
    %c0_160 = arith.constant 0 : index
    %108 = tpu.strided_load %arg1[%c0_157, %c0_158, %c2_159, %c0_160] {strides = array<i32: 1, 2, 2, 1>} : memref<1x16x16x4xf32, #tpu.memory_space<vmem>>, vector<1x7x7x4xf32>
    %109 = arith.maximumf %107, %108 : vector<1x7x7x4xf32>
    %c0_161 = arith.constant 0 : index
    %c1_162 = arith.constant 1 : index
    %c0_163 = arith.constant 0 : index
    %c0_164 = arith.constant 0 : index
    %110 = tpu.strided_load %arg1[%c0_161, %c1_162, %c0_163, %c0_164] {strides = array<i32: 1, 2, 2, 1>} : memref<1x16x16x4xf32, #tpu.memory_space<vmem>>, vector<1x7x7x4xf32>
    %111 = arith.maximumf %109, %110 : vector<1x7x7x4xf32>
    %c0_165 = arith.constant 0 : index
    %c1_166 = arith.constant 1 : index
    %c1_167 = arith.constant 1 : index
    %c0_168 = arith.constant 0 : index
    %112 = tpu.strided_load %arg1[%c0_165, %c1_166, %c1_167, %c0_168] {strides = array<i32: 1, 2, 2, 1>} : memref<1x16x16x4xf32, #tpu.memory_space<vmem>>, vector<1x7x7x4xf32>
    %113 = arith.maximumf %111, %112 : vector<1x7x7x4xf32>
    %c0_169 = arith.constant 0 : index
    %c1_170 = arith.constant 1 : index
    %c2_171 = arith.constant 2 : index
    %c0_172 = arith.constant 0 : index
    %114 = tpu.strided_load %arg1[%c0_169, %c1_170, %c2_171, %c0_172] {strides = array<i32: 1, 2, 2, 1>} : memref<1x16x16x4xf32, #tpu.memory_space<vmem>>, vector<1x7x7x4xf32>
    %115 = arith.maximumf %113, %114 : vector<1x7x7x4xf32>
    %c0_173 = arith.constant 0 : index
    %c2_174 = arith.constant 2 : index
    %c0_175 = arith.constant 0 : index
    %c0_176 = arith.constant 0 : index
    %116 = tpu.strided_load %arg1[%c0_173, %c2_174, %c0_175, %c0_176] {strides = array<i32: 1, 2, 2, 1>} : memref<1x16x16x4xf32, #tpu.memory_space<vmem>>, vector<1x7x7x4xf32>
    %117 = arith.maximumf %115, %116 : vector<1x7x7x4xf32>
    %c0_177 = arith.constant 0 : index
    %c2_178 = arith.constant 2 : index
    %c1_179 = arith.constant 1 : index
    %c0_180 = arith.constant 0 : index
    %118 = tpu.strided_load %arg1[%c0_177, %c2_178, %c1_179, %c0_180] {strides = array<i32: 1, 2, 2, 1>} : memref<1x16x16x4xf32, #tpu.memory_space<vmem>>, vector<1x7x7x4xf32>
    %119 = arith.maximumf %117, %118 : vector<1x7x7x4xf32>
    %c0_181 = arith.constant 0 : index
    %c2_182 = arith.constant 2 : index
    %c2_183 = arith.constant 2 : index
    %c0_184 = arith.constant 0 : index
    %120 = tpu.strided_load %arg1[%c0_181, %c2_182, %c2_183, %c0_184] {strides = array<i32: 1, 2, 2, 1>} : memref<1x16x16x4xf32, #tpu.memory_space<vmem>>, vector<1x7x7x4xf32>
    %121 = arith.maximumf %119, %120 : vector<1x7x7x4xf32>
    %122 = vector.shape_cast %121 : vector<1x7x7x4xf32> to vector<49x4xf32>
    %123 = vector.shape_cast %47 : vector<49x16xf32> to vector<1x49x16xf32>
    %c0_185 = arith.constant 0 : index
    %c0_186 = arith.constant 0 : index
    %c0_187 = arith.constant 0 : index
    %124 = vector.load %arg14[%c0_185, %c0_186, %c0_187] : memref<1x49x36xf32, #tpu.memory_space<vmem>>, vector<1x49x16xf32>
    tpu.vector_store %arg14[%c0_185, %c0_186, %c0_187], %123 {strides = array<i32>} : memref<1x49x36xf32, #tpu.memory_space<vmem>>, vector<1x49x16xf32>,
    %125 = vector.shape_cast %104 : vector<49x16xf32> to vector<1x49x16xf32>
    %c0_188 = arith.constant 0 : index
    %c0_189 = arith.constant 0 : index
    %c16 = arith.constant 16 : index
    %126 = vector.load %arg14[%c0_188, %c0_189, %c16] : memref<1x49x36xf32, #tpu.memory_space<vmem>>, vector<1x49x16xf32>
    tpu.vector_store %arg14[%c0_188, %c0_189, %c16], %125 {strides = array<i32>} : memref<1x49x36xf32, #tpu.memory_space<vmem>>, vector<1x49x16xf32>,
    %127 = vector.shape_cast %122 : vector<49x4xf32> to vector<1x49x4xf32>
    %c0_190 = arith.constant 0 : index
    %c0_191 = arith.constant 0 : index
    %c32 = arith.constant 32 : index
    %128 = vector.load %arg14[%c0_190, %c0_191, %c32] : memref<1x49x36xf32, #tpu.memory_space<vmem>>, vector<1x49x4xf32>
    tpu.vector_store %arg14[%c0_190, %c0_191, %c32], %127 {strides = array<i32>} : memref<1x49x36xf32, #tpu.memory_space<vmem>>, vector<1x49x4xf32>,
    return
  }
  func.func @transform_0(%arg0: i32) -> (i32, i32, i32, i32) {
    %c0_i32 = arith.constant 0 : i32
    %c0_i32_0 = arith.constant 0 : i32
    %c0_i32_1 = arith.constant 0 : i32
    %c0_i32_2 = arith.constant 0 : i32
    return %arg0, %c0_i32, %c0_i32_0, %c0_i32_1 : i32, i32, i32, i32
  }
  func.func @transform_1(%arg0: i32) -> (i32, i32) {
    %c0_i32 = arith.constant 0 : i32
    %c0_i32_0 = arith.constant 0 : i32
    %c0_i32_1 = arith.constant 0 : i32
    return %c0_i32, %c0_i32_0 : i32, i32
  }
  func.func @transform_2(%arg0: i32) -> (i32, i32) {
    %c0_i32 = arith.constant 0 : i32
    %c0_i32_0 = arith.constant 0 : i32
    %c0_i32_1 = arith.constant 0 : i32
    return %c0_i32, %c0_i32_0 : i32, i32
  }
  func.func @transform_3(%arg0: i32) -> (i32, i32) {
    %c0_i32 = arith.constant 0 : i32
    %c0_i32_0 = arith.constant 0 : i32
    %c0_i32_1 = arith.constant 0 : i32
    return %c0_i32, %c0_i32_0 : i32, i32
  }
  func.func @transform_4(%arg0: i32) -> (i32, i32) {
    %c0_i32 = arith.constant 0 : i32
    %c0_i32_0 = arith.constant 0 : i32
    %c0_i32_1 = arith.constant 0 : i32
    return %c0_i32, %c0_i32_0 : i32, i32
  }
  func.func @transform_5(%arg0: i32) -> (i32, i32) {
    %c0_i32 = arith.constant 0 : i32
    %c0_i32_0 = arith.constant 0 : i32
    %c0_i32_1 = arith.constant 0 : i32
    return %c0_i32, %c0_i32_0 : i32, i32
  }
  func.func @transform_6(%arg0: i32) -> (i32, i32) {
    %c0_i32 = arith.constant 0 : i32
    %c0_i32_0 = arith.constant 0 : i32
    %c0_i32_1 = arith.constant 0 : i32
    return %c0_i32, %c0_i32_0 : i32, i32
  }
  func.func @transform_7(%arg0: i32) -> (i32, i32) {
    %c0_i32 = arith.constant 0 : i32
    %c0_i32_0 = arith.constant 0 : i32
    %c0_i32_1 = arith.constant 0 : i32
    return %c0_i32, %c0_i32_0 : i32, i32
  }
  func.func @transform_8(%arg0: i32) -> (i32, i32) {
    %c0_i32 = arith.constant 0 : i32
    %c0_i32_0 = arith.constant 0 : i32
    %c0_i32_1 = arith.constant 0 : i32
    return %c0_i32, %c0_i32_0 : i32, i32
  }
  func.func @transform_9(%arg0: i32) -> (i32, i32) {
    %c0_i32 = arith.constant 0 : i32
    %c0_i32_0 = arith.constant 0 : i32
    %c0_i32_1 = arith.constant 0 : i32
    return %c0_i32, %c0_i32_0 : i32, i32
  }
  func.func @transform_10(%arg0: i32) -> (i32, i32) {
    %c0_i32 = arith.constant 0 : i32
    %c0_i32_0 = arith.constant 0 : i32
    %c0_i32_1 = arith.constant 0 : i32
    return %c0_i32, %c0_i32_0 : i32, i32
  }
  func.func @transform_11(%arg0: i32) -> (i32, i32) {
    %c0_i32 = arith.constant 0 : i32
    %c0_i32_0 = arith.constant 0 : i32
    %c0_i32_1 = arith.constant 0 : i32
    return %c0_i32, %c0_i32_0 : i32, i32
  }
  func.func @transform_12(%arg0: i32) -> (i32, i32) {
    %c0_i32 = arith.constant 0 : i32
    %c0_i32_0 = arith.constant 0 : i32
    %c0_i32_1 = arith.constant 0 : i32
    return %c0_i32, %c0_i32_0 : i32, i32
  }
  func.func @transform_13(%arg0: i32) -> (i32, i32, i32) {
    %c0_i32 = arith.constant 0 : i32
    %c0_i32_0 = arith.constant 0 : i32
    %c0_i32_1 = arith.constant 0 : i32
    return %arg0, %c0_i32, %c0_i32_0 : i32, i32, i32
  }
}

</mosaic_0001>

<llo_original>
// kernel: inception_block_d.1
$region0: #{inception_block_d.1}
  #allocation0 [shape = 'u32[]', space=smem, size = 0x4, offset = 0x4, fixed_abs, tag = 'smem constant byte address 0x4 - core index']
  #allocation1 [shape = 'u32[144,128]{1,0:T(1,128)}', space=vmem, size = 0x12000, scoped, tag = 'internal scratch']
  #allocation2 [shape = 'f32[16,16,8]{2,1,0:T(8,128)}', space=vmem, size = 0x20000, scoped, tag = 'scratch operand']
  #allocation3 [shape = 'f32[16,32,8]{2,1,0:T(8,128)}', space=vmem, size = 0x40000, scoped, tag = 'scratch operand']
  #allocation4 [shape = 'f32[22,16,12]{2,1,0:T(8,128)}', space=vmem, size = 0x2c000, scoped, tag = 'scratch operand']
  #allocation5 [shape = 'f32[16,16,12]{2,1,0:T(8,128)}', space=vmem, size = 0x20000, scoped, tag = 'scratch operand']
  %s0 = inlined_call_operand.vmem [shape: f32[2,16,16,4], index: 0, kind: input, shape index: {}]
  %s1 = inlined_call_operand.vmem [shape: bf16[4,8], index: 1, kind: input, shape index: {}]
  %s2 = inlined_call_operand.vmem [shape: f32[1,8], index: 2, kind: input, shape index: {}]
  %s3 = inlined_call_operand.vmem [shape: bf16[4,8], index: 3, kind: input, shape index: {}]
  %s4 = inlined_call_operand.vmem [shape: f32[1,8], index: 4, kind: input, shape index: {}]
  %s5 = inlined_call_operand.vmem [shape: bf16[72,16], index: 5, kind: input, shape index: {}]
  %s6 = inlined_call_operand.vmem [shape: f32[1,16], index: 6, kind: input, shape index: {}]
  %s7 = inlined_call_operand.vmem [shape: bf16[56,12], index: 7, kind: input, shape index: {}]
  %s8 = inlined_call_operand.vmem [shape: f32[1,12], index: 8, kind: input, shape index: {}]
  %s9 = inlined_call_operand.vmem [shape: bf16[84,12], index: 9, kind: input, shape index: {}]
  %s10 = inlined_call_operand.vmem [shape: f32[1,12], index: 10, kind: input, shape index: {}]
  %s11 = inlined_call_operand.vmem [shape: bf16[108,16], index: 11, kind: input, shape index: {}]
  %s12 = inlined_call_operand.vmem [shape: f32[1,16], index: 12, kind: input, shape index: {}]
  %s13 = inlined_call_operand.vmem [shape: f32[2,49,36], index: 13, kind: output, shape index: {}]
  %s14 = sld [smem:[#allocation0]]
  $region85: #{inception_block_d.1} parent=0
    _
  %s16 = ssub.s32 1, %s14
  %s17 = scalar_select 0, %s16, %s14
  loop: start=0, step=1, limit=4
  $region2: #{inception_block_d.1} parent=0 // loop_pre_header
    _
  $region3: #{inception_block_d.1} parent=0 // loop_header
    %s19 = sphi 0, %s23
    %p20 = scmp.ge.s32.totalorder %s19, 4
    %s29 = sphi 0, %s31
    %s32 = sphi 0, %s29
    %s33 = sphi 0, %s32
    %s49 = sphi 0, %s33
    %s53 = sphi 0, %s53
    %s55 = sphi 0, %s53
    %s56 = sphi 0, %s55
    %s70 = sphi 0, %s56
    %s74 = sphi 0, %s74
    %s76 = sphi 0, %s74
    %s77 = sphi 0, %s76
    %s91 = sphi 0, %s77
    %s95 = sphi 0, %s95
    %s97 = sphi 0, %s95
    %s98 = sphi 0, %s97
    %s112 = sphi 0, %s98
    %s116 = sphi 0, %s116
    %s118 = sphi 0, %s116
    %s119 = sphi 0, %s118
    %s133 = sphi 0, %s119
    %s137 = sphi 0, %s137
    %s139 = sphi 0, %s137
    %s140 = sphi 0, %s139
    %s154 = sphi 0, %s140
    %s158 = sphi 0, %s158
    %s160 = sphi 0, %s158
    %s161 = sphi 0, %s160
    %s175 = sphi 0, %s161
    %s179 = sphi 0, %s179
    %s181 = sphi 0, %s179
    %s182 = sphi 0, %s181
    %s196 = sphi 0, %s182
    %s200 = sphi 0, %s200
    %s202 = sphi 0, %s200
    %s203 = sphi 0, %s202
    %s217 = sphi 0, %s203
    %s221 = sphi 0, %s221
    %s223 = sphi 0, %s221
    %s224 = sphi 0, %s223
    %s238 = sphi 0, %s224
    %s242 = sphi 0, %s242
    %s244 = sphi 0, %s242
    %s245 = sphi 0, %s244
    %s259 = sphi 0, %s245
    %s263 = sphi 0, %s263
    %s265 = sphi 0, %s263
    %s266 = sphi 0, %s265
    %s280 = sphi 0, %s266
    %s284 = sphi 0, %s284
    %s286 = sphi 0, %s284
    %s287 = sphi 0, %s286
    %s301 = sphi 0, %s287
    %s307 = sphi 0, %s309
    %s310 = sphi 0, %s307
    %s311 = sphi 0, %s310
    %s327 = sphi 0, %s311
  $region4: #{inception_block_d.1} parent=0 // loop_header_branch
    %22 = sbr.rel (%p20) target = $region8
  $region5: #{inception_block_d.1} parent=0 // loop_body
    %s24 = ssub.s32 %s19, 1
    %s25 = ssub.s32 %s19, 2
    %s26 = sadd.s32 %s19, 1
    %s27 = ssub.s32 %s19, %s26
    %p28 = scmp.eq.s32.totalorder %s27, 0
    %s30 = sadd.s32 %s29, 1
    %s31 = scalar_select %p28, %s29, %s30
    %p34 = pneg %p28
    %p35 = scmp.eq.s32.totalorder %s19, 1
    %p36 = por %p34, %p35
    %p37 = scmp.ne.s32.totalorder %s29, %s32
    %p38 = scmp.eq.s32.totalorder %s19, 0
    %p39 = por %p37, %p38
    %p40 = scmp.ne.s32.totalorder %s29, %s32
    %p41 = scmp.eq.s32.totalorder %s24, 1
    %p42 = por %p40, %p41
    %p43 = scmp.ne.s32.totalorder %s32, %s33
    %p44 = scmp.eq.s32.totalorder %s24, 0
    %p45 = por %p43, %p44
    %p46 = scmp.ne.s32.totalorder %s32, %s33
    %p47 = scmp.eq.s32.totalorder %s25, 1
    %p48 = por %p46, %p47
    %p50 = scmp.ne.s32.totalorder %s33, %s49
    %p51 = scmp.eq.s32.totalorder %s25, 0
    %p52 = por %p50, %p51
    %s54 = sadd.s32 %s53, 1
    %p57 = scmp.eq.s32.totalorder %s19, 1
    %p58 = scmp.ne.s32.totalorder %s53, %s55
    %p59 = scmp.eq.s32.totalorder %s19, 0
    %p60 = por %p58, %p59
    %p61 = scmp.ne.s32.totalorder %s53, %s55
    %p62 = scmp.eq.s32.totalorder %s24, 1
    %p63 = por %p61, %p62
    %p64 = scmp.ne.s32.totalorder %s55, %s56
    %p65 = scmp.eq.s32.totalorder %s24, 0
    %p66 = por %p64, %p65
    %p67 = scmp.ne.s32.totalorder %s55, %s56
    %p68 = scmp.eq.s32.totalorder %s25, 1
    %p69 = por %p67, %p68
    %p71 = scmp.ne.s32.totalorder %s56, %s70
    %p72 = scmp.eq.s32.totalorder %s25, 0
    %p73 = por %p71, %p72
    %s75 = sadd.s32 %s74, 1
    %p78 = scmp.eq.s32.totalorder %s19, 1
    %p79 = scmp.ne.s32.totalorder %s74, %s76
    %p80 = scmp.eq.s32.totalorder %s19, 0
    %p81 = por %p79, %p80
    %p82 = scmp.ne.s32.totalorder %s74, %s76
    %p83 = scmp.eq.s32.totalorder %s24, 1
    %p84 = por %p82, %p83
    %p85 = scmp.ne.s32.totalorder %s76, %s77
    %p86 = scmp.eq.s32.totalorder %s24, 0
    %p87 = por %p85, %p86
    %p88 = scmp.ne.s32.totalorder %s76, %s77
    %p89 = scmp.eq.s32.totalorder %s25, 1
    %p90 = por %p88, %p89
    %p92 = scmp.ne.s32.totalorder %s77, %s91
    %p93 = scmp.eq.s32.totalorder %s25, 0
    %p94 = por %p92, %p93
    %s96 = sadd.s32 %s95, 1
    %p99 = scmp.eq.s32.totalorder %s19, 1
    %p100 = scmp.ne.s32.totalorder %s95, %s97
    %p101 = scmp.eq.s32.totalorder %s19, 0
    %p102 = por %p100, %p101
    %p103 = scmp.ne.s32.totalorder %s95, %s97
    %p104 = scmp.eq.s32.totalorder %s24, 1
    %p105 = por %p103, %p104
    %p106 = scmp.ne.s32.totalorder %s97, %s98
    %p107 = scmp.eq.s32.totalorder %s24, 0
    %p108 = por %p106, %p107
    %p109 = scmp.ne.s32.totalorder %s97, %s98
    %p110 = scmp.eq.s32.totalorder %s25, 1
    %p111 = por %p109, %p110
    %p113 = scmp.ne.s32.totalorder %s98, %s112
    %p114 = scmp.eq.s32.totalorder %s25, 0
    %p115 = por %p113, %p114
    %s117 = sadd.s32 %s116, 1
    %p120 = scmp.eq.s32.totalorder %s19, 1
    %p121 = scmp.ne.s32.totalorder %s116, %s118
    %p122 = scmp.eq.s32.totalorder %s19, 0
    %p123 = por %p121, %p122
    %p124 = scmp.ne.s32.totalorder %s116, %s118
    %p125 = scmp.eq.s32.totalorder %s24, 1
    %p126 = por %p124, %p125
    %p127 = scmp.ne.s32.totalorder %s118, %s119
    %p128 = scmp.eq.s32.totalorder %s24, 0
    %p129 = por %p127, %p128
    %p130 = scmp.ne.s32.totalorder %s118, %s119
    %p131 = scmp.eq.s32.totalorder %s25, 1
    %p132 = por %p130, %p131
    %p134 = scmp.ne.s32.totalorder %s119, %s133
    %p135 = scmp.eq.s32.totalorder %s25, 0
    %p136 = por %p134, %p135
    %s138 = sadd.s32 %s137, 1
    %p141 = scmp.eq.s32.totalorder %s19, 1
    %p142 = scmp.ne.s32.totalorder %s137, %s139
    %p143 = scmp.eq.s32.totalorder %s19, 0
    %p144 = por %p142, %p143
    %p145 = scmp.ne.s32.totalorder %s137, %s139
    %p146 = scmp.eq.s32.totalorder %s24, 1
    %p147 = por %p145, %p146
    %p148 = scmp.ne.s32.totalorder %s139, %s140
    %p149 = scmp.eq.s32.totalorder %s24, 0
    %p150 = por %p148, %p149
    %p151 = scmp.ne.s32.totalorder %s139, %s140
    %p152 = scmp.eq.s32.totalorder %s25, 1
    %p153 = por %p151, %p152
    %p155 = scmp.ne.s32.totalorder %s140, %s154
    %p156 = scmp.eq.s32.totalorder %s25, 0
    %p157 = por %p155, %p156
    %s159 = sadd.s32 %s158, 1
    %p162 = scmp.eq.s32.totalorder %s19, 1
    %p163 = scmp.ne.s32.totalorder %s158, %s160
    %p164 = scmp.eq.s32.totalorder %s19, 0
    %p165 = por %p163, %p164
    %p166 = scmp.ne.s32.totalorder %s158, %s160
    %p167 = scmp.eq.s32.totalorder %s24, 1
    %p168 = por %p166, %p167
    %p169 = scmp.ne.s32.totalorder %s160, %s161
    %p170 = scmp.eq.s32.totalorder %s24, 0
    %p171 = por %p169, %p170
    %p172 = scmp.ne.s32.totalorder %s160, %s161
    %p173 = scmp.eq.s32.totalorder %s25, 1
    %p174 = por %p172, %p173
    %p176 = scmp.ne.s32.totalorder %s161, %s175
    %p177 = scmp.eq.s32.totalorder %s25, 0
    %p178 = por %p176, %p177
    %s180 = sadd.s32 %s179, 1
    %p183 = scmp.eq.s32.totalorder %s19, 1
    %p184 = scmp.ne.s32.totalorder %s179, %s181
    %p185 = scmp.eq.s32.totalorder %s19, 0
    %p186 = por %p184, %p185
    %p187 = scmp.ne.s32.totalorder %s179, %s181
    %p188 = scmp.eq.s32.totalorder %s24, 1
    %p189 = por %p187, %p188
    %p190 = scmp.ne.s32.totalorder %s181, %s182
    %p191 = scmp.eq.s32.totalorder %s24, 0
    %p192 = por %p190, %p191
    %p193 = scmp.ne.s32.totalorder %s181, %s182
    %p194 = scmp.eq.s32.totalorder %s25, 1
    %p195 = por %p193, %p194
    %p197 = scmp.ne.s32.totalorder %s182, %s196
    %p198 = scmp.eq.s32.totalorder %s25, 0
    %p199 = por %p197, %p198
    %s201 = sadd.s32 %s200, 1
    %p204 = scmp.eq.s32.totalorder %s19, 1
    %p205 = scmp.ne.s32.totalorder %s200, %s202
    %p206 = scmp.eq.s32.totalorder %s19, 0
    %p207 = por %p205, %p206
    %p208 = scmp.ne.s32.totalorder %s200, %s202
    %p209 = scmp.eq.s32.totalorder %s24, 1
    %p210 = por %p208, %p209
    %p211 = scmp.ne.s32.totalorder %s202, %s203
    %p212 = scmp.eq.s32.totalorder %s24, 0
    %p213 = por %p211, %p212
    %p214 = scmp.ne.s32.totalorder %s202, %s203
    %p215 = scmp.eq.s32.totalorder %s25, 1
    %p216 = por %p214, %p215
    %p218 = scmp.ne.s32.totalorder %s203, %s217
    %p219 = scmp.eq.s32.totalorder %s25, 0
    %p220 = por %p218, %p219
    %s222 = sadd.s32 %s221, 1
    %p225 = scmp.eq.s32.totalorder %s19, 1
    %p226 = scmp.ne.s32.totalorder %s221, %s223
    %p227 = scmp.eq.s32.totalorder %s19, 0
    %p228 = por %p226, %p227
    %p229 = scmp.ne.s32.totalorder %s221, %s223
    %p230 = scmp.eq.s32.totalorder %s24, 1
    %p231 = por %p229, %p230
    %p232 = scmp.ne.s32.totalorder %s223, %s224
    %p233 = scmp.eq.s32.totalorder %s24, 0
    %p234 = por %p232, %p233
    %p235 = scmp.ne.s32.totalorder %s223, %s224
    %p236 = scmp.eq.s32.totalorder %s25, 1
    %p237 = por %p235, %p236
    %p239 = scmp.ne.s32.totalorder %s224, %s238
    %p240 = scmp.eq.s32.totalorder %s25, 0
    %p241 = por %p239, %p240
    %s243 = sadd.s32 %s242, 1
    %p246 = scmp.eq.s32.totalorder %s19, 1
    %p247 = scmp.ne.s32.totalorder %s242, %s244
    %p248 = scmp.eq.s32.totalorder %s19, 0
    %p249 = por %p247, %p248
    %p250 = scmp.ne.s32.totalorder %s242, %s244
    %p251 = scmp.eq.s32.totalorder %s24, 1
    %p252 = por %p250, %p251
    %p253 = scmp.ne.s32.totalorder %s244, %s245
    %p254 = scmp.eq.s32.totalorder %s24, 0
    %p255 = por %p253, %p254
    %p256 = scmp.ne.s32.totalorder %s244, %s245
    %p257 = scmp.eq.s32.totalorder %s25, 1
    %p258 = por %p256, %p257
    %p260 = scmp.ne.s32.totalorder %s245, %s259
    %p261 = scmp.eq.s32.totalorder %s25, 0
    %p262 = por %p260, %p261
    %s264 = sadd.s32 %s263, 1
    %p267 = scmp.eq.s32.totalorder %s19, 1
    %p268 = scmp.ne.s32.totalorder %s263, %s265
    %p269 = scmp.eq.s32.totalorder %s19, 0
    %p270 = por %p268, %p269
    %p271 = scmp.ne.s32.totalorder %s263, %s265
    %p272 = scmp.eq.s32.totalorder %s24, 1
    %p273 = por %p271, %p272
    %p274 = scmp.ne.s32.totalorder %s265, %s266
    %p275 = scmp.eq.s32.totalorder %s24, 0
    %p276 = por %p274, %p275
    %p277 = scmp.ne.s32.totalorder %s265, %s266
    %p278 = scmp.eq.s32.totalorder %s25, 1
    %p279 = por %p277, %p278
    %p281 = scmp.ne.s32.totalorder %s266, %s280
    %p282 = scmp.eq.s32.totalorder %s25, 0
    %p283 = por %p281, %p282
    %s285 = sadd.s32 %s284, 1
    %p288 = scmp.eq.s32.totalorder %s19, 1
    %p289 = scmp.ne.s32.totalorder %s284, %s286
    %p290 = scmp.eq.s32.totalorder %s19, 0
    %p291 = por %p289, %p290
    %p292 = scmp.ne.s32.totalorder %s284, %s286
    %p293 = scmp.eq.s32.totalorder %s24, 1
    %p294 = por %p292, %p293
    %p295 = scmp.ne.s32.totalorder %s286, %s287
    %p296 = scmp.eq.s32.totalorder %s24, 0
    %p297 = por %p295, %p296
    %p298 = scmp.ne.s32.totalorder %s286, %s287
    %p299 = scmp.eq.s32.totalorder %s25, 1
    %p300 = por %p298, %p299
    %p302 = scmp.ne.s32.totalorder %s287, %s301
    %p303 = scmp.eq.s32.totalorder %s25, 0
    %p304 = por %p302, %p303
    %s305 = ssub.s32 %s19, %s26
    %p306 = scmp.eq.s32.totalorder %s305, 0
    %s308 = sadd.s32 %s307, 1
    %s309 = scalar_select %p306, %s307, %s308
    %p312 = pneg %p306
    %p313 = scmp.eq.s32.totalorder %s19, 1
    %p314 = por %p312, %p313
    %p315 = scmp.ne.s32.totalorder %s307, %s310
    %p316 = scmp.eq.s32.totalorder %s19, 0
    %p317 = por %p315, %p316
    %p318 = scmp.ne.s32.totalorder %s307, %s310
    %p319 = scmp.eq.s32.totalorder %s24, 1
    %p320 = por %p318, %p319
    %p321 = scmp.ne.s32.totalorder %s310, %s311
    %p322 = scmp.eq.s32.totalorder %s24, 0
    %p323 = por %p321, %p322
    %p324 = scmp.ne.s32.totalorder %s310, %s311
    %p325 = scmp.eq.s32.totalorder %s25, 1
    %p326 = por %p324, %p325
    %p328 = scmp.ne.s32.totalorder %s311, %s327
    %p329 = scmp.eq.s32.totalorder %s25, 0
    %p330 = por %p328, %p329
    %p331 = scmp.le.s32.totalorder 1, %s19
    %p332 = scmp.lt.s32.totalorder %s19, 3
    %p333 = pnand %p331, %p332
    %p334 = pneg %p333
    // Predicated region
    $region9: #{inception_block_d.1} parent=5 // pred_check
      _
    $region10: #{inception_block_d.1} parent=5 // pred_check_branch
      %336 = sbr.rel (%p333) target = $region12
    $region11: #{inception_block_d.1} parent=5 // pred_region
      %s337 = ssub.s32 %s19, 1
      // Predicated region
      $region13: #{inception_block_d.1} parent=11 // pred_check
        %p338 = pneg %p66
      $region14: #{inception_block_d.1} parent=11 // pred_check_branch
        %340 = sbr.rel (%p338) target = $region16
      $region15: #{inception_block_d.1} parent=11 // pred_region
        _
      $region16: #{inception_block_d.1} parent=11 // pred_fallthru
        _
      // Predicated region
      $region17: #{inception_block_d.1} parent=11 // pred_check
        %p341 = pneg %p87
      $region18: #{inception_block_d.1} parent=11 // pred_check_branch
        %343 = sbr.rel (%p341) target = $region20
      $region19: #{inception_block_d.1} parent=11 // pred_region
        _
      $region20: #{inception_block_d.1} parent=11 // pred_fallthru
        _
      // Predicated region
      $region21: #{inception_block_d.1} parent=11 // pred_check
        %p344 = pneg %p108
      $region22: #{inception_block_d.1} parent=11 // pred_check_branch
        %346 = sbr.rel (%p344) target = $region24
      $region23: #{inception_block_d.1} parent=11 // pred_region
        _
      $region24: #{inception_block_d.1} parent=11 // pred_fallthru
        _
      // Predicated region
      $region25: #{inception_block_d.1} parent=11 // pred_check
        %p347 = pneg %p129
      $region26: #{inception_block_d.1} parent=11 // pred_check_branch
        %349 = sbr.rel (%p347) target = $region28
      $region27: #{inception_block_d.1} parent=11 // pred_region
        _
      $region28: #{inception_block_d.1} parent=11 // pred_fallthru
        _
      // Predicated region
      $region29: #{inception_block_d.1} parent=11 // pred_check
        %p350 = pneg %p150
      $region30: #{inception_block_d.1} parent=11 // pred_check_branch
        %352 = sbr.rel (%p350) target = $region32
      $region31: #{inception_block_d.1} parent=11 // pred_region
        _
      $region32: #{inception_block_d.1} parent=11 // pred_fallthru
        _
      // Predicated region
      $region33: #{inception_block_d.1} parent=11 // pred_check
        %p353 = pneg %p171
      $region34: #{inception_block_d.1} parent=11 // pred_check_branch
        %355 = sbr.rel (%p353) target = $region36
      $region35: #{inception_block_d.1} parent=11 // pred_region
        _
      $region36: #{inception_block_d.1} parent=11 // pred_fallthru
        _
      // Predicated region
      $region37: #{inception_block_d.1} parent=11 // pred_check
        %p356 = pneg %p192
      $region38: #{inception_block_d.1} parent=11 // pred_check_branch
        %358 = sbr.rel (%p356) target = $region40
      $region39: #{inception_block_d.1} parent=11 // pred_region
        _
      $region40: #{inception_block_d.1} parent=11 // pred_fallthru
        _
      // Predicated region
      $region41: #{inception_block_d.1} parent=11 // pred_check
        %p359 = pneg %p213
      $region42: #{inception_block_d.1} parent=11 // pred_check_branch
        %361 = sbr.rel (%p359) target = $region44
      $region43: #{inception_block_d.1} parent=11 // pred_region
        _
      $region44: #{inception_block_d.1} parent=11 // pred_fallthru
        _
      // Predicated region
      $region45: #{inception_block_d.1} parent=11 // pred_check
        %p362 = pneg %p234
      $region46: #{inception_block_d.1} parent=11 // pred_check_branch
        %364 = sbr.rel (%p362) target = $region48
      $region47: #{inception_block_d.1} parent=11 // pred_region
        _
      $region48: #{inception_block_d.1} parent=11 // pred_fallthru
        _
      // Predicated region
      $region49: #{inception_block_d.1} parent=11 // pred_check
        %p365 = pneg %p255
      $region50: #{inception_block_d.1} parent=11 // pred_check_branch
        %367 = sbr.rel (%p365) target = $region52
      $region51: #{inception_block_d.1} parent=11 // pred_region
        _
      $region52: #{inception_block_d.1} parent=11 // pred_fallthru
        _
      // Predicated region
      $region53: #{inception_block_d.1} parent=11 // pred_check
        %p368 = pneg %p276
      $region54: #{inception_block_d.1} parent=11 // pred_check_branch
        %370 = sbr.rel (%p368) target = $region56
      $region55: #{inception_block_d.1} parent=11 // pred_region
        _
      $region56: #{inception_block_d.1} parent=11 // pred_fallthru
        _
      // Predicated region
      $region57: #{inception_block_d.1} parent=11 // pred_check
        %p371 = pneg %p297
      $region58: #{inception_block_d.1} parent=11 // pred_check_branch
        %373 = sbr.rel (%p371) target = $region60
      $region59: #{inception_block_d.1} parent=11 // pred_region
        _
      $region60: #{inception_block_d.1} parent=11 // pred_fallthru
        _
    $region12: #{inception_block_d.1} parent=5 // pred_fallthru
      _
    %p374 = scmp.lt.s32.totalorder %s19, 2
    // Predicated region
    $region61: #{inception_block_d.1} parent=5 // pred_check
      %p375 = pneg %p374
    $region62: #{inception_block_d.1} parent=5 // pred_check_branch
      %377 = sbr.rel (%p375) target = $region64
    $region63: #{inception_block_d.1} parent=5 // pred_region
      // Predicated region
      $region65: #{inception_block_d.1} parent=63 // pred_check
        %p378 = pneg %p39
      $region66: #{inception_block_d.1} parent=63 // pred_check_branch
        %380 = sbr.rel (%p378) target = $region68
      $region67: #{inception_block_d.1} parent=63 // pred_region
        %p381 = scmp.lt.s32.totalorder %s19, 1
        %s382 = scalar_select %p381, %s19, 1
        %s383 = smul.addr %s382, 32
        %s384 = smul.addr %s383, 8
        %s385 = scalar_lea.vmem %s0, %s384
      $region68: #{inception_block_d.1} parent=63 // pred_fallthru
        _
    $region64: #{inception_block_d.1} parent=5 // pred_fallthru
      _
    %p386 = scmp.le.s32.totalorder 1, %s19
    %p387 = scmp.lt.s32.totalorder %s19, 3
    %p388 = pnand %p386, %p387
    %p389 = pneg %p388
    // Predicated region
    $region69: #{inception_block_d.1} parent=5 // pred_check
      _
    $region70: #{inception_block_d.1} parent=5 // pred_check_branch
      %391 = sbr.rel (%p388) target = $region72
    $region71: #{inception_block_d.1} parent=5 // pred_region
      %s392 = ssub.s32 %s19, 1
      %p393 = scmp.lt.s32.totalorder %s24, 1
      %s394 = scalar_select %p393, %s24, 1
      %s395 = smul.addr %s394, 32
      %s396 = smul.addr %s395, 8
      %s397 = scalar_lea.vmem %s0, %s396
      %p398 = pneg %p45
      %p399 = pneg %p42
      %p400 = pneg %p66
      %p401 = pneg %p63
      %p402 = pneg %p87
      %p403 = pneg %p84
      %p404 = pneg %p108
      %p405 = pneg %p105
      %p406 = pneg %p129
      %p407 = pneg %p126
      %p408 = pneg %p150
      %p409 = pneg %p147
      %p410 = pneg %p171
      %p411 = pneg %p168
      %p412 = pneg %p192
      %p413 = pneg %p189
      %p414 = pneg %p213
      %p415 = pneg %p210
      %p416 = pneg %p234
      %p417 = pneg %p231
      %p418 = pneg %p255
      %p419 = pneg %p252
      %p420 = pneg %p276
      %p421 = pneg %p273
      %p422 = pneg %p297
      %p423 = pneg %p294
      %p424 = pneg %p323
      %p425 = pneg %p320
      %p426 = scmp.lt.s32.totalorder %s24, 1
      %s427 = scalar_select %p426, %s24, 1
      %s428 = smul.addr %s427, 7
      %s429 = smul.addr %s428, 8
      %s430 = scalar_lea.vmem %s13, %s429
      %p431 = scmp.lt.s32.totalorder %s24, 1
      %s432 = scalar_select %p431, %s24, 1
      %s433 = smul.addr %s432, 32
      %s434 = smul.addr %s433, 8
      %s435 = scalar_lea.vmem %s0, %s434
      %p436 = scmp.lt.s32.totalorder %s24, 1
      %s437 = scalar_select %p436, %s24, 1
      %s438 = smul.addr %s437, 7
      %s439 = smul.addr %s438, 8
      %s440 = scalar_lea.vmem %s13, %s439
      %vm442 = vcmask 64512
      %443 = vst.msk [vmem:[#allocation3] sm:$0xff] %vm442, 0.0
      %444 = vst.msk [vmem:[#allocation3 + $0x20] sm:$0xff] %vm442, 0.0
      %445 = vst.msk [vmem:[#allocation3 + $0x40] sm:$0xff] %vm442, 0.0
      %446 = vst.msk [vmem:[#allocation3 + $0x60] sm:$0xff] %vm442, 0.0
      %447 = vst.msk [vmem:[#allocation3 + $0x80] sm:$0xff] %vm442, 0.0
      %448 = vst.msk [vmem:[#allocation3 + $0xa0] sm:$0xff] %vm442, 0.0
      %449 = vst.msk [vmem:[#allocation3 + $0xc0] sm:$0xff] %vm442, 0.0
      %450 = vst.msk [vmem:[#allocation3 + $0xe0] sm:$0xff] %vm442, 0.0
      %451 = vst.msk [vmem:[#allocation3 + $0x100] sm:$0xff] %vm442, 0.0
      %452 = vst.msk [vmem:[#allocation3 + $0x120] sm:$0xff] %vm442, 0.0
      %453 = vst.msk [vmem:[#allocation3 + $0x140] sm:$0xff] %vm442, 0.0
      %454 = vst.msk [vmem:[#allocation3 + $0x160] sm:$0xff] %vm442, 0.0
      %455 = vst.msk [vmem:[#allocation3 + $0x180] sm:$0xff] %vm442, 0.0
      %456 = vst.msk [vmem:[#allocation3 + $0x1a0] sm:$0xff] %vm442, 0.0
      %457 = vst.msk [vmem:[#allocation3 + $0x1c0] sm:$0xff] %vm442, 0.0
      %458 = vst.msk [vmem:[#allocation3 + $0x1e0] sm:$0xff] %vm442, 0.0
      %459 = vst.msk [vmem:[#allocation3 + $0x18] sm:$0xff] %vm442, 0.0
      %460 = vst.msk [vmem:[#allocation3 + $0x38] sm:$0xff] %vm442, 0.0
      %461 = vst.msk [vmem:[#allocation3 + $0x58] sm:$0xff] %vm442, 0.0
      %462 = vst.msk [vmem:[#allocation3 + $0x78] sm:$0xff] %vm442, 0.0
      %463 = vst.msk [vmem:[#allocation3 + $0x98] sm:$0xff] %vm442, 0.0
      %464 = vst.msk [vmem:[#allocation3 + $0xb8] sm:$0xff] %vm442, 0.0
      %465 = vst.msk [vmem:[#allocation3 + $0xd8] sm:$0xff] %vm442, 0.0
      %466 = vst.msk [vmem:[#allocation3 + $0xf8] sm:$0xff] %vm442, 0.0
      %467 = vst.msk [vmem:[#allocation3 + $0x118] sm:$0xff] %vm442, 0.0
      %468 = vst.msk [vmem:[#allocation3 + $0x138] sm:$0xff] %vm442, 0.0
      %469 = vst.msk [vmem:[#allocation3 + $0x158] sm:$0xff] %vm442, 0.0
      %470 = vst.msk [vmem:[#allocation3 + $0x178] sm:$0xff] %vm442, 0.0
      %471 = vst.msk [vmem:[#allocation3 + $0x198] sm:$0xff] %vm442, 0.0
      %472 = vst.msk [vmem:[#allocation3 + $0x1b8] sm:$0xff] %vm442, 0.0
      %473 = vst.msk [vmem:[#allocation3 + $0x1d8] sm:$0xff] %vm442, 0.0
      %474 = vst.msk [vmem:[#allocation3 + $0x1f8] sm:$0xff] %vm442, 0.0
      %vm475 = vcmask 97280
      %476 = vst.msk [vmem:[#allocation4] sm:$0xff] %vm475, 0.0
      %477 = vst.msk [vmem:[#allocation4 + $0x8] sm:$0xff] %vm475, 0.0
      %478 = vst.msk [vmem:[#allocation4 + $0x10] sm:$0xff] %vm475, 0.0
      %479 = vst.msk [vmem:[#allocation4 + $0x18] sm:$0xff] %vm475, 0.0
      %480 = vst.msk [vmem:[#allocation4 + $0x20] sm:$0xff] %vm475, 0.0
      %481 = vst.msk [vmem:[#allocation4 + $0x28] sm:$0xff] %vm475, 0.0
      %s482 = scalar_lea.vmem [#allocation4], 304
      %483 = vst.msk [vmem:[%s482] sm:$0xff] %vm475, 0.0
      %484 = vst.msk [vmem:[%s482 + $0x8] sm:$0xff] %vm475, 0.0
      %485 = vst.msk [vmem:[%s482 + $0x10] sm:$0xff] %vm475, 0.0
      %486 = vst.msk [vmem:[%s482 + $0x18] sm:$0xff] %vm475, 0.0
      %487 = vst.msk [vmem:[%s482 + $0x20] sm:$0xff] %vm475, 0.0
      %488 = vst.msk [vmem:[%s482 + $0x28] sm:$0xff] %vm475, 0.0
      %v489 = vld [vmem:[%s435] sm:$0xff]
      %v490 = vld [vmem:[%s435 + $0x8] sm:$0xff]
      %v491 = vld [vmem:[%s435 + $0x10] sm:$0xff]
      %v492 = vld [vmem:[%s435 + $0x18] sm:$0xff]
      %v493 = vld [vmem:[%s435 + $0x20] sm:$0xff]
      %v494 = vld [vmem:[%s435 + $0x28] sm:$0xff]
      %v495 = vld [vmem:[%s435 + $0x30] sm:$0xff]
      %v496 = vld [vmem:[%s435 + $0x38] sm:$0xff]
      %v497 = vld [vmem:[%s435 + $0x40] sm:$0xff]
      %v498 = vld [vmem:[%s435 + $0x48] sm:$0xff]
      %v499 = vld [vmem:[%s435 + $0x50] sm:$0xff]
      %v500 = vld [vmem:[%s435 + $0x58] sm:$0xff]
      %v501 = vld [vmem:[%s435 + $0x60] sm:$0xff]
      %v502 = vld [vmem:[%s435 + $0x68] sm:$0xff]
      %v503 = vld [vmem:[%s435 + $0x70] sm:$0xff]
      %v504 = vld [vmem:[%s435 + $0x78] sm:$0xff]
      %v505 = vld [vmem:[%s435 + $0x80] sm:$0xff]
      %v506 = vld [vmem:[%s435 + $0x88] sm:$0xff]
      %v507 = vld [vmem:[%s435 + $0x90] sm:$0xff]
      %v508 = vld [vmem:[%s435 + $0x98] sm:$0xff]
      %v509 = vld [vmem:[%s435 + $0xa0] sm:$0xff]
      %v510 = vld [vmem:[%s435 + $0xa8] sm:$0xff]
      %v511 = vld [vmem:[%s435 + $0xb0] sm:$0xff]
      %v512 = vld [vmem:[%s435 + $0xb8] sm:$0xff]
      %v513 = vld [vmem:[%s435 + $0xc0] sm:$0xff]
      %v514 = vld [vmem:[%s435 + $0xc8] sm:$0xff]
      %v515 = vld [vmem:[%s435 + $0xd0] sm:$0xff]
      %v516 = vld [vmem:[%s435 + $0xd8] sm:$0xff]
      %v517 = vld [vmem:[%s435 + $0xe0] sm:$0xff]
      %v518 = vld [vmem:[%s435 + $0xe8] sm:$0xff]
      %v519 = vld [vmem:[%s435 + $0xf0] sm:$0xff]
      %v520 = vld [vmem:[%s435 + $0xf8] sm:$0xff]
      %v521 = vpack.c.bf16 %v490, %v489
      %v522 = vpack.c.bf16 %v492, %v491
      %v523 = vpack.c.bf16 %v494, %v493
      %v524 = vpack.c.bf16 %v496, %v495
      %v525 = vpack.c.bf16 %v498, %v497
      %v526 = vpack.c.bf16 %v500, %v499
      %v527 = vpack.c.bf16 %v502, %v501
      %v528 = vpack.c.bf16 %v504, %v503
      %v529 = vpack.c.bf16 %v506, %v505
      %v530 = vpack.c.bf16 %v508, %v507
      %v531 = vpack.c.bf16 %v510, %v509
      %v532 = vpack.c.bf16 %v512, %v511
      %v533 = vpack.c.bf16 %v514, %v513
      %v534 = vpack.c.bf16 %v516, %v515
      %v535 = vpack.c.bf16 %v518, %v517
      %v536 = vpack.c.bf16 %v520, %v519
      %v537 = vld [vmem:[%s1] sm:$0x3]
      %v538 = vld [vmem:[%s2] sm:$0x1]
      %v540 = vlaneseq
      %v541 = vshrl.u32 %v540, 7
      %v542 = vsub.s32 0, %v541
      %v543 = vrot.slane %v538, %v542
      %vm545 = vcmask 31744
      %v547 = vsel %vm545, %v521, 0
      %v550 = vsel %vm545, %v522, 0
      %v553 = vsel %vm545, %v523, 0
      %v556 = vsel %vm545, %v524, 0
      %v559 = vsel %vm545, %v525, 0
      %v562 = vsel %vm545, %v526, 0
      %v565 = vsel %vm545, %v527, 0
      %v568 = vsel %vm545, %v528, 0
      %v571 = vsel %vm545, %v529, 0
      %v574 = vsel %vm545, %v530, 0
      %v577 = vsel %vm545, %v531, 0
      %v580 = vsel %vm545, %v532, 0
      %v583 = vsel %vm545, %v533, 0
      %v586 = vsel %vm545, %v534, 0
      %v589 = vsel %vm545, %v535, 0
      %v592 = vsel %vm545, %v536, 0
      %vm594 = vcmask 1041408
      %v596 = vsel %vm594, %v537, 0
      %598 = vmatprep.subr.bf16.mxu0 0
      %599 = vmatpush1.bf16.msra.mxu0 %v596
      %600 = vmatprep.subr.bf16.mxu0 0
      %601 = vmatpush1.bf16.msra.mxu0 0
      %602 = vmatprep.subr.bf16.mxu0 0
      %603 = vmatpush1.bf16.msra.mxu0 0
      %604 = vmatprep.subr.bf16.mxu0 0
      %605 = vmatpush1.bf16.msra.mxu0 0
      %606 = vmatprep.subr.bf16.mxu0 0
      %607 = vmatpush1.bf16.msra.mxu0 0
      %608 = vmatprep.subr.bf16.mxu0 0
      %609 = vmatpush1.bf16.msra.mxu0 0
      %610 = vmatprep.subr.bf16.mxu0 0
      %611 = vmatpush1.bf16.msra.mxu0 0
      %612 = vmatprep.subr.bf16.mxu0 0
      %613 = vmatpush1.bf16.msra.mxu0 0
      %614 = vmatprep.subr.bf16.mxu0 0
      %615 = vmatpush1.bf16.msra.mxu0 0
      %616 = vmatprep.subr.bf16.mxu0 0
      %617 = vmatpush1.bf16.msra.mxu0 0
      %618 = vmatprep.subr.bf16.mxu0 0
      %619 = vmatpush1.bf16.msra.mxu0 0
      %620 = vmatprep.subr.bf16.mxu0 0
      %621 = vmatpush1.bf16.msra.mxu0 0
      %622 = vmatprep.subr.bf16.mxu0 0
      %623 = vmatpush1.bf16.msra.mxu0 0
      %624 = vmatprep.subr.bf16.mxu0 0
      %625 = vmatpush1.bf16.msra.mxu0 0
      %626 = vmatprep.subr.bf16.mxu0 0
      %627 = vmatpush1.bf16.msra.mxu0 0
      %628 = vmatprep.subr.bf16.mxu0 0
      %629 = vmatpush1.bf16.msra.mxu0 0
      %630 = vmatprep.mubr.bf16.mxu0 0
      %631 = vmatmul.mubr.bf16.gmra.mrb[0].mxu0 %v547
      %v632 = vpop.f32.mrb[0].mxu0
      %v633 = vadd.f32 %v543, %v632
      %v634 = vpop.f32.mrb[0].mxu0
      %v635 = vpop.f32.mrb[0].mxu0
      %v636 = vadd.f32 %v543, %v635
      %v637 = vpop.f32.mrb[0].mxu0
      %638 = vmatprep.mubr.bf16.mxu0 0
      %639 = vmatmul.mubr.bf16.gmra.mrb[0].mxu0 %v550
      %v640 = vpop.f32.mrb[0].mxu0
      %v641 = vadd.f32 %v543, %v640
      %v642 = vpop.f32.mrb[0].mxu0
      %v643 = vpop.f32.mrb[0].mxu0
      %v644 = vadd.f32 %v543, %v643
      %v645 = vpop.f32.mrb[0].mxu0
      %646 = vmatprep.mubr.bf16.mxu0 0
      %647 = vmatmul.mubr.bf16.gmra.mrb[0].mxu0 %v553
      %v648 = vpop.f32.mrb[0].mxu0
      %v649 = vadd.f32 %v543, %v648
      %v650 = vpop.f32.mrb[0].mxu0
      %v651 = vpop.f32.mrb[0].mxu0
      %v652 = vadd.f32 %v543, %v651
      %v653 = vpop.f32.mrb[0].mxu0
      %654 = vmatprep.mubr.bf16.mxu0 0
      %655 = vmatmul.mubr.bf16.gmra.mrb[0].mxu0 %v556
      %v656 = vpop.f32.mrb[0].mxu0
      %v657 = vadd.f32 %v543, %v656
      %v658 = vpop.f32.mrb[0].mxu0
      %v659 = vpop.f32.mrb[0].mxu0
      %v660 = vadd.f32 %v543, %v659
      %v661 = vpop.f32.mrb[0].mxu0
      %662 = vmatprep.mubr.bf16.mxu0 0
      %663 = vmatmul.mubr.bf16.gmra.mrb[0].mxu0 %v559
      %v664 = vpop.f32.mrb[0].mxu0
      %v665 = vadd.f32 %v543, %v664
      %v666 = vpop.f32.mrb[0].mxu0
      %v667 = vpop.f32.mrb[0].mxu0
      %v668 = vadd.f32 %v543, %v667
      %v669 = vpop.f32.mrb[0].mxu0
      %670 = vmatprep.mubr.bf16.mxu0 0
      %671 = vmatmul.mubr.bf16.gmra.mrb[0].mxu0 %v562
      %v672 = vpop.f32.mrb[0].mxu0
      %v673 = vadd.f32 %v543, %v672
      %v674 = vpop.f32.mrb[0].mxu0
      %v675 = vpop.f32.mrb[0].mxu0
      %v676 = vadd.f32 %v543, %v675
      %v677 = vpop.f32.mrb[0].mxu0
      %678 = vmatprep.mubr.bf16.mxu0 0
      %679 = vmatmul.mubr.bf16.gmra.mrb[0].mxu0 %v565
      %v680 = vpop.f32.mrb[0].mxu0
      %v681 = vadd.f32 %v543, %v680
      %v682 = vpop.f32.mrb[0].mxu0
      %v683 = vpop.f32.mrb[0].mxu0
      %v684 = vadd.f32 %v543, %v683
      %v685 = vpop.f32.mrb[0].mxu0
      %686 = vmatprep.mubr.bf16.mxu0 0
      %687 = vmatmul.mubr.bf16.gmra.mrb[0].mxu0 %v568
      %v688 = vpop.f32.mrb[0].mxu0
      %v689 = vadd.f32 %v543, %v688
      %v690 = vpop.f32.mrb[0].mxu0
      %v691 = vpop.f32.mrb[0].mxu0
      %v692 = vadd.f32 %v543, %v691
      %v693 = vpop.f32.mrb[0].mxu0
      %694 = vmatprep.mubr.bf16.mxu0 0
      %695 = vmatmul.mubr.bf16.gmra.mrb[0].mxu0 %v571
      %v696 = vpop.f32.mrb[0].mxu0
      %v697 = vadd.f32 %v543, %v696
      %v698 = vpop.f32.mrb[0].mxu0
      %v699 = vpop.f32.mrb[0].mxu0
      %v700 = vadd.f32 %v543, %v699
      %v701 = vpop.f32.mrb[0].mxu0
      %702 = vmatprep.mubr.bf16.mxu0 0
      %703 = vmatmul.mubr.bf16.gmra.mrb[0].mxu0 %v574
      %v704 = vpop.f32.mrb[0].mxu0
      %v705 = vadd.f32 %v543, %v704
      %v706 = vpop.f32.mrb[0].mxu0
      %v707 = vpop.f32.mrb[0].mxu0
      %v708 = vadd.f32 %v543, %v707
      %v709 = vpop.f32.mrb[0].mxu0
      %710 = vmatprep.mubr.bf16.mxu0 0
      %711 = vmatmul.mubr.bf16.gmra.mrb[0].mxu0 %v577
      %v712 = vpop.f32.mrb[0].mxu0
      %v713 = vadd.f32 %v543, %v712
      %v714 = vpop.f32.mrb[0].mxu0
      %v715 = vpop.f32.mrb[0].mxu0
      %v716 = vadd.f32 %v543, %v715
      %v717 = vpop.f32.mrb[0].mxu0
      %718 = vmatprep.mubr.bf16.mxu0 0
      %719 = vmatmul.mubr.bf16.gmra.mrb[0].mxu0 %v580
      %v720 = vpop.f32.mrb[0].mxu0
      %v721 = vadd.f32 %v543, %v720
      %v722 = vpop.f32.mrb[0].mxu0
      %v723 = vpop.f32.mrb[0].mxu0
      %v724 = vadd.f32 %v543, %v723
      %v725 = vpop.f32.mrb[0].mxu0
      %726 = vmatprep.mubr.bf16.mxu0 0
      %727 = vmatmul.mubr.bf16.gmra.mrb[0].mxu0 %v583
      %v728 = vpop.f32.mrb[0].mxu0
      %v729 = vadd.f32 %v543, %v728
      %v730 = vpop.f32.mrb[0].mxu0
      %v731 = vpop.f32.mrb[0].mxu0
      %v732 = vadd.f32 %v543, %v731
      %v733 = vpop.f32.mrb[0].mxu0
      %734 = vmatprep.mubr.bf16.mxu0 0
      %735 = vmatmul.mubr.bf16.gmra.mrb[0].mxu0 %v586
      %v736 = vpop.f32.mrb[0].mxu0
      %v737 = vadd.f32 %v543, %v736
      %v738 = vpop.f32.mrb[0].mxu0
      %v739 = vpop.f32.mrb[0].mxu0
      %v740 = vadd.f32 %v543, %v739
      %v741 = vpop.f32.mrb[0].mxu0
      %742 = vmatprep.mubr.bf16.mxu0 0
      %743 = vmatmul.mubr.bf16.gmra.mrb[0].mxu0 %v589
      %v744 = vpop.f32.mrb[0].mxu0
      %v745 = vadd.f32 %v543, %v744
      %v746 = vpop.f32.mrb[0].mxu0
      %v747 = vpop.f32.mrb[0].mxu0
      %v748 = vadd.f32 %v543, %v747
      %v749 = vpop.f32.mrb[0].mxu0
      %750 = vmatprep.mubr.bf16.mxu0 0
      %751 = vmatmul.mubr.bf16.gmra.mrb[0].mxu0 %v592
      %v752 = vpop.f32.mrb[0].mxu0
      %v753 = vadd.f32 %v543, %v752
      %v754 = vpop.f32.mrb[0].mxu0
      %v755 = vpop.f32.mrb[0].mxu0
      %v756 = vadd.f32 %v543, %v755
      %v757 = vpop.f32.mrb[0].mxu0
      %758 = vdwg.mxu0
      %v759 = vmax.f32 %v633, 0.0
      %v760 = vmax.f32 %v636, 0.0
      %v761 = vmax.f32 %v641, 0.0
      %v762 = vmax.f32 %v644, 0.0
      %v763 = vmax.f32 %v649, 0.0
      %v764 = vmax.f32 %v652, 0.0
      %v765 = vmax.f32 %v657, 0.0
      %v766 = vmax.f32 %v660, 0.0
      %v767 = vmax.f32 %v665, 0.0
      %v768 = vmax.f32 %v668, 0.0
      %v769 = vmax.f32 %v673, 0.0
      %v770 = vmax.f32 %v676, 0.0
      %v771 = vmax.f32 %v681, 0.0
      %v772 = vmax.f32 %v684, 0.0
      %v773 = vmax.f32 %v689, 0.0
      %v774 = vmax.f32 %v692, 0.0
      %v775 = vmax.f32 %v697, 0.0
      %v776 = vmax.f32 %v700, 0.0
      %v777 = vmax.f32 %v705, 0.0
      %v778 = vmax.f32 %v708, 0.0
      %v779 = vmax.f32 %v713, 0.0
      %v780 = vmax.f32 %v716, 0.0
      %v781 = vmax.f32 %v721, 0.0
      %v782 = vmax.f32 %v724, 0.0
      %v783 = vmax.f32 %v729, 0.0
      %v784 = vmax.f32 %v732, 0.0
      %v785 = vmax.f32 %v737, 0.0
      %v786 = vmax.f32 %v740, 0.0
      %v787 = vmax.f32 %v745, 0.0
      %v788 = vmax.f32 %v748, 0.0
      %v789 = vmax.f32 %v753, 0.0
      %v790 = vmax.f32 %v756, 0.0
      %v791 = vld [vmem:[%s3] sm:$0x3]
      %v792 = vld [vmem:[%s4] sm:$0x1]
      %v794 = vlaneseq
      %v795 = vshrl.u32 %v794, 7
      %v796 = vsub.s32 0, %v795
      %v797 = vrot.slane %v792, %v796
      %v800 = vsel %vm594, %v791, 0
      %802 = vmatprep.subr.bf16.mxu0 0
      %803 = vmatpush1.bf16.msra.mxu0 %v800
      %804 = vmatprep.subr.bf16.mxu0 0
      %805 = vmatpush1.bf16.msra.mxu0 0
      %806 = vmatprep.subr.bf16.mxu0 0
      %807 = vmatpush1.bf16.msra.mxu0 0
      %808 = vmatprep.subr.bf16.mxu0 0
      %809 = vmatpush1.bf16.msra.mxu0 0
      %810 = vmatprep.subr.bf16.mxu0 0
      %811 = vmatpush1.bf16.msra.mxu0 0
      %812 = vmatprep.subr.bf16.mxu0 0
      %813 = vmatpush1.bf16.msra.mxu0 0
      %814 = vmatprep.subr.bf16.mxu0 0
      %815 = vmatpush1.bf16.msra.mxu0 0
      %816 = vmatprep.subr.bf16.mxu0 0
      %817 = vmatpush1.bf16.msra.mxu0 0
      %818 = vmatprep.subr.bf16.mxu0 0
      %819 = vmatpush1.bf16.msra.mxu0 0
      %820 = vmatprep.subr.bf16.mxu0 0
      %821 = vmatpush1.bf16.msra.mxu0 0
      %822 = vmatprep.subr.bf16.mxu0 0
      %823 = vmatpush1.bf16.msra.mxu0 0
      %824 = vmatprep.subr.bf16.mxu0 0
      %825 = vmatpush1.bf16.msra.mxu0 0
      %826 = vmatprep.subr.bf16.mxu0 0
      %827 = vmatpush1.bf16.msra.mxu0 0
      %828 = vmatprep.subr.bf16.mxu0 0
      %829 = vmatpush1.bf16.msra.mxu0 0
      %830 = vmatprep.subr.bf16.mxu0 0
      %831 = vmatpush1.bf16.msra.mxu0 0
      %832 = vmatprep.subr.bf16.mxu0 0
      %833 = vmatpush1.bf16.msra.mxu0 0
      %834 = vmatprep.mubr.bf16.mxu0 0
      %835 = vmatmul.mubr.bf16.gmra.mrb[0].mxu0 %v547
      %v836 = vpop.f32.mrb[0].mxu0
      %v837 = vadd.f32 %v797, %v836
      %v838 = vpop.f32.mrb[0].mxu0
      %v839 = vpop.f32.mrb[0].mxu0
      %v840 = vadd.f32 %v797, %v839
      %v841 = vpop.f32.mrb[0].mxu0
      %842 = vmatprep.mubr.bf16.mxu0 0
      %843 = vmatmul.mubr.bf16.gmra.mrb[0].mxu0 %v550
      %v844 = vpop.f32.mrb[0].mxu0
      %v845 = vadd.f32 %v797, %v844
      %v846 = vpop.f32.mrb[0].mxu0
      %v847 = vpop.f32.mrb[0].mxu0
      %v848 = vadd.f32 %v797, %v847
      %v849 = vpop.f32.mrb[0].mxu0
      %850 = vmatprep.mubr.bf16.mxu0 0
      %851 = vmatmul.mubr.bf16.gmra.mrb[0].mxu0 %v553
      %v852 = vpop.f32.mrb[0].mxu0
      %v853 = vadd.f32 %v797, %v852
      %v854 = vpop.f32.mrb[0].mxu0
      %v855 = vpop.f32.mrb[0].mxu0
      %v856 = vadd.f32 %v797, %v855
      %v857 = vpop.f32.mrb[0].mxu0
      %858 = vmatprep.mubr.bf16.mxu0 0
      %859 = vmatmul.mubr.bf16.gmra.mrb[0].mxu0 %v556
      %v860 = vpop.f32.mrb[0].mxu0
      %v861 = vadd.f32 %v797, %v860
      %v862 = vpop.f32.mrb[0].mxu0
      %v863 = vpop.f32.mrb[0].mxu0
      %v864 = vadd.f32 %v797, %v863
      %v865 = vpop.f32.mrb[0].mxu0
      %866 = vmatprep.mubr.bf16.mxu0 0
      %867 = vmatmul.mubr.bf16.gmra.mrb[0].mxu0 %v559
      %v868 = vpop.f32.mrb[0].mxu0
      %v869 = vadd.f32 %v797, %v868
      %v870 = vpop.f32.mrb[0].mxu0
      %v871 = vpop.f32.mrb[0].mxu0
      %v872 = vadd.f32 %v797, %v871
      %v873 = vpop.f32.mrb[0].mxu0
      %874 = vmatprep.mubr.bf16.mxu0 0
      %875 = vmatmul.mubr.bf16.gmra.mrb[0].mxu0 %v562
      %v876 = vpop.f32.mrb[0].mxu0
      %v877 = vadd.f32 %v797, %v876
      %v878 = vpop.f32.mrb[0].mxu0
      %v879 = vpop.f32.mrb[0].mxu0
      %v880 = vadd.f32 %v797, %v879
      %v881 = vpop.f32.mrb[0].mxu0
      %882 = vmatprep.mubr.bf16.mxu0 0
      %883 = vmatmul.mubr.bf16.gmra.mrb[0].mxu0 %v565
      %v884 = vpop.f32.mrb[0].mxu0
      %v885 = vadd.f32 %v797, %v884
      %v886 = vpop.f32.mrb[0].mxu0
      %v887 = vpop.f32.mrb[0].mxu0
      %v888 = vadd.f32 %v797, %v887
      %v889 = vpop.f32.mrb[0].mxu0
      %890 = vmatprep.mubr.bf16.mxu0 0
      %891 = vmatmul.mubr.bf16.gmra.mrb[0].mxu0 %v568
      %v892 = vpop.f32.mrb[0].mxu0
      %v893 = vadd.f32 %v797, %v892
      %v894 = vpop.f32.mrb[0].mxu0
      %v895 = vpop.f32.mrb[0].mxu0
      %v896 = vadd.f32 %v797, %v895
      %v897 = vpop.f32.mrb[0].mxu0
      %898 = vmatprep.mubr.bf16.mxu0 0
      %899 = vmatmul.mubr.bf16.gmra.mrb[0].mxu0 %v571
      %v900 = vpop.f32.mrb[0].mxu0
      %v901 = vadd.f32 %v797, %v900
      %v902 = vpop.f32.mrb[0].mxu0
      %v903 = vpop.f32.mrb[0].mxu0
      %v904 = vadd.f32 %v797, %v903
      %v905 = vpop.f32.mrb[0].mxu0
      %906 = vmatprep.mubr.bf16.mxu0 0
      %907 = vmatmul.mubr.bf16.gmra.mrb[0].mxu0 %v574
      %v908 = vpop.f32.mrb[0].mxu0
      %v909 = vadd.f32 %v797, %v908
      %v910 = vpop.f32.mrb[0].mxu0
      %v911 = vpop.f32.mrb[0].mxu0
      %v912 = vadd.f32 %v797, %v911
      %v913 = vpop.f32.mrb[0].mxu0
      %914 = vmatprep.mubr.bf16.mxu0 0
      %915 = vmatmul.mubr.bf16.gmra.mrb[0].mxu0 %v577
      %v916 = vpop.f32.mrb[0].mxu0
      %v917 = vadd.f32 %v797, %v916
      %v918 = vpop.f32.mrb[0].mxu0
      %v919 = vpop.f32.mrb[0].mxu0
      %v920 = vadd.f32 %v797, %v919
      %v921 = vpop.f32.mrb[0].mxu0
      %922 = vmatprep.mubr.bf16.mxu0 0
      %923 = vmatmul.mubr.bf16.gmra.mrb[0].mxu0 %v580
      %v924 = vpop.f32.mrb[0].mxu0
      %v925 = vadd.f32 %v797, %v924
      %v926 = vpop.f32.mrb[0].mxu0
      %v927 = vpop.f32.mrb[0].mxu0
      %v928 = vadd.f32 %v797, %v927
      %v929 = vpop.f32.mrb[0].mxu0
      %930 = vmatprep.mubr.bf16.mxu0 0
      %931 = vmatmul.mubr.bf16.gmra.mrb[0].mxu0 %v583
      %v932 = vpop.f32.mrb[0].mxu0
      %v933 = vadd.f32 %v797, %v932
      %v934 = vpop.f32.mrb[0].mxu0
      %v935 = vpop.f32.mrb[0].mxu0
      %v936 = vadd.f32 %v797, %v935
      %v937 = vpop.f32.mrb[0].mxu0
      %938 = vmatprep.mubr.bf16.mxu0 0
      %939 = vmatmul.mubr.bf16.gmra.mrb[0].mxu0 %v586
      %v940 = vpop.f32.mrb[0].mxu0
      %v941 = vadd.f32 %v797, %v940
      %v942 = vpop.f32.mrb[0].mxu0
      %v943 = vpop.f32.mrb[0].mxu0
      %v944 = vadd.f32 %v797, %v943
      %v945 = vpop.f32.mrb[0].mxu0
      %946 = vmatprep.mubr.bf16.mxu0 0
      %947 = vmatmul.mubr.bf16.gmra.mrb[0].mxu0 %v589
      %v948 = vpop.f32.mrb[0].mxu0
      %v949 = vadd.f32 %v797, %v948
      %v950 = vpop.f32.mrb[0].mxu0
      %v951 = vpop.f32.mrb[0].mxu0
      %v952 = vadd.f32 %v797, %v951
      %v953 = vpop.f32.mrb[0].mxu0
      %954 = vmatprep.mubr.bf16.mxu0 0
      %955 = vmatmul.mubr.bf16.gmra.mrb[0].mxu0 %v592
      %v956 = vpop.f32.mrb[0].mxu0
      %v957 = vadd.f32 %v797, %v956
      %v958 = vpop.f32.mrb[0].mxu0
      %v959 = vpop.f32.mrb[0].mxu0
      %v960 = vadd.f32 %v797, %v959
      %v961 = vpop.f32.mrb[0].mxu0
      %962 = vdwg.mxu0
      %v963 = vmax.f32 %v837, 0.0
      %v964 = vmax.f32 %v840, 0.0
      %v965 = vmax.f32 %v845, 0.0
      %v966 = vmax.f32 %v848, 0.0
      %v967 = vmax.f32 %v853, 0.0
      %v968 = vmax.f32 %v856, 0.0
      %v969 = vmax.f32 %v861, 0.0
      %v970 = vmax.f32 %v864, 0.0
      %v971 = vmax.f32 %v869, 0.0
      %v972 = vmax.f32 %v872, 0.0
      %v973 = vmax.f32 %v877, 0.0
      %v974 = vmax.f32 %v880, 0.0
      %v975 = vmax.f32 %v885, 0.0
      %v976 = vmax.f32 %v888, 0.0
      %v977 = vmax.f32 %v893, 0.0
      %v978 = vmax.f32 %v896, 0.0
      %v979 = vmax.f32 %v901, 0.0
      %v980 = vmax.f32 %v904, 0.0
      %v981 = vmax.f32 %v909, 0.0
      %v982 = vmax.f32 %v912, 0.0
      %v983 = vmax.f32 %v917, 0.0
      %v984 = vmax.f32 %v920, 0.0
      %v985 = vmax.f32 %v925, 0.0
      %v986 = vmax.f32 %v928, 0.0
      %v987 = vmax.f32 %v933, 0.0
      %v988 = vmax.f32 %v936, 0.0
      %v989 = vmax.f32 %v941, 0.0
      %v990 = vmax.f32 %v944, 0.0
      %v991 = vmax.f32 %v949, 0.0
      %v992 = vmax.f32 %v952, 0.0
      %v993 = vmax.f32 %v957, 0.0
      %v994 = vmax.f32 %v960, 0.0
      %995 = vst.msk [vmem:[#allocation2] sm:$0xff] %vm442, %v759
      %996 = vst.msk [vmem:[#allocation2 + $0x8] sm:$0xff] %vm442, %v760
      %997 = vst.msk [vmem:[#allocation2 + $0x10] sm:$0xff] %vm442, %v761
      %998 = vst.msk [vmem:[#allocation2 + $0x18] sm:$0xff] %vm442, %v762
      %999 = vst.msk [vmem:[#allocation2 + $0x20] sm:$0xff] %vm442, %v763
      %1000 = vst.msk [vmem:[#allocation2 + $0x28] sm:$0xff] %vm442, %v764
      %1001 = vst.msk [vmem:[#allocation2 + $0x30] sm:$0xff] %vm442, %v765
      %1002 = vst.msk [vmem:[#allocation2 + $0x38] sm:$0xff] %vm442, %v766
      %1003 = vst.msk [vmem:[#allocation2 + $0x40] sm:$0xff] %vm442, %v767
      %1004 = vst.msk [vmem:[#allocation2 + $0x48] sm:$0xff] %vm442, %v768
      %1005 = vst.msk [vmem:[#allocation2 + $0x50] sm:$0xff] %vm442, %v769
      %1006 = vst.msk [vmem:[#allocation2 + $0x58] sm:$0xff] %vm442, %v770
      %1007 = vst.msk [vmem:[#allocation2 + $0x60] sm:$0xff] %vm442, %v771
      %1008 = vst.msk [vmem:[#allocation2 + $0x68] sm:$0xff] %vm442, %v772
      %1009 = vst.msk [vmem:[#allocation2 + $0x70] sm:$0xff] %vm442, %v773
      %1010 = vst.msk [vmem:[#allocation2 + $0x78] sm:$0xff] %vm442, %v774
      %1011 = vst.msk [vmem:[#allocation2 + $0x80] sm:$0xff] %vm442, %v775
      %1012 = vst.msk [vmem:[#allocation2 + $0x88] sm:$0xff] %vm442, %v776
      %1013 = vst.msk [vmem:[#allocation2 + $0x90] sm:$0xff] %vm442, %v777
      %1014 = vst.msk [vmem:[#allocation2 + $0x98] sm:$0xff] %vm442, %v778
      %1015 = vst.msk [vmem:[#allocation2 + $0xa0] sm:$0xff] %vm442, %v779
      %1016 = vst.msk [vmem:[#allocation2 + $0xa8] sm:$0xff] %vm442, %v780
      %1017 = vst.msk [vmem:[#allocation2 + $0xb0] sm:$0xff] %vm442, %v781
      %1018 = vst.msk [vmem:[#allocation2 + $0xb8] sm:$0xff] %vm442, %v782
      %1019 = vst.msk [vmem:[#allocation2 + $0xc0] sm:$0xff] %vm442, %v783
      %1020 = vst.msk [vmem:[#allocation2 + $0xc8] sm:$0xff] %vm442, %v784
      %1021 = vst.msk [vmem:[#allocation2 + $0xd0] sm:$0xff] %vm442, %v785
      %1022 = vst.msk [vmem:[#allocation2 + $0xd8] sm:$0xff] %vm442, %v786
      %1023 = vst.msk [vmem:[#allocation2 + $0xe0] sm:$0xff] %vm442, %v787
      %1024 = vst.msk [vmem:[#allocation2 + $0xe8] sm:$0xff] %vm442, %v788
      %1025 = vst.msk [vmem:[#allocation2 + $0xf0] sm:$0xff] %vm442, %v789
      %1026 = vst.msk [vmem:[#allocation2 + $0xf8] sm:$0xff] %vm442, %v790
      %1027 = vst.msk [vmem:[#allocation3 + $0x8] sm:$0xff] %vm442, %v963
      %1028 = vst.msk [vmem:[#allocation3 + $0x10] sm:$0xff] %vm442, %v964
      %1029 = vst.msk [vmem:[#allocation3 + $0x28] sm:$0xff] %vm442, %v965
      %1030 = vst.msk [vmem:[#allocation3 + $0x30] sm:$0xff] %vm442, %v966
      %1031 = vst.msk [vmem:[#allocation3 + $0x48] sm:$0xff] %vm442, %v967
      %1032 = vst.msk [vmem:[#allocation3 + $0x50] sm:$0xff] %vm442, %v968
      %1033 = vst.msk [vmem:[#allocation3 + $0x68] sm:$0xff] %vm442, %v969
      %1034 = vst.msk [vmem:[#allocation3 + $0x70] sm:$0xff] %vm442, %v970
      %1035 = vst.msk [vmem:[#allocation3 + $0x88] sm:$0xff] %vm442, %v971
      %1036 = vst.msk [vmem:[#allocation3 + $0x90] sm:$0xff] %vm442, %v972
      %1037 = vst.msk [vmem:[#allocation3 + $0xa8] sm:$0xff] %vm442, %v973
      %1038 = vst.msk [vmem:[#allocation3 + $0xb0] sm:$0xff] %vm442, %v974
      %1039 = vst.msk [vmem:[#allocation3 + $0xc8] sm:$0xff] %vm442, %v975
      %1040 = vst.msk [vmem:[#allocation3 + $0xd0] sm:$0xff] %vm442, %v976
      %1041 = vst.msk [vmem:[#allocation3 + $0xe8] sm:$0xff] %vm442, %v977
      %1042 = vst.msk [vmem:[#allocation3 + $0xf0] sm:$0xff] %vm442, %v978
      %1043 = vst.msk [vmem:[#allocation3 + $0x108] sm:$0xff] %vm442, %v979
      %1044 = vst.msk [vmem:[#allocation3 + $0x110] sm:$0xff] %vm442, %v980
      %1045 = vst.msk [vmem:[#allocation3 + $0x128] sm:$0xff] %vm442, %v981
      %1046 = vst.msk [vmem:[#allocation3 + $0x130] sm:$0xff] %vm442, %v982
      %1047 = vst.msk [vmem:[#allocation3 + $0x148] sm:$0xff] %vm442, %v983
      %1048 = vst.msk [vmem:[#allocation3 + $0x150] sm:$0xff] %vm442, %v984
      %1049 = vst.msk [vmem:[#allocation3 + $0x168] sm:$0xff] %vm442, %v985
      %1050 = vst.msk [vmem:[#allocation3 + $0x170] sm:$0xff] %vm442, %v986
      %1051 = vst.msk [vmem:[#allocation3 + $0x188] sm:$0xff] %vm442, %v987
      %1052 = vst.msk [vmem:[#allocation3 + $0x190] sm:$0xff] %vm442, %v988
      %1053 = vst.msk [vmem:[#allocation3 + $0x1a8] sm:$0xff] %vm442, %v989
      %1054 = vst.msk [vmem:[#allocation3 + $0x1b0] sm:$0xff] %vm442, %v990
      %1055 = vst.msk [vmem:[#allocation3 + $0x1c8] sm:$0xff] %vm442, %v991
      %1056 = vst.msk [vmem:[#allocation3 + $0x1d0] sm:$0xff] %vm442, %v992
      %1057 = vst.msk [vmem:[#allocation3 + $0x1e8] sm:$0xff] %vm442, %v993
      %1058 = vst.msk [vmem:[#allocation3 + $0x1f0] sm:$0xff] %vm442, %v994
      %v1059 = vld [vmem:[#allocation2] ss:$2 sm:$0x7f]
      %s1060 = scalar_lea.vmem [#allocation2], 32
      %v1061 = vld [vmem:[%s1060] ss:$2 sm:$0x7f]
      %s1062 = scalar_lea.vmem [#allocation2], 64
      %v1063 = vld [vmem:[%s1062] ss:$2 sm:$0x7f]
      %s1064 = scalar_lea.vmem [#allocation2], 96
      %v1065 = vld [vmem:[%s1064] ss:$2 sm:$0x7f]
      %s1066 = scalar_lea.vmem [#allocation2], 128
      %v1067 = vld [vmem:[%s1066] ss:$2 sm:$0x7f]
      %s1068 = scalar_lea.vmem [#allocation2], 160
      %v1069 = vld [vmem:[%s1068] ss:$2 sm:$0x7f]
      %s1070 = scalar_lea.vmem [#allocation2], 192
      %v1071 = vld [vmem:[%s1070] ss:$2 sm:$0x7f]
      %s1072 = scalar_lea.vmem [#allocation2], 1
      %v1073 = vld [vmem:[%s1072] ss:$2 sm:$0x7f]
      %s1074 = scalar_lea.vmem [#allocation2], 33
      %v1075 = vld [vmem:[%s1074] ss:$2 sm:$0x7f]
      %s1076 = scalar_lea.vmem [#allocation2], 65
      %v1077 = vld [vmem:[%s1076] ss:$2 sm:$0x7f]
      %s1078 = scalar_lea.vmem [#allocation2], 97
      %v1079 = vld [vmem:[%s1078] ss:$2 sm:$0x7f]
      %s1080 = scalar_lea.vmem [#allocation2], 129
      %v1081 = vld [vmem:[%s1080] ss:$2 sm:$0x7f]
      %s1082 = scalar_lea.vmem [#allocation2], 161
      %v1083 = vld [vmem:[%s1082] ss:$2 sm:$0x7f]
      %s1084 = scalar_lea.vmem [#allocation2], 193
      %v1085 = vld [vmem:[%s1084] ss:$2 sm:$0x7f]
      %s1086 = scalar_lea.vmem [#allocation2], 2
      %v1087 = vld [vmem:[%s1086] ss:$2 sm:$0x7f]
      %s1088 = scalar_lea.vmem [#allocation2], 34
      %v1089 = vld [vmem:[%s1088] ss:$2 sm:$0x7f]
      %s1090 = scalar_lea.vmem [#allocation2], 66
      %v1091 = vld [vmem:[%s1090] ss:$2 sm:$0x7f]
      %s1092 = scalar_lea.vmem [#allocation2], 98
      %v1093 = vld [vmem:[%s1092] ss:$2 sm:$0x7f]
      %s1094 = scalar_lea.vmem [#allocation2], 130
      %v1095 = vld [vmem:[%s1094] ss:$2 sm:$0x7f]
      %s1096 = scalar_lea.vmem [#allocation2], 162
      %v1097 = vld [vmem:[%s1096] ss:$2 sm:$0x7f]
      %s1098 = scalar_lea.vmem [#allocation2], 194
      %v1099 = vld [vmem:[%s1098] ss:$2 sm:$0x7f]
      %s1100 = scalar_lea.vmem [#allocation2], 16
      %v1101 = vld [vmem:[%s1100] ss:$2 sm:$0x7f]
      %s1102 = scalar_lea.vmem %s1100, 32 [#allocation2]
      %v1103 = vld [vmem:[%s1102] ss:$2 sm:$0x7f]
      %s1104 = scalar_lea.vmem %s1100, 64 [#allocation2]
      %v1105 = vld [vmem:[%s1104] ss:$2 sm:$0x7f]
      %s1106 = scalar_lea.vmem %s1100, 96 [#allocation2]
      %v1107 = vld [vmem:[%s1106] ss:$2 sm:$0x7f]
      %s1108 = scalar_lea.vmem %s1100, 128 [#allocation2]
      %v1109 = vld [vmem:[%s1108] ss:$2 sm:$0x7f]
      %s1110 = scalar_lea.vmem %s1100, 160 [#allocation2]
      %v1111 = vld [vmem:[%s1110] ss:$2 sm:$0x7f]
      %s1112 = scalar_lea.vmem %s1100, 192 [#allocation2]
      %v1113 = vld [vmem:[%s1112] ss:$2 sm:$0x7f]
      %s1114 = scalar_lea.vmem %s1100, 1 [#allocation2]
      %v1115 = vld [vmem:[%s1114] ss:$2 sm:$0x7f]
      %s1116 = scalar_lea.vmem %s1100, 33 [#allocation2]
      %v1117 = vld [vmem:[%s1116] ss:$2 sm:$0x7f]
      %s1118 = scalar_lea.vmem %s1100, 65 [#allocation2]
      %v1119 = vld [vmem:[%s1118] ss:$2 sm:$0x7f]
      %s1120 = scalar_lea.vmem %s1100, 97 [#allocation2]
      %v1121 = vld [vmem:[%s1120] ss:$2 sm:$0x7f]
      %s1122 = scalar_lea.vmem %s1100, 129 [#allocation2]
      %v1123 = vld [vmem:[%s1122] ss:$2 sm:$0x7f]
      %s1124 = scalar_lea.vmem %s1100, 161 [#allocation2]
      %v1125 = vld [vmem:[%s1124] ss:$2 sm:$0x7f]
      %s1126 = scalar_lea.vmem %s1100, 193 [#allocation2]
      %v1127 = vld [vmem:[%s1126] ss:$2 sm:$0x7f]
      %s1128 = scalar_lea.vmem %s1100, 2 [#allocation2]
      %v1129 = vld [vmem:[%s1128] ss:$2 sm:$0x7f]
      %s1130 = scalar_lea.vmem %s1100, 34 [#allocation2]
      %v1131 = vld [vmem:[%s1130] ss:$2 sm:$0x7f]
      %s1132 = scalar_lea.vmem %s1100, 66 [#allocation2]
      %v1133 = vld [vmem:[%s1132] ss:$2 sm:$0x7f]
      %s1134 = scalar_lea.vmem %s1100, 98 [#allocation2]
      %v1135 = vld [vmem:[%s1134] ss:$2 sm:$0x7f]
      %s1136 = scalar_lea.vmem %s1100, 130 [#allocation2]
      %v1137 = vld [vmem:[%s1136] ss:$2 sm:$0x7f]
      %s1138 = scalar_lea.vmem %s1100, 162 [#allocation2]
      %v1139 = vld [vmem:[%s1138] ss:$2 sm:$0x7f]
      %s1140 = scalar_lea.vmem %s1100, 194 [#allocation2]
      %v1141 = vld [vmem:[%s1140] ss:$2 sm:$0x7f]
      %s1142 = scalar_lea.vmem [#allocation2], 32
      %v1143 = vld [vmem:[%s1142] ss:$2 sm:$0x7f]
      %s1144 = scalar_lea.vmem %s1142, 32 [#allocation2]
      %v1145 = vld [vmem:[%s1144] ss:$2 sm:$0x7f]
      %s1146 = scalar_lea.vmem %s1142, 64 [#allocation2]
      %v1147 = vld [vmem:[%s1146] ss:$2 sm:$0x7f]
      %s1148 = scalar_lea.vmem %s1142, 96 [#allocation2]
      %v1149 = vld [vmem:[%s1148] ss:$2 sm:$0x7f]
      %s1150 = scalar_lea.vmem %s1142, 128 [#allocation2]
      %v1151 = vld [vmem:[%s1150] ss:$2 sm:$0x7f]
      %s1152 = scalar_lea.vmem %s1142, 160 [#allocation2]
      %v1153 = vld [vmem:[%s1152] ss:$2 sm:$0x7f]
      %s1154 = scalar_lea.vmem %s1142, 192 [#allocation2]
      %v1155 = vld [vmem:[%s1154] ss:$2 sm:$0x7f]
      %s1156 = scalar_lea.vmem %s1142, 1 [#allocation2]
      %v1157 = vld [vmem:[%s1156] ss:$2 sm:$0x7f]
      %s1158 = scalar_lea.vmem %s1142, 33 [#allocation2]
      %v1159 = vld [vmem:[%s1158] ss:$2 sm:$0x7f]
      %s1160 = scalar_lea.vmem %s1142, 65 [#allocation2]
      %v1161 = vld [vmem:[%s1160] ss:$2 sm:$0x7f]
      %s1162 = scalar_lea.vmem %s1142, 97 [#allocation2]
      %v1163 = vld [vmem:[%s1162] ss:$2 sm:$0x7f]
      %s1164 = scalar_lea.vmem %s1142, 129 [#allocation2]
      %v1165 = vld [vmem:[%s1164] ss:$2 sm:$0x7f]
      %s1166 = scalar_lea.vmem %s1142, 161 [#allocation2]
      %v1167 = vld [vmem:[%s1166] ss:$2 sm:$0x7f]
      %s1168 = scalar_lea.vmem %s1142, 193 [#allocation2]
      %v1169 = vld [vmem:[%s1168] ss:$2 sm:$0x7f]
      %s1170 = scalar_lea.vmem %s1142, 2 [#allocation2]
      %v1171 = vld [vmem:[%s1170] ss:$2 sm:$0x7f]
      %s1172 = scalar_lea.vmem %s1142, 34 [#allocation2]
      %v1173 = vld [vmem:[%s1172] ss:$2 sm:$0x7f]
      %s1174 = scalar_lea.vmem %s1142, 66 [#allocation2]
      %v1175 = vld [vmem:[%s1174] ss:$2 sm:$0x7f]
      %s1176 = scalar_lea.vmem %s1142, 98 [#allocation2]
      %v1177 = vld [vmem:[%s1176] ss:$2 sm:$0x7f]
      %s1178 = scalar_lea.vmem %s1142, 130 [#allocation2]
      %v1179 = vld [vmem:[%s1178] ss:$2 sm:$0x7f]
      %s1180 = scalar_lea.vmem %s1142, 162 [#allocation2]
      %v1181 = vld [vmem:[%s1180] ss:$2 sm:$0x7f]
      %s1182 = scalar_lea.vmem %s1142, 194 [#allocation2]
      %v1183 = vld [vmem:[%s1182] ss:$2 sm:$0x7f]
      %1191 = vrot.lane.b32.xlu0 %v1073, 8
      %v1192 = vpop.permute.xlu0 %1191
      %1193 = vrot.lane.b32.xlu0 %v1075, 8
      %v1194 = vpop.permute.xlu0 %1193
      %1195 = vrot.lane.b32.xlu0 %v1077, 8
      %v1196 = vpop.permute.xlu0 %1195
      %1197 = vrot.lane.b32.xlu0 %v1079, 8
      %v1198 = vpop.permute.xlu0 %1197
      %1199 = vrot.lane.b32.xlu0 %v1081, 8
      %v1200 = vpop.permute.xlu0 %1199
      %1201 = vrot.lane.b32.xlu0 %v1083, 8
      %v1202 = vpop.permute.xlu0 %1201
      %1203 = vrot.lane.b32.xlu0 %v1085, 8
      %v1204 = vpop.permute.xlu0 %1203
      %1219 = vrot.lane.b32.xlu0 %v1087, 16
      %v1220 = vpop.permute.xlu0 %1219
      %1221 = vrot.lane.b32.xlu0 %v1089, 16
      %v1222 = vpop.permute.xlu0 %1221
      %1223 = vrot.lane.b32.xlu0 %v1091, 16
      %v1224 = vpop.permute.xlu0 %1223
      %1225 = vrot.lane.b32.xlu0 %v1093, 16
      %v1226 = vpop.permute.xlu0 %1225
      %1227 = vrot.lane.b32.xlu0 %v1095, 16
      %v1228 = vpop.permute.xlu0 %1227
      %1229 = vrot.lane.b32.xlu0 %v1097, 16
      %v1230 = vpop.permute.xlu0 %1229
      %1231 = vrot.lane.b32.xlu0 %v1099, 16
      %v1232 = vpop.permute.xlu0 %1231
      %1247 = vrot.lane.b32.xlu0 %v1101, 24
      %v1248 = vpop.permute.xlu0 %1247
      %1249 = vrot.lane.b32.xlu0 %v1103, 24
      %v1250 = vpop.permute.xlu0 %1249
      %1251 = vrot.lane.b32.xlu0 %v1105, 24
      %v1252 = vpop.permute.xlu0 %1251
      %1253 = vrot.lane.b32.xlu0 %v1107, 24
      %v1254 = vpop.permute.xlu0 %1253
      %1255 = vrot.lane.b32.xlu0 %v1109, 24
      %v1256 = vpop.permute.xlu0 %1255
      %1257 = vrot.lane.b32.xlu0 %v1111, 24
      %v1258 = vpop.permute.xlu0 %1257
      %1259 = vrot.lane.b32.xlu0 %v1113, 24
      %v1260 = vpop.permute.xlu0 %1259
      %1275 = vrot.lane.b32.xlu0 %v1115, 32
      %v1276 = vpop.permute.xlu0 %1275
      %1277 = vrot.lane.b32.xlu0 %v1117, 32
      %v1278 = vpop.permute.xlu0 %1277
      %1279 = vrot.lane.b32.xlu0 %v1119, 32
      %v1280 = vpop.permute.xlu0 %1279
      %1281 = vrot.lane.b32.xlu0 %v1121, 32
      %v1282 = vpop.permute.xlu0 %1281
      %1283 = vrot.lane.b32.xlu0 %v1123, 32
      %v1284 = vpop.permute.xlu0 %1283
      %1285 = vrot.lane.b32.xlu0 %v1125, 32
      %v1286 = vpop.permute.xlu0 %1285
      %1287 = vrot.lane.b32.xlu0 %v1127, 32
      %v1288 = vpop.permute.xlu0 %1287
      %1303 = vrot.lane.b32.xlu0 %v1129, 40
      %v1304 = vpop.permute.xlu0 %1303
      %1305 = vrot.lane.b32.xlu0 %v1131, 40
      %v1306 = vpop.permute.xlu0 %1305
      %1307 = vrot.lane.b32.xlu0 %v1133, 40
      %v1308 = vpop.permute.xlu0 %1307
      %1309 = vrot.lane.b32.xlu0 %v1135, 40
      %v1310 = vpop.permute.xlu0 %1309
      %1311 = vrot.lane.b32.xlu0 %v1137, 40
      %v1312 = vpop.permute.xlu0 %1311
      %1313 = vrot.lane.b32.xlu0 %v1139, 40
      %v1314 = vpop.permute.xlu0 %1313
      %1315 = vrot.lane.b32.xlu0 %v1141, 40
      %v1316 = vpop.permute.xlu0 %1315
      %1331 = vrot.lane.b32.xlu0 %v1143, 48
      %v1332 = vpop.permute.xlu0 %1331
      %1333 = vrot.lane.b32.xlu0 %v1145, 48
      %v1334 = vpop.permute.xlu0 %1333
      %1335 = vrot.lane.b32.xlu0 %v1147, 48
      %v1336 = vpop.permute.xlu0 %1335
      %1337 = vrot.lane.b32.xlu0 %v1149, 48
      %v1338 = vpop.permute.xlu0 %1337
      %1339 = vrot.lane.b32.xlu0 %v1151, 48
      %v1340 = vpop.permute.xlu0 %1339
      %1341 = vrot.lane.b32.xlu0 %v1153, 48
      %v1342 = vpop.permute.xlu0 %1341
      %1343 = vrot.lane.b32.xlu0 %v1155, 48
      %v1344 = vpop.permute.xlu0 %1343
      %1359 = vrot.lane.b32.xlu0 %v1157, 56
      %v1360 = vpop.permute.xlu0 %1359
      %1361 = vrot.lane.b32.xlu0 %v1159, 56
      %v1362 = vpop.permute.xlu0 %1361
      %1363 = vrot.lane.b32.xlu0 %v1161, 56
      %v1364 = vpop.permute.xlu0 %1363
      %1365 = vrot.lane.b32.xlu0 %v1163, 56
      %v1366 = vpop.permute.xlu0 %1365
      %1367 = vrot.lane.b32.xlu0 %v1165, 56
      %v1368 = vpop.permute.xlu0 %1367
      %1369 = vrot.lane.b32.xlu0 %v1167, 56
      %v1370 = vpop.permute.xlu0 %1369
      %1371 = vrot.lane.b32.xlu0 %v1169, 56
      %v1372 = vpop.permute.xlu0 %1371
      %1387 = vrot.lane.b32.xlu0 %v1171, 64
      %v1388 = vpop.permute.xlu0 %1387
      %1389 = vrot.lane.b32.xlu0 %v1173, 64
      %v1390 = vpop.permute.xlu0 %1389
      %1391 = vrot.lane.b32.xlu0 %v1175, 64
      %v1392 = vpop.permute.xlu0 %1391
      %1393 = vrot.lane.b32.xlu0 %v1177, 64
      %v1394 = vpop.permute.xlu0 %1393
      %1395 = vrot.lane.b32.xlu0 %v1179, 64
      %v1396 = vpop.permute.xlu0 %1395
      %1397 = vrot.lane.b32.xlu0 %v1181, 64
      %v1398 = vpop.permute.xlu0 %1397
      %1399 = vrot.lane.b32.xlu0 %v1183, 64
      %v1400 = vpop.permute.xlu0 %1399
      %v1408 = vsel %vm442, %v1059, %v1192
      %v1409 = vsel %vm442, %v1061, %v1194
      %v1410 = vsel %vm442, %v1063, %v1196
      %v1411 = vsel %vm442, %v1065, %v1198
      %v1412 = vsel %vm442, %v1067, %v1200
      %v1413 = vsel %vm442, %v1069, %v1202
      %v1414 = vsel %vm442, %v1071, %v1204
      %vm1415 = vcmask 130048
      %v1416 = vsel %vm1415, %v1408, %v1220
      %v1417 = vsel %vm1415, %v1409, %v1222
      %v1418 = vsel %vm1415, %v1410, %v1224
      %v1419 = vsel %vm1415, %v1411, %v1226
      %v1420 = vsel %vm1415, %v1412, %v1228
      %v1421 = vsel %vm1415, %v1413, %v1230
      %v1422 = vsel %vm1415, %v1414, %v1232
      %vm1423 = vcmask 195584
      %v1424 = vsel %vm1423, %v1416, %v1248
      %v1425 = vsel %vm1423, %v1417, %v1250
      %v1426 = vsel %vm1423, %v1418, %v1252
      %v1427 = vsel %vm1423, %v1419, %v1254
      %v1428 = vsel %vm1423, %v1420, %v1256
      %v1429 = vsel %vm1423, %v1421, %v1258
      %v1430 = vsel %vm1423, %v1422, %v1260
      %vm1431 = vcmask 261120
      %v1432 = vsel %vm1431, %v1424, %v1276
      %v1433 = vsel %vm1431, %v1425, %v1278
      %v1434 = vsel %vm1431, %v1426, %v1280
      %v1435 = vsel %vm1431, %v1427, %v1282
      %v1436 = vsel %vm1431, %v1428, %v1284
      %v1437 = vsel %vm1431, %v1429, %v1286
      %v1438 = vsel %vm1431, %v1430, %v1288
      %vm1439 = vcmask 326656
      %v1440 = vsel %vm1439, %v1432, %v1304
      %v1441 = vsel %vm1439, %v1433, %v1306
      %v1442 = vsel %vm1439, %v1434, %v1308
      %v1443 = vsel %vm1439, %v1435, %v1310
      %v1444 = vsel %vm1439, %v1436, %v1312
      %v1445 = vsel %vm1439, %v1437, %v1314
      %v1446 = vsel %vm1439, %v1438, %v1316
      %vm1447 = vcmask 392192
      %v1448 = vsel %vm1447, %v1440, %v1332
      %v1449 = vsel %vm1447, %v1441, %v1334
      %v1450 = vsel %vm1447, %v1442, %v1336
      %v1451 = vsel %vm1447, %v1443, %v1338
      %v1452 = vsel %vm1447, %v1444, %v1340
      %v1453 = vsel %vm1447, %v1445, %v1342
      %v1454 = vsel %vm1447, %v1446, %v1344
      %vm1455 = vcmask 457728
      %v1456 = vsel %vm1455, %v1448, %v1360
      %v1457 = vsel %vm1455, %v1449, %v1362
      %v1458 = vsel %vm1455, %v1450, %v1364
      %v1459 = vsel %vm1455, %v1451, %v1366
      %v1460 = vsel %vm1455, %v1452, %v1368
      %v1461 = vsel %vm1455, %v1453, %v1370
      %v1462 = vsel %vm1455, %v1454, %v1372
      %vm1463 = vcmask 523264
      %v1464 = vsel %vm1463, %v1456, %v1388
      %v1465 = vsel %vm1463, %v1457, %v1390
      %v1466 = vsel %vm1463, %v1458, %v1392
      %v1467 = vsel %vm1463, %v1459, %v1394
      %v1468 = vsel %vm1463, %v1460, %v1396
      %v1469 = vsel %vm1463, %v1461, %v1398
      %v1470 = vsel %vm1463, %v1462, %v1400
      %v1478 = vcombine.high %v1464, %v1464
      %v1480 = vunpack.c.l.s4 1966171168
      %v1481 = vunpack.c.0.s8 %v1480
      %v1482 = vlaneseq
      %v1483 = vshrl.u32 %v1482, 7
      %v1484 = vsub.s32 %v1481, %v1483
      %v1485 = vrot.slane %v1464, %v1484
      %v1487 = vunpack.c.l.s4 1966171168
      %v1488 = vunpack.c.0.s8 %v1487
      %v1489 = vlaneseq
      %v1490 = vshrl.u32 %v1489, 7
      %v1491 = vsub.s32 %v1488, %v1490
      %v1492 = vrot.slane %v1478, %v1491
      %v1493 = vcombine.high %v1485, %v1485
      %v1494 = vcombine.high %v1492, %v1492
      %v1496 = vunpack.c.l.s4 1966171168
      %v1497 = vunpack.c.0.s8 %v1496
      %v1498 = vlaneseq
      %v1499 = vshrl.u32 %v1498, 7
      %v1500 = vsub.s32 %v1497, %v1499
      %v1501 = vrot.slane %v1485, %v1500
      %v1503 = vunpack.c.l.s4 1966171168
      %v1504 = vunpack.c.0.s8 %v1503
      %v1505 = vlaneseq
      %v1506 = vshrl.u32 %v1505, 7
      %v1507 = vsub.s32 %v1504, %v1506
      %v1508 = vrot.slane %v1492, %v1507
      %v1510 = vunpack.c.l.s4 1966171168
      %v1511 = vunpack.c.0.s8 %v1510
      %v1512 = vlaneseq
      %v1513 = vshrl.u32 %v1512, 7
      %v1514 = vsub.s32 %v1511, %v1513
      %v1515 = vrot.slane %v1493, %v1514
      %v1517 = vunpack.c.l.s4 1966171168
      %v1518 = vunpack.c.0.s8 %v1517
      %v1519 = vlaneseq
      %v1520 = vshrl.u32 %v1519, 7
      %v1521 = vsub.s32 %v1518, %v1520
      %v1522 = vrot.slane %v1494, %v1521
      %v1523 = vcombine.high %v1501, %v1501
      %v1524 = vcombine.high %v1508, %v1508
      %v1525 = vcombine.high %v1515, %v1515
      %v1526 = vcombine.high %v1465, %v1465
      %v1528 = vunpack.c.l.s4 1966171168
      %v1529 = vunpack.c.0.s8 %v1528
      %v1530 = vlaneseq
      %v1531 = vshrl.u32 %v1530, 7
      %v1532 = vsub.s32 %v1529, %v1531
      %v1533 = vrot.slane %v1465, %v1532
      %v1535 = vunpack.c.l.s4 1966171168
      %v1536 = vunpack.c.0.s8 %v1535
      %v1537 = vlaneseq
      %v1538 = vshrl.u32 %v1537, 7
      %v1539 = vsub.s32 %v1536, %v1538
      %v1540 = vrot.slane %v1526, %v1539
      %v1541 = vcombine.high %v1533, %v1533
      %v1542 = vcombine.high %v1540, %v1540
      %v1544 = vunpack.c.l.s4 1966171168
      %v1545 = vunpack.c.0.s8 %v1544
      %v1546 = vlaneseq
      %v1547 = vshrl.u32 %v1546, 7
      %v1548 = vsub.s32 %v1545, %v1547
      %v1549 = vrot.slane %v1533, %v1548
      %v1551 = vunpack.c.l.s4 1966171168
      %v1552 = vunpack.c.0.s8 %v1551
      %v1553 = vlaneseq
      %v1554 = vshrl.u32 %v1553, 7
      %v1555 = vsub.s32 %v1552, %v1554
      %v1556 = vrot.slane %v1540, %v1555
      %v1558 = vunpack.c.l.s4 1966171168
      %v1559 = vunpack.c.0.s8 %v1558
      %v1560 = vlaneseq
      %v1561 = vshrl.u32 %v1560, 7
      %v1562 = vsub.s32 %v1559, %v1561
      %v1563 = vrot.slane %v1541, %v1562
      %v1565 = vunpack.c.l.s4 1966171168
      %v1566 = vunpack.c.0.s8 %v1565
      %v1567 = vlaneseq
      %v1568 = vshrl.u32 %v1567, 7
      %v1569 = vsub.s32 %v1566, %v1568
      %v1570 = vrot.slane %v1542, %v1569
      %v1571 = vcombine.high %v1549, %v1549
      %v1572 = vcombine.high %v1556, %v1556
      %v1573 = vcombine.high %v1563, %v1563
      %v1574 = vcombine.high %v1466, %v1466
      %v1576 = vunpack.c.l.s4 1966171168
      %v1577 = vunpack.c.0.s8 %v1576
      %v1578 = vlaneseq
      %v1579 = vshrl.u32 %v1578, 7
      %v1580 = vsub.s32 %v1577, %v1579
      %v1581 = vrot.slane %v1466, %v1580
      %v1583 = vunpack.c.l.s4 1966171168
      %v1584 = vunpack.c.0.s8 %v1583
      %v1585 = vlaneseq
      %v1586 = vshrl.u32 %v1585, 7
      %v1587 = vsub.s32 %v1584, %v1586
      %v1588 = vrot.slane %v1574, %v1587
      %v1589 = vcombine.high %v1581, %v1581
      %v1590 = vcombine.high %v1588, %v1588
      %v1592 = vunpack.c.l.s4 1966171168
      %v1593 = vunpack.c.0.s8 %v1592
      %v1594 = vlaneseq
      %v1595 = vshrl.u32 %v1594, 7
      %v1596 = vsub.s32 %v1593, %v1595
      %v1597 = vrot.slane %v1581, %v1596
      %v1599 = vunpack.c.l.s4 1966171168
      %v1600 = vunpack.c.0.s8 %v1599
      %v1601 = vlaneseq
      %v1602 = vshrl.u32 %v1601, 7
      %v1603 = vsub.s32 %v1600, %v1602
      %v1604 = vrot.slane %v1588, %v1603
      %v1606 = vunpack.c.l.s4 1966171168
      %v1607 = vunpack.c.0.s8 %v1606
      %v1608 = vlaneseq
      %v1609 = vshrl.u32 %v1608, 7
      %v1610 = vsub.s32 %v1607, %v1609
      %v1611 = vrot.slane %v1589, %v1610
      %v1613 = vunpack.c.l.s4 1966171168
      %v1614 = vunpack.c.0.s8 %v1613
      %v1615 = vlaneseq
      %v1616 = vshrl.u32 %v1615, 7
      %v1617 = vsub.s32 %v1614, %v1616
      %v1618 = vrot.slane %v1590, %v1617
      %v1619 = vcombine.high %v1597, %v1597
      %v1620 = vcombine.high %v1604, %v1604
      %v1621 = vcombine.high %v1611, %v1611
      %v1622 = vcombine.high %v1467, %v1467
      %v1624 = vunpack.c.l.s4 1966171168
      %v1625 = vunpack.c.0.s8 %v1624
      %v1626 = vlaneseq
      %v1627 = vshrl.u32 %v1626, 7
      %v1628 = vsub.s32 %v1625, %v1627
      %v1629 = vrot.slane %v1467, %v1628
      %v1631 = vunpack.c.l.s4 1966171168
      %v1632 = vunpack.c.0.s8 %v1631
      %v1633 = vlaneseq
      %v1634 = vshrl.u32 %v1633, 7
      %v1635 = vsub.s32 %v1632, %v1634
      %v1636 = vrot.slane %v1622, %v1635
      %v1637 = vcombine.high %v1629, %v1629
      %v1638 = vcombine.high %v1636, %v1636
      %v1640 = vunpack.c.l.s4 1966171168
      %v1641 = vunpack.c.0.s8 %v1640
      %v1642 = vlaneseq
      %v1643 = vshrl.u32 %v1642, 7
      %v1644 = vsub.s32 %v1641, %v1643
      %v1645 = vrot.slane %v1629, %v1644
      %v1647 = vunpack.c.l.s4 1966171168
      %v1648 = vunpack.c.0.s8 %v1647
      %v1649 = vlaneseq
      %v1650 = vshrl.u32 %v1649, 7
      %v1651 = vsub.s32 %v1648, %v1650
      %v1652 = vrot.slane %v1636, %v1651
      %v1654 = vunpack.c.l.s4 1966171168
      %v1655 = vunpack.c.0.s8 %v1654
      %v1656 = vlaneseq
      %v1657 = vshrl.u32 %v1656, 7
      %v1658 = vsub.s32 %v1655, %v1657
      %v1659 = vrot.slane %v1637, %v1658
      %v1661 = vunpack.c.l.s4 1966171168
      %v1662 = vunpack.c.0.s8 %v1661
      %v1663 = vlaneseq
      %v1664 = vshrl.u32 %v1663, 7
      %v1665 = vsub.s32 %v1662, %v1664
      %v1666 = vrot.slane %v1638, %v1665
      %v1667 = vcombine.high %v1645, %v1645
      %v1668 = vcombine.high %v1652, %v1652
      %v1669 = vcombine.high %v1659, %v1659
      %v1670 = vcombine.high %v1468, %v1468
      %v1672 = vunpack.c.l.s4 1966171168
      %v1673 = vunpack.c.0.s8 %v1672
      %v1674 = vlaneseq
      %v1675 = vshrl.u32 %v1674, 7
      %v1676 = vsub.s32 %v1673, %v1675
      %v1677 = vrot.slane %v1468, %v1676
      %v1679 = vunpack.c.l.s4 1966171168
      %v1680 = vunpack.c.0.s8 %v1679
      %v1681 = vlaneseq
      %v1682 = vshrl.u32 %v1681, 7
      %v1683 = vsub.s32 %v1680, %v1682
      %v1684 = vrot.slane %v1670, %v1683
      %v1685 = vcombine.high %v1677, %v1677
      %v1686 = vcombine.high %v1684, %v1684
      %v1688 = vunpack.c.l.s4 1966171168
      %v1689 = vunpack.c.0.s8 %v1688
      %v1690 = vlaneseq
      %v1691 = vshrl.u32 %v1690, 7
      %v1692 = vsub.s32 %v1689, %v1691
      %v1693 = vrot.slane %v1677, %v1692
      %v1695 = vunpack.c.l.s4 1966171168
      %v1696 = vunpack.c.0.s8 %v1695
      %v1697 = vlaneseq
      %v1698 = vshrl.u32 %v1697, 7
      %v1699 = vsub.s32 %v1696, %v1698
      %v1700 = vrot.slane %v1684, %v1699
      %v1702 = vunpack.c.l.s4 1966171168
      %v1703 = vunpack.c.0.s8 %v1702
      %v1704 = vlaneseq
      %v1705 = vshrl.u32 %v1704, 7
      %v1706 = vsub.s32 %v1703, %v1705
      %v1707 = vrot.slane %v1685, %v1706
      %v1709 = vunpack.c.l.s4 1966171168
      %v1710 = vunpack.c.0.s8 %v1709
      %v1711 = vlaneseq
      %v1712 = vshrl.u32 %v1711, 7
      %v1713 = vsub.s32 %v1710, %v1712
      %v1714 = vrot.slane %v1686, %v1713
      %v1715 = vcombine.high %v1693, %v1693
      %v1716 = vcombine.high %v1700, %v1700
      %v1717 = vcombine.high %v1707, %v1707
      %v1718 = vcombine.high %v1469, %v1469
      %v1720 = vunpack.c.l.s4 1966171168
      %v1721 = vunpack.c.0.s8 %v1720
      %v1722 = vlaneseq
      %v1723 = vshrl.u32 %v1722, 7
      %v1724 = vsub.s32 %v1721, %v1723
      %v1725 = vrot.slane %v1469, %v1724
      %v1727 = vunpack.c.l.s4 1966171168
      %v1728 = vunpack.c.0.s8 %v1727
      %v1729 = vlaneseq
      %v1730 = vshrl.u32 %v1729, 7
      %v1731 = vsub.s32 %v1728, %v1730
      %v1732 = vrot.slane %v1718, %v1731
      %v1733 = vcombine.high %v1725, %v1725
      %v1734 = vcombine.high %v1732, %v1732
      %v1736 = vunpack.c.l.s4 1966171168
      %v1737 = vunpack.c.0.s8 %v1736
      %v1738 = vlaneseq
      %v1739 = vshrl.u32 %v1738, 7
      %v1740 = vsub.s32 %v1737, %v1739
      %v1741 = vrot.slane %v1725, %v1740
      %v1743 = vunpack.c.l.s4 1966171168
      %v1744 = vunpack.c.0.s8 %v1743
      %v1745 = vlaneseq
      %v1746 = vshrl.u32 %v1745, 7
      %v1747 = vsub.s32 %v1744, %v1746
      %v1748 = vrot.slane %v1732, %v1747
      %v1750 = vunpack.c.l.s4 1966171168
      %v1751 = vunpack.c.0.s8 %v1750
      %v1752 = vlaneseq
      %v1753 = vshrl.u32 %v1752, 7
      %v1754 = vsub.s32 %v1751, %v1753
      %v1755 = vrot.slane %v1733, %v1754
      %v1757 = vunpack.c.l.s4 1966171168
      %v1758 = vunpack.c.0.s8 %v1757
      %v1759 = vlaneseq
      %v1760 = vshrl.u32 %v1759, 7
      %v1761 = vsub.s32 %v1758, %v1760
      %v1762 = vrot.slane %v1734, %v1761
      %v1763 = vcombine.high %v1741, %v1741
      %v1764 = vcombine.high %v1748, %v1748
      %v1765 = vcombine.high %v1755, %v1755
      %v1766 = vcombine.high %v1470, %v1470
      %v1768 = vunpack.c.l.s4 1966171168
      %v1769 = vunpack.c.0.s8 %v1768
      %v1770 = vlaneseq
      %v1771 = vshrl.u32 %v1770, 7
      %v1772 = vsub.s32 %v1769, %v1771
      %v1773 = vrot.slane %v1470, %v1772
      %v1775 = vunpack.c.l.s4 1966171168
      %v1776 = vunpack.c.0.s8 %v1775
      %v1777 = vlaneseq
      %v1778 = vshrl.u32 %v1777, 7
      %v1779 = vsub.s32 %v1776, %v1778
      %v1780 = vrot.slane %v1766, %v1779
      %v1781 = vcombine.high %v1773, %v1773
      %v1782 = vcombine.high %v1780, %v1780
      %v1784 = vunpack.c.l.s4 1966171168
      %v1785 = vunpack.c.0.s8 %v1784
      %v1786 = vlaneseq
      %v1787 = vshrl.u32 %v1786, 7
      %v1788 = vsub.s32 %v1785, %v1787
      %v1789 = vrot.slane %v1773, %v1788
      %v1791 = vunpack.c.l.s4 1966171168
      %v1792 = vunpack.c.0.s8 %v1791
      %v1793 = vlaneseq
      %v1794 = vshrl.u32 %v1793, 7
      %v1795 = vsub.s32 %v1792, %v1794
      %v1796 = vrot.slane %v1780, %v1795
      %v1798 = vunpack.c.l.s4 1966171168
      %v1799 = vunpack.c.0.s8 %v1798
      %v1800 = vlaneseq
      %v1801 = vshrl.u32 %v1800, 7
      %v1802 = vsub.s32 %v1799, %v1801
      %v1803 = vrot.slane %v1781, %v1802
      %v1805 = vunpack.c.l.s4 1966171168
      %v1806 = vunpack.c.0.s8 %v1805
      %v1807 = vlaneseq
      %v1808 = vshrl.u32 %v1807, 7
      %v1809 = vsub.s32 %v1806, %v1808
      %v1810 = vrot.slane %v1782, %v1809
      %v1811 = vcombine.high %v1789, %v1789
      %v1812 = vcombine.high %v1796, %v1796
      %v1813 = vcombine.high %v1803, %v1803
      %v1814 = vcombine.low %v1501, %v1515
      %v1815 = vcombine.low %v1523, %v1525
      %v1816 = vcombine.low %v1508, %v1522
      %v1817 = vcombine.low %v1524, %v1549
      %v1819 = vunpack.c.l.s4 1966171168
      %v1820 = vunpack.c.0.s8 %v1819
      %v1821 = vlaneseq
      %v1822 = vshrl.u32 %v1821, 7
      %v1823 = vsub.s32 %v1820, %v1822
      %v1824 = vrot.slane %v1814, %v1823
      %v1826 = vunpack.c.l.s4 1966171168
      %v1827 = vunpack.c.0.s8 %v1826
      %v1828 = vlaneseq
      %v1829 = vshrl.u32 %v1828, 7
      %v1830 = vsub.s32 %v1827, %v1829
      %v1831 = vrot.slane %v1815, %v1830
      %v1833 = vunpack.c.l.s4 1966171168
      %v1834 = vunpack.c.0.s8 %v1833
      %v1835 = vlaneseq
      %v1836 = vshrl.u32 %v1835, 7
      %v1837 = vsub.s32 %v1834, %v1836
      %v1838 = vrot.slane %v1816, %v1837
      %v1840 = vunpack.c.l.s4 1966171168
      %v1841 = vunpack.c.0.s8 %v1840
      %v1842 = vlaneseq
      %v1843 = vshrl.u32 %v1842, 7
      %v1844 = vsub.s32 %v1841, %v1843
      %v1845 = vrot.slane %v1817, %v1844
      %v1846 = vcombine.low %v1824, %v1831
      %v1847 = vcombine.low %v1838, %v1845
      %v1849 = vunpack.c.l.s4 1966171168
      %v1850 = vunpack.c.0.s8 %v1849
      %v1851 = vlaneseq
      %v1852 = vshrl.u32 %v1851, 7
      %v1853 = vsub.s32 %v1850, %v1852
      %v1854 = vrot.slane %v1846, %v1853
      %v1856 = vunpack.c.l.s4 1966171168
      %v1857 = vunpack.c.0.s8 %v1856
      %v1858 = vlaneseq
      %v1859 = vshrl.u32 %v1858, 7
      %v1860 = vsub.s32 %v1857, %v1859
      %v1861 = vrot.slane %v1847, %v1860
      %v1862 = vcombine.low %v1854, %v1861
      %v1863 = vcombine.low %v1563, %v1571
      %v1864 = vcombine.low %v1573, %v1556
      %v1865 = vcombine.low %v1570, %v1572
      %v1866 = vcombine.low %v1597, %v1611
      %v1868 = vunpack.c.l.s4 1966171168
      %v1869 = vunpack.c.0.s8 %v1868
      %v1870 = vlaneseq
      %v1871 = vshrl.u32 %v1870, 7
      %v1872 = vsub.s32 %v1869, %v1871
      %v1873 = vrot.slane %v1863, %v1872
      %v1875 = vunpack.c.l.s4 1966171168
      %v1876 = vunpack.c.0.s8 %v1875
      %v1877 = vlaneseq
      %v1878 = vshrl.u32 %v1877, 7
      %v1879 = vsub.s32 %v1876, %v1878
      %v1880 = vrot.slane %v1864, %v1879
      %v1882 = vunpack.c.l.s4 1966171168
      %v1883 = vunpack.c.0.s8 %v1882
      %v1884 = vlaneseq
      %v1885 = vshrl.u32 %v1884, 7
      %v1886 = vsub.s32 %v1883, %v1885
      %v1887 = vrot.slane %v1865, %v1886
      %v1889 = vunpack.c.l.s4 1966171168
      %v1890 = vunpack.c.0.s8 %v1889
      %v1891 = vlaneseq
      %v1892 = vshrl.u32 %v1891, 7
      %v1893 = vsub.s32 %v1890, %v1892
      %v1894 = vrot.slane %v1866, %v1893
      %v1895 = vcombine.low %v1873, %v1880
      %v1896 = vcombine.low %v1887, %v1894
      %v1898 = vunpack.c.l.s4 1966171168
      %v1899 = vunpack.c.0.s8 %v1898
      %v1900 = vlaneseq
      %v1901 = vshrl.u32 %v1900, 7
      %v1902 = vsub.s32 %v1899, %v1901
      %v1903 = vrot.slane %v1895, %v1902
      %v1905 = vunpack.c.l.s4 1966171168
      %v1906 = vunpack.c.0.s8 %v1905
      %v1907 = vlaneseq
      %v1908 = vshrl.u32 %v1907, 7
      %v1909 = vsub.s32 %v1906, %v1908
      %v1910 = vrot.slane %v1896, %v1909
      %v1911 = vcombine.low %v1903, %v1910
      %v1912 = vcombine.low %v1619, %v1621
      %v1913 = vcombine.low %v1604, %v1618
      %v1914 = vcombine.low %v1620, %v1645
      %v1915 = vcombine.low %v1659, %v1667
      %v1917 = vunpack.c.l.s4 1966171168
      %v1918 = vunpack.c.0.s8 %v1917
      %v1919 = vlaneseq
      %v1920 = vshrl.u32 %v1919, 7
      %v1921 = vsub.s32 %v1918, %v1920
      %v1922 = vrot.slane %v1912, %v1921
      %v1924 = vunpack.c.l.s4 1966171168
      %v1925 = vunpack.c.0.s8 %v1924
      %v1926 = vlaneseq
      %v1927 = vshrl.u32 %v1926, 7
      %v1928 = vsub.s32 %v1925, %v1927
      %v1929 = vrot.slane %v1913, %v1928
      %v1931 = vunpack.c.l.s4 1966171168
      %v1932 = vunpack.c.0.s8 %v1931
      %v1933 = vlaneseq
      %v1934 = vshrl.u32 %v1933, 7
      %v1935 = vsub.s32 %v1932, %v1934
      %v1936 = vrot.slane %v1914, %v1935
      %v1938 = vunpack.c.l.s4 1966171168
      %v1939 = vunpack.c.0.s8 %v1938
      %v1940 = vlaneseq
      %v1941 = vshrl.u32 %v1940, 7
      %v1942 = vsub.s32 %v1939, %v1941
      %v1943 = vrot.slane %v1915, %v1942
      %v1944 = vcombine.low %v1922, %v1929
      %v1945 = vcombine.low %v1936, %v1943
      %v1947 = vunpack.c.l.s4 1966171168
      %v1948 = vunpack.c.0.s8 %v1947
      %v1949 = vlaneseq
      %v1950 = vshrl.u32 %v1949, 7
      %v1951 = vsub.s32 %v1948, %v1950
      %v1952 = vrot.slane %v1944, %v1951
      %v1954 = vunpack.c.l.s4 1966171168
      %v1955 = vunpack.c.0.s8 %v1954
      %v1956 = vlaneseq
      %v1957 = vshrl.u32 %v1956, 7
      %v1958 = vsub.s32 %v1955, %v1957
      %v1959 = vrot.slane %v1945, %v1958
      %v1960 = vcombine.low %v1952, %v1959
      %v1961 = vcombine.low %v1669, %v1652
      %v1962 = vcombine.low %v1666, %v1668
      %v1963 = vcombine.low %v1693, %v1707
      %v1964 = vcombine.low %v1715, %v1717
      %v1966 = vunpack.c.l.s4 1966171168
      %v1967 = vunpack.c.0.s8 %v1966
      %v1968 = vlaneseq
      %v1969 = vshrl.u32 %v1968, 7
      %v1970 = vsub.s32 %v1967, %v1969
      %v1971 = vrot.slane %v1961, %v1970
      %v1973 = vunpack.c.l.s4 1966171168
      %v1974 = vunpack.c.0.s8 %v1973
      %v1975 = vlaneseq
      %v1976 = vshrl.u32 %v1975, 7
      %v1977 = vsub.s32 %v1974, %v1976
      %v1978 = vrot.slane %v1962, %v1977
      %v1980 = vunpack.c.l.s4 1966171168
      %v1981 = vunpack.c.0.s8 %v1980
      %v1982 = vlaneseq
      %v1983 = vshrl.u32 %v1982, 7
      %v1984 = vsub.s32 %v1981, %v1983
      %v1985 = vrot.slane %v1963, %v1984
      %v1987 = vunpack.c.l.s4 1966171168
      %v1988 = vunpack.c.0.s8 %v1987
      %v1989 = vlaneseq
      %v1990 = vshrl.u32 %v1989, 7
      %v1991 = vsub.s32 %v1988, %v1990
      %v1992 = vrot.slane %v1964, %v1991
      %v1993 = vcombine.low %v1971, %v1978
      %v1994 = vcombine.low %v1985, %v1992
      %v1996 = vunpack.c.l.s4 1966171168
      %v1997 = vunpack.c.0.s8 %v1996
      %v1998 = vlaneseq
      %v1999 = vshrl.u32 %v1998, 7
      %v2000 = vsub.s32 %v1997, %v1999
      %v2001 = vrot.slane %v1993, %v2000
      %v2003 = vunpack.c.l.s4 1966171168
      %v2004 = vunpack.c.0.s8 %v2003
      %v2005 = vlaneseq
      %v2006 = vshrl.u32 %v2005, 7
      %v2007 = vsub.s32 %v2004, %v2006
      %v2008 = vrot.slane %v1994, %v2007
      %v2009 = vcombine.low %v2001, %v2008
      %v2010 = vcombine.low %v1700, %v1714
      %v2011 = vcombine.low %v1716, %v1741
      %v2012 = vcombine.low %v1755, %v1763
      %v2013 = vcombine.low %v1765, %v1748
      %v2015 = vunpack.c.l.s4 1966171168
      %v2016 = vunpack.c.0.s8 %v2015
      %v2017 = vlaneseq
      %v2018 = vshrl.u32 %v2017, 7
      %v2019 = vsub.s32 %v2016, %v2018
      %v2020 = vrot.slane %v2010, %v2019
      %v2022 = vunpack.c.l.s4 1966171168
      %v2023 = vunpack.c.0.s8 %v2022
      %v2024 = vlaneseq
      %v2025 = vshrl.u32 %v2024, 7
      %v2026 = vsub.s32 %v2023, %v2025
      %v2027 = vrot.slane %v2011, %v2026
      %v2029 = vunpack.c.l.s4 1966171168
      %v2030 = vunpack.c.0.s8 %v2029
      %v2031 = vlaneseq
      %v2032 = vshrl.u32 %v2031, 7
      %v2033 = vsub.s32 %v2030, %v2032
      %v2034 = vrot.slane %v2012, %v2033
      %v2036 = vunpack.c.l.s4 1966171168
      %v2037 = vunpack.c.0.s8 %v2036
      %v2038 = vlaneseq
      %v2039 = vshrl.u32 %v2038, 7
      %v2040 = vsub.s32 %v2037, %v2039
      %v2041 = vrot.slane %v2013, %v2040
      %v2042 = vcombine.low %v2020, %v2027
      %v2043 = vcombine.low %v2034, %v2041
      %v2045 = vunpack.c.l.s4 1966171168
      %v2046 = vunpack.c.0.s8 %v2045
      %v2047 = vlaneseq
      %v2048 = vshrl.u32 %v2047, 7
      %v2049 = vsub.s32 %v2046, %v2048
      %v2050 = vrot.slane %v2042, %v2049
      %v2052 = vunpack.c.l.s4 1966171168
      %v2053 = vunpack.c.0.s8 %v2052
      %v2054 = vlaneseq
      %v2055 = vshrl.u32 %v2054, 7
      %v2056 = vsub.s32 %v2053, %v2055
      %v2057 = vrot.slane %v2043, %v2056
      %v2058 = vcombine.low %v2050, %v2057
      %v2059 = vcombine.low %v1762, %v1764
      %v2060 = vcombine.low %v1789, %v1803
      %v2061 = vcombine.low %v1811, %v1813
      %v2062 = vcombine.low %v1796, %v1810
      %v2064 = vunpack.c.l.s4 1966171168
      %v2065 = vunpack.c.0.s8 %v2064
      %v2066 = vlaneseq
      %v2067 = vshrl.u32 %v2066, 7
      %v2068 = vsub.s32 %v2065, %v2067
      %v2069 = vrot.slane %v2059, %v2068
      %v2071 = vunpack.c.l.s4 1966171168
      %v2072 = vunpack.c.0.s8 %v2071
      %v2073 = vlaneseq
      %v2074 = vshrl.u32 %v2073, 7
      %v2075 = vsub.s32 %v2072, %v2074
      %v2076 = vrot.slane %v2060, %v2075
      %v2078 = vunpack.c.l.s4 1966171168
      %v2079 = vunpack.c.0.s8 %v2078
      %v2080 = vlaneseq
      %v2081 = vshrl.u32 %v2080, 7
      %v2082 = vsub.s32 %v2079, %v2081
      %v2083 = vrot.slane %v2061, %v2082
      %v2085 = vunpack.c.l.s4 1966171168
      %v2086 = vunpack.c.0.s8 %v2085
      %v2087 = vlaneseq
      %v2088 = vshrl.u32 %v2087, 7
      %v2089 = vsub.s32 %v2086, %v2088
      %v2090 = vrot.slane %v2062, %v2089
      %v2091 = vcombine.low %v2069, %v2076
      %v2092 = vcombine.low %v2083, %v2090
      %v2094 = vunpack.c.l.s4 1966171168
      %v2095 = vunpack.c.0.s8 %v2094
      %v2096 = vlaneseq
      %v2097 = vshrl.u32 %v2096, 7
      %v2098 = vsub.s32 %v2095, %v2097
      %v2099 = vrot.slane %v2091, %v2098
      %v2101 = vunpack.c.l.s4 1966171168
      %v2102 = vunpack.c.0.s8 %v2101
      %v2103 = vlaneseq
      %v2104 = vshrl.u32 %v2103, 7
      %v2105 = vsub.s32 %v2102, %v2104
      %v2106 = vrot.slane %v2092, %v2105
      %v2107 = vcombine.low %v2099, %v2106
      %v2109 = vunpack.c.l.s4 1966171168
      %v2110 = vunpack.c.0.s8 %v2109
      %v2111 = vlaneseq
      %v2112 = vshrl.u32 %v2111, 7
      %v2113 = vsub.s32 %v2110, %v2112
      %v2114 = vrot.slane %v1812, %v2113
      %v2116 = vunpack.c.l.s4 1966171168
      %v2117 = vunpack.c.0.s8 %v2116
      %v2118 = vlaneseq
      %v2119 = vshrl.u32 %v2118, 7
      %v2120 = vsub.s32 %v2117, %v2119
      %v2121 = vrot.slane %v2114, %v2120
      %v2129 = vpack.c.bf16 %v1911, %v1862
      %v2130 = vpack.c.bf16 %v2009, %v1960
      %v2131 = vpack.c.bf16 %v2107, %v2058
      %v2132 = vpack.c.bf16 %v2121, %v2121
      %v2133 = vld [vmem:[%s5] sm:$0xf]
      %v2134 = vld [vmem:[%s5 + $0x4] sm:$0xf]
      %v2135 = vld [vmem:[%s5 + $0x8] sm:$0xf]
      %v2136 = vld [vmem:[%s5 + $0xc] sm:$0xf]
      %v2137 = vld [vmem:[%s5 + $0x10] sm:$0xf]
      %v2138 = vld [vmem:[%s5 + $0x14] sm:$0xf]
      %v2139 = vld [vmem:[%s5 + $0x18] sm:$0xf]
      %v2140 = vld [vmem:[%s5 + $0x1c] sm:$0xf]
      %v2141 = vld [vmem:[%s5 + $0x20] sm:$0xf]
      %v2142 = vld [vmem:[%s6] sm:$0x1]
      %v2144 = vlaneseq
      %v2145 = vshrl.u32 %v2144, 7
      %v2146 = vsub.s32 0, %v2145
      %v2147 = vrot.slane %v2142, %v2146
      %v2158 = vunpack.c.l.b16 %v2133
      %v2159 = vunpack.c.l.b16 %v2134
      %v2160 = vunpack.c.l.b16 %v2135
      %v2161 = vunpack.c.l.b16 %v2136
      %v2162 = vunpack.c.l.b16 %v2137
      %v2163 = vunpack.c.l.b16 %v2138
      %v2164 = vunpack.c.l.b16 %v2139
      %v2165 = vunpack.c.l.b16 %v2140
      %v2166 = vunpack.c.l.b16 %v2141
      %v2167 = vpack.c.b16 %v2159, %v2158
      %v2168 = vpack.c.b16 %v2161, %v2160
      %v2169 = vpack.c.b16 %v2163, %v2162
      %v2170 = vpack.c.b16 %v2165, %v2164
      %v2171 = vpack.c.b16 %v2166, %v2166
      %vm2176 = vcmask 588800
      %v2178 = vsel %vm2176, %v2129, 0
      %v2181 = vsel %vm2176, %v2130, 0
      %v2184 = vsel %vm2176, %v2131, 0
      %v2187 = vsel %vm2176, %v2132, 0
      %vm2189 = vcmask 1043456
      %v2191 = vsel %vm2189, %v2171, 0
      %2193 = vmatprep.subr.bf16.mxu0 0
      %2194 = vmatpush1.bf16.msra.mxu0 %v2167
      %2195 = vmatprep.subr.bf16.mxu0 0
      %2196 = vmatpush1.bf16.msra.mxu0 %v2168
      %2197 = vmatprep.subr.bf16.mxu0 0
      %2198 = vmatpush1.bf16.msra.mxu0 %v2169
      %2199 = vmatprep.subr.bf16.mxu0 0
      %2200 = vmatpush1.bf16.msra.mxu0 %v2170
      %2201 = vmatprep.subr.bf16.mxu0 0
      %2202 = vmatpush1.bf16.msra.mxu0 %v2191
      %2203 = vmatprep.subr.bf16.mxu0 0
      %2204 = vmatpush1.bf16.msra.mxu0 0
      %2205 = vmatprep.subr.bf16.mxu0 0
      %2206 = vmatpush1.bf16.msra.mxu0 0
      %2207 = vmatprep.subr.bf16.mxu0 0
      %2208 = vmatpush1.bf16.msra.mxu0 0
      %2209 = vmatprep.subr.bf16.mxu0 0
      %2210 = vmatpush1.bf16.msra.mxu0 0
      %2211 = vmatprep.subr.bf16.mxu0 0
      %2212 = vmatpush1.bf16.msra.mxu0 0
      %2213 = vmatprep.subr.bf16.mxu0 0
      %2214 = vmatpush1.bf16.msra.mxu0 0
      %2215 = vmatprep.subr.bf16.mxu0 0
      %2216 = vmatpush1.bf16.msra.mxu0 0
      %2217 = vmatprep.subr.bf16.mxu0 0
      %2218 = vmatpush1.bf16.msra.mxu0 0
      %2219 = vmatprep.subr.bf16.mxu0 0
      %2220 = vmatpush1.bf16.msra.mxu0 0
      %2221 = vmatprep.subr.bf16.mxu0 0
      %2222 = vmatpush1.bf16.msra.mxu0 0
      %2223 = vmatprep.subr.bf16.mxu0 0
      %2224 = vmatpush1.bf16.msra.mxu0 0
      %2225 = vmatprep.mubr.bf16.mxu0 0
      %2226 = vmatmul.mubr.bf16.gmra.mrb[0].mxu0 %v2178
      %v2227 = vpop.f32.mrb[0].mxu0
      %v2228 = vadd.f32 %v2147, %v2227
      %v2229 = vpop.f32.mrb[0].mxu0
      %v2230 = vpop.f32.mrb[0].mxu0
      %v2231 = vadd.f32 %v2147, %v2230
      %v2232 = vpop.f32.mrb[0].mxu0
      %2233 = vmatprep.mubr.bf16.mxu0 0
      %2234 = vmatmul.mubr.bf16.gmra.mrb[0].mxu0 %v2181
      %v2235 = vpop.f32.mrb[0].mxu0
      %v2236 = vadd.f32 %v2147, %v2235
      %v2237 = vpop.f32.mrb[0].mxu0
      %v2238 = vpop.f32.mrb[0].mxu0
      %v2239 = vadd.f32 %v2147, %v2238
      %v2240 = vpop.f32.mrb[0].mxu0
      %2241 = vmatprep.mubr.bf16.mxu0 0
      %2242 = vmatmul.mubr.bf16.gmra.mrb[0].mxu0 %v2184
      %v2243 = vpop.f32.mrb[0].mxu0
      %v2244 = vadd.f32 %v2147, %v2243
      %v2245 = vpop.f32.mrb[0].mxu0
      %v2246 = vpop.f32.mrb[0].mxu0
      %v2247 = vadd.f32 %v2147, %v2246
      %v2248 = vpop.f32.mrb[0].mxu0
      %2249 = vmatprep.mubr.bf16.mxu0 0
      %2250 = vmatmul.mubr.bf16.gmra.mrb[0].mxu0 %v2187
      %v2251 = vpop.f32.mrb[0].mxu0
      %v2252 = vadd.f32 %v2147, %v2251
      %v2253 = vpop.f32.mrb[0].mxu0
      %v2254 = vpop.f32.mrb[0].mxu0
      %v2255 = vpop.f32.mrb[0].mxu0
      %2256 = vdwg.mxu0
      %v2257 = vmax.f32 %v2228, 0.0
      %v2258 = vmax.f32 %v2231, 0.0
      %v2259 = vmax.f32 %v2236, 0.0
      %v2260 = vmax.f32 %v2239, 0.0
      %v2261 = vmax.f32 %v2244, 0.0
      %v2262 = vmax.f32 %v2247, 0.0
      %v2263 = vmax.f32 %v2252, 0.0
      %v2264 = vld [vmem:[#allocation3 + $0x5] sm:$0xff]
      %v2265 = vld [vmem:[#allocation3 + $0xd] sm:$0xff]
      %v2266 = vld [vmem:[#allocation3 + $0x25] sm:$0xff]
      %v2267 = vld [vmem:[#allocation3 + $0x2d] sm:$0xff]
      %v2268 = vld [vmem:[#allocation3 + $0x45] sm:$0xff]
      %v2269 = vld [vmem:[#allocation3 + $0x4d] sm:$0xff]
      %v2270 = vld [vmem:[#allocation3 + $0x65] sm:$0xff]
      %v2271 = vld [vmem:[#allocation3 + $0x6d] sm:$0xff]
      %v2272 = vld [vmem:[#allocation3 + $0x85] sm:$0xff]
      %v2273 = vld [vmem:[#allocation3 + $0x8d] sm:$0xff]
      %v2274 = vld [vmem:[#allocation3 + $0xa5] sm:$0xff]
      %v2275 = vld [vmem:[#allocation3 + $0xad] sm:$0xff]
      %v2276 = vld [vmem:[#allocation3 + $0xc5] sm:$0xff]
      %v2277 = vld [vmem:[#allocation3 + $0xcd] sm:$0xff]
      %v2278 = vld [vmem:[#allocation3 + $0xe5] sm:$0xff]
      %v2279 = vld [vmem:[#allocation3 + $0xed] sm:$0xff]
      %v2280 = vld [vmem:[#allocation3 + $0x105] sm:$0xff]
      %v2281 = vld [vmem:[#allocation3 + $0x10d] sm:$0xff]
      %v2282 = vld [vmem:[#allocation3 + $0x125] sm:$0xff]
      %v2283 = vld [vmem:[#allocation3 + $0x12d] sm:$0xff]
      %v2284 = vld [vmem:[#allocation3 + $0x145] sm:$0xff]
      %v2285 = vld [vmem:[#allocation3 + $0x14d] sm:$0xff]
      %v2286 = vld [vmem:[#allocation3 + $0x165] sm:$0xff]
      %v2287 = vld [vmem:[#allocation3 + $0x16d] sm:$0xff]
      %v2288 = vld [vmem:[#allocation3 + $0x185] sm:$0xff]
      %v2289 = vld [vmem:[#allocation3 + $0x18d] sm:$0xff]
      %v2290 = vld [vmem:[#allocation3 + $0x1a5] sm:$0xff]
      %v2291 = vld [vmem:[#allocation3 + $0x1ad] sm:$0xff]
      %v2292 = vld [vmem:[#allocation3 + $0x1c5] sm:$0xff]
      %v2293 = vld [vmem:[#allocation3 + $0x1cd] sm:$0xff]
      %v2294 = vld [vmem:[#allocation3 + $0x1e5] sm:$0xff]
      %v2295 = vld [vmem:[#allocation3 + $0x1ed] sm:$0xff]
      %v2296 = vld [vmem:[#allocation3 + $0x6] sm:$0xff]
      %v2297 = vld [vmem:[#allocation3 + $0xe] sm:$0xff]
      %v2298 = vld [vmem:[#allocation3 + $0x26] sm:$0xff]
      %v2299 = vld [vmem:[#allocation3 + $0x2e] sm:$0xff]
      %v2300 = vld [vmem:[#allocation3 + $0x46] sm:$0xff]
      %v2301 = vld [vmem:[#allocation3 + $0x4e] sm:$0xff]
      %v2302 = vld [vmem:[#allocation3 + $0x66] sm:$0xff]
      %v2303 = vld [vmem:[#allocation3 + $0x6e] sm:$0xff]
      %v2304 = vld [vmem:[#allocation3 + $0x86] sm:$0xff]
      %v2305 = vld [vmem:[#allocation3 + $0x8e] sm:$0xff]
      %v2306 = vld [vmem:[#allocation3 + $0xa6] sm:$0xff]
      %v2307 = vld [vmem:[#allocation3 + $0xae] sm:$0xff]
      %v2308 = vld [vmem:[#allocation3 + $0xc6] sm:$0xff]
      %v2309 = vld [vmem:[#allocation3 + $0xce] sm:$0xff]
      %v2310 = vld [vmem:[#allocation3 + $0xe6] sm:$0xff]
      %v2311 = vld [vmem:[#allocation3 + $0xee] sm:$0xff]
      %v2312 = vld [vmem:[#allocation3 + $0x106] sm:$0xff]
      %v2313 = vld [vmem:[#allocation3 + $0x10e] sm:$0xff]
      %v2314 = vld [vmem:[#allocation3 + $0x126] sm:$0xff]
      %v2315 = vld [vmem:[#allocation3 + $0x12e] sm:$0xff]
      %v2316 = vld [vmem:[#allocation3 + $0x146] sm:$0xff]
      %v2317 = vld [vmem:[#allocation3 + $0x14e] sm:$0xff]
      %v2318 = vld [vmem:[#allocation3 + $0x166] sm:$0xff]
      %v2319 = vld [vmem:[#allocation3 + $0x16e] sm:$0xff]
      %v2320 = vld [vmem:[#allocation3 + $0x186] sm:$0xff]
      %v2321 = vld [vmem:[#allocation3 + $0x18e] sm:$0xff]
      %v2322 = vld [vmem:[#allocation3 + $0x1a6] sm:$0xff]
      %v2323 = vld [vmem:[#allocation3 + $0x1ae] sm:$0xff]
      %v2324 = vld [vmem:[#allocation3 + $0x1c6] sm:$0xff]
      %v2325 = vld [vmem:[#allocation3 + $0x1ce] sm:$0xff]
      %v2326 = vld [vmem:[#allocation3 + $0x1e6] sm:$0xff]
      %v2327 = vld [vmem:[#allocation3 + $0x1ee] sm:$0xff]
      %v2328 = vld [vmem:[#allocation3 + $0x7] sm:$0xff]
      %v2329 = vld [vmem:[#allocation3 + $0xf] sm:$0xff]
      %v2330 = vld [vmem:[#allocation3 + $0x27] sm:$0xff]
      %v2331 = vld [vmem:[#allocation3 + $0x2f] sm:$0xff]
      %v2332 = vld [vmem:[#allocation3 + $0x47] sm:$0xff]
      %v2333 = vld [vmem:[#allocation3 + $0x4f] sm:$0xff]
      %v2334 = vld [vmem:[#allocation3 + $0x67] sm:$0xff]
      %v2335 = vld [vmem:[#allocation3 + $0x6f] sm:$0xff]
      %v2336 = vld [vmem:[#allocation3 + $0x87] sm:$0xff]
      %v2337 = vld [vmem:[#allocation3 + $0x8f] sm:$0xff]
      %v2338 = vld [vmem:[#allocation3 + $0xa7] sm:$0xff]
      %v2339 = vld [vmem:[#allocation3 + $0xaf] sm:$0xff]
      %v2340 = vld [vmem:[#allocation3 + $0xc7] sm:$0xff]
      %v2341 = vld [vmem:[#allocation3 + $0xcf] sm:$0xff]
      %v2342 = vld [vmem:[#allocation3 + $0xe7] sm:$0xff]
      %v2343 = vld [vmem:[#allocation3 + $0xef] sm:$0xff]
      %v2344 = vld [vmem:[#allocation3 + $0x107] sm:$0xff]
      %v2345 = vld [vmem:[#allocation3 + $0x10f] sm:$0xff]
      %v2346 = vld [vmem:[#allocation3 + $0x127] sm:$0xff]
      %v2347 = vld [vmem:[#allocation3 + $0x12f] sm:$0xff]
      %v2348 = vld [vmem:[#allocation3 + $0x147] sm:$0xff]
      %v2349 = vld [vmem:[#allocation3 + $0x14f] sm:$0xff]
      %v2350 = vld [vmem:[#allocation3 + $0x167] sm:$0xff]
      %v2351 = vld [vmem:[#allocation3 + $0x16f] sm:$0xff]
      %v2352 = vld [vmem:[#allocation3 + $0x187] sm:$0xff]
      %v2353 = vld [vmem:[#allocation3 + $0x18f] sm:$0xff]
      %v2354 = vld [vmem:[#allocation3 + $0x1a7] sm:$0xff]
      %v2355 = vld [vmem:[#allocation3 + $0x1af] sm:$0xff]
      %v2356 = vld [vmem:[#allocation3 + $0x1c7] sm:$0xff]
      %v2357 = vld [vmem:[#allocation3 + $0x1cf] sm:$0xff]
      %v2358 = vld [vmem:[#allocation3 + $0x1e7] sm:$0xff]
      %v2359 = vld [vmem:[#allocation3 + $0x1ef] sm:$0xff]
      %v2360 = vld [vmem:[#allocation3 + $0x8] sm:$0xff]
      %v2361 = vld [vmem:[#allocation3 + $0x10] sm:$0xff]
      %v2362 = vld [vmem:[#allocation3 + $0x28] sm:$0xff]
      %v2363 = vld [vmem:[#allocation3 + $0x30] sm:$0xff]
      %v2364 = vld [vmem:[#allocation3 + $0x48] sm:$0xff]
      %v2365 = vld [vmem:[#allocation3 + $0x50] sm:$0xff]
      %v2366 = vld [vmem:[#allocation3 + $0x68] sm:$0xff]
      %v2367 = vld [vmem:[#allocation3 + $0x70] sm:$0xff]
      %v2368 = vld [vmem:[#allocation3 + $0x88] sm:$0xff]
      %v2369 = vld [vmem:[#allocation3 + $0x90] sm:$0xff]
      %v2370 = vld [vmem:[#allocation3 + $0xa8] sm:$0xff]
      %v2371 = vld [vmem:[#allocation3 + $0xb0] sm:$0xff]
      %v2372 = vld [vmem:[#allocation3 + $0xc8] sm:$0xff]
      %v2373 = vld [vmem:[#allocation3 + $0xd0] sm:$0xff]
      %v2374 = vld [vmem:[#allocation3 + $0xe8] sm:$0xff]
      %v2375 = vld [vmem:[#allocation3 + $0xf0] sm:$0xff]
      %v2376 = vld [vmem:[#allocation3 + $0x108] sm:$0xff]
      %v2377 = vld [vmem:[#allocation3 + $0x110] sm:$0xff]
      %v2378 = vld [vmem:[#allocation3 + $0x128] sm:$0xff]
      %v2379 = vld [vmem:[#allocation3 + $0x130] sm:$0xff]
      %v2380 = vld [vmem:[#allocation3 + $0x148] sm:$0xff]
      %v2381 = vld [vmem:[#allocation3 + $0x150] sm:$0xff]
      %v2382 = vld [vmem:[#allocation3 + $0x168] sm:$0xff]
      %v2383 = vld [vmem:[#allocation3 + $0x170] sm:$0xff]
      %v2384 = vld [vmem:[#allocation3 + $0x188] sm:$0xff]
      %v2385 = vld [vmem:[#allocation3 + $0x190] sm:$0xff]
      %v2386 = vld [vmem:[#allocation3 + $0x1a8] sm:$0xff]
      %v2387 = vld [vmem:[#allocation3 + $0x1b0] sm:$0xff]
      %v2388 = vld [vmem:[#allocation3 + $0x1c8] sm:$0xff]
      %v2389 = vld [vmem:[#allocation3 + $0x1d0] sm:$0xff]
      %v2390 = vld [vmem:[#allocation3 + $0x1e8] sm:$0xff]
      %v2391 = vld [vmem:[#allocation3 + $0x1f0] sm:$0xff]
      %v2392 = vld [vmem:[#allocation3 + $0x9] sm:$0xff]
      %v2393 = vld [vmem:[#allocation3 + $0x11] sm:$0xff]
      %v2394 = vld [vmem:[#allocation3 + $0x29] sm:$0xff]
      %v2395 = vld [vmem:[#allocation3 + $0x31] sm:$0xff]
      %v2396 = vld [vmem:[#allocation3 + $0x49] sm:$0xff]
      %v2397 = vld [vmem:[#allocation3 + $0x51] sm:$0xff]
      %v2398 = vld [vmem:[#allocation3 + $0x69] sm:$0xff]
      %v2399 = vld [vmem:[#allocation3 + $0x71] sm:$0xff]
      %v2400 = vld [vmem:[#allocation3 + $0x89] sm:$0xff]
      %v2401 = vld [vmem:[#allocation3 + $0x91] sm:$0xff]
      %v2402 = vld [vmem:[#allocation3 + $0xa9] sm:$0xff]
      %v2403 = vld [vmem:[#allocation3 + $0xb1] sm:$0xff]
      %v2404 = vld [vmem:[#allocation3 + $0xc9] sm:$0xff]
      %v2405 = vld [vmem:[#allocation3 + $0xd1] sm:$0xff]
      %v2406 = vld [vmem:[#allocation3 + $0xe9] sm:$0xff]
      %v2407 = vld [vmem:[#allocation3 + $0xf1] sm:$0xff]
      %v2408 = vld [vmem:[#allocation3 + $0x109] sm:$0xff]
      %v2409 = vld [vmem:[#allocation3 + $0x111] sm:$0xff]
      %v2410 = vld [vmem:[#allocation3 + $0x129] sm:$0xff]
      %v2411 = vld [vmem:[#allocation3 + $0x131] sm:$0xff]
      %v2412 = vld [vmem:[#allocation3 + $0x149] sm:$0xff]
      %v2413 = vld [vmem:[#allocation3 + $0x151] sm:$0xff]
      %v2414 = vld [vmem:[#allocation3 + $0x169] sm:$0xff]
      %v2415 = vld [vmem:[#allocation3 + $0x171] sm:$0xff]
      %v2416 = vld [vmem:[#allocation3 + $0x189] sm:$0xff]
      %v2417 = vld [vmem:[#allocation3 + $0x191] sm:$0xff]
      %v2418 = vld [vmem:[#allocation3 + $0x1a9] sm:$0xff]
      %v2419 = vld [vmem:[#allocation3 + $0x1b1] sm:$0xff]
      %v2420 = vld [vmem:[#allocation3 + $0x1c9] sm:$0xff]
      %v2421 = vld [vmem:[#allocation3 + $0x1d1] sm:$0xff]
      %v2422 = vld [vmem:[#allocation3 + $0x1e9] sm:$0xff]
      %v2423 = vld [vmem:[#allocation3 + $0x1f1] sm:$0xff]
      %v2424 = vld [vmem:[#allocation3 + $0xa] sm:$0xff]
      %v2425 = vld [vmem:[#allocation3 + $0x12] sm:$0xff]
      %v2426 = vld [vmem:[#allocation3 + $0x2a] sm:$0xff]
      %v2427 = vld [vmem:[#allocation3 + $0x32] sm:$0xff]
      %v2428 = vld [vmem:[#allocation3 + $0x4a] sm:$0xff]
      %v2429 = vld [vmem:[#allocation3 + $0x52] sm:$0xff]
      %v2430 = vld [vmem:[#allocation3 + $0x6a] sm:$0xff]
      %v2431 = vld [vmem:[#allocation3 + $0x72] sm:$0xff]
      %v2432 = vld [vmem:[#allocation3 + $0x8a] sm:$0xff]
      %v2433 = vld [vmem:[#allocation3 + $0x92] sm:$0xff]
      %v2434 = vld [vmem:[#allocation3 + $0xaa] sm:$0xff]
      %v2435 = vld [vmem:[#allocation3 + $0xb2] sm:$0xff]
      %v2436 = vld [vmem:[#allocation3 + $0xca] sm:$0xff]
      %v2437 = vld [vmem:[#allocation3 + $0xd2] sm:$0xff]
      %v2438 = vld [vmem:[#allocation3 + $0xea] sm:$0xff]
      %v2439 = vld [vmem:[#allocation3 + $0xf2] sm:$0xff]
      %v2440 = vld [vmem:[#allocation3 + $0x10a] sm:$0xff]
      %v2441 = vld [vmem:[#allocation3 + $0x112] sm:$0xff]
      %v2442 = vld [vmem:[#allocation3 + $0x12a] sm:$0xff]
      %v2443 = vld [vmem:[#allocation3 + $0x132] sm:$0xff]
      %v2444 = vld [vmem:[#allocation3 + $0x14a] sm:$0xff]
      %v2445 = vld [vmem:[#allocation3 + $0x152] sm:$0xff]
      %v2446 = vld [vmem:[#allocation3 + $0x16a] sm:$0xff]
      %v2447 = vld [vmem:[#allocation3 + $0x172] sm:$0xff]
      %v2448 = vld [vmem:[#allocation3 + $0x18a] sm:$0xff]
      %v2449 = vld [vmem:[#allocation3 + $0x192] sm:$0xff]
      %v2450 = vld [vmem:[#allocation3 + $0x1aa] sm:$0xff]
      %v2451 = vld [vmem:[#allocation3 + $0x1b2] sm:$0xff]
      %v2452 = vld [vmem:[#allocation3 + $0x1ca] sm:$0xff]
      %v2453 = vld [vmem:[#allocation3 + $0x1d2] sm:$0xff]
      %v2454 = vld [vmem:[#allocation3 + $0x1ea] sm:$0xff]
      %v2455 = vld [vmem:[#allocation3 + $0x1f2] sm:$0xff]
      %v2456 = vld [vmem:[#allocation3 + $0xb] sm:$0xff]
      %v2457 = vld [vmem:[#allocation3 + $0x13] sm:$0xff]
      %v2458 = vld [vmem:[#allocation3 + $0x2b] sm:$0xff]
      %v2459 = vld [vmem:[#allocation3 + $0x33] sm:$0xff]
      %v2460 = vld [vmem:[#allocation3 + $0x4b] sm:$0xff]
      %v2461 = vld [vmem:[#allocation3 + $0x53] sm:$0xff]
      %v2462 = vld [vmem:[#allocation3 + $0x6b] sm:$0xff]
      %v2463 = vld [vmem:[#allocation3 + $0x73] sm:$0xff]
      %v2464 = vld [vmem:[#allocation3 + $0x8b] sm:$0xff]
      %v2465 = vld [vmem:[#allocation3 + $0x93] sm:$0xff]
      %v2466 = vld [vmem:[#allocation3 + $0xab] sm:$0xff]
      %v2467 = vld [vmem:[#allocation3 + $0xb3] sm:$0xff]
      %v2468 = vld [vmem:[#allocation3 + $0xcb] sm:$0xff]
      %v2469 = vld [vmem:[#allocation3 + $0xd3] sm:$0xff]
      %v2470 = vld [vmem:[#allocation3 + $0xeb] sm:$0xff]
      %v2471 = vld [vmem:[#allocation3 + $0xf3] sm:$0xff]
      %v2472 = vld [vmem:[#allocation3 + $0x10b] sm:$0xff]
      %v2473 = vld [vmem:[#allocation3 + $0x113] sm:$0xff]
      %v2474 = vld [vmem:[#allocation3 + $0x12b] sm:$0xff]
      %v2475 = vld [vmem:[#allocation3 + $0x133] sm:$0xff]
      %v2476 = vld [vmem:[#allocation3 + $0x14b] sm:$0xff]
      %v2477 = vld [vmem:[#allocation3 + $0x153] sm:$0xff]
      %v2478 = vld [vmem:[#allocation3 + $0x16b] sm:$0xff]
      %v2479 = vld [vmem:[#allocation3 + $0x173] sm:$0xff]
      %v2480 = vld [vmem:[#allocation3 + $0x18b] sm:$0xff]
      %v2481 = vld [vmem:[#allocation3 + $0x193] sm:$0xff]
      %v2482 = vld [vmem:[#allocation3 + $0x1ab] sm:$0xff]
      %v2483 = vld [vmem:[#allocation3 + $0x1b3] sm:$0xff]
      %v2484 = vld [vmem:[#allocation3 + $0x1cb] sm:$0xff]
      %v2485 = vld [vmem:[#allocation3 + $0x1d3] sm:$0xff]
      %v2486 = vld [vmem:[#allocation3 + $0x1eb] sm:$0xff]
      %v2487 = vld [vmem:[#allocation3 + $0x1f3] sm:$0xff]
      %2520 = vrot.lane.b32.xlu0 %v2296, 8
      %v2521 = vpop.permute.xlu0 %2520
      %2522 = vrot.lane.b32.xlu0 %v2297, 8
      %v2523 = vpop.permute.xlu0 %2522
      %2524 = vrot.lane.b32.xlu0 %v2298, 8
      %v2525 = vpop.permute.xlu0 %2524
      %2526 = vrot.lane.b32.xlu0 %v2299, 8
      %v2527 = vpop.permute.xlu0 %2526
      %2528 = vrot.lane.b32.xlu0 %v2300, 8
      %v2529 = vpop.permute.xlu0 %2528
      %2530 = vrot.lane.b32.xlu0 %v2301, 8
      %v2531 = vpop.permute.xlu0 %2530
      %2532 = vrot.lane.b32.xlu0 %v2302, 8
      %v2533 = vpop.permute.xlu0 %2532
      %2534 = vrot.lane.b32.xlu0 %v2303, 8
      %v2535 = vpop.permute.xlu0 %2534
      %2536 = vrot.lane.b32.xlu0 %v2304, 8
      %v2537 = vpop.permute.xlu0 %2536
      %2538 = vrot.lane.b32.xlu0 %v2305, 8
      %v2539 = vpop.permute.xlu0 %2538
      %2540 = vrot.lane.b32.xlu0 %v2306, 8
      %v2541 = vpop.permute.xlu0 %2540
      %2542 = vrot.lane.b32.xlu0 %v2307, 8
      %v2543 = vpop.permute.xlu0 %2542
      %2544 = vrot.lane.b32.xlu0 %v2308, 8
      %v2545 = vpop.permute.xlu0 %2544
      %2546 = vrot.lane.b32.xlu0 %v2309, 8
      %v2547 = vpop.permute.xlu0 %2546
      %2548 = vrot.lane.b32.xlu0 %v2310, 8
      %v2549 = vpop.permute.xlu0 %2548
      %2550 = vrot.lane.b32.xlu0 %v2311, 8
      %v2551 = vpop.permute.xlu0 %2550
      %2552 = vrot.lane.b32.xlu0 %v2312, 8
      %v2553 = vpop.permute.xlu0 %2552
      %2554 = vrot.lane.b32.xlu0 %v2313, 8
      %v2555 = vpop.permute.xlu0 %2554
      %2556 = vrot.lane.b32.xlu0 %v2314, 8
      %v2557 = vpop.permute.xlu0 %2556
      %2558 = vrot.lane.b32.xlu0 %v2315, 8
      %v2559 = vpop.permute.xlu0 %2558
      %2560 = vrot.lane.b32.xlu0 %v2316, 8
      %v2561 = vpop.permute.xlu0 %2560
      %2562 = vrot.lane.b32.xlu0 %v2317, 8
      %v2563 = vpop.permute.xlu0 %2562
      %2564 = vrot.lane.b32.xlu0 %v2318, 8
      %v2565 = vpop.permute.xlu0 %2564
      %2566 = vrot.lane.b32.xlu0 %v2319, 8
      %v2567 = vpop.permute.xlu0 %2566
      %2568 = vrot.lane.b32.xlu0 %v2320, 8
      %v2569 = vpop.permute.xlu0 %2568
      %2570 = vrot.lane.b32.xlu0 %v2321, 8
      %v2571 = vpop.permute.xlu0 %2570
      %2572 = vrot.lane.b32.xlu0 %v2322, 8
      %v2573 = vpop.permute.xlu0 %2572
      %2574 = vrot.lane.b32.xlu0 %v2323, 8
      %v2575 = vpop.permute.xlu0 %2574
      %2576 = vrot.lane.b32.xlu0 %v2324, 8
      %v2577 = vpop.permute.xlu0 %2576
      %2578 = vrot.lane.b32.xlu0 %v2325, 8
      %v2579 = vpop.permute.xlu0 %2578
      %2580 = vrot.lane.b32.xlu0 %v2326, 8
      %v2581 = vpop.permute.xlu0 %2580
      %2582 = vrot.lane.b32.xlu0 %v2327, 8
      %v2583 = vpop.permute.xlu0 %2582
      %2648 = vrot.lane.b32.xlu0 %v2328, 16
      %v2649 = vpop.permute.xlu0 %2648
      %2650 = vrot.lane.b32.xlu0 %v2329, 16
      %v2651 = vpop.permute.xlu0 %2650
      %2652 = vrot.lane.b32.xlu0 %v2330, 16
      %v2653 = vpop.permute.xlu0 %2652
      %2654 = vrot.lane.b32.xlu0 %v2331, 16
      %v2655 = vpop.permute.xlu0 %2654
      %2656 = vrot.lane.b32.xlu0 %v2332, 16
      %v2657 = vpop.permute.xlu0 %2656
      %2658 = vrot.lane.b32.xlu0 %v2333, 16
      %v2659 = vpop.permute.xlu0 %2658
      %2660 = vrot.lane.b32.xlu0 %v2334, 16
      %v2661 = vpop.permute.xlu0 %2660
      %2662 = vrot.lane.b32.xlu0 %v2335, 16
      %v2663 = vpop.permute.xlu0 %2662
      %2664 = vrot.lane.b32.xlu0 %v2336, 16
      %v2665 = vpop.permute.xlu0 %2664
      %2666 = vrot.lane.b32.xlu0 %v2337, 16
      %v2667 = vpop.permute.xlu0 %2666
      %2668 = vrot.lane.b32.xlu0 %v2338, 16
      %v2669 = vpop.permute.xlu0 %2668
      %2670 = vrot.lane.b32.xlu0 %v2339, 16
      %v2671 = vpop.permute.xlu0 %2670
      %2672 = vrot.lane.b32.xlu0 %v2340, 16
      %v2673 = vpop.permute.xlu0 %2672
      %2674 = vrot.lane.b32.xlu0 %v2341, 16
      %v2675 = vpop.permute.xlu0 %2674
      %2676 = vrot.lane.b32.xlu0 %v2342, 16
      %v2677 = vpop.permute.xlu0 %2676
      %2678 = vrot.lane.b32.xlu0 %v2343, 16
      %v2679 = vpop.permute.xlu0 %2678
      %2680 = vrot.lane.b32.xlu0 %v2344, 16
      %v2681 = vpop.permute.xlu0 %2680
      %2682 = vrot.lane.b32.xlu0 %v2345, 16
      %v2683 = vpop.permute.xlu0 %2682
      %2684 = vrot.lane.b32.xlu0 %v2346, 16
      %v2685 = vpop.permute.xlu0 %2684
      %2686 = vrot.lane.b32.xlu0 %v2347, 16
      %v2687 = vpop.permute.xlu0 %2686
      %2688 = vrot.lane.b32.xlu0 %v2348, 16
      %v2689 = vpop.permute.xlu0 %2688
      %2690 = vrot.lane.b32.xlu0 %v2349, 16
      %v2691 = vpop.permute.xlu0 %2690
      %2692 = vrot.lane.b32.xlu0 %v2350, 16
      %v2693 = vpop.permute.xlu0 %2692
      %2694 = vrot.lane.b32.xlu0 %v2351, 16
      %v2695 = vpop.permute.xlu0 %2694
      %2696 = vrot.lane.b32.xlu0 %v2352, 16
      %v2697 = vpop.permute.xlu0 %2696
      %2698 = vrot.lane.b32.xlu0 %v2353, 16
      %v2699 = vpop.permute.xlu0 %2698
      %2700 = vrot.lane.b32.xlu0 %v2354, 16
      %v2701 = vpop.permute.xlu0 %2700
      %2702 = vrot.lane.b32.xlu0 %v2355, 16
      %v2703 = vpop.permute.xlu0 %2702
      %2704 = vrot.lane.b32.xlu0 %v2356, 16
      %v2705 = vpop.permute.xlu0 %2704
      %2706 = vrot.lane.b32.xlu0 %v2357, 16
      %v2707 = vpop.permute.xlu0 %2706
      %2708 = vrot.lane.b32.xlu0 %v2358, 16
      %v2709 = vpop.permute.xlu0 %2708
      %2710 = vrot.lane.b32.xlu0 %v2359, 16
      %v2711 = vpop.permute.xlu0 %2710
      %2776 = vrot.lane.b32.xlu0 %v2360, 24
      %v2777 = vpop.permute.xlu0 %2776
      %2778 = vrot.lane.b32.xlu0 %v2361, 24
      %v2779 = vpop.permute.xlu0 %2778
      %2780 = vrot.lane.b32.xlu0 %v2362, 24
      %v2781 = vpop.permute.xlu0 %2780
      %2782 = vrot.lane.b32.xlu0 %v2363, 24
      %v2783 = vpop.permute.xlu0 %2782
      %2784 = vrot.lane.b32.xlu0 %v2364, 24
      %v2785 = vpop.permute.xlu0 %2784
      %2786 = vrot.lane.b32.xlu0 %v2365, 24
      %v2787 = vpop.permute.xlu0 %2786
      %2788 = vrot.lane.b32.xlu0 %v2366, 24
      %v2789 = vpop.permute.xlu0 %2788
      %2790 = vrot.lane.b32.xlu0 %v2367, 24
      %v2791 = vpop.permute.xlu0 %2790
      %2792 = vrot.lane.b32.xlu0 %v2368, 24
      %v2793 = vpop.permute.xlu0 %2792
      %2794 = vrot.lane.b32.xlu0 %v2369, 24
      %v2795 = vpop.permute.xlu0 %2794
      %2796 = vrot.lane.b32.xlu0 %v2370, 24
      %v2797 = vpop.permute.xlu0 %2796
      %2798 = vrot.lane.b32.xlu0 %v2371, 24
      %v2799 = vpop.permute.xlu0 %2798
      %2800 = vrot.lane.b32.xlu0 %v2372, 24
      %v2801 = vpop.permute.xlu0 %2800
      %2802 = vrot.lane.b32.xlu0 %v2373, 24
      %v2803 = vpop.permute.xlu0 %2802
      %2804 = vrot.lane.b32.xlu0 %v2374, 24
      %v2805 = vpop.permute.xlu0 %2804
      %2806 = vrot.lane.b32.xlu0 %v2375, 24
      %v2807 = vpop.permute.xlu0 %2806
      %2808 = vrot.lane.b32.xlu0 %v2376, 24
      %v2809 = vpop.permute.xlu0 %2808
      %2810 = vrot.lane.b32.xlu0 %v2377, 24
      %v2811 = vpop.permute.xlu0 %2810
      %2812 = vrot.lane.b32.xlu0 %v2378, 24
      %v2813 = vpop.permute.xlu0 %2812
      %2814 = vrot.lane.b32.xlu0 %v2379, 24
      %v2815 = vpop.permute.xlu0 %2814
      %2816 = vrot.lane.b32.xlu0 %v2380, 24
      %v2817 = vpop.permute.xlu0 %2816
      %2818 = vrot.lane.b32.xlu0 %v2381, 24
      %v2819 = vpop.permute.xlu0 %2818
      %2820 = vrot.lane.b32.xlu0 %v2382, 24
      %v2821 = vpop.permute.xlu0 %2820
      %2822 = vrot.lane.b32.xlu0 %v2383, 24
      %v2823 = vpop.permute.xlu0 %2822
      %2824 = vrot.lane.b32.xlu0 %v2384, 24
      %v2825 = vpop.permute.xlu0 %2824
      %2826 = vrot.lane.b32.xlu0 %v2385, 24
      %v2827 = vpop.permute.xlu0 %2826
      %2828 = vrot.lane.b32.xlu0 %v2386, 24
      %v2829 = vpop.permute.xlu0 %2828
      %2830 = vrot.lane.b32.xlu0 %v2387, 24
      %v2831 = vpop.permute.xlu0 %2830
      %2832 = vrot.lane.b32.xlu0 %v2388, 24
      %v2833 = vpop.permute.xlu0 %2832
      %2834 = vrot.lane.b32.xlu0 %v2389, 24
      %v2835 = vpop.permute.xlu0 %2834
      %2836 = vrot.lane.b32.xlu0 %v2390, 24
      %v2837 = vpop.permute.xlu0 %2836
      %2838 = vrot.lane.b32.xlu0 %v2391, 24
      %v2839 = vpop.permute.xlu0 %2838
      %2904 = vrot.lane.b32.xlu0 %v2392, 32
      %v2905 = vpop.permute.xlu0 %2904
      %2906 = vrot.lane.b32.xlu0 %v2393, 32
      %v2907 = vpop.permute.xlu0 %2906
      %2908 = vrot.lane.b32.xlu0 %v2394, 32
      %v2909 = vpop.permute.xlu0 %2908
      %2910 = vrot.lane.b32.xlu0 %v2395, 32
      %v2911 = vpop.permute.xlu0 %2910
      %2912 = vrot.lane.b32.xlu0 %v2396, 32
      %v2913 = vpop.permute.xlu0 %2912
      %2914 = vrot.lane.b32.xlu0 %v2397, 32
      %v2915 = vpop.permute.xlu0 %2914
      %2916 = vrot.lane.b32.xlu0 %v2398, 32
      %v2917 = vpop.permute.xlu0 %2916
      %2918 = vrot.lane.b32.xlu0 %v2399, 32
      %v2919 = vpop.permute.xlu0 %2918
      %2920 = vrot.lane.b32.xlu0 %v2400, 32
      %v2921 = vpop.permute.xlu0 %2920
      %2922 = vrot.lane.b32.xlu0 %v2401, 32
      %v2923 = vpop.permute.xlu0 %2922
      %2924 = vrot.lane.b32.xlu0 %v2402, 32
      %v2925 = vpop.permute.xlu0 %2924
      %2926 = vrot.lane.b32.xlu0 %v2403, 32
      %v2927 = vpop.permute.xlu0 %2926
      %2928 = vrot.lane.b32.xlu0 %v2404, 32
      %v2929 = vpop.permute.xlu0 %2928
      %2930 = vrot.lane.b32.xlu0 %v2405, 32
      %v2931 = vpop.permute.xlu0 %2930
      %2932 = vrot.lane.b32.xlu0 %v2406, 32
      %v2933 = vpop.permute.xlu0 %2932
      %2934 = vrot.lane.b32.xlu0 %v2407, 32
      %v2935 = vpop.permute.xlu0 %2934
      %2936 = vrot.lane.b32.xlu0 %v2408, 32
      %v2937 = vpop.permute.xlu0 %2936
      %2938 = vrot.lane.b32.xlu0 %v2409, 32
      %v2939 = vpop.permute.xlu0 %2938
      %2940 = vrot.lane.b32.xlu0 %v2410, 32
      %v2941 = vpop.permute.xlu0 %2940
      %2942 = vrot.lane.b32.xlu0 %v2411, 32
      %v2943 = vpop.permute.xlu0 %2942
      %2944 = vrot.lane.b32.xlu0 %v2412, 32
      %v2945 = vpop.permute.xlu0 %2944
      %2946 = vrot.lane.b32.xlu0 %v2413, 32
      %v2947 = vpop.permute.xlu0 %2946
      %2948 = vrot.lane.b32.xlu0 %v2414, 32
      %v2949 = vpop.permute.xlu0 %2948
      %2950 = vrot.lane.b32.xlu0 %v2415, 32
      %v2951 = vpop.permute.xlu0 %2950
      %2952 = vrot.lane.b32.xlu0 %v2416, 32
      %v2953 = vpop.permute.xlu0 %2952
      %2954 = vrot.lane.b32.xlu0 %v2417, 32
      %v2955 = vpop.permute.xlu0 %2954
      %2956 = vrot.lane.b32.xlu0 %v2418, 32
      %v2957 = vpop.permute.xlu0 %2956
      %2958 = vrot.lane.b32.xlu0 %v2419, 32
      %v2959 = vpop.permute.xlu0 %2958
      %2960 = vrot.lane.b32.xlu0 %v2420, 32
      %v2961 = vpop.permute.xlu0 %2960
      %2962 = vrot.lane.b32.xlu0 %v2421, 32
      %v2963 = vpop.permute.xlu0 %2962
      %2964 = vrot.lane.b32.xlu0 %v2422, 32
      %v2965 = vpop.permute.xlu0 %2964
      %2966 = vrot.lane.b32.xlu0 %v2423, 32
      %v2967 = vpop.permute.xlu0 %2966
      %3032 = vrot.lane.b32.xlu0 %v2424, 40
      %v3033 = vpop.permute.xlu0 %3032
      %3034 = vrot.lane.b32.xlu0 %v2425, 40
      %v3035 = vpop.permute.xlu0 %3034
      %3036 = vrot.lane.b32.xlu0 %v2426, 40
      %v3037 = vpop.permute.xlu0 %3036
      %3038 = vrot.lane.b32.xlu0 %v2427, 40
      %v3039 = vpop.permute.xlu0 %3038
      %3040 = vrot.lane.b32.xlu0 %v2428, 40
      %v3041 = vpop.permute.xlu0 %3040
      %3042 = vrot.lane.b32.xlu0 %v2429, 40
      %v3043 = vpop.permute.xlu0 %3042
      %3044 = vrot.lane.b32.xlu0 %v2430, 40
      %v3045 = vpop.permute.xlu0 %3044
      %3046 = vrot.lane.b32.xlu0 %v2431, 40
      %v3047 = vpop.permute.xlu0 %3046
      %3048 = vrot.lane.b32.xlu0 %v2432, 40
      %v3049 = vpop.permute.xlu0 %3048
      %3050 = vrot.lane.b32.xlu0 %v2433, 40
      %v3051 = vpop.permute.xlu0 %3050
      %3052 = vrot.lane.b32.xlu0 %v2434, 40
      %v3053 = vpop.permute.xlu0 %3052
      %3054 = vrot.lane.b32.xlu0 %v2435, 40
      %v3055 = vpop.permute.xlu0 %3054
      %3056 = vrot.lane.b32.xlu0 %v2436, 40
      %v3057 = vpop.permute.xlu0 %3056
      %3058 = vrot.lane.b32.xlu0 %v2437, 40
      %v3059 = vpop.permute.xlu0 %3058
      %3060 = vrot.lane.b32.xlu0 %v2438, 40
      %v3061 = vpop.permute.xlu0 %3060
      %3062 = vrot.lane.b32.xlu0 %v2439, 40
      %v3063 = vpop.permute.xlu0 %3062
      %3064 = vrot.lane.b32.xlu0 %v2440, 40
      %v3065 = vpop.permute.xlu0 %3064
      %3066 = vrot.lane.b32.xlu0 %v2441, 40
      %v3067 = vpop.permute.xlu0 %3066
      %3068 = vrot.lane.b32.xlu0 %v2442, 40
      %v3069 = vpop.permute.xlu0 %3068
      %3070 = vrot.lane.b32.xlu0 %v2443, 40
      %v3071 = vpop.permute.xlu0 %3070
      %3072 = vrot.lane.b32.xlu0 %v2444, 40
      %v3073 = vpop.permute.xlu0 %3072
      %3074 = vrot.lane.b32.xlu0 %v2445, 40
      %v3075 = vpop.permute.xlu0 %3074
      %3076 = vrot.lane.b32.xlu0 %v2446, 40
      %v3077 = vpop.permute.xlu0 %3076
      %3078 = vrot.lane.b32.xlu0 %v2447, 40
      %v3079 = vpop.permute.xlu0 %3078
      %3080 = vrot.lane.b32.xlu0 %v2448, 40
      %v3081 = vpop.permute.xlu0 %3080
      %3082 = vrot.lane.b32.xlu0 %v2449, 40
      %v3083 = vpop.permute.xlu0 %3082
      %3084 = vrot.lane.b32.xlu0 %v2450, 40
      %v3085 = vpop.permute.xlu0 %3084
      %3086 = vrot.lane.b32.xlu0 %v2451, 40
      %v3087 = vpop.permute.xlu0 %3086
      %3088 = vrot.lane.b32.xlu0 %v2452, 40
      %v3089 = vpop.permute.xlu0 %3088
      %3090 = vrot.lane.b32.xlu0 %v2453, 40
      %v3091 = vpop.permute.xlu0 %3090
      %3092 = vrot.lane.b32.xlu0 %v2454, 40
      %v3093 = vpop.permute.xlu0 %3092
      %3094 = vrot.lane.b32.xlu0 %v2455, 40
      %v3095 = vpop.permute.xlu0 %3094
      %3160 = vrot.lane.b32.xlu0 %v2456, 48
      %v3161 = vpop.permute.xlu0 %3160
      %3162 = vrot.lane.b32.xlu0 %v2457, 48
      %v3163 = vpop.permute.xlu0 %3162
      %3164 = vrot.lane.b32.xlu0 %v2458, 48
      %v3165 = vpop.permute.xlu0 %3164
      %3166 = vrot.lane.b32.xlu0 %v2459, 48
      %v3167 = vpop.permute.xlu0 %3166
      %3168 = vrot.lane.b32.xlu0 %v2460, 48
      %v3169 = vpop.permute.xlu0 %3168
      %3170 = vrot.lane.b32.xlu0 %v2461, 48
      %v3171 = vpop.permute.xlu0 %3170
      %3172 = vrot.lane.b32.xlu0 %v2462, 48
      %v3173 = vpop.permute.xlu0 %3172
      %3174 = vrot.lane.b32.xlu0 %v2463, 48
      %v3175 = vpop.permute.xlu0 %3174
      %3176 = vrot.lane.b32.xlu0 %v2464, 48
      %v3177 = vpop.permute.xlu0 %3176
      %3178 = vrot.lane.b32.xlu0 %v2465, 48
      %v3179 = vpop.permute.xlu0 %3178
      %3180 = vrot.lane.b32.xlu0 %v2466, 48
      %v3181 = vpop.permute.xlu0 %3180
      %3182 = vrot.lane.b32.xlu0 %v2467, 48
      %v3183 = vpop.permute.xlu0 %3182
      %3184 = vrot.lane.b32.xlu0 %v2468, 48
      %v3185 = vpop.permute.xlu0 %3184
      %3186 = vrot.lane.b32.xlu0 %v2469, 48
      %v3187 = vpop.permute.xlu0 %3186
      %3188 = vrot.lane.b32.xlu0 %v2470, 48
      %v3189 = vpop.permute.xlu0 %3188
      %3190 = vrot.lane.b32.xlu0 %v2471, 48
      %v3191 = vpop.permute.xlu0 %3190
      %3192 = vrot.lane.b32.xlu0 %v2472, 48
      %v3193 = vpop.permute.xlu0 %3192
      %3194 = vrot.lane.b32.xlu0 %v2473, 48
      %v3195 = vpop.permute.xlu0 %3194
      %3196 = vrot.lane.b32.xlu0 %v2474, 48
      %v3197 = vpop.permute.xlu0 %3196
      %3198 = vrot.lane.b32.xlu0 %v2475, 48
      %v3199 = vpop.permute.xlu0 %3198
      %3200 = vrot.lane.b32.xlu0 %v2476, 48
      %v3201 = vpop.permute.xlu0 %3200
      %3202 = vrot.lane.b32.xlu0 %v2477, 48
      %v3203 = vpop.permute.xlu0 %3202
      %3204 = vrot.lane.b32.xlu0 %v2478, 48
      %v3205 = vpop.permute.xlu0 %3204
      %3206 = vrot.lane.b32.xlu0 %v2479, 48
      %v3207 = vpop.permute.xlu0 %3206
      %3208 = vrot.lane.b32.xlu0 %v2480, 48
      %v3209 = vpop.permute.xlu0 %3208
      %3210 = vrot.lane.b32.xlu0 %v2481, 48
      %v3211 = vpop.permute.xlu0 %3210
      %3212 = vrot.lane.b32.xlu0 %v2482, 48
      %v3213 = vpop.permute.xlu0 %3212
      %3214 = vrot.lane.b32.xlu0 %v2483, 48
      %v3215 = vpop.permute.xlu0 %3214
      %3216 = vrot.lane.b32.xlu0 %v2484, 48
      %v3217 = vpop.permute.xlu0 %3216
      %3218 = vrot.lane.b32.xlu0 %v2485, 48
      %v3219 = vpop.permute.xlu0 %3218
      %3220 = vrot.lane.b32.xlu0 %v2486, 48
      %v3221 = vpop.permute.xlu0 %3220
      %3222 = vrot.lane.b32.xlu0 %v2487, 48
      %v3223 = vpop.permute.xlu0 %3222
      %v3256 = vsel %vm442, %v2264, %v2521
      %v3257 = vsel %vm442, %v2265, %v2523
      %v3258 = vsel %vm442, %v2266, %v2525
      %v3259 = vsel %vm442, %v2267, %v2527
      %v3260 = vsel %vm442, %v2268, %v2529
      %v3261 = vsel %vm442, %v2269, %v2531
      %v3262 = vsel %vm442, %v2270, %v2533
      %v3263 = vsel %vm442, %v2271, %v2535
      %v3264 = vsel %vm442, %v2272, %v2537
      %v3265 = vsel %vm442, %v2273, %v2539
      %v3266 = vsel %vm442, %v2274, %v2541
      %v3267 = vsel %vm442, %v2275, %v2543
      %v3268 = vsel %vm442, %v2276, %v2545
      %v3269 = vsel %vm442, %v2277, %v2547
      %v3270 = vsel %vm442, %v2278, %v2549
      %v3271 = vsel %vm442, %v2279, %v2551
      %v3272 = vsel %vm442, %v2280, %v2553
      %v3273 = vsel %vm442, %v2281, %v2555
      %v3274 = vsel %vm442, %v2282, %v2557
      %v3275 = vsel %vm442, %v2283, %v2559
      %v3276 = vsel %vm442, %v2284, %v2561
      %v3277 = vsel %vm442, %v2285, %v2563
      %v3278 = vsel %vm442, %v2286, %v2565
      %v3279 = vsel %vm442, %v2287, %v2567
      %v3280 = vsel %vm442, %v2288, %v2569
      %v3281 = vsel %vm442, %v2289, %v2571
      %v3282 = vsel %vm442, %v2290, %v2573
      %v3283 = vsel %vm442, %v2291, %v2575
      %v3284 = vsel %vm442, %v2292, %v2577
      %v3285 = vsel %vm442, %v2293, %v2579
      %v3286 = vsel %vm442, %v2294, %v2581
      %v3287 = vsel %vm442, %v2295, %v2583
      %v3288 = vsel %vm1415, %v3256, %v2649
      %v3289 = vsel %vm1415, %v3257, %v2651
      %v3290 = vsel %vm1415, %v3258, %v2653
      %v3291 = vsel %vm1415, %v3259, %v2655
      %v3292 = vsel %vm1415, %v3260, %v2657
      %v3293 = vsel %vm1415, %v3261, %v2659
      %v3294 = vsel %vm1415, %v3262, %v2661
      %v3295 = vsel %vm1415, %v3263, %v2663
      %v3296 = vsel %vm1415, %v3264, %v2665
      %v3297 = vsel %vm1415, %v3265, %v2667
      %v3298 = vsel %vm1415, %v3266, %v2669
      %v3299 = vsel %vm1415, %v3267, %v2671
      %v3300 = vsel %vm1415, %v3268, %v2673
      %v3301 = vsel %vm1415, %v3269, %v2675
      %v3302 = vsel %vm1415, %v3270, %v2677
      %v3303 = vsel %vm1415, %v3271, %v2679
      %v3304 = vsel %vm1415, %v3272, %v2681
      %v3305 = vsel %vm1415, %v3273, %v2683
      %v3306 = vsel %vm1415, %v3274, %v2685
      %v3307 = vsel %vm1415, %v3275, %v2687
      %v3308 = vsel %vm1415, %v3276, %v2689
      %v3309 = vsel %vm1415, %v3277, %v2691
      %v3310 = vsel %vm1415, %v3278, %v2693
      %v3311 = vsel %vm1415, %v3279, %v2695
      %v3312 = vsel %vm1415, %v3280, %v2697
      %v3313 = vsel %vm1415, %v3281, %v2699
      %v3314 = vsel %vm1415, %v3282, %v2701
      %v3315 = vsel %vm1415, %v3283, %v2703
      %v3316 = vsel %vm1415, %v3284, %v2705
      %v3317 = vsel %vm1415, %v3285, %v2707
      %v3318 = vsel %vm1415, %v3286, %v2709
      %v3319 = vsel %vm1415, %v3287, %v2711
      %v3320 = vsel %vm1423, %v3288, %v2777
      %v3321 = vsel %vm1423, %v3289, %v2779
      %v3322 = vsel %vm1423, %v3290, %v2781
      %v3323 = vsel %vm1423, %v3291, %v2783
      %v3324 = vsel %vm1423, %v3292, %v2785
      %v3325 = vsel %vm1423, %v3293, %v2787
      %v3326 = vsel %vm1423, %v3294, %v2789
      %v3327 = vsel %vm1423, %v3295, %v2791
      %v3328 = vsel %vm1423, %v3296, %v2793
      %v3329 = vsel %vm1423, %v3297, %v2795
      %v3330 = vsel %vm1423, %v3298, %v2797
      %v3331 = vsel %vm1423, %v3299, %v2799
      %v3332 = vsel %vm1423, %v3300, %v2801
      %v3333 = vsel %vm1423, %v3301, %v2803
      %v3334 = vsel %vm1423, %v3302, %v2805
      %v3335 = vsel %vm1423, %v3303, %v2807
      %v3336 = vsel %vm1423, %v3304, %v2809
      %v3337 = vsel %vm1423, %v3305, %v2811
      %v3338 = vsel %vm1423, %v3306, %v2813
      %v3339 = vsel %vm1423, %v3307, %v2815
      %v3340 = vsel %vm1423, %v3308, %v2817
      %v3341 = vsel %vm1423, %v3309, %v2819
      %v3342 = vsel %vm1423, %v3310, %v2821
      %v3343 = vsel %vm1423, %v3311, %v2823
      %v3344 = vsel %vm1423, %v3312, %v2825
      %v3345 = vsel %vm1423, %v3313, %v2827
      %v3346 = vsel %vm1423, %v3314, %v2829
      %v3347 = vsel %vm1423, %v3315, %v2831
      %v3348 = vsel %vm1423, %v3316, %v2833
      %v3349 = vsel %vm1423, %v3317, %v2835
      %v3350 = vsel %vm1423, %v3318, %v2837
      %v3351 = vsel %vm1423, %v3319, %v2839
      %v3352 = vsel %vm1431, %v3320, %v2905
      %v3353 = vsel %vm1431, %v3321, %v2907
      %v3354 = vsel %vm1431, %v3322, %v2909
      %v3355 = vsel %vm1431, %v3323, %v2911
      %v3356 = vsel %vm1431, %v3324, %v2913
      %v3357 = vsel %vm1431, %v3325, %v2915
      %v3358 = vsel %vm1431, %v3326, %v2917
      %v3359 = vsel %vm1431, %v3327, %v2919
      %v3360 = vsel %vm1431, %v3328, %v2921
      %v3361 = vsel %vm1431, %v3329, %v2923
      %v3362 = vsel %vm1431, %v3330, %v2925
      %v3363 = vsel %vm1431, %v3331, %v2927
      %v3364 = vsel %vm1431, %v3332, %v2929
      %v3365 = vsel %vm1431, %v3333, %v2931
      %v3366 = vsel %vm1431, %v3334, %v2933
      %v3367 = vsel %vm1431, %v3335, %v2935
      %v3368 = vsel %vm1431, %v3336, %v2937
      %v3369 = vsel %vm1431, %v3337, %v2939
      %v3370 = vsel %vm1431, %v3338, %v2941
      %v3371 = vsel %vm1431, %v3339, %v2943
      %v3372 = vsel %vm1431, %v3340, %v2945
      %v3373 = vsel %vm1431, %v3341, %v2947
      %v3374 = vsel %vm1431, %v3342, %v2949
      %v3375 = vsel %vm1431, %v3343, %v2951
      %v3376 = vsel %vm1431, %v3344, %v2953
      %v3377 = vsel %vm1431, %v3345, %v2955
      %v3378 = vsel %vm1431, %v3346, %v2957
      %v3379 = vsel %vm1431, %v3347, %v2959
      %v3380 = vsel %vm1431, %v3348, %v2961
      %v3381 = vsel %vm1431, %v3349, %v2963
      %v3382 = vsel %vm1431, %v3350, %v2965
      %v3383 = vsel %vm1431, %v3351, %v2967
      %v3384 = vsel %vm1439, %v3352, %v3033
      %v3385 = vsel %vm1439, %v3353, %v3035
      %v3386 = vsel %vm1439, %v3354, %v3037
      %v3387 = vsel %vm1439, %v3355, %v3039
      %v3388 = vsel %vm1439, %v3356, %v3041
      %v3389 = vsel %vm1439, %v3357, %v3043
      %v3390 = vsel %vm1439, %v3358, %v3045
      %v3391 = vsel %vm1439, %v3359, %v3047
      %v3392 = vsel %vm1439, %v3360, %v3049
      %v3393 = vsel %vm1439, %v3361, %v3051
      %v3394 = vsel %vm1439, %v3362, %v3053
      %v3395 = vsel %vm1439, %v3363, %v3055
      %v3396 = vsel %vm1439, %v3364, %v3057
      %v3397 = vsel %vm1439, %v3365, %v3059
      %v3398 = vsel %vm1439, %v3366, %v3061
      %v3399 = vsel %vm1439, %v3367, %v3063
      %v3400 = vsel %vm1439, %v3368, %v3065
      %v3401 = vsel %vm1439, %v3369, %v3067
      %v3402 = vsel %vm1439, %v3370, %v3069
      %v3403 = vsel %vm1439, %v3371, %v3071
      %v3404 = vsel %vm1439, %v3372, %v3073
      %v3405 = vsel %vm1439, %v3373, %v3075
      %v3406 = vsel %vm1439, %v3374, %v3077
      %v3407 = vsel %vm1439, %v3375, %v3079
      %v3408 = vsel %vm1439, %v3376, %v3081
      %v3409 = vsel %vm1439, %v3377, %v3083
      %v3410 = vsel %vm1439, %v3378, %v3085
      %v3411 = vsel %vm1439, %v3379, %v3087
      %v3412 = vsel %vm1439, %v3380, %v3089
      %v3413 = vsel %vm1439, %v3381, %v3091
      %v3414 = vsel %vm1439, %v3382, %v3093
      %v3415 = vsel %vm1439, %v3383, %v3095
      %v3416 = vsel %vm1447, %v3384, %v3161
      %v3417 = vsel %vm1447, %v3385, %v3163
      %v3418 = vsel %vm1447, %v3386, %v3165
      %v3419 = vsel %vm1447, %v3387, %v3167
      %v3420 = vsel %vm1447, %v3388, %v3169
      %v3421 = vsel %vm1447, %v3389, %v3171
      %v3422 = vsel %vm1447, %v3390, %v3173
      %v3423 = vsel %vm1447, %v3391, %v3175
      %v3424 = vsel %vm1447, %v3392, %v3177
      %v3425 = vsel %vm1447, %v3393, %v3179
      %v3426 = vsel %vm1447, %v3394, %v3181
      %v3427 = vsel %vm1447, %v3395, %v3183
      %v3428 = vsel %vm1447, %v3396, %v3185
      %v3429 = vsel %vm1447, %v3397, %v3187
      %v3430 = vsel %vm1447, %v3398, %v3189
      %v3431 = vsel %vm1447, %v3399, %v3191
      %v3432 = vsel %vm1447, %v3400, %v3193
      %v3433 = vsel %vm1447, %v3401, %v3195
      %v3434 = vsel %vm1447, %v3402, %v3197
      %v3435 = vsel %vm1447, %v3403, %v3199
      %v3436 = vsel %vm1447, %v3404, %v3201
      %v3437 = vsel %vm1447, %v3405, %v3203
      %v3438 = vsel %vm1447, %v3406, %v3205
      %v3439 = vsel %vm1447, %v3407, %v3207
      %v3440 = vsel %vm1447, %v3408, %v3209
      %v3441 = vsel %vm1447, %v3409, %v3211
      %v3442 = vsel %vm1447, %v3410, %v3213
      %v3443 = vsel %vm1447, %v3411, %v3215
      %v3444 = vsel %vm1447, %v3412, %v3217
      %v3445 = vsel %vm1447, %v3413, %v3219
      %v3446 = vsel %vm1447, %v3414, %v3221
      %v3447 = vsel %vm1447, %v3415, %v3223
      %v3448 = vpack.c.bf16 %v3417, %v3416
      %v3449 = vpack.c.bf16 %v3419, %v3418
      %v3450 = vpack.c.bf16 %v3421, %v3420
      %v3451 = vpack.c.bf16 %v3423, %v3422
      %v3452 = vpack.c.bf16 %v3425, %v3424
      %v3453 = vpack.c.bf16 %v3427, %v3426
      %v3454 = vpack.c.bf16 %v3429, %v3428
      %v3455 = vpack.c.bf16 %v3431, %v3430
      %v3456 = vpack.c.bf16 %v3433, %v3432
      %v3457 = vpack.c.bf16 %v3435, %v3434
      %v3458 = vpack.c.bf16 %v3437, %v3436
      %v3459 = vpack.c.bf16 %v3439, %v3438
      %v3460 = vpack.c.bf16 %v3441, %v3440
      %v3461 = vpack.c.bf16 %v3443, %v3442
      %v3462 = vpack.c.bf16 %v3445, %v3444
      %v3463 = vpack.c.bf16 %v3447, %v3446
      %v3464 = vld [vmem:[%s7] sm:$0xf]
      %v3465 = vld [vmem:[%s7 + $0x4] sm:$0xf]
      %v3466 = vld [vmem:[%s7 + $0x8] sm:$0xf]
      %v3467 = vld [vmem:[%s7 + $0xc] sm:$0xf]
      %v3468 = vld [vmem:[%s7 + $0x10] sm:$0xf]
      %v3469 = vld [vmem:[%s7 + $0x14] sm:$0xf]
      %v3470 = vld [vmem:[%s7 + $0x18] sm:$0xf]
      %v3471 = vld [vmem:[%s8] sm:$0x1]
      %v3473 = vlaneseq
      %v3474 = vshrl.u32 %v3473, 7
      %v3475 = vsub.s32 0, %v3474
      %v3476 = vrot.slane %v3471, %v3475
      %v3485 = vunpack.c.l.b16 %v3464
      %v3486 = vunpack.c.l.b16 %v3465
      %v3487 = vunpack.c.l.b16 %v3466
      %v3488 = vunpack.c.l.b16 %v3467
      %v3489 = vunpack.c.l.b16 %v3468
      %v3490 = vunpack.c.l.b16 %v3469
      %v3491 = vunpack.c.l.b16 %v3470
      %v3492 = vpack.c.b16 %v3486, %v3485
      %v3493 = vpack.c.b16 %v3488, %v3487
      %v3494 = vpack.c.b16 %v3490, %v3489
      %v3495 = vpack.c.b16 %v3491, %v3491
      %v3500 = vsel %vm1455, %v3448, 0
      %v3503 = vsel %vm1455, %v3449, 0
      %v3506 = vsel %vm1455, %v3450, 0
      %v3509 = vsel %vm1455, %v3451, 0
      %v3512 = vsel %vm1455, %v3452, 0
      %v3515 = vsel %vm1455, %v3453, 0
      %v3518 = vsel %vm1455, %v3454, 0
      %v3521 = vsel %vm1455, %v3455, 0
      %v3524 = vsel %vm1455, %v3456, 0
      %v3527 = vsel %vm1455, %v3457, 0
      %v3530 = vsel %vm1455, %v3458, 0
      %v3533 = vsel %vm1455, %v3459, 0
      %v3536 = vsel %vm1455, %v3460, 0
      %v3539 = vsel %vm1455, %v3461, 0
      %v3542 = vsel %vm1455, %v3462, 0
      %v3545 = vsel %vm1455, %v3463, 0
      %v3548 = vsel %vm2189, %v3495, 0
      %3550 = vmatprep.subr.bf16.mxu0 0
      %3551 = vmatpush1.bf16.msra.mxu0 %v3492
      %3552 = vmatprep.subr.bf16.mxu0 0
      %3553 = vmatpush1.bf16.msra.mxu0 %v3493
      %3554 = vmatprep.subr.bf16.mxu0 0
      %3555 = vmatpush1.bf16.msra.mxu0 %v3494
      %3556 = vmatprep.subr.bf16.mxu0 0
      %3557 = vmatpush1.bf16.msra.mxu0 %v3548
      %3558 = vmatprep.subr.bf16.mxu0 0
      %3559 = vmatpush1.bf16.msra.mxu0 0
      %3560 = vmatprep.subr.bf16.mxu0 0
      %3561 = vmatpush1.bf16.msra.mxu0 0
      %3562 = vmatprep.subr.bf16.mxu0 0
      %3563 = vmatpush1.bf16.msra.mxu0 0
      %3564 = vmatprep.subr.bf16.mxu0 0
      %3565 = vmatpush1.bf16.msra.mxu0 0
      %3566 = vmatprep.subr.bf16.mxu0 0
      %3567 = vmatpush1.bf16.msra.mxu0 0
      %3568 = vmatprep.subr.bf16.mxu0 0
      %3569 = vmatpush1.bf16.msra.mxu0 0
      %3570 = vmatprep.subr.bf16.mxu0 0
      %3571 = vmatpush1.bf16.msra.mxu0 0
      %3572 = vmatprep.subr.bf16.mxu0 0
      %3573 = vmatpush1.bf16.msra.mxu0 0
      %3574 = vmatprep.subr.bf16.mxu0 0
      %3575 = vmatpush1.bf16.msra.mxu0 0
      %3576 = vmatprep.subr.bf16.mxu0 0
      %3577 = vmatpush1.bf16.msra.mxu0 0
      %3578 = vmatprep.subr.bf16.mxu0 0
      %3579 = vmatpush1.bf16.msra.mxu0 0
      %3580 = vmatprep.subr.bf16.mxu0 0
      %3581 = vmatpush1.bf16.msra.mxu0 0
      %3582 = vmatprep.mubr.bf16.mxu0 0
      %3583 = vmatmul.mubr.bf16.gmra.mrb[0].mxu0 %v3500
      %v3584 = vpop.f32.mrb[0].mxu0
      %v3585 = vadd.f32 %v3476, %v3584
      %v3586 = vpop.f32.mrb[0].mxu0
      %v3587 = vpop.f32.mrb[0].mxu0
      %v3588 = vadd.f32 %v3476, %v3587
      %v3589 = vpop.f32.mrb[0].mxu0
      %3590 = vmatprep.mubr.bf16.mxu0 0
      %3591 = vmatmul.mubr.bf16.gmra.mrb[0].mxu0 %v3503
      %v3592 = vpop.f32.mrb[0].mxu0
      %v3593 = vadd.f32 %v3476, %v3592
      %v3594 = vpop.f32.mrb[0].mxu0
      %v3595 = vpop.f32.mrb[0].mxu0
      %v3596 = vadd.f32 %v3476, %v3595
      %v3597 = vpop.f32.mrb[0].mxu0
      %3598 = vmatprep.mubr.bf16.mxu0 0
      %3599 = vmatmul.mubr.bf16.gmra.mrb[0].mxu0 %v3506
      %v3600 = vpop.f32.mrb[0].mxu0
      %v3601 = vadd.f32 %v3476, %v3600
      %v3602 = vpop.f32.mrb[0].mxu0
      %v3603 = vpop.f32.mrb[0].mxu0
      %v3604 = vadd.f32 %v3476, %v3603
      %v3605 = vpop.f32.mrb[0].mxu0
      %3606 = vmatprep.mubr.bf16.mxu0 0
      %3607 = vmatmul.mubr.bf16.gmra.mrb[0].mxu0 %v3509
      %v3608 = vpop.f32.mrb[0].mxu0
      %v3609 = vadd.f32 %v3476, %v3608
      %v3610 = vpop.f32.mrb[0].mxu0
      %v3611 = vpop.f32.mrb[0].mxu0
      %v3612 = vadd.f32 %v3476, %v3611
      %v3613 = vpop.f32.mrb[0].mxu0
      %3614 = vmatprep.mubr.bf16.mxu0 0
      %3615 = vmatmul.mubr.bf16.gmra.mrb[0].mxu0 %v3512
      %v3616 = vpop.f32.mrb[0].mxu0
      %v3617 = vadd.f32 %v3476, %v3616
      %v3618 = vpop.f32.mrb[0].mxu0
      %v3619 = vpop.f32.mrb[0].mxu0
      %v3620 = vadd.f32 %v3476, %v3619
      %v3621 = vpop.f32.mrb[0].mxu0
      %3622 = vmatprep.mubr.bf16.mxu0 0
      %3623 = vmatmul.mubr.bf16.gmra.mrb[0].mxu0 %v3515
      %v3624 = vpop.f32.mrb[0].mxu0
      %v3625 = vadd.f32 %v3476, %v3624
      %v3626 = vpop.f32.mrb[0].mxu0
      %v3627 = vpop.f32.mrb[0].mxu0
      %v3628 = vadd.f32 %v3476, %v3627
      %v3629 = vpop.f32.mrb[0].mxu0
      %3630 = vmatprep.mubr.bf16.mxu0 0
      %3631 = vmatmul.mubr.bf16.gmra.mrb[0].mxu0 %v3518
      %v3632 = vpop.f32.mrb[0].mxu0
      %v3633 = vadd.f32 %v3476, %v3632
      %v3634 = vpop.f32.mrb[0].mxu0
      %v3635 = vpop.f32.mrb[0].mxu0
      %v3636 = vadd.f32 %v3476, %v3635
      %v3637 = vpop.f32.mrb[0].mxu0
      %3638 = vmatprep.mubr.bf16.mxu0 0
      %3639 = vmatmul.mubr.bf16.gmra.mrb[0].mxu0 %v3521
      %v3640 = vpop.f32.mrb[0].mxu0
      %v3641 = vadd.f32 %v3476, %v3640
      %v3642 = vpop.f32.mrb[0].mxu0
      %v3643 = vpop.f32.mrb[0].mxu0
      %v3644 = vadd.f32 %v3476, %v3643
      %v3645 = vpop.f32.mrb[0].mxu0
      %3646 = vmatprep.mubr.bf16.mxu0 0
      %3647 = vmatmul.mubr.bf16.gmra.mrb[0].mxu0 %v3524
      %v3648 = vpop.f32.mrb[0].mxu0
      %v3649 = vadd.f32 %v3476, %v3648
      %v3650 = vpop.f32.mrb[0].mxu0
      %v3651 = vpop.f32.mrb[0].mxu0
      %v3652 = vadd.f32 %v3476, %v3651
      %v3653 = vpop.f32.mrb[0].mxu0
      %3654 = vmatprep.mubr.bf16.mxu0 0
      %3655 = vmatmul.mubr.bf16.gmra.mrb[0].mxu0 %v3527
      %v3656 = vpop.f32.mrb[0].mxu0
      %v3657 = vadd.f32 %v3476, %v3656
      %v3658 = vpop.f32.mrb[0].mxu0
      %v3659 = vpop.f32.mrb[0].mxu0
      %v3660 = vadd.f32 %v3476, %v3659
      %v3661 = vpop.f32.mrb[0].mxu0
      %3662 = vmatprep.mubr.bf16.mxu0 0
      %3663 = vmatmul.mubr.bf16.gmra.mrb[0].mxu0 %v3530
      %v3664 = vpop.f32.mrb[0].mxu0
      %v3665 = vadd.f32 %v3476, %v3664
      %v3666 = vpop.f32.mrb[0].mxu0
      %v3667 = vpop.f32.mrb[0].mxu0
      %v3668 = vadd.f32 %v3476, %v3667
      %v3669 = vpop.f32.mrb[0].mxu0
      %3670 = vmatprep.mubr.bf16.mxu0 0
      %3671 = vmatmul.mubr.bf16.gmra.mrb[0].mxu0 %v3533
      %v3672 = vpop.f32.mrb[0].mxu0
      %v3673 = vadd.f32 %v3476, %v3672
      %v3674 = vpop.f32.mrb[0].mxu0
      %v3675 = vpop.f32.mrb[0].mxu0
      %v3676 = vadd.f32 %v3476, %v3675
      %v3677 = vpop.f32.mrb[0].mxu0
      %3678 = vmatprep.mubr.bf16.mxu0 0
      %3679 = vmatmul.mubr.bf16.gmra.mrb[0].mxu0 %v3536
      %v3680 = vpop.f32.mrb[0].mxu0
      %v3681 = vadd.f32 %v3476, %v3680
      %v3682 = vpop.f32.mrb[0].mxu0
      %v3683 = vpop.f32.mrb[0].mxu0
      %v3684 = vadd.f32 %v3476, %v3683
      %v3685 = vpop.f32.mrb[0].mxu0
      %3686 = vmatprep.mubr.bf16.mxu0 0
      %3687 = vmatmul.mubr.bf16.gmra.mrb[0].mxu0 %v3539
      %v3688 = vpop.f32.mrb[0].mxu0
      %v3689 = vadd.f32 %v3476, %v3688
      %v3690 = vpop.f32.mrb[0].mxu0
      %v3691 = vpop.f32.mrb[0].mxu0
      %v3692 = vadd.f32 %v3476, %v3691
      %v3693 = vpop.f32.mrb[0].mxu0
      %3694 = vmatprep.mubr.bf16.mxu0 0
      %3695 = vmatmul.mubr.bf16.gmra.mrb[0].mxu0 %v3542
      %v3696 = vpop.f32.mrb[0].mxu0
      %v3697 = vadd.f32 %v3476, %v3696
      %v3698 = vpop.f32.mrb[0].mxu0
      %v3699 = vpop.f32.mrb[0].mxu0
      %v3700 = vadd.f32 %v3476, %v3699
      %v3701 = vpop.f32.mrb[0].mxu0
      %3702 = vmatprep.mubr.bf16.mxu0 0
      %3703 = vmatmul.mubr.bf16.gmra.mrb[0].mxu0 %v3545
      %v3704 = vpop.f32.mrb[0].mxu0
      %v3705 = vadd.f32 %v3476, %v3704
      %v3706 = vpop.f32.mrb[0].mxu0
      %v3707 = vpop.f32.mrb[0].mxu0
      %v3708 = vadd.f32 %v3476, %v3707
      %v3709 = vpop.f32.mrb[0].mxu0
      %3710 = vdwg.mxu0
      %v3711 = vmax.f32 %v3585, 0.0
      %v3712 = vmax.f32 %v3588, 0.0
      %v3713 = vmax.f32 %v3593, 0.0
      %v3714 = vmax.f32 %v3596, 0.0
      %v3715 = vmax.f32 %v3601, 0.0
      %v3716 = vmax.f32 %v3604, 0.0
      %v3717 = vmax.f32 %v3609, 0.0
      %v3718 = vmax.f32 %v3612, 0.0
      %v3719 = vmax.f32 %v3617, 0.0
      %v3720 = vmax.f32 %v3620, 0.0
      %v3721 = vmax.f32 %v3625, 0.0
      %v3722 = vmax.f32 %v3628, 0.0
      %v3723 = vmax.f32 %v3633, 0.0
      %v3724 = vmax.f32 %v3636, 0.0
      %v3725 = vmax.f32 %v3641, 0.0
      %v3726 = vmax.f32 %v3644, 0.0
      %v3727 = vmax.f32 %v3649, 0.0
      %v3728 = vmax.f32 %v3652, 0.0
      %v3729 = vmax.f32 %v3657, 0.0
      %v3730 = vmax.f32 %v3660, 0.0
      %v3731 = vmax.f32 %v3665, 0.0
      %v3732 = vmax.f32 %v3668, 0.0
      %v3733 = vmax.f32 %v3673, 0.0
      %v3734 = vmax.f32 %v3676, 0.0
      %v3735 = vmax.f32 %v3681, 0.0
      %v3736 = vmax.f32 %v3684, 0.0
      %v3737 = vmax.f32 %v3689, 0.0
      %v3738 = vmax.f32 %v3692, 0.0
      %v3739 = vmax.f32 %v3697, 0.0
      %v3740 = vmax.f32 %v3700, 0.0
      %v3741 = vmax.f32 %v3705, 0.0
      %v3742 = vmax.f32 %v3708, 0.0
      %s3743 = scalar_lea.vmem [#allocation4], 48
      %3744 = vst.msk [vmem:[%s3743] sm:$0xff] %vm475, %v3711
      %3745 = vst.msk [vmem:[%s3743 + $0x8] sm:$0xff] %vm475, %v3712
      %3746 = vst.msk [vmem:[%s3743 + $0x10] sm:$0xff] %vm475, %v3713
      %3747 = vst.msk [vmem:[%s3743 + $0x18] sm:$0xff] %vm475, %v3714
      %3748 = vst.msk [vmem:[%s3743 + $0x20] sm:$0xff] %vm475, %v3715
      %3749 = vst.msk [vmem:[%s3743 + $0x28] sm:$0xff] %vm475, %v3716
      %3750 = vst.msk [vmem:[%s3743 + $0x30] sm:$0xff] %vm475, %v3717
      %3751 = vst.msk [vmem:[%s3743 + $0x38] sm:$0xff] %vm475, %v3718
      %3752 = vst.msk [vmem:[%s3743 + $0x40] sm:$0xff] %vm475, %v3719
      %3753 = vst.msk [vmem:[%s3743 + $0x48] sm:$0xff] %vm475, %v3720
      %3754 = vst.msk [vmem:[%s3743 + $0x50] sm:$0xff] %vm475, %v3721
      %3755 = vst.msk [vmem:[%s3743 + $0x58] sm:$0xff] %vm475, %v3722
      %3756 = vst.msk [vmem:[%s3743 + $0x60] sm:$0xff] %vm475, %v3723
      %3757 = vst.msk [vmem:[%s3743 + $0x68] sm:$0xff] %vm475, %v3724
      %3758 = vst.msk [vmem:[%s3743 + $0x70] sm:$0xff] %vm475, %v3725
      %3759 = vst.msk [vmem:[%s3743 + $0x78] sm:$0xff] %vm475, %v3726
      %3760 = vst.msk [vmem:[%s3743 + $0x80] sm:$0xff] %vm475, %v3727
      %3761 = vst.msk [vmem:[%s3743 + $0x88] sm:$0xff] %vm475, %v3728
      %3762 = vst.msk [vmem:[%s3743 + $0x90] sm:$0xff] %vm475, %v3729
      %3763 = vst.msk [vmem:[%s3743 + $0x98] sm:$0xff] %vm475, %v3730
      %3764 = vst.msk [vmem:[%s3743 + $0xa0] sm:$0xff] %vm475, %v3731
      %3765 = vst.msk [vmem:[%s3743 + $0xa8] sm:$0xff] %vm475, %v3732
      %3766 = vst.msk [vmem:[%s3743 + $0xb0] sm:$0xff] %vm475, %v3733
      %3767 = vst.msk [vmem:[%s3743 + $0xb8] sm:$0xff] %vm475, %v3734
      %3768 = vst.msk [vmem:[%s3743 + $0xc0] sm:$0xff] %vm475, %v3735
      %3769 = vst.msk [vmem:[%s3743 + $0xc8] sm:$0xff] %vm475, %v3736
      %3770 = vst.msk [vmem:[%s3743 + $0xd0] sm:$0xff] %vm475, %v3737
      %3771 = vst.msk [vmem:[%s3743 + $0xd8] sm:$0xff] %vm475, %v3738
      %3772 = vst.msk [vmem:[%s3743 + $0xe0] sm:$0xff] %vm475, %v3739
      %3773 = vst.msk [vmem:[%s3743 + $0xe8] sm:$0xff] %vm475, %v3740
      %3774 = vst.msk [vmem:[%s3743 + $0xf0] sm:$0xff] %vm475, %v3741
      %3775 = vst.msk [vmem:[%s3743 + $0xf8] sm:$0xff] %vm475, %v3742
      %v3776 = vld [vmem:[#allocation4] sm:$0xff]
      %v3777 = vld [vmem:[#allocation4 + $0x8] sm:$0xff]
      %v3778 = vld [vmem:[#allocation4 + $0x10] sm:$0xff]
      %v3779 = vld [vmem:[#allocation4 + $0x18] sm:$0xff]
      %v3780 = vld [vmem:[#allocation4 + $0x20] sm:$0xff]
      %v3781 = vld [vmem:[#allocation4 + $0x28] sm:$0xff]
      %v3782 = vld [vmem:[#allocation4 + $0x30] sm:$0xff]
      %v3783 = vld [vmem:[#allocation4 + $0x38] sm:$0xff]
      %v3784 = vld [vmem:[#allocation4 + $0x40] sm:$0xff]
      %v3785 = vld [vmem:[#allocation4 + $0x48] sm:$0xff]
      %v3786 = vld [vmem:[#allocation4 + $0x50] sm:$0xff]
      %v3787 = vld [vmem:[#allocation4 + $0x58] sm:$0xff]
      %v3788 = vld [vmem:[#allocation4 + $0x60] sm:$0xff]
      %v3789 = vld [vmem:[#allocation4 + $0x68] sm:$0xff]
      %v3790 = vld [vmem:[#allocation4 + $0x70] sm:$0xff]
      %v3791 = vld [vmem:[#allocation4 + $0x78] sm:$0xff]
      %v3792 = vld [vmem:[#allocation4 + $0x80] sm:$0xff]
      %v3793 = vld [vmem:[#allocation4 + $0x88] sm:$0xff]
      %v3794 = vld [vmem:[#allocation4 + $0x90] sm:$0xff]
      %v3795 = vld [vmem:[#allocation4 + $0x98] sm:$0xff]
      %v3796 = vld [vmem:[#allocation4 + $0xa0] sm:$0xff]
      %v3797 = vld [vmem:[#allocation4 + $0xa8] sm:$0xff]
      %v3798 = vld [vmem:[#allocation4 + $0xb0] sm:$0xff]
      %v3799 = vld [vmem:[#allocation4 + $0xb8] sm:$0xff]
      %v3800 = vld [vmem:[#allocation4 + $0xc0] sm:$0xff]
      %v3801 = vld [vmem:[#allocation4 + $0xc8] sm:$0xff]
      %v3802 = vld [vmem:[#allocation4 + $0xd0] sm:$0xff]
      %v3803 = vld [vmem:[#allocation4 + $0xd8] sm:$0xff]
      %v3804 = vld [vmem:[#allocation4 + $0xe0] sm:$0xff]
      %v3805 = vld [vmem:[#allocation4 + $0xe8] sm:$0xff]
      %v3806 = vld [vmem:[#allocation4 + $0xf0] sm:$0xff]
      %v3807 = vld [vmem:[#allocation4 + $0xf8] sm:$0xff]
      %s3808 = scalar_lea.vmem [#allocation4], 16
      %v3809 = vld [vmem:[%s3808] sm:$0xff]
      %v3810 = vld [vmem:[%s3808 + $0x8] sm:$0xff]
      %v3811 = vld [vmem:[%s3808 + $0x10] sm:$0xff]
      %v3812 = vld [vmem:[%s3808 + $0x18] sm:$0xff]
      %v3813 = vld [vmem:[%s3808 + $0x20] sm:$0xff]
      %v3814 = vld [vmem:[%s3808 + $0x28] sm:$0xff]
      %v3815 = vld [vmem:[%s3808 + $0x30] sm:$0xff]
      %v3816 = vld [vmem:[%s3808 + $0x38] sm:$0xff]
      %v3817 = vld [vmem:[%s3808 + $0x40] sm:$0xff]
      %v3818 = vld [vmem:[%s3808 + $0x48] sm:$0xff]
      %v3819 = vld [vmem:[%s3808 + $0x50] sm:$0xff]
      %v3820 = vld [vmem:[%s3808 + $0x58] sm:$0xff]
      %v3821 = vld [vmem:[%s3808 + $0x60] sm:$0xff]
      %v3822 = vld [vmem:[%s3808 + $0x68] sm:$0xff]
      %v3823 = vld [vmem:[%s3808 + $0x70] sm:$0xff]
      %v3824 = vld [vmem:[%s3808 + $0x78] sm:$0xff]
      %v3825 = vld [vmem:[%s3808 + $0x80] sm:$0xff]
      %v3826 = vld [vmem:[%s3808 + $0x88] sm:$0xff]
      %v3827 = vld [vmem:[%s3808 + $0x90] sm:$0xff]
      %v3828 = vld [vmem:[%s3808 + $0x98] sm:$0xff]
      %v3829 = vld [vmem:[%s3808 + $0xa0] sm:$0xff]
      %v3830 = vld [vmem:[%s3808 + $0xa8] sm:$0xff]
      %v3831 = vld [vmem:[%s3808 + $0xb0] sm:$0xff]
      %v3832 = vld [vmem:[%s3808 + $0xb8] sm:$0xff]
      %v3833 = vld [vmem:[%s3808 + $0xc0] sm:$0xff]
      %v3834 = vld [vmem:[%s3808 + $0xc8] sm:$0xff]
      %v3835 = vld [vmem:[%s3808 + $0xd0] sm:$0xff]
      %v3836 = vld [vmem:[%s3808 + $0xd8] sm:$0xff]
      %v3837 = vld [vmem:[%s3808 + $0xe0] sm:$0xff]
      %v3838 = vld [vmem:[%s3808 + $0xe8] sm:$0xff]
      %v3839 = vld [vmem:[%s3808 + $0xf0] sm:$0xff]
      %v3840 = vld [vmem:[%s3808 + $0xf8] sm:$0xff]
      %s3841 = scalar_lea.vmem [#allocation4], 32
      %v3842 = vld [vmem:[%s3841] sm:$0xff]
      %v3843 = vld [vmem:[%s3841 + $0x8] sm:$0xff]
      %v3844 = vld [vmem:[%s3841 + $0x10] sm:$0xff]
      %v3845 = vld [vmem:[%s3841 + $0x18] sm:$0xff]
      %v3846 = vld [vmem:[%s3841 + $0x20] sm:$0xff]
      %v3847 = vld [vmem:[%s3841 + $0x28] sm:$0xff]
      %v3848 = vld [vmem:[%s3841 + $0x30] sm:$0xff]
      %v3849 = vld [vmem:[%s3841 + $0x38] sm:$0xff]
      %v3850 = vld [vmem:[%s3841 + $0x40] sm:$0xff]
      %v3851 = vld [vmem:[%s3841 + $0x48] sm:$0xff]
      %v3852 = vld [vmem:[%s3841 + $0x50] sm:$0xff]
      %v3853 = vld [vmem:[%s3841 + $0x58] sm:$0xff]
      %v3854 = vld [vmem:[%s3841 + $0x60] sm:$0xff]
      %v3855 = vld [vmem:[%s3841 + $0x68] sm:$0xff]
      %v3856 = vld [vmem:[%s3841 + $0x70] sm:$0xff]
      %v3857 = vld [vmem:[%s3841 + $0x78] sm:$0xff]
      %v3858 = vld [vmem:[%s3841 + $0x80] sm:$0xff]
      %v3859 = vld [vmem:[%s3841 + $0x88] sm:$0xff]
      %v3860 = vld [vmem:[%s3841 + $0x90] sm:$0xff]
      %v3861 = vld [vmem:[%s3841 + $0x98] sm:$0xff]
      %v3862 = vld [vmem:[%s3841 + $0xa0] sm:$0xff]
      %v3863 = vld [vmem:[%s3841 + $0xa8] sm:$0xff]
      %v3864 = vld [vmem:[%s3841 + $0xb0] sm:$0xff]
      %v3865 = vld [vmem:[%s3841 + $0xb8] sm:$0xff]
      %v3866 = vld [vmem:[%s3841 + $0xc0] sm:$0xff]
      %v3867 = vld [vmem:[%s3841 + $0xc8] sm:$0xff]
      %v3868 = vld [vmem:[%s3841 + $0xd0] sm:$0xff]
      %v3869 = vld [vmem:[%s3841 + $0xd8] sm:$0xff]
      %v3870 = vld [vmem:[%s3841 + $0xe0] sm:$0xff]
      %v3871 = vld [vmem:[%s3841 + $0xe8] sm:$0xff]
      %v3872 = vld [vmem:[%s3841 + $0xf0] sm:$0xff]
      %v3873 = vld [vmem:[%s3841 + $0xf8] sm:$0xff]
      %v3874 = vld [vmem:[%s3743] sm:$0xff]
      %v3875 = vld [vmem:[%s3743 + $0x8] sm:$0xff]
      %v3876 = vld [vmem:[%s3743 + $0x10] sm:$0xff]
      %v3877 = vld [vmem:[%s3743 + $0x18] sm:$0xff]
      %v3878 = vld [vmem:[%s3743 + $0x20] sm:$0xff]
      %v3879 = vld [vmem:[%s3743 + $0x28] sm:$0xff]
      %v3880 = vld [vmem:[%s3743 + $0x30] sm:$0xff]
      %v3881 = vld [vmem:[%s3743 + $0x38] sm:$0xff]
      %v3882 = vld [vmem:[%s3743 + $0x40] sm:$0xff]
      %v3883 = vld [vmem:[%s3743 + $0x48] sm:$0xff]
      %v3884 = vld [vmem:[%s3743 + $0x50] sm:$0xff]
      %v3885 = vld [vmem:[%s3743 + $0x58] sm:$0xff]
      %v3886 = vld [vmem:[%s3743 + $0x60] sm:$0xff]
      %v3887 = vld [vmem:[%s3743 + $0x68] sm:$0xff]
      %v3888 = vld [vmem:[%s3743 + $0x70] sm:$0xff]
      %v3889 = vld [vmem:[%s3743 + $0x78] sm:$0xff]
      %v3890 = vld [vmem:[%s3743 + $0x80] sm:$0xff]
      %v3891 = vld [vmem:[%s3743 + $0x88] sm:$0xff]
      %v3892 = vld [vmem:[%s3743 + $0x90] sm:$0xff]
      %v3893 = vld [vmem:[%s3743 + $0x98] sm:$0xff]
      %v3894 = vld [vmem:[%s3743 + $0xa0] sm:$0xff]
      %v3895 = vld [vmem:[%s3743 + $0xa8] sm:$0xff]
      %v3896 = vld [vmem:[%s3743 + $0xb0] sm:$0xff]
      %v3897 = vld [vmem:[%s3743 + $0xb8] sm:$0xff]
      %v3898 = vld [vmem:[%s3743 + $0xc0] sm:$0xff]
      %v3899 = vld [vmem:[%s3743 + $0xc8] sm:$0xff]
      %v3900 = vld [vmem:[%s3743 + $0xd0] sm:$0xff]
      %v3901 = vld [vmem:[%s3743 + $0xd8] sm:$0xff]
      %v3902 = vld [vmem:[%s3743 + $0xe0] sm:$0xff]
      %v3903 = vld [vmem:[%s3743 + $0xe8] sm:$0xff]
      %v3904 = vld [vmem:[%s3743 + $0xf0] sm:$0xff]
      %v3905 = vld [vmem:[%s3743 + $0xf8] sm:$0xff]
      %s3906 = scalar_lea.vmem [#allocation4], 64
      %v3907 = vld [vmem:[%s3906] sm:$0xff]
      %v3908 = vld [vmem:[%s3906 + $0x8] sm:$0xff]
      %v3909 = vld [vmem:[%s3906 + $0x10] sm:$0xff]
      %v3910 = vld [vmem:[%s3906 + $0x18] sm:$0xff]
      %v3911 = vld [vmem:[%s3906 + $0x20] sm:$0xff]
      %v3912 = vld [vmem:[%s3906 + $0x28] sm:$0xff]
      %v3913 = vld [vmem:[%s3906 + $0x30] sm:$0xff]
      %v3914 = vld [vmem:[%s3906 + $0x38] sm:$0xff]
      %v3915 = vld [vmem:[%s3906 + $0x40] sm:$0xff]
      %v3916 = vld [vmem:[%s3906 + $0x48] sm:$0xff]
      %v3917 = vld [vmem:[%s3906 + $0x50] sm:$0xff]
      %v3918 = vld [vmem:[%s3906 + $0x58] sm:$0xff]
      %v3919 = vld [vmem:[%s3906 + $0x60] sm:$0xff]
      %v3920 = vld [vmem:[%s3906 + $0x68] sm:$0xff]
      %v3921 = vld [vmem:[%s3906 + $0x70] sm:$0xff]
      %v3922 = vld [vmem:[%s3906 + $0x78] sm:$0xff]
      %v3923 = vld [vmem:[%s3906 + $0x80] sm:$0xff]
      %v3924 = vld [vmem:[%s3906 + $0x88] sm:$0xff]
      %v3925 = vld [vmem:[%s3906 + $0x90] sm:$0xff]
      %v3926 = vld [vmem:[%s3906 + $0x98] sm:$0xff]
      %v3927 = vld [vmem:[%s3906 + $0xa0] sm:$0xff]
      %v3928 = vld [vmem:[%s3906 + $0xa8] sm:$0xff]
      %v3929 = vld [vmem:[%s3906 + $0xb0] sm:$0xff]
      %v3930 = vld [vmem:[%s3906 + $0xb8] sm:$0xff]
      %v3931 = vld [vmem:[%s3906 + $0xc0] sm:$0xff]
      %v3932 = vld [vmem:[%s3906 + $0xc8] sm:$0xff]
      %v3933 = vld [vmem:[%s3906 + $0xd0] sm:$0xff]
      %v3934 = vld [vmem:[%s3906 + $0xd8] sm:$0xff]
      %v3935 = vld [vmem:[%s3906 + $0xe0] sm:$0xff]
      %v3936 = vld [vmem:[%s3906 + $0xe8] sm:$0xff]
      %v3937 = vld [vmem:[%s3906 + $0xf0] sm:$0xff]
      %v3938 = vld [vmem:[%s3906 + $0xf8] sm:$0xff]
      %s3939 = scalar_lea.vmem [#allocation4], 80
      %v3940 = vld [vmem:[%s3939] sm:$0xff]
      %v3941 = vld [vmem:[%s3939 + $0x8] sm:$0xff]
      %v3942 = vld [vmem:[%s3939 + $0x10] sm:$0xff]
      %v3943 = vld [vmem:[%s3939 + $0x18] sm:$0xff]
      %v3944 = vld [vmem:[%s3939 + $0x20] sm:$0xff]
      %v3945 = vld [vmem:[%s3939 + $0x28] sm:$0xff]
      %v3946 = vld [vmem:[%s3939 + $0x30] sm:$0xff]
      %v3947 = vld [vmem:[%s3939 + $0x38] sm:$0xff]
      %v3948 = vld [vmem:[%s3939 + $0x40] sm:$0xff]
      %v3949 = vld [vmem:[%s3939 + $0x48] sm:$0xff]
      %v3950 = vld [vmem:[%s3939 + $0x50] sm:$0xff]
      %v3951 = vld [vmem:[%s3939 + $0x58] sm:$0xff]
      %v3952 = vld [vmem:[%s3939 + $0x60] sm:$0xff]
      %v3953 = vld [vmem:[%s3939 + $0x68] sm:$0xff]
      %v3954 = vld [vmem:[%s3939 + $0x70] sm:$0xff]
      %v3955 = vld [vmem:[%s3939 + $0x78] sm:$0xff]
      %v3956 = vld [vmem:[%s3939 + $0x80] sm:$0xff]
      %v3957 = vld [vmem:[%s3939 + $0x88] sm:$0xff]
      %v3958 = vld [vmem:[%s3939 + $0x90] sm:$0xff]
      %v3959 = vld [vmem:[%s3939 + $0x98] sm:$0xff]
      %v3960 = vld [vmem:[%s3939 + $0xa0] sm:$0xff]
      %v3961 = vld [vmem:[%s3939 + $0xa8] sm:$0xff]
      %v3962 = vld [vmem:[%s3939 + $0xb0] sm:$0xff]
      %v3963 = vld [vmem:[%s3939 + $0xb8] sm:$0xff]
      %v3964 = vld [vmem:[%s3939 + $0xc0] sm:$0xff]
      %v3965 = vld [vmem:[%s3939 + $0xc8] sm:$0xff]
      %v3966 = vld [vmem:[%s3939 + $0xd0] sm:$0xff]
      %v3967 = vld [vmem:[%s3939 + $0xd8] sm:$0xff]
      %v3968 = vld [vmem:[%s3939 + $0xe0] sm:$0xff]
      %v3969 = vld [vmem:[%s3939 + $0xe8] sm:$0xff]
      %v3970 = vld [vmem:[%s3939 + $0xf0] sm:$0xff]
      %v3971 = vld [vmem:[%s3939 + $0xf8] sm:$0xff]
      %s3972 = scalar_lea.vmem [#allocation4], 96
      %v3973 = vld [vmem:[%s3972] sm:$0xff]
      %v3974 = vld [vmem:[%s3972 + $0x8] sm:$0xff]
      %v3975 = vld [vmem:[%s3972 + $0x10] sm:$0xff]
      %v3976 = vld [vmem:[%s3972 + $0x18] sm:$0xff]
      %v3977 = vld [vmem:[%s3972 + $0x20] sm:$0xff]
      %v3978 = vld [vmem:[%s3972 + $0x28] sm:$0xff]
      %v3979 = vld [vmem:[%s3972 + $0x30] sm:$0xff]
      %v3980 = vld [vmem:[%s3972 + $0x38] sm:$0xff]
      %v3981 = vld [vmem:[%s3972 + $0x40] sm:$0xff]
      %v3982 = vld [vmem:[%s3972 + $0x48] sm:$0xff]
      %v3983 = vld [vmem:[%s3972 + $0x50] sm:$0xff]
      %v3984 = vld [vmem:[%s3972 + $0x58] sm:$0xff]
      %v3985 = vld [vmem:[%s3972 + $0x60] sm:$0xff]
      %v3986 = vld [vmem:[%s3972 + $0x68] sm:$0xff]
      %v3987 = vld [vmem:[%s3972 + $0x70] sm:$0xff]
      %v3988 = vld [vmem:[%s3972 + $0x78] sm:$0xff]
      %v3989 = vld [vmem:[%s3972 + $0x80] sm:$0xff]
      %v3990 = vld [vmem:[%s3972 + $0x88] sm:$0xff]
      %v3991 = vld [vmem:[%s3972 + $0x90] sm:$0xff]
      %v3992 = vld [vmem:[%s3972 + $0x98] sm:$0xff]
      %v3993 = vld [vmem:[%s3972 + $0xa0] sm:$0xff]
      %v3994 = vld [vmem:[%s3972 + $0xa8] sm:$0xff]
      %v3995 = vld [vmem:[%s3972 + $0xb0] sm:$0xff]
      %v3996 = vld [vmem:[%s3972 + $0xb8] sm:$0xff]
      %v3997 = vld [vmem:[%s3972 + $0xc0] sm:$0xff]
      %v3998 = vld [vmem:[%s3972 + $0xc8] sm:$0xff]
      %v3999 = vld [vmem:[%s3972 + $0xd0] sm:$0xff]
      %v4000 = vld [vmem:[%s3972 + $0xd8] sm:$0xff]
      %v4001 = vld [vmem:[%s3972 + $0xe0] sm:$0xff]
      %v4002 = vld [vmem:[%s3972 + $0xe8] sm:$0xff]
      %v4003 = vld [vmem:[%s3972 + $0xf0] sm:$0xff]
      %v4004 = vld [vmem:[%s3972 + $0xf8] sm:$0xff]
      %4037 = vrot.lane.b32.xlu0 %v3809, 12
      %v4038 = vpop.permute.xlu0 %4037
      %4039 = vrot.lane.b32.xlu0 %v3810, 12
      %v4040 = vpop.permute.xlu0 %4039
      %4041 = vrot.lane.b32.xlu0 %v3811, 12
      %v4042 = vpop.permute.xlu0 %4041
      %4043 = vrot.lane.b32.xlu0 %v3812, 12
      %v4044 = vpop.permute.xlu0 %4043
      %4045 = vrot.lane.b32.xlu0 %v3813, 12
      %v4046 = vpop.permute.xlu0 %4045
      %4047 = vrot.lane.b32.xlu0 %v3814, 12
      %v4048 = vpop.permute.xlu0 %4047
      %4049 = vrot.lane.b32.xlu0 %v3815, 12
      %v4050 = vpop.permute.xlu0 %4049
      %4051 = vrot.lane.b32.xlu0 %v3816, 12
      %v4052 = vpop.permute.xlu0 %4051
      %4053 = vrot.lane.b32.xlu0 %v3817, 12
      %v4054 = vpop.permute.xlu0 %4053
      %4055 = vrot.lane.b32.xlu0 %v3818, 12
      %v4056 = vpop.permute.xlu0 %4055
      %4057 = vrot.lane.b32.xlu0 %v3819, 12
      %v4058 = vpop.permute.xlu0 %4057
      %4059 = vrot.lane.b32.xlu0 %v3820, 12
      %v4060 = vpop.permute.xlu0 %4059
      %4061 = vrot.lane.b32.xlu0 %v3821, 12
      %v4062 = vpop.permute.xlu0 %4061
      %4063 = vrot.lane.b32.xlu0 %v3822, 12
      %v4064 = vpop.permute.xlu0 %4063
      %4065 = vrot.lane.b32.xlu0 %v3823, 12
      %v4066 = vpop.permute.xlu0 %4065
      %4067 = vrot.lane.b32.xlu0 %v3824, 12
      %v4068 = vpop.permute.xlu0 %4067
      %4069 = vrot.lane.b32.xlu0 %v3825, 12
      %v4070 = vpop.permute.xlu0 %4069
      %4071 = vrot.lane.b32.xlu0 %v3826, 12
      %v4072 = vpop.permute.xlu0 %4071
      %4073 = vrot.lane.b32.xlu0 %v3827, 12
      %v4074 = vpop.permute.xlu0 %4073
      %4075 = vrot.lane.b32.xlu0 %v3828, 12
      %v4076 = vpop.permute.xlu0 %4075
      %4077 = vrot.lane.b32.xlu0 %v3829, 12
      %v4078 = vpop.permute.xlu0 %4077
      %4079 = vrot.lane.b32.xlu0 %v3830, 12
      %v4080 = vpop.permute.xlu0 %4079
      %4081 = vrot.lane.b32.xlu0 %v3831, 12
      %v4082 = vpop.permute.xlu0 %4081
      %4083 = vrot.lane.b32.xlu0 %v3832, 12
      %v4084 = vpop.permute.xlu0 %4083
      %4085 = vrot.lane.b32.xlu0 %v3833, 12
      %v4086 = vpop.permute.xlu0 %4085
      %4087 = vrot.lane.b32.xlu0 %v3834, 12
      %v4088 = vpop.permute.xlu0 %4087
      %4089 = vrot.lane.b32.xlu0 %v3835, 12
      %v4090 = vpop.permute.xlu0 %4089
      %4091 = vrot.lane.b32.xlu0 %v3836, 12
      %v4092 = vpop.permute.xlu0 %4091
      %4093 = vrot.lane.b32.xlu0 %v3837, 12
      %v4094 = vpop.permute.xlu0 %4093
      %4095 = vrot.lane.b32.xlu0 %v3838, 12
      %v4096 = vpop.permute.xlu0 %4095
      %4097 = vrot.lane.b32.xlu0 %v3839, 12
      %v4098 = vpop.permute.xlu0 %4097
      %4099 = vrot.lane.b32.xlu0 %v3840, 12
      %v4100 = vpop.permute.xlu0 %4099
      %4165 = vrot.lane.b32.xlu0 %v3842, 24
      %v4166 = vpop.permute.xlu0 %4165
      %4167 = vrot.lane.b32.xlu0 %v3843, 24
      %v4168 = vpop.permute.xlu0 %4167
      %4169 = vrot.lane.b32.xlu0 %v3844, 24
      %v4170 = vpop.permute.xlu0 %4169
      %4171 = vrot.lane.b32.xlu0 %v3845, 24
      %v4172 = vpop.permute.xlu0 %4171
      %4173 = vrot.lane.b32.xlu0 %v3846, 24
      %v4174 = vpop.permute.xlu0 %4173
      %4175 = vrot.lane.b32.xlu0 %v3847, 24
      %v4176 = vpop.permute.xlu0 %4175
      %4177 = vrot.lane.b32.xlu0 %v3848, 24
      %v4178 = vpop.permute.xlu0 %4177
      %4179 = vrot.lane.b32.xlu0 %v3849, 24
      %v4180 = vpop.permute.xlu0 %4179
      %4181 = vrot.lane.b32.xlu0 %v3850, 24
      %v4182 = vpop.permute.xlu0 %4181
      %4183 = vrot.lane.b32.xlu0 %v3851, 24
      %v4184 = vpop.permute.xlu0 %4183
      %4185 = vrot.lane.b32.xlu0 %v3852, 24
      %v4186 = vpop.permute.xlu0 %4185
      %4187 = vrot.lane.b32.xlu0 %v3853, 24
      %v4188 = vpop.permute.xlu0 %4187
      %4189 = vrot.lane.b32.xlu0 %v3854, 24
      %v4190 = vpop.permute.xlu0 %4189
      %4191 = vrot.lane.b32.xlu0 %v3855, 24
      %v4192 = vpop.permute.xlu0 %4191
      %4193 = vrot.lane.b32.xlu0 %v3856, 24
      %v4194 = vpop.permute.xlu0 %4193
      %4195 = vrot.lane.b32.xlu0 %v3857, 24
      %v4196 = vpop.permute.xlu0 %4195
      %4197 = vrot.lane.b32.xlu0 %v3858, 24
      %v4198 = vpop.permute.xlu0 %4197
      %4199 = vrot.lane.b32.xlu0 %v3859, 24
      %v4200 = vpop.permute.xlu0 %4199
      %4201 = vrot.lane.b32.xlu0 %v3860, 24
      %v4202 = vpop.permute.xlu0 %4201
      %4203 = vrot.lane.b32.xlu0 %v3861, 24
      %v4204 = vpop.permute.xlu0 %4203
      %4205 = vrot.lane.b32.xlu0 %v3862, 24
      %v4206 = vpop.permute.xlu0 %4205
      %4207 = vrot.lane.b32.xlu0 %v3863, 24
      %v4208 = vpop.permute.xlu0 %4207
      %4209 = vrot.lane.b32.xlu0 %v3864, 24
      %v4210 = vpop.permute.xlu0 %4209
      %4211 = vrot.lane.b32.xlu0 %v3865, 24
      %v4212 = vpop.permute.xlu0 %4211
      %4213 = vrot.lane.b32.xlu0 %v3866, 24
      %v4214 = vpop.permute.xlu0 %4213
      %4215 = vrot.lane.b32.xlu0 %v3867, 24
      %v4216 = vpop.permute.xlu0 %4215
      %4217 = vrot.lane.b32.xlu0 %v3868, 24
      %v4218 = vpop.permute.xlu0 %4217
      %4219 = vrot.lane.b32.xlu0 %v3869, 24
      %v4220 = vpop.permute.xlu0 %4219
      %4221 = vrot.lane.b32.xlu0 %v3870, 24
      %v4222 = vpop.permute.xlu0 %4221
      %4223 = vrot.lane.b32.xlu0 %v3871, 24
      %v4224 = vpop.permute.xlu0 %4223
      %4225 = vrot.lane.b32.xlu0 %v3872, 24
      %v4226 = vpop.permute.xlu0 %4225
      %4227 = vrot.lane.b32.xlu0 %v3873, 24
      %v4228 = vpop.permute.xlu0 %4227
      %4293 = vrot.lane.b32.xlu0 %v3874, 36
      %v4294 = vpop.permute.xlu0 %4293
      %4295 = vrot.lane.b32.xlu0 %v3875, 36
      %v4296 = vpop.permute.xlu0 %4295
      %4297 = vrot.lane.b32.xlu0 %v3876, 36
      %v4298 = vpop.permute.xlu0 %4297
      %4299 = vrot.lane.b32.xlu0 %v3877, 36
      %v4300 = vpop.permute.xlu0 %4299
      %4301 = vrot.lane.b32.xlu0 %v3878, 36
      %v4302 = vpop.permute.xlu0 %4301
      %4303 = vrot.lane.b32.xlu0 %v3879, 36
      %v4304 = vpop.permute.xlu0 %4303
      %4305 = vrot.lane.b32.xlu0 %v3880, 36
      %v4306 = vpop.permute.xlu0 %4305
      %4307 = vrot.lane.b32.xlu0 %v3881, 36
      %v4308 = vpop.permute.xlu0 %4307
      %4309 = vrot.lane.b32.xlu0 %v3882, 36
      %v4310 = vpop.permute.xlu0 %4309
      %4311 = vrot.lane.b32.xlu0 %v3883, 36
      %v4312 = vpop.permute.xlu0 %4311
      %4313 = vrot.lane.b32.xlu0 %v3884, 36
      %v4314 = vpop.permute.xlu0 %4313
      %4315 = vrot.lane.b32.xlu0 %v3885, 36
      %v4316 = vpop.permute.xlu0 %4315
      %4317 = vrot.lane.b32.xlu0 %v3886, 36
      %v4318 = vpop.permute.xlu0 %4317
      %4319 = vrot.lane.b32.xlu0 %v3887, 36
      %v4320 = vpop.permute.xlu0 %4319
      %4321 = vrot.lane.b32.xlu0 %v3888, 36
      %v4322 = vpop.permute.xlu0 %4321
      %4323 = vrot.lane.b32.xlu0 %v3889, 36
      %v4324 = vpop.permute.xlu0 %4323
      %4325 = vrot.lane.b32.xlu0 %v3890, 36
      %v4326 = vpop.permute.xlu0 %4325
      %4327 = vrot.lane.b32.xlu0 %v3891, 36
      %v4328 = vpop.permute.xlu0 %4327
      %4329 = vrot.lane.b32.xlu0 %v3892, 36
      %v4330 = vpop.permute.xlu0 %4329
      %4331 = vrot.lane.b32.xlu0 %v3893, 36
      %v4332 = vpop.permute.xlu0 %4331
      %4333 = vrot.lane.b32.xlu0 %v3894, 36
      %v4334 = vpop.permute.xlu0 %4333
      %4335 = vrot.lane.b32.xlu0 %v3895, 36
      %v4336 = vpop.permute.xlu0 %4335
      %4337 = vrot.lane.b32.xlu0 %v3896, 36
      %v4338 = vpop.permute.xlu0 %4337
      %4339 = vrot.lane.b32.xlu0 %v3897, 36
      %v4340 = vpop.permute.xlu0 %4339
      %4341 = vrot.lane.b32.xlu0 %v3898, 36
      %v4342 = vpop.permute.xlu0 %4341
      %4343 = vrot.lane.b32.xlu0 %v3899, 36
      %v4344 = vpop.permute.xlu0 %4343
      %4345 = vrot.lane.b32.xlu0 %v3900, 36
      %v4346 = vpop.permute.xlu0 %4345
      %4347 = vrot.lane.b32.xlu0 %v3901, 36
      %v4348 = vpop.permute.xlu0 %4347
      %4349 = vrot.lane.b32.xlu0 %v3902, 36
      %v4350 = vpop.permute.xlu0 %4349
      %4351 = vrot.lane.b32.xlu0 %v3903, 36
      %v4352 = vpop.permute.xlu0 %4351
      %4353 = vrot.lane.b32.xlu0 %v3904, 36
      %v4354 = vpop.permute.xlu0 %4353
      %4355 = vrot.lane.b32.xlu0 %v3905, 36
      %v4356 = vpop.permute.xlu0 %4355
      %4421 = vrot.lane.b32.xlu0 %v3907, 48
      %v4422 = vpop.permute.xlu0 %4421
      %4423 = vrot.lane.b32.xlu0 %v3908, 48
      %v4424 = vpop.permute.xlu0 %4423
      %4425 = vrot.lane.b32.xlu0 %v3909, 48
      %v4426 = vpop.permute.xlu0 %4425
      %4427 = vrot.lane.b32.xlu0 %v3910, 48
      %v4428 = vpop.permute.xlu0 %4427
      %4429 = vrot.lane.b32.xlu0 %v3911, 48
      %v4430 = vpop.permute.xlu0 %4429
      %4431 = vrot.lane.b32.xlu0 %v3912, 48
      %v4432 = vpop.permute.xlu0 %4431
      %4433 = vrot.lane.b32.xlu0 %v3913, 48
      %v4434 = vpop.permute.xlu0 %4433
      %4435 = vrot.lane.b32.xlu0 %v3914, 48
      %v4436 = vpop.permute.xlu0 %4435
      %4437 = vrot.lane.b32.xlu0 %v3915, 48
      %v4438 = vpop.permute.xlu0 %4437
      %4439 = vrot.lane.b32.xlu0 %v3916, 48
      %v4440 = vpop.permute.xlu0 %4439
      %4441 = vrot.lane.b32.xlu0 %v3917, 48
      %v4442 = vpop.permute.xlu0 %4441
      %4443 = vrot.lane.b32.xlu0 %v3918, 48
      %v4444 = vpop.permute.xlu0 %4443
      %4445 = vrot.lane.b32.xlu0 %v3919, 48
      %v4446 = vpop.permute.xlu0 %4445
      %4447 = vrot.lane.b32.xlu0 %v3920, 48
      %v4448 = vpop.permute.xlu0 %4447
      %4449 = vrot.lane.b32.xlu0 %v3921, 48
      %v4450 = vpop.permute.xlu0 %4449
      %4451 = vrot.lane.b32.xlu0 %v3922, 48
      %v4452 = vpop.permute.xlu0 %4451
      %4453 = vrot.lane.b32.xlu0 %v3923, 48
      %v4454 = vpop.permute.xlu0 %4453
      %4455 = vrot.lane.b32.xlu0 %v3924, 48
      %v4456 = vpop.permute.xlu0 %4455
      %4457 = vrot.lane.b32.xlu0 %v3925, 48
      %v4458 = vpop.permute.xlu0 %4457
      %4459 = vrot.lane.b32.xlu0 %v3926, 48
      %v4460 = vpop.permute.xlu0 %4459
      %4461 = vrot.lane.b32.xlu0 %v3927, 48
      %v4462 = vpop.permute.xlu0 %4461
      %4463 = vrot.lane.b32.xlu0 %v3928, 48
      %v4464 = vpop.permute.xlu0 %4463
      %4465 = vrot.lane.b32.xlu0 %v3929, 48
      %v4466 = vpop.permute.xlu0 %4465
      %4467 = vrot.lane.b32.xlu0 %v3930, 48
      %v4468 = vpop.permute.xlu0 %4467
      %4469 = vrot.lane.b32.xlu0 %v3931, 48
      %v4470 = vpop.permute.xlu0 %4469
      %4471 = vrot.lane.b32.xlu0 %v3932, 48
      %v4472 = vpop.permute.xlu0 %4471
      %4473 = vrot.lane.b32.xlu0 %v3933, 48
      %v4474 = vpop.permute.xlu0 %4473
      %4475 = vrot.lane.b32.xlu0 %v3934, 48
      %v4476 = vpop.permute.xlu0 %4475
      %4477 = vrot.lane.b32.xlu0 %v3935, 48
      %v4478 = vpop.permute.xlu0 %4477
      %4479 = vrot.lane.b32.xlu0 %v3936, 48
      %v4480 = vpop.permute.xlu0 %4479
      %4481 = vrot.lane.b32.xlu0 %v3937, 48
      %v4482 = vpop.permute.xlu0 %4481
      %4483 = vrot.lane.b32.xlu0 %v3938, 48
      %v4484 = vpop.permute.xlu0 %4483
      %4549 = vrot.lane.b32.xlu0 %v3940, 60
      %v4550 = vpop.permute.xlu0 %4549
      %4551 = vrot.lane.b32.xlu0 %v3941, 60
      %v4552 = vpop.permute.xlu0 %4551
      %4553 = vrot.lane.b32.xlu0 %v3942, 60
      %v4554 = vpop.permute.xlu0 %4553
      %4555 = vrot.lane.b32.xlu0 %v3943, 60
      %v4556 = vpop.permute.xlu0 %4555
      %4557 = vrot.lane.b32.xlu0 %v3944, 60
      %v4558 = vpop.permute.xlu0 %4557
      %4559 = vrot.lane.b32.xlu0 %v3945, 60
      %v4560 = vpop.permute.xlu0 %4559
      %4561 = vrot.lane.b32.xlu0 %v3946, 60
      %v4562 = vpop.permute.xlu0 %4561
      %4563 = vrot.lane.b32.xlu0 %v3947, 60
      %v4564 = vpop.permute.xlu0 %4563
      %4565 = vrot.lane.b32.xlu0 %v3948, 60
      %v4566 = vpop.permute.xlu0 %4565
      %4567 = vrot.lane.b32.xlu0 %v3949, 60
      %v4568 = vpop.permute.xlu0 %4567
      %4569 = vrot.lane.b32.xlu0 %v3950, 60
      %v4570 = vpop.permute.xlu0 %4569
      %4571 = vrot.lane.b32.xlu0 %v3951, 60
      %v4572 = vpop.permute.xlu0 %4571
      %4573 = vrot.lane.b32.xlu0 %v3952, 60
      %v4574 = vpop.permute.xlu0 %4573
      %4575 = vrot.lane.b32.xlu0 %v3953, 60
      %v4576 = vpop.permute.xlu0 %4575
      %4577 = vrot.lane.b32.xlu0 %v3954, 60
      %v4578 = vpop.permute.xlu0 %4577
      %4579 = vrot.lane.b32.xlu0 %v3955, 60
      %v4580 = vpop.permute.xlu0 %4579
      %4581 = vrot.lane.b32.xlu0 %v3956, 60
      %v4582 = vpop.permute.xlu0 %4581
      %4583 = vrot.lane.b32.xlu0 %v3957, 60
      %v4584 = vpop.permute.xlu0 %4583
      %4585 = vrot.lane.b32.xlu0 %v3958, 60
      %v4586 = vpop.permute.xlu0 %4585
      %4587 = vrot.lane.b32.xlu0 %v3959, 60
      %v4588 = vpop.permute.xlu0 %4587
      %4589 = vrot.lane.b32.xlu0 %v3960, 60
      %v4590 = vpop.permute.xlu0 %4589
      %4591 = vrot.lane.b32.xlu0 %v3961, 60
      %v4592 = vpop.permute.xlu0 %4591
      %4593 = vrot.lane.b32.xlu0 %v3962, 60
      %v4594 = vpop.permute.xlu0 %4593
      %4595 = vrot.lane.b32.xlu0 %v3963, 60
      %v4596 = vpop.permute.xlu0 %4595
      %4597 = vrot.lane.b32.xlu0 %v3964, 60
      %v4598 = vpop.permute.xlu0 %4597
      %4599 = vrot.lane.b32.xlu0 %v3965, 60
      %v4600 = vpop.permute.xlu0 %4599
      %4601 = vrot.lane.b32.xlu0 %v3966, 60
      %v4602 = vpop.permute.xlu0 %4601
      %4603 = vrot.lane.b32.xlu0 %v3967, 60
      %v4604 = vpop.permute.xlu0 %4603
      %4605 = vrot.lane.b32.xlu0 %v3968, 60
      %v4606 = vpop.permute.xlu0 %4605
      %4607 = vrot.lane.b32.xlu0 %v3969, 60
      %v4608 = vpop.permute.xlu0 %4607
      %4609 = vrot.lane.b32.xlu0 %v3970, 60
      %v4610 = vpop.permute.xlu0 %4609
      %4611 = vrot.lane.b32.xlu0 %v3971, 60
      %v4612 = vpop.permute.xlu0 %4611
      %4677 = vrot.lane.b32.xlu0 %v3973, 72
      %v4678 = vpop.permute.xlu0 %4677
      %4679 = vrot.lane.b32.xlu0 %v3974, 72
      %v4680 = vpop.permute.xlu0 %4679
      %4681 = vrot.lane.b32.xlu0 %v3975, 72
      %v4682 = vpop.permute.xlu0 %4681
      %4683 = vrot.lane.b32.xlu0 %v3976, 72
      %v4684 = vpop.permute.xlu0 %4683
      %4685 = vrot.lane.b32.xlu0 %v3977, 72
      %v4686 = vpop.permute.xlu0 %4685
      %4687 = vrot.lane.b32.xlu0 %v3978, 72
      %v4688 = vpop.permute.xlu0 %4687
      %4689 = vrot.lane.b32.xlu0 %v3979, 72
      %v4690 = vpop.permute.xlu0 %4689
      %4691 = vrot.lane.b32.xlu0 %v3980, 72
      %v4692 = vpop.permute.xlu0 %4691
      %4693 = vrot.lane.b32.xlu0 %v3981, 72
      %v4694 = vpop.permute.xlu0 %4693
      %4695 = vrot.lane.b32.xlu0 %v3982, 72
      %v4696 = vpop.permute.xlu0 %4695
      %4697 = vrot.lane.b32.xlu0 %v3983, 72
      %v4698 = vpop.permute.xlu0 %4697
      %4699 = vrot.lane.b32.xlu0 %v3984, 72
      %v4700 = vpop.permute.xlu0 %4699
      %4701 = vrot.lane.b32.xlu0 %v3985, 72
      %v4702 = vpop.permute.xlu0 %4701
      %4703 = vrot.lane.b32.xlu0 %v3986, 72
      %v4704 = vpop.permute.xlu0 %4703
      %4705 = vrot.lane.b32.xlu0 %v3987, 72
      %v4706 = vpop.permute.xlu0 %4705
      %4707 = vrot.lane.b32.xlu0 %v3988, 72
      %v4708 = vpop.permute.xlu0 %4707
      %4709 = vrot.lane.b32.xlu0 %v3989, 72
      %v4710 = vpop.permute.xlu0 %4709
      %4711 = vrot.lane.b32.xlu0 %v3990, 72
      %v4712 = vpop.permute.xlu0 %4711
      %4713 = vrot.lane.b32.xlu0 %v3991, 72
      %v4714 = vpop.permute.xlu0 %4713
      %4715 = vrot.lane.b32.xlu0 %v3992, 72
      %v4716 = vpop.permute.xlu0 %4715
      %4717 = vrot.lane.b32.xlu0 %v3993, 72
      %v4718 = vpop.permute.xlu0 %4717
      %4719 = vrot.lane.b32.xlu0 %v3994, 72
      %v4720 = vpop.permute.xlu0 %4719
      %4721 = vrot.lane.b32.xlu0 %v3995, 72
      %v4722 = vpop.permute.xlu0 %4721
      %4723 = vrot.lane.b32.xlu0 %v3996, 72
      %v4724 = vpop.permute.xlu0 %4723
      %4725 = vrot.lane.b32.xlu0 %v3997, 72
      %v4726 = vpop.permute.xlu0 %4725
      %4727 = vrot.lane.b32.xlu0 %v3998, 72
      %v4728 = vpop.permute.xlu0 %4727
      %4729 = vrot.lane.b32.xlu0 %v3999, 72
      %v4730 = vpop.permute.xlu0 %4729
      %4731 = vrot.lane.b32.xlu0 %v4000, 72
      %v4732 = vpop.permute.xlu0 %4731
      %4733 = vrot.lane.b32.xlu0 %v4001, 72
      %v4734 = vpop.permute.xlu0 %4733
      %4735 = vrot.lane.b32.xlu0 %v4002, 72
      %v4736 = vpop.permute.xlu0 %4735
      %4737 = vrot.lane.b32.xlu0 %v4003, 72
      %v4738 = vpop.permute.xlu0 %4737
      %4739 = vrot.lane.b32.xlu0 %v4004, 72
      %v4740 = vpop.permute.xlu0 %4739
      %v4773 = vsel %vm475, %v3776, %v4038
      %v4774 = vsel %vm475, %v3777, %v4040
      %v4775 = vsel %vm475, %v3778, %v4042
      %v4776 = vsel %vm475, %v3779, %v4044
      %v4777 = vsel %vm475, %v3780, %v4046
      %v4778 = vsel %vm475, %v3781, %v4048
      %v4779 = vsel %vm475, %v3782, %v4050
      %v4780 = vsel %vm475, %v3783, %v4052
      %v4781 = vsel %vm475, %v3784, %v4054
      %v4782 = vsel %vm475, %v3785, %v4056
      %v4783 = vsel %vm475, %v3786, %v4058
      %v4784 = vsel %vm475, %v3787, %v4060
      %v4785 = vsel %vm475, %v3788, %v4062
      %v4786 = vsel %vm475, %v3789, %v4064
      %v4787 = vsel %vm475, %v3790, %v4066
      %v4788 = vsel %vm475, %v3791, %v4068
      %v4789 = vsel %vm475, %v3792, %v4070
      %v4790 = vsel %vm475, %v3793, %v4072
      %v4791 = vsel %vm475, %v3794, %v4074
      %v4792 = vsel %vm475, %v3795, %v4076
      %v4793 = vsel %vm475, %v3796, %v4078
      %v4794 = vsel %vm475, %v3797, %v4080
      %v4795 = vsel %vm475, %v3798, %v4082
      %v4796 = vsel %vm475, %v3799, %v4084
      %v4797 = vsel %vm475, %v3800, %v4086
      %v4798 = vsel %vm475, %v3801, %v4088
      %v4799 = vsel %vm475, %v3802, %v4090
      %v4800 = vsel %vm475, %v3803, %v4092
      %v4801 = vsel %vm475, %v3804, %v4094
      %v4802 = vsel %vm475, %v3805, %v4096
      %v4803 = vsel %vm475, %v3806, %v4098
      %v4804 = vsel %vm475, %v3807, %v4100
      %v4805 = vsel %vm1423, %v4773, %v4166
      %v4806 = vsel %vm1423, %v4774, %v4168
      %v4807 = vsel %vm1423, %v4775, %v4170
      %v4808 = vsel %vm1423, %v4776, %v4172
      %v4809 = vsel %vm1423, %v4777, %v4174
      %v4810 = vsel %vm1423, %v4778, %v4176
      %v4811 = vsel %vm1423, %v4779, %v4178
      %v4812 = vsel %vm1423, %v4780, %v4180
      %v4813 = vsel %vm1423, %v4781, %v4182
      %v4814 = vsel %vm1423, %v4782, %v4184
      %v4815 = vsel %vm1423, %v4783, %v4186
      %v4816 = vsel %vm1423, %v4784, %v4188
      %v4817 = vsel %vm1423, %v4785, %v4190
      %v4818 = vsel %vm1423, %v4786, %v4192
      %v4819 = vsel %vm1423, %v4787, %v4194
      %v4820 = vsel %vm1423, %v4788, %v4196
      %v4821 = vsel %vm1423, %v4789, %v4198
      %v4822 = vsel %vm1423, %v4790, %v4200
      %v4823 = vsel %vm1423, %v4791, %v4202
      %v4824 = vsel %vm1423, %v4792, %v4204
      %v4825 = vsel %vm1423, %v4793, %v4206
      %v4826 = vsel %vm1423, %v4794, %v4208
      %v4827 = vsel %vm1423, %v4795, %v4210
      %v4828 = vsel %vm1423, %v4796, %v4212
      %v4829 = vsel %vm1423, %v4797, %v4214
      %v4830 = vsel %vm1423, %v4798, %v4216
      %v4831 = vsel %vm1423, %v4799, %v4218
      %v4832 = vsel %vm1423, %v4800, %v4220
      %v4833 = vsel %vm1423, %v4801, %v4222
      %v4834 = vsel %vm1423, %v4802, %v4224
      %v4835 = vsel %vm1423, %v4803, %v4226
      %v4836 = vsel %vm1423, %v4804, %v4228
      %vm4837 = vcmask 293888
      %v4838 = vsel %vm4837, %v4805, %v4294
      %v4839 = vsel %vm4837, %v4806, %v4296
      %v4840 = vsel %vm4837, %v4807, %v4298
      %v4841 = vsel %vm4837, %v4808, %v4300
      %v4842 = vsel %vm4837, %v4809, %v4302
      %v4843 = vsel %vm4837, %v4810, %v4304
      %v4844 = vsel %vm4837, %v4811, %v4306
      %v4845 = vsel %vm4837, %v4812, %v4308
      %v4846 = vsel %vm4837, %v4813, %v4310
      %v4847 = vsel %vm4837, %v4814, %v4312
      %v4848 = vsel %vm4837, %v4815, %v4314
      %v4849 = vsel %vm4837, %v4816, %v4316
      %v4850 = vsel %vm4837, %v4817, %v4318
      %v4851 = vsel %vm4837, %v4818, %v4320
      %v4852 = vsel %vm4837, %v4819, %v4322
      %v4853 = vsel %vm4837, %v4820, %v4324
      %v4854 = vsel %vm4837, %v4821, %v4326
      %v4855 = vsel %vm4837, %v4822, %v4328
      %v4856 = vsel %vm4837, %v4823, %v4330
      %v4857 = vsel %vm4837, %v4824, %v4332
      %v4858 = vsel %vm4837, %v4825, %v4334
      %v4859 = vsel %vm4837, %v4826, %v4336
      %v4860 = vsel %vm4837, %v4827, %v4338
      %v4861 = vsel %vm4837, %v4828, %v4340
      %v4862 = vsel %vm4837, %v4829, %v4342
      %v4863 = vsel %vm4837, %v4830, %v4344
      %v4864 = vsel %vm4837, %v4831, %v4346
      %v4865 = vsel %vm4837, %v4832, %v4348
      %v4866 = vsel %vm4837, %v4833, %v4350
      %v4867 = vsel %vm4837, %v4834, %v4352
      %v4868 = vsel %vm4837, %v4835, %v4354
      %v4869 = vsel %vm4837, %v4836, %v4356
      %v4870 = vsel %vm1447, %v4838, %v4422
      %v4871 = vsel %vm1447, %v4839, %v4424
      %v4872 = vsel %vm1447, %v4840, %v4426
      %v4873 = vsel %vm1447, %v4841, %v4428
      %v4874 = vsel %vm1447, %v4842, %v4430
      %v4875 = vsel %vm1447, %v4843, %v4432
      %v4876 = vsel %vm1447, %v4844, %v4434
      %v4877 = vsel %vm1447, %v4845, %v4436
      %v4878 = vsel %vm1447, %v4846, %v4438
      %v4879 = vsel %vm1447, %v4847, %v4440
      %v4880 = vsel %vm1447, %v4848, %v4442
      %v4881 = vsel %vm1447, %v4849, %v4444
      %v4882 = vsel %vm1447, %v4850, %v4446
      %v4883 = vsel %vm1447, %v4851, %v4448
      %v4884 = vsel %vm1447, %v4852, %v4450
      %v4885 = vsel %vm1447, %v4853, %v4452
      %v4886 = vsel %vm1447, %v4854, %v4454
      %v4887 = vsel %vm1447, %v4855, %v4456
      %v4888 = vsel %vm1447, %v4856, %v4458
      %v4889 = vsel %vm1447, %v4857, %v4460
      %v4890 = vsel %vm1447, %v4858, %v4462
      %v4891 = vsel %vm1447, %v4859, %v4464
      %v4892 = vsel %vm1447, %v4860, %v4466
      %v4893 = vsel %vm1447, %v4861, %v4468
      %v4894 = vsel %vm1447, %v4862, %v4470
      %v4895 = vsel %vm1447, %v4863, %v4472
      %v4896 = vsel %vm1447, %v4864, %v4474
      %v4897 = vsel %vm1447, %v4865, %v4476
      %v4898 = vsel %vm1447, %v4866, %v4478
      %v4899 = vsel %vm1447, %v4867, %v4480
      %v4900 = vsel %vm1447, %v4868, %v4482
      %v4901 = vsel %vm1447, %v4869, %v4484
      %vm4902 = vcmask 490496
      %v4903 = vsel %vm4902, %v4870, %v4550
      %v4904 = vsel %vm4902, %v4871, %v4552
      %v4905 = vsel %vm4902, %v4872, %v4554
      %v4906 = vsel %vm4902, %v4873, %v4556
      %v4907 = vsel %vm4902, %v4874, %v4558
      %v4908 = vsel %vm4902, %v4875, %v4560
      %v4909 = vsel %vm4902, %v4876, %v4562
      %v4910 = vsel %vm4902, %v4877, %v4564
      %v4911 = vsel %vm4902, %v4878, %v4566
      %v4912 = vsel %vm4902, %v4879, %v4568
      %v4913 = vsel %vm4902, %v4880, %v4570
      %v4914 = vsel %vm4902, %v4881, %v4572
      %v4915 = vsel %vm4902, %v4882, %v4574
      %v4916 = vsel %vm4902, %v4883, %v4576
      %v4917 = vsel %vm4902, %v4884, %v4578
      %v4918 = vsel %vm4902, %v4885, %v4580
      %v4919 = vsel %vm4902, %v4886, %v4582
      %v4920 = vsel %vm4902, %v4887, %v4584
      %v4921 = vsel %vm4902, %v4888, %v4586
      %v4922 = vsel %vm4902, %v4889, %v4588
      %v4923 = vsel %vm4902, %v4890, %v4590
      %v4924 = vsel %vm4902, %v4891, %v4592
      %v4925 = vsel %vm4902, %v4892, %v4594
      %v4926 = vsel %vm4902, %v4893, %v4596
      %v4927 = vsel %vm4902, %v4894, %v4598
      %v4928 = vsel %vm4902, %v4895, %v4600
      %v4929 = vsel %vm4902, %v4896, %v4602
      %v4930 = vsel %vm4902, %v4897, %v4604
      %v4931 = vsel %vm4902, %v4898, %v4606
      %v4932 = vsel %vm4902, %v4899, %v4608
      %v4933 = vsel %vm4902, %v4900, %v4610
      %v4934 = vsel %vm4902, %v4901, %v4612
      %v4935 = vsel %vm2176, %v4903, %v4678
      %v4936 = vsel %vm2176, %v4904, %v4680
      %v4937 = vsel %vm2176, %v4905, %v4682
      %v4938 = vsel %vm2176, %v4906, %v4684
      %v4939 = vsel %vm2176, %v4907, %v4686
      %v4940 = vsel %vm2176, %v4908, %v4688
      %v4941 = vsel %vm2176, %v4909, %v4690
      %v4942 = vsel %vm2176, %v4910, %v4692
      %v4943 = vsel %vm2176, %v4911, %v4694
      %v4944 = vsel %vm2176, %v4912, %v4696
      %v4945 = vsel %vm2176, %v4913, %v4698
      %v4946 = vsel %vm2176, %v4914, %v4700
      %v4947 = vsel %vm2176, %v4915, %v4702
      %v4948 = vsel %vm2176, %v4916, %v4704
      %v4949 = vsel %vm2176, %v4917, %v4706
      %v4950 = vsel %vm2176, %v4918, %v4708
      %v4951 = vsel %vm2176, %v4919, %v4710
      %v4952 = vsel %vm2176, %v4920, %v4712
      %v4953 = vsel %vm2176, %v4921, %v4714
      %v4954 = vsel %vm2176, %v4922, %v4716
      %v4955 = vsel %vm2176, %v4923, %v4718
      %v4956 = vsel %vm2176, %v4924, %v4720
      %v4957 = vsel %vm2176, %v4925, %v4722
      %v4958 = vsel %vm2176, %v4926, %v4724
      %v4959 = vsel %vm2176, %v4927, %v4726
      %v4960 = vsel %vm2176, %v4928, %v4728
      %v4961 = vsel %vm2176, %v4929, %v4730
      %v4962 = vsel %vm2176, %v4930, %v4732
      %v4963 = vsel %vm2176, %v4931, %v4734
      %v4964 = vsel %vm2176, %v4932, %v4736
      %v4965 = vsel %vm2176, %v4933, %v4738
      %v4966 = vsel %vm2176, %v4934, %v4740
      %v4967 = vpack.c.bf16 %v4936, %v4935
      %v4968 = vpack.c.bf16 %v4938, %v4937
      %v4969 = vpack.c.bf16 %v4940, %v4939
      %v4970 = vpack.c.bf16 %v4942, %v4941
      %v4971 = vpack.c.bf16 %v4944, %v4943
      %v4972 = vpack.c.bf16 %v4946, %v4945
      %v4973 = vpack.c.bf16 %v4948, %v4947
      %v4974 = vpack.c.bf16 %v4950, %v4949
      %v4975 = vpack.c.bf16 %v4952, %v4951
      %v4976 = vpack.c.bf16 %v4954, %v4953
      %v4977 = vpack.c.bf16 %v4956, %v4955
      %v4978 = vpack.c.bf16 %v4958, %v4957
      %v4979 = vpack.c.bf16 %v4960, %v4959
      %v4980 = vpack.c.bf16 %v4962, %v4961
      %v4981 = vpack.c.bf16 %v4964, %v4963
      %v4982 = vpack.c.bf16 %v4966, %v4965
      %v4983 = vld [vmem:[%s9] sm:$0xf]
      %v4984 = vld [vmem:[%s9 + $0x4] sm:$0xf]
      %v4985 = vld [vmem:[%s9 + $0x8] sm:$0xf]
      %v4986 = vld [vmem:[%s9 + $0xc] sm:$0xf]
      %v4987 = vld [vmem:[%s9 + $0x10] sm:$0xf]
      %v4988 = vld [vmem:[%s9 + $0x14] sm:$0xf]
      %v4989 = vld [vmem:[%s9 + $0x18] sm:$0xf]
      %v4990 = vld [vmem:[%s9 + $0x1c] sm:$0xf]
      %v4991 = vld [vmem:[%s9 + $0x20] sm:$0xf]
      %v4992 = vld [vmem:[%s9 + $0x24] sm:$0xf]
      %v4993 = vld [vmem:[%s9 + $0x28] sm:$0x3]
      %v4994 = vld [vmem:[%s10] sm:$0x1]
      %v4996 = vlaneseq
      %v4997 = vshrl.u32 %v4996, 7
      %v4998 = vsub.s32 0, %v4997
      %v4999 = vrot.slane %v4994, %v4998
      %v5012 = vunpack.c.l.b16 %v4983
      %v5013 = vunpack.c.l.b16 %v4984
      %v5014 = vunpack.c.l.b16 %v4985
      %v5015 = vunpack.c.l.b16 %v4986
      %v5016 = vunpack.c.l.b16 %v4987
      %v5017 = vunpack.c.l.b16 %v4988
      %v5018 = vunpack.c.l.b16 %v4989
      %v5019 = vunpack.c.l.b16 %v4990
      %v5020 = vunpack.c.l.b16 %v4991
      %v5021 = vunpack.c.l.b16 %v4992
      %v5022 = vunpack.c.l.b16 %v4993
      %v5023 = vpack.c.b16 %v5013, %v5012
      %v5024 = vpack.c.b16 %v5015, %v5014
      %v5025 = vpack.c.b16 %v5017, %v5016
      %v5026 = vpack.c.b16 %v5019, %v5018
      %v5027 = vpack.c.b16 %v5021, %v5020
      %v5028 = vpack.c.b16 %v5022, %v5022
      %vm5034 = vcmask 687104
      %v5036 = vsel %vm5034, %v4967, 0
      %v5039 = vsel %vm5034, %v4968, 0
      %v5042 = vsel %vm5034, %v4969, 0
      %v5045 = vsel %vm5034, %v4970, 0
      %v5048 = vsel %vm5034, %v4971, 0
      %v5051 = vsel %vm5034, %v4972, 0
      %v5054 = vsel %vm5034, %v4973, 0
      %v5057 = vsel %vm5034, %v4974, 0
      %v5060 = vsel %vm5034, %v4975, 0
      %v5063 = vsel %vm5034, %v4976, 0
      %v5066 = vsel %vm5034, %v4977, 0
      %v5069 = vsel %vm5034, %v4978, 0
      %v5072 = vsel %vm5034, %v4979, 0
      %v5075 = vsel %vm5034, %v4980, 0
      %v5078 = vsel %vm5034, %v4981, 0
      %v5081 = vsel %vm5034, %v4982, 0
      %v5084 = vsel %vm594, %v5028, 0
      %5086 = vmatprep.subr.bf16.mxu0 0
      %5087 = vmatpush1.bf16.msra.mxu0 %v5023
      %5088 = vmatprep.subr.bf16.mxu0 0
      %5089 = vmatpush1.bf16.msra.mxu0 %v5024
      %5090 = vmatprep.subr.bf16.mxu0 0
      %5091 = vmatpush1.bf16.msra.mxu0 %v5025
      %5092 = vmatprep.subr.bf16.mxu0 0
      %5093 = vmatpush1.bf16.msra.mxu0 %v5026
      %5094 = vmatprep.subr.bf16.mxu0 0
      %5095 = vmatpush1.bf16.msra.mxu0 %v5027
      %5096 = vmatprep.subr.bf16.mxu0 0
      %5097 = vmatpush1.bf16.msra.mxu0 %v5084
      %5098 = vmatprep.subr.bf16.mxu0 0
      %5099 = vmatpush1.bf16.msra.mxu0 0
      %5100 = vmatprep.subr.bf16.mxu0 0
      %5101 = vmatpush1.bf16.msra.mxu0 0
      %5102 = vmatprep.subr.bf16.mxu0 0
      %5103 = vmatpush1.bf16.msra.mxu0 0
      %5104 = vmatprep.subr.bf16.mxu0 0
      %5105 = vmatpush1.bf16.msra.mxu0 0
      %5106 = vmatprep.subr.bf16.mxu0 0
      %5107 = vmatpush1.bf16.msra.mxu0 0
      %5108 = vmatprep.subr.bf16.mxu0 0
      %5109 = vmatpush1.bf16.msra.mxu0 0
      %5110 = vmatprep.subr.bf16.mxu0 0
      %5111 = vmatpush1.bf16.msra.mxu0 0
      %5112 = vmatprep.subr.bf16.mxu0 0
      %5113 = vmatpush1.bf16.msra.mxu0 0
      %5114 = vmatprep.subr.bf16.mxu0 0
      %5115 = vmatpush1.bf16.msra.mxu0 0
      %5116 = vmatprep.subr.bf16.mxu0 0
      %5117 = vmatpush1.bf16.msra.mxu0 0
      %5118 = vmatprep.mubr.bf16.mxu0 0
      %5119 = vmatmul.mubr.bf16.gmra.mrb[0].mxu0 %v5036
      %v5120 = vpop.f32.mrb[0].mxu0
      %v5121 = vadd.f32 %v4999, %v5120
      %v5122 = vpop.f32.mrb[0].mxu0
      %v5123 = vpop.f32.mrb[0].mxu0
      %v5124 = vadd.f32 %v4999, %v5123
      %v5125 = vpop.f32.mrb[0].mxu0
      %5126 = vmatprep.mubr.bf16.mxu0 0
      %5127 = vmatmul.mubr.bf16.gmra.mrb[0].mxu0 %v5039
      %v5128 = vpop.f32.mrb[0].mxu0
      %v5129 = vadd.f32 %v4999, %v5128
      %v5130 = vpop.f32.mrb[0].mxu0
      %v5131 = vpop.f32.mrb[0].mxu0
      %v5132 = vadd.f32 %v4999, %v5131
      %v5133 = vpop.f32.mrb[0].mxu0
      %5134 = vmatprep.mubr.bf16.mxu0 0
      %5135 = vmatmul.mubr.bf16.gmra.mrb[0].mxu0 %v5042
      %v5136 = vpop.f32.mrb[0].mxu0
      %v5137 = vadd.f32 %v4999, %v5136
      %v5138 = vpop.f32.mrb[0].mxu0
      %v5139 = vpop.f32.mrb[0].mxu0
      %v5140 = vadd.f32 %v4999, %v5139
      %v5141 = vpop.f32.mrb[0].mxu0
      %5142 = vmatprep.mubr.bf16.mxu0 0
      %5143 = vmatmul.mubr.bf16.gmra.mrb[0].mxu0 %v5045
      %v5144 = vpop.f32.mrb[0].mxu0
      %v5145 = vadd.f32 %v4999, %v5144
      %v5146 = vpop.f32.mrb[0].mxu0
      %v5147 = vpop.f32.mrb[0].mxu0
      %v5148 = vadd.f32 %v4999, %v5147
      %v5149 = vpop.f32.mrb[0].mxu0
      %5150 = vmatprep.mubr.bf16.mxu0 0
      %5151 = vmatmul.mubr.bf16.gmra.mrb[0].mxu0 %v5048
      %v5152 = vpop.f32.mrb[0].mxu0
      %v5153 = vadd.f32 %v4999, %v5152
      %v5154 = vpop.f32.mrb[0].mxu0
      %v5155 = vpop.f32.mrb[0].mxu0
      %v5156 = vadd.f32 %v4999, %v5155
      %v5157 = vpop.f32.mrb[0].mxu0
      %5158 = vmatprep.mubr.bf16.mxu0 0
      %5159 = vmatmul.mubr.bf16.gmra.mrb[0].mxu0 %v5051
      %v5160 = vpop.f32.mrb[0].mxu0
      %v5161 = vadd.f32 %v4999, %v5160
      %v5162 = vpop.f32.mrb[0].mxu0
      %v5163 = vpop.f32.mrb[0].mxu0
      %v5164 = vadd.f32 %v4999, %v5163
      %v5165 = vpop.f32.mrb[0].mxu0
      %5166 = vmatprep.mubr.bf16.mxu0 0
      %5167 = vmatmul.mubr.bf16.gmra.mrb[0].mxu0 %v5054
      %v5168 = vpop.f32.mrb[0].mxu0
      %v5169 = vadd.f32 %v4999, %v5168
      %v5170 = vpop.f32.mrb[0].mxu0
      %v5171 = vpop.f32.mrb[0].mxu0
      %v5172 = vadd.f32 %v4999, %v5171
      %v5173 = vpop.f32.mrb[0].mxu0
      %5174 = vmatprep.mubr.bf16.mxu0 0
      %5175 = vmatmul.mubr.bf16.gmra.mrb[0].mxu0 %v5057
      %v5176 = vpop.f32.mrb[0].mxu0
      %v5177 = vadd.f32 %v4999, %v5176
      %v5178 = vpop.f32.mrb[0].mxu0
      %v5179 = vpop.f32.mrb[0].mxu0
      %v5180 = vadd.f32 %v4999, %v5179
      %v5181 = vpop.f32.mrb[0].mxu0
      %5182 = vmatprep.mubr.bf16.mxu0 0
      %5183 = vmatmul.mubr.bf16.gmra.mrb[0].mxu0 %v5060
      %v5184 = vpop.f32.mrb[0].mxu0
      %v5185 = vadd.f32 %v4999, %v5184
      %v5186 = vpop.f32.mrb[0].mxu0
      %v5187 = vpop.f32.mrb[0].mxu0
      %v5188 = vadd.f32 %v4999, %v5187
      %v5189 = vpop.f32.mrb[0].mxu0
      %5190 = vmatprep.mubr.bf16.mxu0 0
      %5191 = vmatmul.mubr.bf16.gmra.mrb[0].mxu0 %v5063
      %v5192 = vpop.f32.mrb[0].mxu0
      %v5193 = vadd.f32 %v4999, %v5192
      %v5194 = vpop.f32.mrb[0].mxu0
      %v5195 = vpop.f32.mrb[0].mxu0
      %v5196 = vadd.f32 %v4999, %v5195
      %v5197 = vpop.f32.mrb[0].mxu0
      %5198 = vmatprep.mubr.bf16.mxu0 0
      %5199 = vmatmul.mubr.bf16.gmra.mrb[0].mxu0 %v5066
      %v5200 = vpop.f32.mrb[0].mxu0
      %v5201 = vadd.f32 %v4999, %v5200
      %v5202 = vpop.f32.mrb[0].mxu0
      %v5203 = vpop.f32.mrb[0].mxu0
      %v5204 = vadd.f32 %v4999, %v5203
      %v5205 = vpop.f32.mrb[0].mxu0
      %5206 = vmatprep.mubr.bf16.mxu0 0
      %5207 = vmatmul.mubr.bf16.gmra.mrb[0].mxu0 %v5069
      %v5208 = vpop.f32.mrb[0].mxu0
      %v5209 = vadd.f32 %v4999, %v5208
      %v5210 = vpop.f32.mrb[0].mxu0
      %v5211 = vpop.f32.mrb[0].mxu0
      %v5212 = vadd.f32 %v4999, %v5211
      %v5213 = vpop.f32.mrb[0].mxu0
      %5214 = vmatprep.mubr.bf16.mxu0 0
      %5215 = vmatmul.mubr.bf16.gmra.mrb[0].mxu0 %v5072
      %v5216 = vpop.f32.mrb[0].mxu0
      %v5217 = vadd.f32 %v4999, %v5216
      %v5218 = vpop.f32.mrb[0].mxu0
      %v5219 = vpop.f32.mrb[0].mxu0
      %v5220 = vadd.f32 %v4999, %v5219
      %v5221 = vpop.f32.mrb[0].mxu0
      %5222 = vmatprep.mubr.bf16.mxu0 0
      %5223 = vmatmul.mubr.bf16.gmra.mrb[0].mxu0 %v5075
      %v5224 = vpop.f32.mrb[0].mxu0
      %v5225 = vadd.f32 %v4999, %v5224
      %v5226 = vpop.f32.mrb[0].mxu0
      %v5227 = vpop.f32.mrb[0].mxu0
      %v5228 = vadd.f32 %v4999, %v5227
      %v5229 = vpop.f32.mrb[0].mxu0
      %5230 = vmatprep.mubr.bf16.mxu0 0
      %5231 = vmatmul.mubr.bf16.gmra.mrb[0].mxu0 %v5078
      %v5232 = vpop.f32.mrb[0].mxu0
      %v5233 = vadd.f32 %v4999, %v5232
      %v5234 = vpop.f32.mrb[0].mxu0
      %v5235 = vpop.f32.mrb[0].mxu0
      %v5236 = vadd.f32 %v4999, %v5235
      %v5237 = vpop.f32.mrb[0].mxu0
      %5238 = vmatprep.mubr.bf16.mxu0 0
      %5239 = vmatmul.mubr.bf16.gmra.mrb[0].mxu0 %v5081
      %v5240 = vpop.f32.mrb[0].mxu0
      %v5241 = vadd.f32 %v4999, %v5240
      %v5242 = vpop.f32.mrb[0].mxu0
      %v5243 = vpop.f32.mrb[0].mxu0
      %v5244 = vadd.f32 %v4999, %v5243
      %v5245 = vpop.f32.mrb[0].mxu0
      %5246 = vdwg.mxu0
      %v5247 = vmax.f32 %v5121, 0.0
      %v5248 = vmax.f32 %v5124, 0.0
      %v5249 = vmax.f32 %v5129, 0.0
      %v5250 = vmax.f32 %v5132, 0.0
      %v5251 = vmax.f32 %v5137, 0.0
      %v5252 = vmax.f32 %v5140, 0.0
      %v5253 = vmax.f32 %v5145, 0.0
      %v5254 = vmax.f32 %v5148, 0.0
      %v5255 = vmax.f32 %v5153, 0.0
      %v5256 = vmax.f32 %v5156, 0.0
      %v5257 = vmax.f32 %v5161, 0.0
      %v5258 = vmax.f32 %v5164, 0.0
      %v5259 = vmax.f32 %v5169, 0.0
      %v5260 = vmax.f32 %v5172, 0.0
      %v5261 = vmax.f32 %v5177, 0.0
      %v5262 = vmax.f32 %v5180, 0.0
      %v5263 = vmax.f32 %v5185, 0.0
      %v5264 = vmax.f32 %v5188, 0.0
      %v5265 = vmax.f32 %v5193, 0.0
      %v5266 = vmax.f32 %v5196, 0.0
      %v5267 = vmax.f32 %v5201, 0.0
      %v5268 = vmax.f32 %v5204, 0.0
      %v5269 = vmax.f32 %v5209, 0.0
      %v5270 = vmax.f32 %v5212, 0.0
      %v5271 = vmax.f32 %v5217, 0.0
      %v5272 = vmax.f32 %v5220, 0.0
      %v5273 = vmax.f32 %v5225, 0.0
      %v5274 = vmax.f32 %v5228, 0.0
      %v5275 = vmax.f32 %v5233, 0.0
      %v5276 = vmax.f32 %v5236, 0.0
      %v5277 = vmax.f32 %v5241, 0.0
      %v5278 = vmax.f32 %v5244, 0.0
      %5279 = vst.msk [vmem:[#allocation5] sm:$0xff] %vm475, %v5247
      %5280 = vst.msk [vmem:[#allocation5 + $0x8] sm:$0xff] %vm475, %v5248
      %5281 = vst.msk [vmem:[#allocation5 + $0x10] sm:$0xff] %vm475, %v5249
      %5282 = vst.msk [vmem:[#allocation5 + $0x18] sm:$0xff] %vm475, %v5250
      %5283 = vst.msk [vmem:[#allocation5 + $0x20] sm:$0xff] %vm475, %v5251
      %5284 = vst.msk [vmem:[#allocation5 + $0x28] sm:$0xff] %vm475, %v5252
      %5285 = vst.msk [vmem:[#allocation5 + $0x30] sm:$0xff] %vm475, %v5253
      %5286 = vst.msk [vmem:[#allocation5 + $0x38] sm:$0xff] %vm475, %v5254
      %5287 = vst.msk [vmem:[#allocation5 + $0x40] sm:$0xff] %vm475, %v5255
      %5288 = vst.msk [vmem:[#allocation5 + $0x48] sm:$0xff] %vm475, %v5256
      %5289 = vst.msk [vmem:[#allocation5 + $0x50] sm:$0xff] %vm475, %v5257
      %5290 = vst.msk [vmem:[#allocation5 + $0x58] sm:$0xff] %vm475, %v5258
      %5291 = vst.msk [vmem:[#allocation5 + $0x60] sm:$0xff] %vm475, %v5259
      %5292 = vst.msk [vmem:[#allocation5 + $0x68] sm:$0xff] %vm475, %v5260
      %5293 = vst.msk [vmem:[#allocation5 + $0x70] sm:$0xff] %vm475, %v5261
      %5294 = vst.msk [vmem:[#allocation5 + $0x78] sm:$0xff] %vm475, %v5262
      %5295 = vst.msk [vmem:[#allocation5 + $0x80] sm:$0xff] %vm475, %v5263
      %5296 = vst.msk [vmem:[#allocation5 + $0x88] sm:$0xff] %vm475, %v5264
      %5297 = vst.msk [vmem:[#allocation5 + $0x90] sm:$0xff] %vm475, %v5265
      %5298 = vst.msk [vmem:[#allocation5 + $0x98] sm:$0xff] %vm475, %v5266
      %5299 = vst.msk [vmem:[#allocation5 + $0xa0] sm:$0xff] %vm475, %v5267
      %5300 = vst.msk [vmem:[#allocation5 + $0xa8] sm:$0xff] %vm475, %v5268
      %5301 = vst.msk [vmem:[#allocation5 + $0xb0] sm:$0xff] %vm475, %v5269
      %5302 = vst.msk [vmem:[#allocation5 + $0xb8] sm:$0xff] %vm475, %v5270
      %5303 = vst.msk [vmem:[#allocation5 + $0xc0] sm:$0xff] %vm475, %v5271
      %5304 = vst.msk [vmem:[#allocation5 + $0xc8] sm:$0xff] %vm475, %v5272
      %5305 = vst.msk [vmem:[#allocation5 + $0xd0] sm:$0xff] %vm475, %v5273
      %5306 = vst.msk [vmem:[#allocation5 + $0xd8] sm:$0xff] %vm475, %v5274
      %5307 = vst.msk [vmem:[#allocation5 + $0xe0] sm:$0xff] %vm475, %v5275
      %5308 = vst.msk [vmem:[#allocation5 + $0xe8] sm:$0xff] %vm475, %v5276
      %5309 = vst.msk [vmem:[#allocation5 + $0xf0] sm:$0xff] %vm475, %v5277
      %5310 = vst.msk [vmem:[#allocation5 + $0xf8] sm:$0xff] %vm475, %v5278
      %v5311 = vld [vmem:[#allocation5] ss:$2 sm:$0x7f]
      %s5312 = scalar_lea.vmem [#allocation5], 32
      %v5313 = vld [vmem:[%s5312] ss:$2 sm:$0x7f]
      %s5314 = scalar_lea.vmem [#allocation5], 64
      %v5315 = vld [vmem:[%s5314] ss:$2 sm:$0x7f]
      %s5316 = scalar_lea.vmem [#allocation5], 96
      %v5317 = vld [vmem:[%s5316] ss:$2 sm:$0x7f]
      %s5318 = scalar_lea.vmem [#allocation5], 128
      %v5319 = vld [vmem:[%s5318] ss:$2 sm:$0x7f]
      %s5320 = scalar_lea.vmem [#allocation5], 160
      %v5321 = vld [vmem:[%s5320] ss:$2 sm:$0x7f]
      %s5322 = scalar_lea.vmem [#allocation5], 192
      %v5323 = vld [vmem:[%s5322] ss:$2 sm:$0x7f]
      %s5324 = scalar_lea.vmem [#allocation5], 1
      %v5325 = vld [vmem:[%s5324] ss:$2 sm:$0x7f]
      %s5326 = scalar_lea.vmem [#allocation5], 33
      %v5327 = vld [vmem:[%s5326] ss:$2 sm:$0x7f]
      %s5328 = scalar_lea.vmem [#allocation5], 65
      %v5329 = vld [vmem:[%s5328] ss:$2 sm:$0x7f]
      %s5330 = scalar_lea.vmem [#allocation5], 97
      %v5331 = vld [vmem:[%s5330] ss:$2 sm:$0x7f]
      %s5332 = scalar_lea.vmem [#allocation5], 129
      %v5333 = vld [vmem:[%s5332] ss:$2 sm:$0x7f]
      %s5334 = scalar_lea.vmem [#allocation5], 161
      %v5335 = vld [vmem:[%s5334] ss:$2 sm:$0x7f]
      %s5336 = scalar_lea.vmem [#allocation5], 193
      %v5337 = vld [vmem:[%s5336] ss:$2 sm:$0x7f]
      %s5338 = scalar_lea.vmem [#allocation5], 2
      %v5339 = vld [vmem:[%s5338] ss:$2 sm:$0x7f]
      %s5340 = scalar_lea.vmem [#allocation5], 34
      %v5341 = vld [vmem:[%s5340] ss:$2 sm:$0x7f]
      %s5342 = scalar_lea.vmem [#allocation5], 66
      %v5343 = vld [vmem:[%s5342] ss:$2 sm:$0x7f]
      %s5344 = scalar_lea.vmem [#allocation5], 98
      %v5345 = vld [vmem:[%s5344] ss:$2 sm:$0x7f]
      %s5346 = scalar_lea.vmem [#allocation5], 130
      %v5347 = vld [vmem:[%s5346] ss:$2 sm:$0x7f]
      %s5348 = scalar_lea.vmem [#allocation5], 162
      %v5349 = vld [vmem:[%s5348] ss:$2 sm:$0x7f]
      %s5350 = scalar_lea.vmem [#allocation5], 194
      %v5351 = vld [vmem:[%s5350] ss:$2 sm:$0x7f]
      %s5352 = scalar_lea.vmem [#allocation5], 16
      %v5353 = vld [vmem:[%s5352] ss:$2 sm:$0x7f]
      %s5354 = scalar_lea.vmem %s5352, 32 [#allocation5]
      %v5355 = vld [vmem:[%s5354] ss:$2 sm:$0x7f]
      %s5356 = scalar_lea.vmem %s5352, 64 [#allocation5]
      %v5357 = vld [vmem:[%s5356] ss:$2 sm:$0x7f]
      %s5358 = scalar_lea.vmem %s5352, 96 [#allocation5]
      %v5359 = vld [vmem:[%s5358] ss:$2 sm:$0x7f]
      %s5360 = scalar_lea.vmem %s5352, 128 [#allocation5]
      %v5361 = vld [vmem:[%s5360] ss:$2 sm:$0x7f]
      %s5362 = scalar_lea.vmem %s5352, 160 [#allocation5]
      %v5363 = vld [vmem:[%s5362] ss:$2 sm:$0x7f]
      %s5364 = scalar_lea.vmem %s5352, 192 [#allocation5]
      %v5365 = vld [vmem:[%s5364] ss:$2 sm:$0x7f]
      %s5366 = scalar_lea.vmem %s5352, 1 [#allocation5]
      %v5367 = vld [vmem:[%s5366] ss:$2 sm:$0x7f]
      %s5368 = scalar_lea.vmem %s5352, 33 [#allocation5]
      %v5369 = vld [vmem:[%s5368] ss:$2 sm:$0x7f]
      %s5370 = scalar_lea.vmem %s5352, 65 [#allocation5]
      %v5371 = vld [vmem:[%s5370] ss:$2 sm:$0x7f]
      %s5372 = scalar_lea.vmem %s5352, 97 [#allocation5]
      %v5373 = vld [vmem:[%s5372] ss:$2 sm:$0x7f]
      %s5374 = scalar_lea.vmem %s5352, 129 [#allocation5]
      %v5375 = vld [vmem:[%s5374] ss:$2 sm:$0x7f]
      %s5376 = scalar_lea.vmem %s5352, 161 [#allocation5]
      %v5377 = vld [vmem:[%s5376] ss:$2 sm:$0x7f]
      %s5378 = scalar_lea.vmem %s5352, 193 [#allocation5]
      %v5379 = vld [vmem:[%s5378] ss:$2 sm:$0x7f]
      %s5380 = scalar_lea.vmem %s5352, 2 [#allocation5]
      %v5381 = vld [vmem:[%s5380] ss:$2 sm:$0x7f]
      %s5382 = scalar_lea.vmem %s5352, 34 [#allocation5]
      %v5383 = vld [vmem:[%s5382] ss:$2 sm:$0x7f]
      %s5384 = scalar_lea.vmem %s5352, 66 [#allocation5]
      %v5385 = vld [vmem:[%s5384] ss:$2 sm:$0x7f]
      %s5386 = scalar_lea.vmem %s5352, 98 [#allocation5]
      %v5387 = vld [vmem:[%s5386] ss:$2 sm:$0x7f]
      %s5388 = scalar_lea.vmem %s5352, 130 [#allocation5]
      %v5389 = vld [vmem:[%s5388] ss:$2 sm:$0x7f]
      %s5390 = scalar_lea.vmem %s5352, 162 [#allocation5]
      %v5391 = vld [vmem:[%s5390] ss:$2 sm:$0x7f]
      %s5392 = scalar_lea.vmem %s5352, 194 [#allocation5]
      %v5393 = vld [vmem:[%s5392] ss:$2 sm:$0x7f]
      %s5394 = scalar_lea.vmem [#allocation5], 32
      %v5395 = vld [vmem:[%s5394] ss:$2 sm:$0x7f]
      %s5396 = scalar_lea.vmem %s5394, 32 [#allocation5]
      %v5397 = vld [vmem:[%s5396] ss:$2 sm:$0x7f]
      %s5398 = scalar_lea.vmem %s5394, 64 [#allocation5]
      %v5399 = vld [vmem:[%s5398] ss:$2 sm:$0x7f]
      %s5400 = scalar_lea.vmem %s5394, 96 [#allocation5]
      %v5401 = vld [vmem:[%s5400] ss:$2 sm:$0x7f]
      %s5402 = scalar_lea.vmem %s5394, 128 [#allocation5]
      %v5403 = vld [vmem:[%s5402] ss:$2 sm:$0x7f]
      %s5404 = scalar_lea.vmem %s5394, 160 [#allocation5]
      %v5405 = vld [vmem:[%s5404] ss:$2 sm:$0x7f]
      %s5406 = scalar_lea.vmem %s5394, 192 [#allocation5]
      %v5407 = vld [vmem:[%s5406] ss:$2 sm:$0x7f]
      %s5408 = scalar_lea.vmem %s5394, 1 [#allocation5]
      %v5409 = vld [vmem:[%s5408] ss:$2 sm:$0x7f]
      %s5410 = scalar_lea.vmem %s5394, 33 [#allocation5]
      %v5411 = vld [vmem:[%s5410] ss:$2 sm:$0x7f]
      %s5412 = scalar_lea.vmem %s5394, 65 [#allocation5]
      %v5413 = vld [vmem:[%s5412] ss:$2 sm:$0x7f]
      %s5414 = scalar_lea.vmem %s5394, 97 [#allocation5]
      %v5415 = vld [vmem:[%s5414] ss:$2 sm:$0x7f]
      %s5416 = scalar_lea.vmem %s5394, 129 [#allocation5]
      %v5417 = vld [vmem:[%s5416] ss:$2 sm:$0x7f]
      %s5418 = scalar_lea.vmem %s5394, 161 [#allocation5]
      %v5419 = vld [vmem:[%s5418] ss:$2 sm:$0x7f]
      %s5420 = scalar_lea.vmem %s5394, 193 [#allocation5]
      %v5421 = vld [vmem:[%s5420] ss:$2 sm:$0x7f]
      %s5422 = scalar_lea.vmem %s5394, 2 [#allocation5]
      %v5423 = vld [vmem:[%s5422] ss:$2 sm:$0x7f]
      %s5424 = scalar_lea.vmem %s5394, 34 [#allocation5]
      %v5425 = vld [vmem:[%s5424] ss:$2 sm:$0x7f]
      %s5426 = scalar_lea.vmem %s5394, 66 [#allocation5]
      %v5427 = vld [vmem:[%s5426] ss:$2 sm:$0x7f]
      %s5428 = scalar_lea.vmem %s5394, 98 [#allocation5]
      %v5429 = vld [vmem:[%s5428] ss:$2 sm:$0x7f]
      %s5430 = scalar_lea.vmem %s5394, 130 [#allocation5]
      %v5431 = vld [vmem:[%s5430] ss:$2 sm:$0x7f]
      %s5432 = scalar_lea.vmem %s5394, 162 [#allocation5]
      %v5433 = vld [vmem:[%s5432] ss:$2 sm:$0x7f]
      %s5434 = scalar_lea.vmem %s5394, 194 [#allocation5]
      %v5435 = vld [vmem:[%s5434] ss:$2 sm:$0x7f]
      %5443 = vrot.lane.b32.xlu0 %v5325, 12
      %v5444 = vpop.permute.xlu0 %5443
      %5445 = vrot.lane.b32.xlu0 %v5327, 12
      %v5446 = vpop.permute.xlu0 %5445
      %5447 = vrot.lane.b32.xlu0 %v5329, 12
      %v5448 = vpop.permute.xlu0 %5447
      %5449 = vrot.lane.b32.xlu0 %v5331, 12
      %v5450 = vpop.permute.xlu0 %5449
      %5451 = vrot.lane.b32.xlu0 %v5333, 12
      %v5452 = vpop.permute.xlu0 %5451
      %5453 = vrot.lane.b32.xlu0 %v5335, 12
      %v5454 = vpop.permute.xlu0 %5453
      %5455 = vrot.lane.b32.xlu0 %v5337, 12
      %v5456 = vpop.permute.xlu0 %5455
      %5471 = vrot.lane.b32.xlu0 %v5339, 24
      %v5472 = vpop.permute.xlu0 %5471
      %5473 = vrot.lane.b32.xlu0 %v5341, 24
      %v5474 = vpop.permute.xlu0 %5473
      %5475 = vrot.lane.b32.xlu0 %v5343, 24
      %v5476 = vpop.permute.xlu0 %5475
      %5477 = vrot.lane.b32.xlu0 %v5345, 24
      %v5478 = vpop.permute.xlu0 %5477
      %5479 = vrot.lane.b32.xlu0 %v5347, 24
      %v5480 = vpop.permute.xlu0 %5479
      %5481 = vrot.lane.b32.xlu0 %v5349, 24
      %v5482 = vpop.permute.xlu0 %5481
      %5483 = vrot.lane.b32.xlu0 %v5351, 24
      %v5484 = vpop.permute.xlu0 %5483
      %5499 = vrot.lane.b32.xlu0 %v5353, 36
      %v5500 = vpop.permute.xlu0 %5499
      %5501 = vrot.lane.b32.xlu0 %v5355, 36
      %v5502 = vpop.permute.xlu0 %5501
      %5503 = vrot.lane.b32.xlu0 %v5357, 36
      %v5504 = vpop.permute.xlu0 %5503
      %5505 = vrot.lane.b32.xlu0 %v5359, 36
      %v5506 = vpop.permute.xlu0 %5505
      %5507 = vrot.lane.b32.xlu0 %v5361, 36
      %v5508 = vpop.permute.xlu0 %5507
      %5509 = vrot.lane.b32.xlu0 %v5363, 36
      %v5510 = vpop.permute.xlu0 %5509
      %5511 = vrot.lane.b32.xlu0 %v5365, 36
      %v5512 = vpop.permute.xlu0 %5511
      %5527 = vrot.lane.b32.xlu0 %v5367, 48
      %v5528 = vpop.permute.xlu0 %5527
      %5529 = vrot.lane.b32.xlu0 %v5369, 48
      %v5530 = vpop.permute.xlu0 %5529
      %5531 = vrot.lane.b32.xlu0 %v5371, 48
      %v5532 = vpop.permute.xlu0 %5531
      %5533 = vrot.lane.b32.xlu0 %v5373, 48
      %v5534 = vpop.permute.xlu0 %5533
      %5535 = vrot.lane.b32.xlu0 %v5375, 48
      %v5536 = vpop.permute.xlu0 %5535
      %5537 = vrot.lane.b32.xlu0 %v5377, 48
      %v5538 = vpop.permute.xlu0 %5537
      %5539 = vrot.lane.b32.xlu0 %v5379, 48
      %v5540 = vpop.permute.xlu0 %5539
      %5555 = vrot.lane.b32.xlu0 %v5381, 60
      %v5556 = vpop.permute.xlu0 %5555
      %5557 = vrot.lane.b32.xlu0 %v5383, 60
      %v5558 = vpop.permute.xlu0 %5557
      %5559 = vrot.lane.b32.xlu0 %v5385, 60
      %v5560 = vpop.permute.xlu0 %5559
      %5561 = vrot.lane.b32.xlu0 %v5387, 60
      %v5562 = vpop.permute.xlu0 %5561
      %5563 = vrot.lane.b32.xlu0 %v5389, 60
      %v5564 = vpop.permute.xlu0 %5563
      %5565 = vrot.lane.b32.xlu0 %v5391, 60
      %v5566 = vpop.permute.xlu0 %5565
      %5567 = vrot.lane.b32.xlu0 %v5393, 60
      %v5568 = vpop.permute.xlu0 %5567
      %5583 = vrot.lane.b32.xlu0 %v5395, 72
      %v5584 = vpop.permute.xlu0 %5583
      %5585 = vrot.lane.b32.xlu0 %v5397, 72
      %v5586 = vpop.permute.xlu0 %5585
      %5587 = vrot.lane.b32.xlu0 %v5399, 72
      %v5588 = vpop.permute.xlu0 %5587
      %5589 = vrot.lane.b32.xlu0 %v5401, 72
      %v5590 = vpop.permute.xlu0 %5589
      %5591 = vrot.lane.b32.xlu0 %v5403, 72
      %v5592 = vpop.permute.xlu0 %5591
      %5593 = vrot.lane.b32.xlu0 %v5405, 72
      %v5594 = vpop.permute.xlu0 %5593
      %5595 = vrot.lane.b32.xlu0 %v5407, 72
      %v5596 = vpop.permute.xlu0 %5595
      %5611 = vrot.lane.b32.xlu0 %v5409, 84
      %v5612 = vpop.permute.xlu0 %5611
      %5613 = vrot.lane.b32.xlu0 %v5411, 84
      %v5614 = vpop.permute.xlu0 %5613
      %5615 = vrot.lane.b32.xlu0 %v5413, 84
      %v5616 = vpop.permute.xlu0 %5615
      %5617 = vrot.lane.b32.xlu0 %v5415, 84
      %v5618 = vpop.permute.xlu0 %5617
      %5619 = vrot.lane.b32.xlu0 %v5417, 84
      %v5620 = vpop.permute.xlu0 %5619
      %5621 = vrot.lane.b32.xlu0 %v5419, 84
      %v5622 = vpop.permute.xlu0 %5621
      %5623 = vrot.lane.b32.xlu0 %v5421, 84
      %v5624 = vpop.permute.xlu0 %5623
      %5639 = vrot.lane.b32.xlu0 %v5423, 96
      %v5640 = vpop.permute.xlu0 %5639
      %5641 = vrot.lane.b32.xlu0 %v5425, 96
      %v5642 = vpop.permute.xlu0 %5641
      %5643 = vrot.lane.b32.xlu0 %v5427, 96
      %v5644 = vpop.permute.xlu0 %5643
      %5645 = vrot.lane.b32.xlu0 %v5429, 96
      %v5646 = vpop.permute.xlu0 %5645
      %5647 = vrot.lane.b32.xlu0 %v5431, 96
      %v5648 = vpop.permute.xlu0 %5647
      %5649 = vrot.lane.b32.xlu0 %v5433, 96
      %v5650 = vpop.permute.xlu0 %5649
      %5651 = vrot.lane.b32.xlu0 %v5435, 96
      %v5652 = vpop.permute.xlu0 %5651
      %v5660 = vsel %vm475, %v5311, %v5444
      %v5661 = vsel %vm475, %v5313, %v5446
      %v5662 = vsel %vm475, %v5315, %v5448
      %v5663 = vsel %vm475, %v5317, %v5450
      %v5664 = vsel %vm475, %v5319, %v5452
      %v5665 = vsel %vm475, %v5321, %v5454
      %v5666 = vsel %vm475, %v5323, %v5456
      %v5667 = vsel %vm1423, %v5660, %v5472
      %v5668 = vsel %vm1423, %v5661, %v5474
      %v5669 = vsel %vm1423, %v5662, %v5476
      %v5670 = vsel %vm1423, %v5663, %v5478
      %v5671 = vsel %vm1423, %v5664, %v5480
      %v5672 = vsel %vm1423, %v5665, %v5482
      %v5673 = vsel %vm1423, %v5666, %v5484
      %v5674 = vsel %vm4837, %v5667, %v5500
      %v5675 = vsel %vm4837, %v5668, %v5502
      %v5676 = vsel %vm4837, %v5669, %v5504
      %v5677 = vsel %vm4837, %v5670, %v5506
      %v5678 = vsel %vm4837, %v5671, %v5508
      %v5679 = vsel %vm4837, %v5672, %v5510
      %v5680 = vsel %vm4837, %v5673, %v5512
      %v5681 = vsel %vm1447, %v5674, %v5528
      %v5682 = vsel %vm1447, %v5675, %v5530
      %v5683 = vsel %vm1447, %v5676, %v5532
      %v5684 = vsel %vm1447, %v5677, %v5534
      %v5685 = vsel %vm1447, %v5678, %v5536
      %v5686 = vsel %vm1447, %v5679, %v5538
      %v5687 = vsel %vm1447, %v5680, %v5540
      %v5688 = vsel %vm4902, %v5681, %v5556
      %v5689 = vsel %vm4902, %v5682, %v5558
      %v5690 = vsel %vm4902, %v5683, %v5560
      %v5691 = vsel %vm4902, %v5684, %v5562
      %v5692 = vsel %vm4902, %v5685, %v5564
      %v5693 = vsel %vm4902, %v5686, %v5566
      %v5694 = vsel %vm4902, %v5687, %v5568
      %v5695 = vsel %vm2176, %v5688, %v5584
      %v5696 = vsel %vm2176, %v5689, %v5586
      %v5697 = vsel %vm2176, %v5690, %v5588
      %v5698 = vsel %vm2176, %v5691, %v5590
      %v5699 = vsel %vm2176, %v5692, %v5592
      %v5700 = vsel %vm2176, %v5693, %v5594
      %v5701 = vsel %vm2176, %v5694, %v5596
      %v5702 = vsel %vm5034, %v5695, %v5612
      %v5703 = vsel %vm5034, %v5696, %v5614
      %v5704 = vsel %vm5034, %v5697, %v5616
      %v5705 = vsel %vm5034, %v5698, %v5618
      %v5706 = vsel %vm5034, %v5699, %v5620
      %v5707 = vsel %vm5034, %v5700, %v5622
      %v5708 = vsel %vm5034, %v5701, %v5624
      %vm5709 = vcmask 785408
      %v5710 = vsel %vm5709, %v5702, %v5640
      %v5711 = vsel %vm5709, %v5703, %v5642
      %v5712 = vsel %vm5709, %v5704, %v5644
      %v5713 = vsel %vm5709, %v5705, %v5646
      %v5714 = vsel %vm5709, %v5706, %v5648
      %v5715 = vsel %vm5709, %v5707, %v5650
      %v5716 = vsel %vm5709, %v5708, %v5652
      %v5724 = vcombine.high %v5710, %v5710
      %v5726 = vunpack.c.l.s4 1966171168
      %v5727 = vunpack.c.0.s8 %v5726
      %v5728 = vlaneseq
      %v5729 = vshrl.u32 %v5728, 7
      %v5730 = vsub.s32 %v5727, %v5729
      %v5731 = vrot.slane %v5710, %v5730
      %v5733 = vunpack.c.l.s4 1966171168
      %v5734 = vunpack.c.0.s8 %v5733
      %v5735 = vlaneseq
      %v5736 = vshrl.u32 %v5735, 7
      %v5737 = vsub.s32 %v5734, %v5736
      %v5738 = vrot.slane %v5724, %v5737
      %v5739 = vcombine.high %v5731, %v5731
      %v5740 = vcombine.high %v5738, %v5738
      %v5742 = vunpack.c.l.s4 1966171168
      %v5743 = vunpack.c.0.s8 %v5742
      %v5744 = vlaneseq
      %v5745 = vshrl.u32 %v5744, 7
      %v5746 = vsub.s32 %v5743, %v5745
      %v5747 = vrot.slane %v5731, %v5746
      %v5749 = vunpack.c.l.s4 1966171168
      %v5750 = vunpack.c.0.s8 %v5749
      %v5751 = vlaneseq
      %v5752 = vshrl.u32 %v5751, 7
      %v5753 = vsub.s32 %v5750, %v5752
      %v5754 = vrot.slane %v5738, %v5753
      %v5756 = vunpack.c.l.s4 1966171168
      %v5757 = vunpack.c.0.s8 %v5756
      %v5758 = vlaneseq
      %v5759 = vshrl.u32 %v5758, 7
      %v5760 = vsub.s32 %v5757, %v5759
      %v5761 = vrot.slane %v5739, %v5760
      %v5763 = vunpack.c.l.s4 1966171168
      %v5764 = vunpack.c.0.s8 %v5763
      %v5765 = vlaneseq
      %v5766 = vshrl.u32 %v5765, 7
      %v5767 = vsub.s32 %v5764, %v5766
      %v5768 = vrot.slane %v5740, %v5767
      %v5769 = vcombine.high %v5747, %v5747
      %v5770 = vcombine.high %v5754, %v5754
      %v5771 = vcombine.high %v5761, %v5761
      %v5772 = vcombine.high %v5711, %v5711
      %v5774 = vunpack.c.l.s4 1966171168
      %v5775 = vunpack.c.0.s8 %v5774
      %v5776 = vlaneseq
      %v5777 = vshrl.u32 %v5776, 7
      %v5778 = vsub.s32 %v5775, %v5777
      %v5779 = vrot.slane %v5711, %v5778
      %v5781 = vunpack.c.l.s4 1966171168
      %v5782 = vunpack.c.0.s8 %v5781
      %v5783 = vlaneseq
      %v5784 = vshrl.u32 %v5783, 7
      %v5785 = vsub.s32 %v5782, %v5784
      %v5786 = vrot.slane %v5772, %v5785
      %v5787 = vcombine.high %v5779, %v5779
      %v5788 = vcombine.high %v5786, %v5786
      %v5790 = vunpack.c.l.s4 1966171168
      %v5791 = vunpack.c.0.s8 %v5790
      %v5792 = vlaneseq
      %v5793 = vshrl.u32 %v5792, 7
      %v5794 = vsub.s32 %v5791, %v5793
      %v5795 = vrot.slane %v5779, %v5794
      %v5797 = vunpack.c.l.s4 1966171168
      %v5798 = vunpack.c.0.s8 %v5797
      %v5799 = vlaneseq
      %v5800 = vshrl.u32 %v5799, 7
      %v5801 = vsub.s32 %v5798, %v5800
      %v5802 = vrot.slane %v5786, %v5801
      %v5804 = vunpack.c.l.s4 1966171168
      %v5805 = vunpack.c.0.s8 %v5804
      %v5806 = vlaneseq
      %v5807 = vshrl.u32 %v5806, 7
      %v5808 = vsub.s32 %v5805, %v5807
      %v5809 = vrot.slane %v5787, %v5808
      %v5811 = vunpack.c.l.s4 1966171168
      %v5812 = vunpack.c.0.s8 %v5811
      %v5813 = vlaneseq
      %v5814 = vshrl.u32 %v5813, 7
      %v5815 = vsub.s32 %v5812, %v5814
      %v5816 = vrot.slane %v5788, %v5815
      %v5817 = vcombine.high %v5795, %v5795
      %v5818 = vcombine.high %v5802, %v5802
      %v5819 = vcombine.high %v5809, %v5809
      %v5820 = vcombine.high %v5712, %v5712
      %v5822 = vunpack.c.l.s4 1966171168
      %v5823 = vunpack.c.0.s8 %v5822
      %v5824 = vlaneseq
      %v5825 = vshrl.u32 %v5824, 7
      %v5826 = vsub.s32 %v5823, %v5825
      %v5827 = vrot.slane %v5712, %v5826
      %v5829 = vunpack.c.l.s4 1966171168
      %v5830 = vunpack.c.0.s8 %v5829
      %v5831 = vlaneseq
      %v5832 = vshrl.u32 %v5831, 7
      %v5833 = vsub.s32 %v5830, %v5832
      %v5834 = vrot.slane %v5820, %v5833
      %v5835 = vcombine.high %v5827, %v5827
      %v5836 = vcombine.high %v5834, %v5834
      %v5838 = vunpack.c.l.s4 1966171168
      %v5839 = vunpack.c.0.s8 %v5838
      %v5840 = vlaneseq
      %v5841 = vshrl.u32 %v5840, 7
      %v5842 = vsub.s32 %v5839, %v5841
      %v5843 = vrot.slane %v5827, %v5842
      %v5845 = vunpack.c.l.s4 1966171168
      %v5846 = vunpack.c.0.s8 %v5845
      %v5847 = vlaneseq
      %v5848 = vshrl.u32 %v5847, 7
      %v5849 = vsub.s32 %v5846, %v5848
      %v5850 = vrot.slane %v5834, %v5849
      %v5852 = vunpack.c.l.s4 1966171168
      %v5853 = vunpack.c.0.s8 %v5852
      %v5854 = vlaneseq
      %v5855 = vshrl.u32 %v5854, 7
      %v5856 = vsub.s32 %v5853, %v5855
      %v5857 = vrot.slane %v5835, %v5856
      %v5859 = vunpack.c.l.s4 1966171168
      %v5860 = vunpack.c.0.s8 %v5859
      %v5861 = vlaneseq
      %v5862 = vshrl.u32 %v5861, 7
      %v5863 = vsub.s32 %v5860, %v5862
      %v5864 = vrot.slane %v5836, %v5863
      %v5865 = vcombine.high %v5843, %v5843
      %v5866 = vcombine.high %v5850, %v5850
      %v5867 = vcombine.high %v5857, %v5857
      %v5868 = vcombine.high %v5713, %v5713
      %v5870 = vunpack.c.l.s4 1966171168
      %v5871 = vunpack.c.0.s8 %v5870
      %v5872 = vlaneseq
      %v5873 = vshrl.u32 %v5872, 7
      %v5874 = vsub.s32 %v5871, %v5873
      %v5875 = vrot.slane %v5713, %v5874
      %v5877 = vunpack.c.l.s4 1966171168
      %v5878 = vunpack.c.0.s8 %v5877
      %v5879 = vlaneseq
      %v5880 = vshrl.u32 %v5879, 7
      %v5881 = vsub.s32 %v5878, %v5880
      %v5882 = vrot.slane %v5868, %v5881
      %v5883 = vcombine.high %v5875, %v5875
      %v5884 = vcombine.high %v5882, %v5882
      %v5886 = vunpack.c.l.s4 1966171168
      %v5887 = vunpack.c.0.s8 %v5886
      %v5888 = vlaneseq
      %v5889 = vshrl.u32 %v5888, 7
      %v5890 = vsub.s32 %v5887, %v5889
      %v5891 = vrot.slane %v5875, %v5890
      %v5893 = vunpack.c.l.s4 1966171168
      %v5894 = vunpack.c.0.s8 %v5893
      %v5895 = vlaneseq
      %v5896 = vshrl.u32 %v5895, 7
      %v5897 = vsub.s32 %v5894, %v5896
      %v5898 = vrot.slane %v5882, %v5897
      %v5900 = vunpack.c.l.s4 1966171168
      %v5901 = vunpack.c.0.s8 %v5900
      %v5902 = vlaneseq
      %v5903 = vshrl.u32 %v5902, 7
      %v5904 = vsub.s32 %v5901, %v5903
      %v5905 = vrot.slane %v5883, %v5904
      %v5907 = vunpack.c.l.s4 1966171168
      %v5908 = vunpack.c.0.s8 %v5907
      %v5909 = vlaneseq
      %v5910 = vshrl.u32 %v5909, 7
      %v5911 = vsub.s32 %v5908, %v5910
      %v5912 = vrot.slane %v5884, %v5911
      %v5913 = vcombine.high %v5891, %v5891
      %v5914 = vcombine.high %v5898, %v5898
      %v5915 = vcombine.high %v5905, %v5905
      %v5916 = vcombine.high %v5714, %v5714
      %v5918 = vunpack.c.l.s4 1966171168
      %v5919 = vunpack.c.0.s8 %v5918
      %v5920 = vlaneseq
      %v5921 = vshrl.u32 %v5920, 7
      %v5922 = vsub.s32 %v5919, %v5921
      %v5923 = vrot.slane %v5714, %v5922
      %v5925 = vunpack.c.l.s4 1966171168
      %v5926 = vunpack.c.0.s8 %v5925
      %v5927 = vlaneseq
      %v5928 = vshrl.u32 %v5927, 7
      %v5929 = vsub.s32 %v5926, %v5928
      %v5930 = vrot.slane %v5916, %v5929
      %v5931 = vcombine.high %v5923, %v5923
      %v5932 = vcombine.high %v5930, %v5930
      %v5934 = vunpack.c.l.s4 1966171168
      %v5935 = vunpack.c.0.s8 %v5934
      %v5936 = vlaneseq
      %v5937 = vshrl.u32 %v5936, 7
      %v5938 = vsub.s32 %v5935, %v5937
      %v5939 = vrot.slane %v5923, %v5938
      %v5941 = vunpack.c.l.s4 1966171168
      %v5942 = vunpack.c.0.s8 %v5941
      %v5943 = vlaneseq
      %v5944 = vshrl.u32 %v5943, 7
      %v5945 = vsub.s32 %v5942, %v5944
      %v5946 = vrot.slane %v5930, %v5945
      %v5948 = vunpack.c.l.s4 1966171168
      %v5949 = vunpack.c.0.s8 %v5948
      %v5950 = vlaneseq
      %v5951 = vshrl.u32 %v5950, 7
      %v5952 = vsub.s32 %v5949, %v5951
      %v5953 = vrot.slane %v5931, %v5952
      %v5955 = vunpack.c.l.s4 1966171168
      %v5956 = vunpack.c.0.s8 %v5955
      %v5957 = vlaneseq
      %v5958 = vshrl.u32 %v5957, 7
      %v5959 = vsub.s32 %v5956, %v5958
      %v5960 = vrot.slane %v5932, %v5959
      %v5961 = vcombine.high %v5939, %v5939
      %v5962 = vcombine.high %v5946, %v5946
      %v5963 = vcombine.high %v5953, %v5953
      %v5964 = vcombine.high %v5715, %v5715
      %v5966 = vunpack.c.l.s4 1966171168
      %v5967 = vunpack.c.0.s8 %v5966
      %v5968 = vlaneseq
      %v5969 = vshrl.u32 %v5968, 7
      %v5970 = vsub.s32 %v5967, %v5969
      %v5971 = vrot.slane %v5715, %v5970
      %v5973 = vunpack.c.l.s4 1966171168
      %v5974 = vunpack.c.0.s8 %v5973
      %v5975 = vlaneseq
      %v5976 = vshrl.u32 %v5975, 7
      %v5977 = vsub.s32 %v5974, %v5976
      %v5978 = vrot.slane %v5964, %v5977
      %v5979 = vcombine.high %v5971, %v5971
      %v5980 = vcombine.high %v5978, %v5978
      %v5982 = vunpack.c.l.s4 1966171168
      %v5983 = vunpack.c.0.s8 %v5982
      %v5984 = vlaneseq
      %v5985 = vshrl.u32 %v5984, 7
      %v5986 = vsub.s32 %v5983, %v5985
      %v5987 = vrot.slane %v5971, %v5986
      %v5989 = vunpack.c.l.s4 1966171168
      %v5990 = vunpack.c.0.s8 %v5989
      %v5991 = vlaneseq
      %v5992 = vshrl.u32 %v5991, 7
      %v5993 = vsub.s32 %v5990, %v5992
      %v5994 = vrot.slane %v5978, %v5993
      %v5996 = vunpack.c.l.s4 1966171168
      %v5997 = vunpack.c.0.s8 %v5996
      %v5998 = vlaneseq
      %v5999 = vshrl.u32 %v5998, 7
      %v6000 = vsub.s32 %v5997, %v5999
      %v6001 = vrot.slane %v5979, %v6000
      %v6003 = vunpack.c.l.s4 1966171168
      %v6004 = vunpack.c.0.s8 %v6003
      %v6005 = vlaneseq
      %v6006 = vshrl.u32 %v6005, 7
      %v6007 = vsub.s32 %v6004, %v6006
      %v6008 = vrot.slane %v5980, %v6007
      %v6009 = vcombine.high %v5987, %v5987
      %v6010 = vcombine.high %v5994, %v5994
      %v6011 = vcombine.high %v6001, %v6001
      %v6012 = vcombine.high %v5716, %v5716
      %v6014 = vunpack.c.l.s4 1966171168
      %v6015 = vunpack.c.0.s8 %v6014
      %v6016 = vlaneseq
      %v6017 = vshrl.u32 %v6016, 7
      %v6018 = vsub.s32 %v6015, %v6017
      %v6019 = vrot.slane %v5716, %v6018
      %v6021 = vunpack.c.l.s4 1966171168
      %v6022 = vunpack.c.0.s8 %v6021
      %v6023 = vlaneseq
      %v6024 = vshrl.u32 %v6023, 7
      %v6025 = vsub.s32 %v6022, %v6024
      %v6026 = vrot.slane %v6012, %v6025
      %v6027 = vcombine.high %v6019, %v6019
      %v6028 = vcombine.high %v6026, %v6026
      %v6030 = vunpack.c.l.s4 1966171168
      %v6031 = vunpack.c.0.s8 %v6030
      %v6032 = vlaneseq
      %v6033 = vshrl.u32 %v6032, 7
      %v6034 = vsub.s32 %v6031, %v6033
      %v6035 = vrot.slane %v6019, %v6034
      %v6037 = vunpack.c.l.s4 1966171168
      %v6038 = vunpack.c.0.s8 %v6037
      %v6039 = vlaneseq
      %v6040 = vshrl.u32 %v6039, 7
      %v6041 = vsub.s32 %v6038, %v6040
      %v6042 = vrot.slane %v6026, %v6041
      %v6044 = vunpack.c.l.s4 1966171168
      %v6045 = vunpack.c.0.s8 %v6044
      %v6046 = vlaneseq
      %v6047 = vshrl.u32 %v6046, 7
      %v6048 = vsub.s32 %v6045, %v6047
      %v6049 = vrot.slane %v6027, %v6048
      %v6051 = vunpack.c.l.s4 1966171168
      %v6052 = vunpack.c.0.s8 %v6051
      %v6053 = vlaneseq
      %v6054 = vshrl.u32 %v6053, 7
      %v6055 = vsub.s32 %v6052, %v6054
      %v6056 = vrot.slane %v6028, %v6055
      %v6057 = vcombine.high %v6035, %v6035
      %v6058 = vcombine.high %v6042, %v6042
      %v6059 = vcombine.high %v6049, %v6049
      %v6060 = vcombine.low %v5747, %v5761
      %v6061 = vcombine.low %v5769, %v5771
      %v6062 = vcombine.low %v5754, %v5768
      %v6063 = vcombine.low %v5770, %v5795
      %v6065 = vunpack.c.l.s4 1966171168
      %v6066 = vunpack.c.0.s8 %v6065
      %v6067 = vlaneseq
      %v6068 = vshrl.u32 %v6067, 7
      %v6069 = vsub.s32 %v6066, %v6068
      %v6070 = vrot.slane %v6060, %v6069
      %v6072 = vunpack.c.l.s4 1966171168
      %v6073 = vunpack.c.0.s8 %v6072
      %v6074 = vlaneseq
      %v6075 = vshrl.u32 %v6074, 7
      %v6076 = vsub.s32 %v6073, %v6075
      %v6077 = vrot.slane %v6061, %v6076
      %v6079 = vunpack.c.l.s4 1966171168
      %v6080 = vunpack.c.0.s8 %v6079
      %v6081 = vlaneseq
      %v6082 = vshrl.u32 %v6081, 7
      %v6083 = vsub.s32 %v6080, %v6082
      %v6084 = vrot.slane %v6062, %v6083
      %v6086 = vunpack.c.l.s4 1966171168
      %v6087 = vunpack.c.0.s8 %v6086
      %v6088 = vlaneseq
      %v6089 = vshrl.u32 %v6088, 7
      %v6090 = vsub.s32 %v6087, %v6089
      %v6091 = vrot.slane %v6063, %v6090
      %v6092 = vcombine.low %v6070, %v6077
      %v6093 = vcombine.low %v6084, %v6091
      %v6095 = vunpack.c.l.s4 1966171168
      %v6096 = vunpack.c.0.s8 %v6095
      %v6097 = vlaneseq
      %v6098 = vshrl.u32 %v6097, 7
      %v6099 = vsub.s32 %v6096, %v6098
      %v6100 = vrot.slane %v6092, %v6099
      %v6102 = vunpack.c.l.s4 1966171168
      %v6103 = vunpack.c.0.s8 %v6102
      %v6104 = vlaneseq
      %v6105 = vshrl.u32 %v6104, 7
      %v6106 = vsub.s32 %v6103, %v6105
      %v6107 = vrot.slane %v6093, %v6106
      %v6108 = vcombine.low %v6100, %v6107
      %v6109 = vcombine.low %v5809, %v5817
      %v6110 = vcombine.low %v5819, %v5802
      %v6111 = vcombine.low %v5816, %v5818
      %v6112 = vcombine.low %v5843, %v5857
      %v6114 = vunpack.c.l.s4 1966171168
      %v6115 = vunpack.c.0.s8 %v6114
      %v6116 = vlaneseq
      %v6117 = vshrl.u32 %v6116, 7
      %v6118 = vsub.s32 %v6115, %v6117
      %v6119 = vrot.slane %v6109, %v6118
      %v6121 = vunpack.c.l.s4 1966171168
      %v6122 = vunpack.c.0.s8 %v6121
      %v6123 = vlaneseq
      %v6124 = vshrl.u32 %v6123, 7
      %v6125 = vsub.s32 %v6122, %v6124
      %v6126 = vrot.slane %v6110, %v6125
      %v6128 = vunpack.c.l.s4 1966171168
      %v6129 = vunpack.c.0.s8 %v6128
      %v6130 = vlaneseq
      %v6131 = vshrl.u32 %v6130, 7
      %v6132 = vsub.s32 %v6129, %v6131
      %v6133 = vrot.slane %v6111, %v6132
      %v6135 = vunpack.c.l.s4 1966171168
      %v6136 = vunpack.c.0.s8 %v6135
      %v6137 = vlaneseq
      %v6138 = vshrl.u32 %v6137, 7
      %v6139 = vsub.s32 %v6136, %v6138
      %v6140 = vrot.slane %v6112, %v6139
      %v6141 = vcombine.low %v6119, %v6126
      %v6142 = vcombine.low %v6133, %v6140
      %v6144 = vunpack.c.l.s4 1966171168
      %v6145 = vunpack.c.0.s8 %v6144
      %v6146 = vlaneseq
      %v6147 = vshrl.u32 %v6146, 7
      %v6148 = vsub.s32 %v6145, %v6147
      %v6149 = vrot.slane %v6141, %v6148
      %v6151 = vunpack.c.l.s4 1966171168
      %v6152 = vunpack.c.0.s8 %v6151
      %v6153 = vlaneseq
      %v6154 = vshrl.u32 %v6153, 7
      %v6155 = vsub.s32 %v6152, %v6154
      %v6156 = vrot.slane %v6142, %v6155
      %v6157 = vcombine.low %v6149, %v6156
      %v6158 = vcombine.low %v5865, %v5867
      %v6159 = vcombine.low %v5850, %v5864
      %v6160 = vcombine.low %v5866, %v5891
      %v6161 = vcombine.low %v5905, %v5913
      %v6163 = vunpack.c.l.s4 1966171168
      %v6164 = vunpack.c.0.s8 %v6163
      %v6165 = vlaneseq
      %v6166 = vshrl.u32 %v6165, 7
      %v6167 = vsub.s32 %v6164, %v6166
      %v6168 = vrot.slane %v6158, %v6167
      %v6170 = vunpack.c.l.s4 1966171168
      %v6171 = vunpack.c.0.s8 %v6170
      %v6172 = vlaneseq
      %v6173 = vshrl.u32 %v6172, 7
      %v6174 = vsub.s32 %v6171, %v6173
      %v6175 = vrot.slane %v6159, %v6174
      %v6177 = vunpack.c.l.s4 1966171168
      %v6178 = vunpack.c.0.s8 %v6177
      %v6179 = vlaneseq
      %v6180 = vshrl.u32 %v6179, 7
      %v6181 = vsub.s32 %v6178, %v6180
      %v6182 = vrot.slane %v6160, %v6181
      %v6184 = vunpack.c.l.s4 1966171168
      %v6185 = vunpack.c.0.s8 %v6184
      %v6186 = vlaneseq
      %v6187 = vshrl.u32 %v6186, 7
      %v6188 = vsub.s32 %v6185, %v6187
      %v6189 = vrot.slane %v6161, %v6188
      %v6190 = vcombine.low %v6168, %v6175
      %v6191 = vcombine.low %v6182, %v6189
      %v6193 = vunpack.c.l.s4 1966171168
      %v6194 = vunpack.c.0.s8 %v6193
      %v6195 = vlaneseq
      %v6196 = vshrl.u32 %v6195, 7
      %v6197 = vsub.s32 %v6194, %v6196
      %v6198 = vrot.slane %v6190, %v6197
      %v6200 = vunpack.c.l.s4 1966171168
      %v6201 = vunpack.c.0.s8 %v6200
      %v6202 = vlaneseq
      %v6203 = vshrl.u32 %v6202, 7
      %v6204 = vsub.s32 %v6201, %v6203
      %v6205 = vrot.slane %v6191, %v6204
      %v6206 = vcombine.low %v6198, %v6205
      %v6207 = vcombine.low %v5915, %v5898
      %v6208 = vcombine.low %v5912, %v5914
      %v6209 = vcombine.low %v5939, %v5953
      %v6210 = vcombine.low %v5961, %v5963
      %v6212 = vunpack.c.l.s4 1966171168
      %v6213 = vunpack.c.0.s8 %v6212
      %v6214 = vlaneseq
      %v6215 = vshrl.u32 %v6214, 7
      %v6216 = vsub.s32 %v6213, %v6215
      %v6217 = vrot.slane %v6207, %v6216
      %v6219 = vunpack.c.l.s4 1966171168
      %v6220 = vunpack.c.0.s8 %v6219
      %v6221 = vlaneseq
      %v6222 = vshrl.u32 %v6221, 7
      %v6223 = vsub.s32 %v6220, %v6222
      %v6224 = vrot.slane %v6208, %v6223
      %v6226 = vunpack.c.l.s4 1966171168
      %v6227 = vunpack.c.0.s8 %v6226
      %v6228 = vlaneseq
      %v6229 = vshrl.u32 %v6228, 7
      %v6230 = vsub.s32 %v6227, %v6229
      %v6231 = vrot.slane %v6209, %v6230
      %v6233 = vunpack.c.l.s4 1966171168
      %v6234 = vunpack.c.0.s8 %v6233
      %v6235 = vlaneseq
      %v6236 = vshrl.u32 %v6235, 7
      %v6237 = vsub.s32 %v6234, %v6236
      %v6238 = vrot.slane %v6210, %v6237
      %v6239 = vcombine.low %v6217, %v6224
      %v6240 = vcombine.low %v6231, %v6238
      %v6242 = vunpack.c.l.s4 1966171168
      %v6243 = vunpack.c.0.s8 %v6242
      %v6244 = vlaneseq
      %v6245 = vshrl.u32 %v6244, 7
      %v6246 = vsub.s32 %v6243, %v6245
      %v6247 = vrot.slane %v6239, %v6246
      %v6249 = vunpack.c.l.s4 1966171168
      %v6250 = vunpack.c.0.s8 %v6249
      %v6251 = vlaneseq
      %v6252 = vshrl.u32 %v6251, 7
      %v6253 = vsub.s32 %v6250, %v6252
      %v6254 = vrot.slane %v6240, %v6253
      %v6255 = vcombine.low %v6247, %v6254
      %v6256 = vcombine.low %v5946, %v5960
      %v6257 = vcombine.low %v5962, %v5987
      %v6258 = vcombine.low %v6001, %v6009
      %v6259 = vcombine.low %v6011, %v5994
      %v6261 = vunpack.c.l.s4 1966171168
      %v6262 = vunpack.c.0.s8 %v6261
      %v6263 = vlaneseq
      %v6264 = vshrl.u32 %v6263, 7
      %v6265 = vsub.s32 %v6262, %v6264
      %v6266 = vrot.slane %v6256, %v6265
      %v6268 = vunpack.c.l.s4 1966171168
      %v6269 = vunpack.c.0.s8 %v6268
      %v6270 = vlaneseq
      %v6271 = vshrl.u32 %v6270, 7
      %v6272 = vsub.s32 %v6269, %v6271
      %v6273 = vrot.slane %v6257, %v6272
      %v6275 = vunpack.c.l.s4 1966171168
      %v6276 = vunpack.c.0.s8 %v6275
      %v6277 = vlaneseq
      %v6278 = vshrl.u32 %v6277, 7
      %v6279 = vsub.s32 %v6276, %v6278
      %v6280 = vrot.slane %v6258, %v6279
      %v6282 = vunpack.c.l.s4 1966171168
      %v6283 = vunpack.c.0.s8 %v6282
      %v6284 = vlaneseq
      %v6285 = vshrl.u32 %v6284, 7
      %v6286 = vsub.s32 %v6283, %v6285
      %v6287 = vrot.slane %v6259, %v6286
      %v6288 = vcombine.low %v6266, %v6273
      %v6289 = vcombine.low %v6280, %v6287
      %v6291 = vunpack.c.l.s4 1966171168
      %v6292 = vunpack.c.0.s8 %v6291
      %v6293 = vlaneseq
      %v6294 = vshrl.u32 %v6293, 7
      %v6295 = vsub.s32 %v6292, %v6294
      %v6296 = vrot.slane %v6288, %v6295
      %v6298 = vunpack.c.l.s4 1966171168
      %v6299 = vunpack.c.0.s8 %v6298
      %v6300 = vlaneseq
      %v6301 = vshrl.u32 %v6300, 7
      %v6302 = vsub.s32 %v6299, %v6301
      %v6303 = vrot.slane %v6289, %v6302
      %v6304 = vcombine.low %v6296, %v6303
      %v6305 = vcombine.low %v6008, %v6010
      %v6306 = vcombine.low %v6035, %v6049
      %v6307 = vcombine.low %v6057, %v6059
      %v6308 = vcombine.low %v6042, %v6056
      %v6310 = vunpack.c.l.s4 1966171168
      %v6311 = vunpack.c.0.s8 %v6310
      %v6312 = vlaneseq
      %v6313 = vshrl.u32 %v6312, 7
      %v6314 = vsub.s32 %v6311, %v6313
      %v6315 = vrot.slane %v6305, %v6314
      %v6317 = vunpack.c.l.s4 1966171168
      %v6318 = vunpack.c.0.s8 %v6317
      %v6319 = vlaneseq
      %v6320 = vshrl.u32 %v6319, 7
      %v6321 = vsub.s32 %v6318, %v6320
      %v6322 = vrot.slane %v6306, %v6321
      %v6324 = vunpack.c.l.s4 1966171168
      %v6325 = vunpack.c.0.s8 %v6324
      %v6326 = vlaneseq
      %v6327 = vshrl.u32 %v6326, 7
      %v6328 = vsub.s32 %v6325, %v6327
      %v6329 = vrot.slane %v6307, %v6328
      %v6331 = vunpack.c.l.s4 1966171168
      %v6332 = vunpack.c.0.s8 %v6331
      %v6333 = vlaneseq
      %v6334 = vshrl.u32 %v6333, 7
      %v6335 = vsub.s32 %v6332, %v6334
      %v6336 = vrot.slane %v6308, %v6335
      %v6337 = vcombine.low %v6315, %v6322
      %v6338 = vcombine.low %v6329, %v6336
      %v6340 = vunpack.c.l.s4 1966171168
      %v6341 = vunpack.c.0.s8 %v6340
      %v6342 = vlaneseq
      %v6343 = vshrl.u32 %v6342, 7
      %v6344 = vsub.s32 %v6341, %v6343
      %v6345 = vrot.slane %v6337, %v6344
      %v6347 = vunpack.c.l.s4 1966171168
      %v6348 = vunpack.c.0.s8 %v6347
      %v6349 = vlaneseq
      %v6350 = vshrl.u32 %v6349, 7
      %v6351 = vsub.s32 %v6348, %v6350
      %v6352 = vrot.slane %v6338, %v6351
      %v6353 = vcombine.low %v6345, %v6352
      %v6355 = vunpack.c.l.s4 1966171168
      %v6356 = vunpack.c.0.s8 %v6355
      %v6357 = vlaneseq
      %v6358 = vshrl.u32 %v6357, 7
      %v6359 = vsub.s32 %v6356, %v6358
      %v6360 = vrot.slane %v6058, %v6359
      %v6362 = vunpack.c.l.s4 1966171168
      %v6363 = vunpack.c.0.s8 %v6362
      %v6364 = vlaneseq
      %v6365 = vshrl.u32 %v6364, 7
      %v6366 = vsub.s32 %v6363, %v6365
      %v6367 = vrot.slane %v6360, %v6366
      %v6375 = vpack.c.bf16 %v6157, %v6108
      %v6376 = vpack.c.bf16 %v6255, %v6206
      %v6377 = vpack.c.bf16 %v6353, %v6304
      %v6378 = vpack.c.bf16 %v6367, %v6367
      %v6379 = vld [vmem:[%s11] sm:$0xf]
      %v6380 = vld [vmem:[%s11 + $0x4] sm:$0xf]
      %v6381 = vld [vmem:[%s11 + $0x8] sm:$0xf]
      %v6382 = vld [vmem:[%s11 + $0xc] sm:$0xf]
      %v6383 = vld [vmem:[%s11 + $0x10] sm:$0xf]
      %v6384 = vld [vmem:[%s11 + $0x14] sm:$0xf]
      %v6385 = vld [vmem:[%s11 + $0x18] sm:$0xf]
      %v6386 = vld [vmem:[%s11 + $0x1c] sm:$0xf]
      %v6387 = vld [vmem:[%s11 + $0x20] sm:$0xf]
      %v6388 = vld [vmem:[%s11 + $0x24] sm:$0xf]
      %v6389 = vld [vmem:[%s11 + $0x28] sm:$0xf]
      %v6390 = vld [vmem:[%s11 + $0x2c] sm:$0xf]
      %v6391 = vld [vmem:[%s11 + $0x30] sm:$0xf]
      %v6392 = vld [vmem:[%s11 + $0x34] sm:$0x3]
      %v6393 = vld [vmem:[%s12] sm:$0x1]
      %v6395 = vlaneseq
      %v6396 = vshrl.u32 %v6395, 7
      %v6397 = vsub.s32 0, %v6396
      %v6398 = vrot.slane %v6393, %v6397
      %v6414 = vunpack.c.l.b16 %v6379
      %v6415 = vunpack.c.l.b16 %v6380
      %v6416 = vunpack.c.l.b16 %v6381
      %v6417 = vunpack.c.l.b16 %v6382
      %v6418 = vunpack.c.l.b16 %v6383
      %v6419 = vunpack.c.l.b16 %v6384
      %v6420 = vunpack.c.l.b16 %v6385
      %v6421 = vunpack.c.l.b16 %v6386
      %v6422 = vunpack.c.l.b16 %v6387
      %v6423 = vunpack.c.l.b16 %v6388
      %v6424 = vunpack.c.l.b16 %v6389
      %v6425 = vunpack.c.l.b16 %v6390
      %v6426 = vunpack.c.l.b16 %v6391
      %v6427 = vunpack.c.l.b16 %v6392
      %v6428 = vpack.c.b16 %v6415, %v6414
      %v6429 = vpack.c.b16 %v6417, %v6416
      %v6430 = vpack.c.b16 %v6419, %v6418
      %v6431 = vpack.c.b16 %v6421, %v6420
      %v6432 = vpack.c.b16 %v6423, %v6422
      %v6433 = vpack.c.b16 %v6425, %v6424
      %v6434 = vpack.c.b16 %v6427, %v6426
      %vm6441 = vcmask 883712
      %v6443 = vsel %vm6441, %v6375, 0
      %v6446 = vsel %vm6441, %v6376, 0
      %v6449 = vsel %vm6441, %v6377, 0
      %v6452 = vsel %vm6441, %v6378, 0
      %vm6454 = vcmask 1045504
      %v6456 = vsel %vm6454, %v6434, 0
      %6458 = vmatprep.subr.bf16.mxu0 0
      %6459 = vmatpush1.bf16.msra.mxu0 %v6428
      %6460 = vmatprep.subr.bf16.mxu0 0
      %6461 = vmatpush1.bf16.msra.mxu0 %v6429
      %6462 = vmatprep.subr.bf16.mxu0 0
      %6463 = vmatpush1.bf16.msra.mxu0 %v6430
      %6464 = vmatprep.subr.bf16.mxu0 0
      %6465 = vmatpush1.bf16.msra.mxu0 %v6431
      %6466 = vmatprep.subr.bf16.mxu0 0
      %6467 = vmatpush1.bf16.msra.mxu0 %v6432
      %6468 = vmatprep.subr.bf16.mxu0 0
      %6469 = vmatpush1.bf16.msra.mxu0 %v6433
      %6470 = vmatprep.subr.bf16.mxu0 0
      %6471 = vmatpush1.bf16.msra.mxu0 %v6456
      %6472 = vmatprep.subr.bf16.mxu0 0
      %6473 = vmatpush1.bf16.msra.mxu0 0
      %6474 = vmatprep.subr.bf16.mxu0 0
      %6475 = vmatpush1.bf16.msra.mxu0 0
      %6476 = vmatprep.subr.bf16.mxu0 0
      %6477 = vmatpush1.bf16.msra.mxu0 0
      %6478 = vmatprep.subr.bf16.mxu0 0
      %6479 = vmatpush1.bf16.msra.mxu0 0
      %6480 = vmatprep.subr.bf16.mxu0 0
      %6481 = vmatpush1.bf16.msra.mxu0 0
      %6482 = vmatprep.subr.bf16.mxu0 0
      %6483 = vmatpush1.bf16.msra.mxu0 0
      %6484 = vmatprep.subr.bf16.mxu0 0
      %6485 = vmatpush1.bf16.msra.mxu0 0
      %6486 = vmatprep.subr.bf16.mxu0 0
      %6487 = vmatpush1.bf16.msra.mxu0 0
      %6488 = vmatprep.subr.bf16.mxu0 0
      %6489 = vmatpush1.bf16.msra.mxu0 0
      %6490 = vmatprep.mubr.bf16.mxu0 0
      %6491 = vmatmul.mubr.bf16.gmra.mrb[0].mxu0 %v6443
      %v6492 = vpop.f32.mrb[0].mxu0
      %v6493 = vadd.f32 %v6398, %v6492
      %v6494 = vpop.f32.mrb[0].mxu0
      %v6495 = vpop.f32.mrb[0].mxu0
      %v6496 = vadd.f32 %v6398, %v6495
      %v6497 = vpop.f32.mrb[0].mxu0
      %6498 = vmatprep.mubr.bf16.mxu0 0
      %6499 = vmatmul.mubr.bf16.gmra.mrb[0].mxu0 %v6446
      %v6500 = vpop.f32.mrb[0].mxu0
      %v6501 = vadd.f32 %v6398, %v6500
      %v6502 = vpop.f32.mrb[0].mxu0
      %v6503 = vpop.f32.mrb[0].mxu0
      %v6504 = vadd.f32 %v6398, %v6503
      %v6505 = vpop.f32.mrb[0].mxu0
      %6506 = vmatprep.mubr.bf16.mxu0 0
      %6507 = vmatmul.mubr.bf16.gmra.mrb[0].mxu0 %v6449
      %v6508 = vpop.f32.mrb[0].mxu0
      %v6509 = vadd.f32 %v6398, %v6508
      %v6510 = vpop.f32.mrb[0].mxu0
      %v6511 = vpop.f32.mrb[0].mxu0
      %v6512 = vadd.f32 %v6398, %v6511
      %v6513 = vpop.f32.mrb[0].mxu0
      %6514 = vmatprep.mubr.bf16.mxu0 0
      %6515 = vmatmul.mubr.bf16.gmra.mrb[0].mxu0 %v6452
      %v6516 = vpop.f32.mrb[0].mxu0
      %v6517 = vadd.f32 %v6398, %v6516
      %v6518 = vpop.f32.mrb[0].mxu0
      %v6519 = vpop.f32.mrb[0].mxu0
      %v6520 = vpop.f32.mrb[0].mxu0
      %6521 = vdwg.mxu0
      %v6522 = vmax.f32 %v6493, 0.0
      %v6523 = vmax.f32 %v6496, 0.0
      %v6524 = vmax.f32 %v6501, 0.0
      %v6525 = vmax.f32 %v6504, 0.0
      %v6526 = vmax.f32 %v6509, 0.0
      %v6527 = vmax.f32 %v6512, 0.0
      %v6528 = vmax.f32 %v6517, 0.0
      %v6529 = vld [vmem:[%s435] ss:$2 sm:$0x7f]
      %s6530 = scalar_lea.vmem %s435, 32
      %v6531 = vld [vmem:[%s6530] ss:$2 sm:$0x7f]
      %s6532 = scalar_lea.vmem %s435, 64
      %v6533 = vld [vmem:[%s6532] ss:$2 sm:$0x7f]
      %s6534 = scalar_lea.vmem %s435, 96
      %v6535 = vld [vmem:[%s6534] ss:$2 sm:$0x7f]
      %s6536 = scalar_lea.vmem %s435, 128
      %v6537 = vld [vmem:[%s6536] ss:$2 sm:$0x7f]
      %s6538 = scalar_lea.vmem %s435, 160
      %v6539 = vld [vmem:[%s6538] ss:$2 sm:$0x7f]
      %s6540 = scalar_lea.vmem %s435, 192
      %v6541 = vld [vmem:[%s6540] ss:$2 sm:$0x7f]
      %s6542 = scalar_lea.vmem %s435, 1
      %v6543 = vld [vmem:[%s6542] ss:$2 sm:$0x7f]
      %s6544 = scalar_lea.vmem %s435, 33
      %v6545 = vld [vmem:[%s6544] ss:$2 sm:$0x7f]
      %s6546 = scalar_lea.vmem %s435, 65
      %v6547 = vld [vmem:[%s6546] ss:$2 sm:$0x7f]
      %s6548 = scalar_lea.vmem %s435, 97
      %v6549 = vld [vmem:[%s6548] ss:$2 sm:$0x7f]
      %s6550 = scalar_lea.vmem %s435, 129
      %v6551 = vld [vmem:[%s6550] ss:$2 sm:$0x7f]
      %s6552 = scalar_lea.vmem %s435, 161
      %v6553 = vld [vmem:[%s6552] ss:$2 sm:$0x7f]
      %s6554 = scalar_lea.vmem %s435, 193
      %v6555 = vld [vmem:[%s6554] ss:$2 sm:$0x7f]
      %v6556 = vmax.f32 %v6529, %v6543
      %v6557 = vmax.f32 %v6531, %v6545
      %v6558 = vmax.f32 %v6533, %v6547
      %v6559 = vmax.f32 %v6535, %v6549
      %v6560 = vmax.f32 %v6537, %v6551
      %v6561 = vmax.f32 %v6539, %v6553
      %v6562 = vmax.f32 %v6541, %v6555
      %s6563 = scalar_lea.vmem %s435, 2
      %v6564 = vld [vmem:[%s6563] ss:$2 sm:$0x7f]
      %s6565 = scalar_lea.vmem %s435, 34
      %v6566 = vld [vmem:[%s6565] ss:$2 sm:$0x7f]
      %s6567 = scalar_lea.vmem %s435, 66
      %v6568 = vld [vmem:[%s6567] ss:$2 sm:$0x7f]
      %s6569 = scalar_lea.vmem %s435, 98
      %v6570 = vld [vmem:[%s6569] ss:$2 sm:$0x7f]
      %s6571 = scalar_lea.vmem %s435, 130
      %v6572 = vld [vmem:[%s6571] ss:$2 sm:$0x7f]
      %s6573 = scalar_lea.vmem %s435, 162
      %v6574 = vld [vmem:[%s6573] ss:$2 sm:$0x7f]
      %s6575 = scalar_lea.vmem %s435, 194
      %v6576 = vld [vmem:[%s6575] ss:$2 sm:$0x7f]
      %v6577 = vmax.f32 %v6556, %v6564
      %v6578 = vmax.f32 %v6557, %v6566
      %v6579 = vmax.f32 %v6558, %v6568
      %v6580 = vmax.f32 %v6559, %v6570
      %v6581 = vmax.f32 %v6560, %v6572
      %v6582 = vmax.f32 %v6561, %v6574
      %v6583 = vmax.f32 %v6562, %v6576
      %s6584 = scalar_lea.vmem %s435, 16
      %v6585 = vld [vmem:[%s6584] ss:$2 sm:$0x7f]
      %s6586 = scalar_lea.vmem %s6584, 32
      %v6587 = vld [vmem:[%s6586] ss:$2 sm:$0x7f]
      %s6588 = scalar_lea.vmem %s6584, 64
      %v6589 = vld [vmem:[%s6588] ss:$2 sm:$0x7f]
      %s6590 = scalar_lea.vmem %s6584, 96
      %v6591 = vld [vmem:[%s6590] ss:$2 sm:$0x7f]
      %s6592 = scalar_lea.vmem %s6584, 128
      %v6593 = vld [vmem:[%s6592] ss:$2 sm:$0x7f]
      %s6594 = scalar_lea.vmem %s6584, 160
      %v6595 = vld [vmem:[%s6594] ss:$2 sm:$0x7f]
      %s6596 = scalar_lea.vmem %s6584, 192
      %v6597 = vld [vmem:[%s6596] ss:$2 sm:$0x7f]
      %v6598 = vmax.f32 %v6577, %v6585
      %v6599 = vmax.f32 %v6578, %v6587
      %v6600 = vmax.f32 %v6579, %v6589
      %v6601 = vmax.f32 %v6580, %v6591
      %v6602 = vmax.f32 %v6581, %v6593
      %v6603 = vmax.f32 %v6582, %v6595
      %v6604 = vmax.f32 %v6583, %v6597
      %s6605 = scalar_lea.vmem %s6584, 1
      %v6606 = vld [vmem:[%s6605] ss:$2 sm:$0x7f]
      %s6607 = scalar_lea.vmem %s6584, 33
      %v6608 = vld [vmem:[%s6607] ss:$2 sm:$0x7f]
      %s6609 = scalar_lea.vmem %s6584, 65
      %v6610 = vld [vmem:[%s6609] ss:$2 sm:$0x7f]
      %s6611 = scalar_lea.vmem %s6584, 97
      %v6612 = vld [vmem:[%s6611] ss:$2 sm:$0x7f]
      %s6613 = scalar_lea.vmem %s6584, 129
      %v6614 = vld [vmem:[%s6613] ss:$2 sm:$0x7f]
      %s6615 = scalar_lea.vmem %s6584, 161
      %v6616 = vld [vmem:[%s6615] ss:$2 sm:$0x7f]
      %s6617 = scalar_lea.vmem %s6584, 193
      %v6618 = vld [vmem:[%s6617] ss:$2 sm:$0x7f]
      %v6619 = vmax.f32 %v6598, %v6606
      %v6620 = vmax.f32 %v6599, %v6608
      %v6621 = vmax.f32 %v6600, %v6610
      %v6622 = vmax.f32 %v6601, %v6612
      %v6623 = vmax.f32 %v6602, %v6614
      %v6624 = vmax.f32 %v6603, %v6616
      %v6625 = vmax.f32 %v6604, %v6618
      %s6626 = scalar_lea.vmem %s6584, 2
      %v6627 = vld [vmem:[%s6626] ss:$2 sm:$0x7f]
      %s6628 = scalar_lea.vmem %s6584, 34
      %v6629 = vld [vmem:[%s6628] ss:$2 sm:$0x7f]
      %s6630 = scalar_lea.vmem %s6584, 66
      %v6631 = vld [vmem:[%s6630] ss:$2 sm:$0x7f]
      %s6632 = scalar_lea.vmem %s6584, 98
      %v6633 = vld [vmem:[%s6632] ss:$2 sm:$0x7f]
      %s6634 = scalar_lea.vmem %s6584, 130
      %v6635 = vld [vmem:[%s6634] ss:$2 sm:$0x7f]
      %s6636 = scalar_lea.vmem %s6584, 162
      %v6637 = vld [vmem:[%s6636] ss:$2 sm:$0x7f]
      %s6638 = scalar_lea.vmem %s6584, 194
      %v6639 = vld [vmem:[%s6638] ss:$2 sm:$0x7f]
      %v6640 = vmax.f32 %v6619, %v6627
      %v6641 = vmax.f32 %v6620, %v6629
      %v6642 = vmax.f32 %v6621, %v6631
      %v6643 = vmax.f32 %v6622, %v6633
      %v6644 = vmax.f32 %v6623, %v6635
      %v6645 = vmax.f32 %v6624, %v6637
      %v6646 = vmax.f32 %v6625, %v6639
      %s6647 = scalar_lea.vmem %s435, 32
      %v6648 = vld [vmem:[%s6647] ss:$2 sm:$0x7f]
      %s6649 = scalar_lea.vmem %s6647, 32
      %v6650 = vld [vmem:[%s6649] ss:$2 sm:$0x7f]
      %s6651 = scalar_lea.vmem %s6647, 64
      %v6652 = vld [vmem:[%s6651] ss:$2 sm:$0x7f]
      %s6653 = scalar_lea.vmem %s6647, 96
      %v6654 = vld [vmem:[%s6653] ss:$2 sm:$0x7f]
      %s6655 = scalar_lea.vmem %s6647, 128
      %v6656 = vld [vmem:[%s6655] ss:$2 sm:$0x7f]
      %s6657 = scalar_lea.vmem %s6647, 160
      %v6658 = vld [vmem:[%s6657] ss:$2 sm:$0x7f]
      %s6659 = scalar_lea.vmem %s6647, 192
      %v6660 = vld [vmem:[%s6659] ss:$2 sm:$0x7f]
      %v6661 = vmax.f32 %v6640, %v6648
      %v6662 = vmax.f32 %v6641, %v6650
      %v6663 = vmax.f32 %v6642, %v6652
      %v6664 = vmax.f32 %v6643, %v6654
      %v6665 = vmax.f32 %v6644, %v6656
      %v6666 = vmax.f32 %v6645, %v6658
      %v6667 = vmax.f32 %v6646, %v6660
      %s6668 = scalar_lea.vmem %s6647, 1
      %v6669 = vld [vmem:[%s6668] ss:$2 sm:$0x7f]
      %s6670 = scalar_lea.vmem %s6647, 33
      %v6671 = vld [vmem:[%s6670] ss:$2 sm:$0x7f]
      %s6672 = scalar_lea.vmem %s6647, 65
      %v6673 = vld [vmem:[%s6672] ss:$2 sm:$0x7f]
      %s6674 = scalar_lea.vmem %s6647, 97
      %v6675 = vld [vmem:[%s6674] ss:$2 sm:$0x7f]
      %s6676 = scalar_lea.vmem %s6647, 129
      %v6677 = vld [vmem:[%s6676] ss:$2 sm:$0x7f]
      %s6678 = scalar_lea.vmem %s6647, 161
      %v6679 = vld [vmem:[%s6678] ss:$2 sm:$0x7f]
      %s6680 = scalar_lea.vmem %s6647, 193
      %v6681 = vld [vmem:[%s6680] ss:$2 sm:$0x7f]
      %v6682 = vmax.f32 %v6661, %v6669
      %v6683 = vmax.f32 %v6662, %v6671
      %v6684 = vmax.f32 %v6663, %v6673
      %v6685 = vmax.f32 %v6664, %v6675
      %v6686 = vmax.f32 %v6665, %v6677
      %v6687 = vmax.f32 %v6666, %v6679
      %v6688 = vmax.f32 %v6667, %v6681
      %s6689 = scalar_lea.vmem %s6647, 2
      %v6690 = vld [vmem:[%s6689] ss:$2 sm:$0x7f]
      %s6691 = scalar_lea.vmem %s6647, 34
      %v6692 = vld [vmem:[%s6691] ss:$2 sm:$0x7f]
      %s6693 = scalar_lea.vmem %s6647, 66
      %v6694 = vld [vmem:[%s6693] ss:$2 sm:$0x7f]
      %s6695 = scalar_lea.vmem %s6647, 98
      %v6696 = vld [vmem:[%s6695] ss:$2 sm:$0x7f]
      %s6697 = scalar_lea.vmem %s6647, 130
      %v6698 = vld [vmem:[%s6697] ss:$2 sm:$0x7f]
      %s6699 = scalar_lea.vmem %s6647, 162
      %v6700 = vld [vmem:[%s6699] ss:$2 sm:$0x7f]
      %s6701 = scalar_lea.vmem %s6647, 194
      %v6702 = vld [vmem:[%s6701] ss:$2 sm:$0x7f]
      %v6703 = vmax.f32 %v6682, %v6690
      %v6704 = vmax.f32 %v6683, %v6692
      %v6705 = vmax.f32 %v6684, %v6694
      %v6706 = vmax.f32 %v6685, %v6696
      %v6707 = vmax.f32 %v6686, %v6698
      %v6708 = vmax.f32 %v6687, %v6700
      %v6709 = vmax.f32 %v6688, %v6702
      %6710 = vst.msk [vmem:[%s440] sm:$0xff] %vm1415, %v2257
      %6711 = vst.msk [vmem:[%s440 + $0x8] sm:$0xff] %vm1415, %v2258
      %6712 = vst.msk [vmem:[%s440 + $0x10] sm:$0xff] %vm1415, %v2259
      %6713 = vst.msk [vmem:[%s440 + $0x18] sm:$0xff] %vm1415, %v2260
      %6714 = vst.msk [vmem:[%s440 + $0x20] sm:$0xff] %vm1415, %v2261
      %6715 = vst.msk [vmem:[%s440 + $0x28] sm:$0xff] %vm1415, %v2262
      %vm6716 = vcmask 122880
      %6717 = vst.msk [vmem:[%s440 + $0x30] sm:$0x1] %vm6716, %v2263
      %6725 = vrot.lane.b32.xlu0 %v6522, 16
      %v6726 = vpop.permute.xlu0 %6725
      %6727 = vrot.lane.b32.xlu0 %v6523, 16
      %v6728 = vpop.permute.xlu0 %6727
      %6729 = vrot.lane.b32.xlu0 %v6524, 16
      %v6730 = vpop.permute.xlu0 %6729
      %6731 = vrot.lane.b32.xlu0 %v6525, 16
      %v6732 = vpop.permute.xlu0 %6731
      %6733 = vrot.lane.b32.xlu0 %v6526, 16
      %v6734 = vpop.permute.xlu0 %6733
      %6735 = vrot.lane.b32.xlu0 %v6527, 16
      %v6736 = vpop.permute.xlu0 %6735
      %6737 = vrot.lane.b32.xlu0 %v6528, 16
      %v6738 = vpop.permute.xlu0 %6737
      %vm6746 = vcmask 261248
      %6747 = vst.msk [vmem:[%s440] sm:$0xff] %vm6746, %v6726
      %6748 = vst.msk [vmem:[%s440 + $0x8] sm:$0xff] %vm6746, %v6728
      %6749 = vst.msk [vmem:[%s440 + $0x10] sm:$0xff] %vm6746, %v6730
      %6750 = vst.msk [vmem:[%s440 + $0x18] sm:$0xff] %vm6746, %v6732
      %6751 = vst.msk [vmem:[%s440 + $0x20] sm:$0xff] %vm6746, %v6734
      %6752 = vst.msk [vmem:[%s440 + $0x28] sm:$0xff] %vm6746, %v6736
      %vm6753 = vcmask 254080
      %6754 = vst.msk [vmem:[%s440 + $0x30] sm:$0x1] %vm6753, %v6738
      %v6762 = vcombine.high %v6703, %v6703
      %v6764 = vunpack.c.l.s4 1966171168
      %v6765 = vunpack.c.0.s8 %v6764
      %v6766 = vlaneseq
      %v6767 = vshrl.u32 %v6766, 7
      %v6768 = vsub.s32 %v6765, %v6767
      %v6769 = vrot.slane %v6703, %v6768
      %v6771 = vunpack.c.l.s4 1966171168
      %v6772 = vunpack.c.0.s8 %v6771
      %v6773 = vlaneseq
      %v6774 = vshrl.u32 %v6773, 7
      %v6775 = vsub.s32 %v6772, %v6774
      %v6776 = vrot.slane %v6762, %v6775
      %v6777 = vcombine.high %v6769, %v6769
      %v6778 = vcombine.high %v6776, %v6776
      %v6780 = vunpack.c.l.s4 1966171168
      %v6781 = vunpack.c.0.s8 %v6780
      %v6782 = vlaneseq
      %v6783 = vshrl.u32 %v6782, 7
      %v6784 = vsub.s32 %v6781, %v6783
      %v6785 = vrot.slane %v6769, %v6784
      %v6787 = vunpack.c.l.s4 1966171168
      %v6788 = vunpack.c.0.s8 %v6787
      %v6789 = vlaneseq
      %v6790 = vshrl.u32 %v6789, 7
      %v6791 = vsub.s32 %v6788, %v6790
      %v6792 = vrot.slane %v6776, %v6791
      %v6794 = vunpack.c.l.s4 1966171168
      %v6795 = vunpack.c.0.s8 %v6794
      %v6796 = vlaneseq
      %v6797 = vshrl.u32 %v6796, 7
      %v6798 = vsub.s32 %v6795, %v6797
      %v6799 = vrot.slane %v6777, %v6798
      %v6801 = vunpack.c.l.s4 1966171168
      %v6802 = vunpack.c.0.s8 %v6801
      %v6803 = vlaneseq
      %v6804 = vshrl.u32 %v6803, 7
      %v6805 = vsub.s32 %v6802, %v6804
      %v6806 = vrot.slane %v6778, %v6805
      %v6807 = vcombine.high %v6785, %v6785
      %v6808 = vcombine.high %v6792, %v6792
      %v6809 = vcombine.high %v6799, %v6799
      %v6810 = vcombine.high %v6704, %v6704
      %v6812 = vunpack.c.l.s4 1966171168
      %v6813 = vunpack.c.0.s8 %v6812
      %v6814 = vlaneseq
      %v6815 = vshrl.u32 %v6814, 7
      %v6816 = vsub.s32 %v6813, %v6815
      %v6817 = vrot.slane %v6704, %v6816
      %v6819 = vunpack.c.l.s4 1966171168
      %v6820 = vunpack.c.0.s8 %v6819
      %v6821 = vlaneseq
      %v6822 = vshrl.u32 %v6821, 7
      %v6823 = vsub.s32 %v6820, %v6822
      %v6824 = vrot.slane %v6810, %v6823
      %v6825 = vcombine.high %v6817, %v6817
      %v6826 = vcombine.high %v6824, %v6824
      %v6828 = vunpack.c.l.s4 1966171168
      %v6829 = vunpack.c.0.s8 %v6828
      %v6830 = vlaneseq
      %v6831 = vshrl.u32 %v6830, 7
      %v6832 = vsub.s32 %v6829, %v6831
      %v6833 = vrot.slane %v6817, %v6832
      %v6835 = vunpack.c.l.s4 1966171168
      %v6836 = vunpack.c.0.s8 %v6835
      %v6837 = vlaneseq
      %v6838 = vshrl.u32 %v6837, 7
      %v6839 = vsub.s32 %v6836, %v6838
      %v6840 = vrot.slane %v6824, %v6839
      %v6842 = vunpack.c.l.s4 1966171168
      %v6843 = vunpack.c.0.s8 %v6842
      %v6844 = vlaneseq
      %v6845 = vshrl.u32 %v6844, 7
      %v6846 = vsub.s32 %v6843, %v6845
      %v6847 = vrot.slane %v6825, %v6846
      %v6849 = vunpack.c.l.s4 1966171168
      %v6850 = vunpack.c.0.s8 %v6849
      %v6851 = vlaneseq
      %v6852 = vshrl.u32 %v6851, 7
      %v6853 = vsub.s32 %v6850, %v6852
      %v6854 = vrot.slane %v6826, %v6853
      %v6855 = vcombine.high %v6833, %v6833
      %v6856 = vcombine.high %v6840, %v6840
      %v6857 = vcombine.high %v6847, %v6847
      %v6858 = vcombine.high %v6705, %v6705
      %v6860 = vunpack.c.l.s4 1966171168
      %v6861 = vunpack.c.0.s8 %v6860
      %v6862 = vlaneseq
      %v6863 = vshrl.u32 %v6862, 7
      %v6864 = vsub.s32 %v6861, %v6863
      %v6865 = vrot.slane %v6705, %v6864
      %v6867 = vunpack.c.l.s4 1966171168
      %v6868 = vunpack.c.0.s8 %v6867
      %v6869 = vlaneseq
      %v6870 = vshrl.u32 %v6869, 7
      %v6871 = vsub.s32 %v6868, %v6870
      %v6872 = vrot.slane %v6858, %v6871
      %v6873 = vcombine.high %v6865, %v6865
      %v6874 = vcombine.high %v6872, %v6872
      %v6876 = vunpack.c.l.s4 1966171168
      %v6877 = vunpack.c.0.s8 %v6876
      %v6878 = vlaneseq
      %v6879 = vshrl.u32 %v6878, 7
      %v6880 = vsub.s32 %v6877, %v6879
      %v6881 = vrot.slane %v6865, %v6880
      %v6883 = vunpack.c.l.s4 1966171168
      %v6884 = vunpack.c.0.s8 %v6883
      %v6885 = vlaneseq
      %v6886 = vshrl.u32 %v6885, 7
      %v6887 = vsub.s32 %v6884, %v6886
      %v6888 = vrot.slane %v6872, %v6887
      %v6890 = vunpack.c.l.s4 1966171168
      %v6891 = vunpack.c.0.s8 %v6890
      %v6892 = vlaneseq
      %v6893 = vshrl.u32 %v6892, 7
      %v6894 = vsub.s32 %v6891, %v6893
      %v6895 = vrot.slane %v6873, %v6894
      %v6897 = vunpack.c.l.s4 1966171168
      %v6898 = vunpack.c.0.s8 %v6897
      %v6899 = vlaneseq
      %v6900 = vshrl.u32 %v6899, 7
      %v6901 = vsub.s32 %v6898, %v6900
      %v6902 = vrot.slane %v6874, %v6901
      %v6903 = vcombine.high %v6881, %v6881
      %v6904 = vcombine.high %v6888, %v6888
      %v6905 = vcombine.high %v6895, %v6895
      %v6906 = vcombine.high %v6706, %v6706
      %v6908 = vunpack.c.l.s4 1966171168
      %v6909 = vunpack.c.0.s8 %v6908
      %v6910 = vlaneseq
      %v6911 = vshrl.u32 %v6910, 7
      %v6912 = vsub.s32 %v6909, %v6911
      %v6913 = vrot.slane %v6706, %v6912
      %v6915 = vunpack.c.l.s4 1966171168
      %v6916 = vunpack.c.0.s8 %v6915
      %v6917 = vlaneseq
      %v6918 = vshrl.u32 %v6917, 7
      %v6919 = vsub.s32 %v6916, %v6918
      %v6920 = vrot.slane %v6906, %v6919
      %v6921 = vcombine.high %v6913, %v6913
      %v6922 = vcombine.high %v6920, %v6920
      %v6924 = vunpack.c.l.s4 1966171168
      %v6925 = vunpack.c.0.s8 %v6924
      %v6926 = vlaneseq
      %v6927 = vshrl.u32 %v6926, 7
      %v6928 = vsub.s32 %v6925, %v6927
      %v6929 = vrot.slane %v6913, %v6928
      %v6931 = vunpack.c.l.s4 1966171168
      %v6932 = vunpack.c.0.s8 %v6931
      %v6933 = vlaneseq
      %v6934 = vshrl.u32 %v6933, 7
      %v6935 = vsub.s32 %v6932, %v6934
      %v6936 = vrot.slane %v6920, %v6935
      %v6938 = vunpack.c.l.s4 1966171168
      %v6939 = vunpack.c.0.s8 %v6938
      %v6940 = vlaneseq
      %v6941 = vshrl.u32 %v6940, 7
      %v6942 = vsub.s32 %v6939, %v6941
      %v6943 = vrot.slane %v6921, %v6942
      %v6945 = vunpack.c.l.s4 1966171168
      %v6946 = vunpack.c.0.s8 %v6945
      %v6947 = vlaneseq
      %v6948 = vshrl.u32 %v6947, 7
      %v6949 = vsub.s32 %v6946, %v6948
      %v6950 = vrot.slane %v6922, %v6949
      %v6951 = vcombine.high %v6929, %v6929
      %v6952 = vcombine.high %v6936, %v6936
      %v6953 = vcombine.high %v6943, %v6943
      %v6954 = vcombine.high %v6707, %v6707
      %v6956 = vunpack.c.l.s4 1966171168
      %v6957 = vunpack.c.0.s8 %v6956
      %v6958 = vlaneseq
      %v6959 = vshrl.u32 %v6958, 7
      %v6960 = vsub.s32 %v6957, %v6959
      %v6961 = vrot.slane %v6707, %v6960
      %v6963 = vunpack.c.l.s4 1966171168
      %v6964 = vunpack.c.0.s8 %v6963
      %v6965 = vlaneseq
      %v6966 = vshrl.u32 %v6965, 7
      %v6967 = vsub.s32 %v6964, %v6966
      %v6968 = vrot.slane %v6954, %v6967
      %v6969 = vcombine.high %v6961, %v6961
      %v6970 = vcombine.high %v6968, %v6968
      %v6972 = vunpack.c.l.s4 1966171168
      %v6973 = vunpack.c.0.s8 %v6972
      %v6974 = vlaneseq
      %v6975 = vshrl.u32 %v6974, 7
      %v6976 = vsub.s32 %v6973, %v6975
      %v6977 = vrot.slane %v6961, %v6976
      %v6979 = vunpack.c.l.s4 1966171168
      %v6980 = vunpack.c.0.s8 %v6979
      %v6981 = vlaneseq
      %v6982 = vshrl.u32 %v6981, 7
      %v6983 = vsub.s32 %v6980, %v6982
      %v6984 = vrot.slane %v6968, %v6983
      %v6986 = vunpack.c.l.s4 1966171168
      %v6987 = vunpack.c.0.s8 %v6986
      %v6988 = vlaneseq
      %v6989 = vshrl.u32 %v6988, 7
      %v6990 = vsub.s32 %v6987, %v6989
      %v6991 = vrot.slane %v6969, %v6990
      %v6993 = vunpack.c.l.s4 1966171168
      %v6994 = vunpack.c.0.s8 %v6993
      %v6995 = vlaneseq
      %v6996 = vshrl.u32 %v6995, 7
      %v6997 = vsub.s32 %v6994, %v6996
      %v6998 = vrot.slane %v6970, %v6997
      %v6999 = vcombine.high %v6977, %v6977
      %v7000 = vcombine.high %v6984, %v6984
      %v7001 = vcombine.high %v6991, %v6991
      %v7002 = vcombine.high %v6708, %v6708
      %v7004 = vunpack.c.l.s4 1966171168
      %v7005 = vunpack.c.0.s8 %v7004
      %v7006 = vlaneseq
      %v7007 = vshrl.u32 %v7006, 7
      %v7008 = vsub.s32 %v7005, %v7007
      %v7009 = vrot.slane %v6708, %v7008
      %v7011 = vunpack.c.l.s4 1966171168
      %v7012 = vunpack.c.0.s8 %v7011
      %v7013 = vlaneseq
      %v7014 = vshrl.u32 %v7013, 7
      %v7015 = vsub.s32 %v7012, %v7014
      %v7016 = vrot.slane %v7002, %v7015
      %v7017 = vcombine.high %v7009, %v7009
      %v7018 = vcombine.high %v7016, %v7016
      %v7020 = vunpack.c.l.s4 1966171168
      %v7021 = vunpack.c.0.s8 %v7020
      %v7022 = vlaneseq
      %v7023 = vshrl.u32 %v7022, 7
      %v7024 = vsub.s32 %v7021, %v7023
      %v7025 = vrot.slane %v7009, %v7024
      %v7027 = vunpack.c.l.s4 1966171168
      %v7028 = vunpack.c.0.s8 %v7027
      %v7029 = vlaneseq
      %v7030 = vshrl.u32 %v7029, 7
      %v7031 = vsub.s32 %v7028, %v7030
      %v7032 = vrot.slane %v7016, %v7031
      %v7034 = vunpack.c.l.s4 1966171168
      %v7035 = vunpack.c.0.s8 %v7034
      %v7036 = vlaneseq
      %v7037 = vshrl.u32 %v7036, 7
      %v7038 = vsub.s32 %v7035, %v7037
      %v7039 = vrot.slane %v7017, %v7038
      %v7041 = vunpack.c.l.s4 1966171168
      %v7042 = vunpack.c.0.s8 %v7041
      %v7043 = vlaneseq
      %v7044 = vshrl.u32 %v7043, 7
      %v7045 = vsub.s32 %v7042, %v7044
      %v7046 = vrot.slane %v7018, %v7045
      %v7047 = vcombine.high %v7025, %v7025
      %v7048 = vcombine.high %v7032, %v7032
      %v7049 = vcombine.high %v7039, %v7039
      %v7050 = vcombine.high %v6709, %v6709
      %v7052 = vunpack.c.l.s4 1966171168
      %v7053 = vunpack.c.0.s8 %v7052
      %v7054 = vlaneseq
      %v7055 = vshrl.u32 %v7054, 7
      %v7056 = vsub.s32 %v7053, %v7055
      %v7057 = vrot.slane %v6709, %v7056
      %v7059 = vunpack.c.l.s4 1966171168
      %v7060 = vunpack.c.0.s8 %v7059
      %v7061 = vlaneseq
      %v7062 = vshrl.u32 %v7061, 7
      %v7063 = vsub.s32 %v7060, %v7062
      %v7064 = vrot.slane %v7050, %v7063
      %v7065 = vcombine.high %v7057, %v7057
      %v7066 = vcombine.high %v7064, %v7064
      %v7068 = vunpack.c.l.s4 1966171168
      %v7069 = vunpack.c.0.s8 %v7068
      %v7070 = vlaneseq
      %v7071 = vshrl.u32 %v7070, 7
      %v7072 = vsub.s32 %v7069, %v7071
      %v7073 = vrot.slane %v7057, %v7072
      %v7075 = vunpack.c.l.s4 1966171168
      %v7076 = vunpack.c.0.s8 %v7075
      %v7077 = vlaneseq
      %v7078 = vshrl.u32 %v7077, 7
      %v7079 = vsub.s32 %v7076, %v7078
      %v7080 = vrot.slane %v7064, %v7079
      %v7082 = vunpack.c.l.s4 1966171168
      %v7083 = vunpack.c.0.s8 %v7082
      %v7084 = vlaneseq
      %v7085 = vshrl.u32 %v7084, 7
      %v7086 = vsub.s32 %v7083, %v7085
      %v7087 = vrot.slane %v7065, %v7086
      %v7089 = vunpack.c.l.s4 1966171168
      %v7090 = vunpack.c.0.s8 %v7089
      %v7091 = vlaneseq
      %v7092 = vshrl.u32 %v7091, 7
      %v7093 = vsub.s32 %v7090, %v7092
      %v7094 = vrot.slane %v7066, %v7093
      %v7095 = vcombine.high %v7073, %v7073
      %v7096 = vcombine.high %v7080, %v7080
      %v7097 = vcombine.high %v7087, %v7087
      %v7098 = vcombine.low %v6785, %v6799
      %v7099 = vcombine.low %v6807, %v6809
      %v7100 = vcombine.low %v6792, %v6806
      %v7101 = vcombine.low %v6808, %v6833
      %v7103 = vunpack.c.l.s4 1966171168
      %v7104 = vunpack.c.0.s8 %v7103
      %v7105 = vlaneseq
      %v7106 = vshrl.u32 %v7105, 7
      %v7107 = vsub.s32 %v7104, %v7106
      %v7108 = vrot.slane %v7098, %v7107
      %v7110 = vunpack.c.l.s4 1966171168
      %v7111 = vunpack.c.0.s8 %v7110
      %v7112 = vlaneseq
      %v7113 = vshrl.u32 %v7112, 7
      %v7114 = vsub.s32 %v7111, %v7113
      %v7115 = vrot.slane %v7099, %v7114
      %v7117 = vunpack.c.l.s4 1966171168
      %v7118 = vunpack.c.0.s8 %v7117
      %v7119 = vlaneseq
      %v7120 = vshrl.u32 %v7119, 7
      %v7121 = vsub.s32 %v7118, %v7120
      %v7122 = vrot.slane %v7100, %v7121
      %v7124 = vunpack.c.l.s4 1966171168
      %v7125 = vunpack.c.0.s8 %v7124
      %v7126 = vlaneseq
      %v7127 = vshrl.u32 %v7126, 7
      %v7128 = vsub.s32 %v7125, %v7127
      %v7129 = vrot.slane %v7101, %v7128
      %v7130 = vcombine.low %v7108, %v7115
      %v7131 = vcombine.low %v7122, %v7129
      %v7133 = vunpack.c.l.s4 1966171168
      %v7134 = vunpack.c.0.s8 %v7133
      %v7135 = vlaneseq
      %v7136 = vshrl.u32 %v7135, 7
      %v7137 = vsub.s32 %v7134, %v7136
      %v7138 = vrot.slane %v7130, %v7137
      %v7140 = vunpack.c.l.s4 1966171168
      %v7141 = vunpack.c.0.s8 %v7140
      %v7142 = vlaneseq
      %v7143 = vshrl.u32 %v7142, 7
      %v7144 = vsub.s32 %v7141, %v7143
      %v7145 = vrot.slane %v7131, %v7144
      %v7146 = vcombine.low %v7138, %v7145
      %v7147 = vcombine.low %v6847, %v6855
      %v7148 = vcombine.low %v6857, %v6840
      %v7149 = vcombine.low %v6854, %v6856
      %v7150 = vcombine.low %v6881, %v6895
      %v7152 = vunpack.c.l.s4 1966171168
      %v7153 = vunpack.c.0.s8 %v7152
      %v7154 = vlaneseq
      %v7155 = vshrl.u32 %v7154, 7
      %v7156 = vsub.s32 %v7153, %v7155
      %v7157 = vrot.slane %v7147, %v7156
      %v7159 = vunpack.c.l.s4 1966171168
      %v7160 = vunpack.c.0.s8 %v7159
      %v7161 = vlaneseq
      %v7162 = vshrl.u32 %v7161, 7
      %v7163 = vsub.s32 %v7160, %v7162
      %v7164 = vrot.slane %v7148, %v7163
      %v7166 = vunpack.c.l.s4 1966171168
      %v7167 = vunpack.c.0.s8 %v7166
      %v7168 = vlaneseq
      %v7169 = vshrl.u32 %v7168, 7
      %v7170 = vsub.s32 %v7167, %v7169
      %v7171 = vrot.slane %v7149, %v7170
      %v7173 = vunpack.c.l.s4 1966171168
      %v7174 = vunpack.c.0.s8 %v7173
      %v7175 = vlaneseq
      %v7176 = vshrl.u32 %v7175, 7
      %v7177 = vsub.s32 %v7174, %v7176
      %v7178 = vrot.slane %v7150, %v7177
      %v7179 = vcombine.low %v7157, %v7164
      %v7180 = vcombine.low %v7171, %v7178
      %v7182 = vunpack.c.l.s4 1966171168
      %v7183 = vunpack.c.0.s8 %v7182
      %v7184 = vlaneseq
      %v7185 = vshrl.u32 %v7184, 7
      %v7186 = vsub.s32 %v7183, %v7185
      %v7187 = vrot.slane %v7179, %v7186
      %v7189 = vunpack.c.l.s4 1966171168
      %v7190 = vunpack.c.0.s8 %v7189
      %v7191 = vlaneseq
      %v7192 = vshrl.u32 %v7191, 7
      %v7193 = vsub.s32 %v7190, %v7192
      %v7194 = vrot.slane %v7180, %v7193
      %v7195 = vcombine.low %v7187, %v7194
      %v7196 = vcombine.low %v6903, %v6905
      %v7197 = vcombine.low %v6888, %v6902
      %v7198 = vcombine.low %v6904, %v6929
      %v7199 = vcombine.low %v6943, %v6951
      %v7201 = vunpack.c.l.s4 1966171168
      %v7202 = vunpack.c.0.s8 %v7201
      %v7203 = vlaneseq
      %v7204 = vshrl.u32 %v7203, 7
      %v7205 = vsub.s32 %v7202, %v7204
      %v7206 = vrot.slane %v7196, %v7205
      %v7208 = vunpack.c.l.s4 1966171168
      %v7209 = vunpack.c.0.s8 %v7208
      %v7210 = vlaneseq
      %v7211 = vshrl.u32 %v7210, 7
      %v7212 = vsub.s32 %v7209, %v7211
      %v7213 = vrot.slane %v7197, %v7212
      %v7215 = vunpack.c.l.s4 1966171168
      %v7216 = vunpack.c.0.s8 %v7215
      %v7217 = vlaneseq
      %v7218 = vshrl.u32 %v7217, 7
      %v7219 = vsub.s32 %v7216, %v7218
      %v7220 = vrot.slane %v7198, %v7219
      %v7222 = vunpack.c.l.s4 1966171168
      %v7223 = vunpack.c.0.s8 %v7222
      %v7224 = vlaneseq
      %v7225 = vshrl.u32 %v7224, 7
      %v7226 = vsub.s32 %v7223, %v7225
      %v7227 = vrot.slane %v7199, %v7226
      %v7228 = vcombine.low %v7206, %v7213
      %v7229 = vcombine.low %v7220, %v7227
      %v7231 = vunpack.c.l.s4 1966171168
      %v7232 = vunpack.c.0.s8 %v7231
      %v7233 = vlaneseq
      %v7234 = vshrl.u32 %v7233, 7
      %v7235 = vsub.s32 %v7232, %v7234
      %v7236 = vrot.slane %v7228, %v7235
      %v7238 = vunpack.c.l.s4 1966171168
      %v7239 = vunpack.c.0.s8 %v7238
      %v7240 = vlaneseq
      %v7241 = vshrl.u32 %v7240, 7
      %v7242 = vsub.s32 %v7239, %v7241
      %v7243 = vrot.slane %v7229, %v7242
      %v7244 = vcombine.low %v7236, %v7243
      %v7245 = vcombine.low %v6953, %v6936
      %v7246 = vcombine.low %v6950, %v6952
      %v7247 = vcombine.low %v6977, %v6991
      %v7248 = vcombine.low %v6999, %v7001
      %v7250 = vunpack.c.l.s4 1966171168
      %v7251 = vunpack.c.0.s8 %v7250
      %v7252 = vlaneseq
      %v7253 = vshrl.u32 %v7252, 7
      %v7254 = vsub.s32 %v7251, %v7253
      %v7255 = vrot.slane %v7245, %v7254
      %v7257 = vunpack.c.l.s4 1966171168
      %v7258 = vunpack.c.0.s8 %v7257
      %v7259 = vlaneseq
      %v7260 = vshrl.u32 %v7259, 7
      %v7261 = vsub.s32 %v7258, %v7260
      %v7262 = vrot.slane %v7246, %v7261
      %v7264 = vunpack.c.l.s4 1966171168
      %v7265 = vunpack.c.0.s8 %v7264
      %v7266 = vlaneseq
      %v7267 = vshrl.u32 %v7266, 7
      %v7268 = vsub.s32 %v7265, %v7267
      %v7269 = vrot.slane %v7247, %v7268
      %v7271 = vunpack.c.l.s4 1966171168
      %v7272 = vunpack.c.0.s8 %v7271
      %v7273 = vlaneseq
      %v7274 = vshrl.u32 %v7273, 7
      %v7275 = vsub.s32 %v7272, %v7274
      %v7276 = vrot.slane %v7248, %v7275
      %v7277 = vcombine.low %v7255, %v7262
      %v7278 = vcombine.low %v7269, %v7276
      %v7280 = vunpack.c.l.s4 1966171168
      %v7281 = vunpack.c.0.s8 %v7280
      %v7282 = vlaneseq
      %v7283 = vshrl.u32 %v7282, 7
      %v7284 = vsub.s32 %v7281, %v7283
      %v7285 = vrot.slane %v7277, %v7284
      %v7287 = vunpack.c.l.s4 1966171168
      %v7288 = vunpack.c.0.s8 %v7287
      %v7289 = vlaneseq
      %v7290 = vshrl.u32 %v7289, 7
      %v7291 = vsub.s32 %v7288, %v7290
      %v7292 = vrot.slane %v7278, %v7291
      %v7293 = vcombine.low %v7285, %v7292
      %v7294 = vcombine.low %v6984, %v6998
      %v7295 = vcombine.low %v7000, %v7025
      %v7296 = vcombine.low %v7039, %v7047
      %v7297 = vcombine.low %v7049, %v7032
      %v7299 = vunpack.c.l.s4 1966171168
      %v7300 = vunpack.c.0.s8 %v7299
      %v7301 = vlaneseq
      %v7302 = vshrl.u32 %v7301, 7
      %v7303 = vsub.s32 %v7300, %v7302
      %v7304 = vrot.slane %v7294, %v7303
      %v7306 = vunpack.c.l.s4 1966171168
      %v7307 = vunpack.c.0.s8 %v7306
      %v7308 = vlaneseq
      %v7309 = vshrl.u32 %v7308, 7
      %v7310 = vsub.s32 %v7307, %v7309
      %v7311 = vrot.slane %v7295, %v7310
      %v7313 = vunpack.c.l.s4 1966171168
      %v7314 = vunpack.c.0.s8 %v7313
      %v7315 = vlaneseq
      %v7316 = vshrl.u32 %v7315, 7
      %v7317 = vsub.s32 %v7314, %v7316
      %v7318 = vrot.slane %v7296, %v7317
      %v7320 = vunpack.c.l.s4 1966171168
      %v7321 = vunpack.c.0.s8 %v7320
      %v7322 = vlaneseq
      %v7323 = vshrl.u32 %v7322, 7
      %v7324 = vsub.s32 %v7321, %v7323
      %v7325 = vrot.slane %v7297, %v7324
      %v7326 = vcombine.low %v7304, %v7311
      %v7327 = vcombine.low %v7318, %v7325
      %v7329 = vunpack.c.l.s4 1966171168
      %v7330 = vunpack.c.0.s8 %v7329
      %v7331 = vlaneseq
      %v7332 = vshrl.u32 %v7331, 7
      %v7333 = vsub.s32 %v7330, %v7332
      %v7334 = vrot.slane %v7326, %v7333
      %v7336 = vunpack.c.l.s4 1966171168
      %v7337 = vunpack.c.0.s8 %v7336
      %v7338 = vlaneseq
      %v7339 = vshrl.u32 %v7338, 7
      %v7340 = vsub.s32 %v7337, %v7339
      %v7341 = vrot.slane %v7327, %v7340
      %v7342 = vcombine.low %v7334, %v7341
      %v7343 = vcombine.low %v7046, %v7048
      %v7344 = vcombine.low %v7073, %v7087
      %v7345 = vcombine.low %v7095, %v7097
      %v7346 = vcombine.low %v7080, %v7094
      %v7348 = vunpack.c.l.s4 1966171168
      %v7349 = vunpack.c.0.s8 %v7348
      %v7350 = vlaneseq
      %v7351 = vshrl.u32 %v7350, 7
      %v7352 = vsub.s32 %v7349, %v7351
      %v7353 = vrot.slane %v7343, %v7352
      %v7355 = vunpack.c.l.s4 1966171168
      %v7356 = vunpack.c.0.s8 %v7355
      %v7357 = vlaneseq
      %v7358 = vshrl.u32 %v7357, 7
      %v7359 = vsub.s32 %v7356, %v7358
      %v7360 = vrot.slane %v7344, %v7359
      %v7362 = vunpack.c.l.s4 1966171168
      %v7363 = vunpack.c.0.s8 %v7362
      %v7364 = vlaneseq
      %v7365 = vshrl.u32 %v7364, 7
      %v7366 = vsub.s32 %v7363, %v7365
      %v7367 = vrot.slane %v7345, %v7366
      %v7369 = vunpack.c.l.s4 1966171168
      %v7370 = vunpack.c.0.s8 %v7369
      %v7371 = vlaneseq
      %v7372 = vshrl.u32 %v7371, 7
      %v7373 = vsub.s32 %v7370, %v7372
      %v7374 = vrot.slane %v7346, %v7373
      %v7375 = vcombine.low %v7353, %v7360
      %v7376 = vcombine.low %v7367, %v7374
      %v7378 = vunpack.c.l.s4 1966171168
      %v7379 = vunpack.c.0.s8 %v7378
      %v7380 = vlaneseq
      %v7381 = vshrl.u32 %v7380, 7
      %v7382 = vsub.s32 %v7379, %v7381
      %v7383 = vrot.slane %v7375, %v7382
      %v7385 = vunpack.c.l.s4 1966171168
      %v7386 = vunpack.c.0.s8 %v7385
      %v7387 = vlaneseq
      %v7388 = vshrl.u32 %v7387, 7
      %v7389 = vsub.s32 %v7386, %v7388
      %v7390 = vrot.slane %v7376, %v7389
      %v7391 = vcombine.low %v7383, %v7390
      %v7393 = vunpack.c.l.s4 1966171168
      %v7394 = vunpack.c.0.s8 %v7393
      %v7395 = vlaneseq
      %v7396 = vshrl.u32 %v7395, 7
      %v7397 = vsub.s32 %v7394, %v7396
      %v7398 = vrot.slane %v7096, %v7397
      %v7400 = vunpack.c.l.s4 1966171168
      %v7401 = vunpack.c.0.s8 %v7400
      %v7402 = vlaneseq
      %v7403 = vshrl.u32 %v7402, 7
      %v7404 = vsub.s32 %v7401, %v7403
      %v7405 = vrot.slane %v7398, %v7404
      %7406 = vrot.lane.b32.xlu0 %v7146, 32
      %v7407 = vpop.permute.xlu0 %7406
      %7408 = vrot.lane.b32.xlu0 %v7195, 32
      %v7409 = vpop.permute.xlu0 %7408
      %7410 = vrot.lane.b32.xlu0 %v7244, 32
      %v7411 = vpop.permute.xlu0 %7410
      %7412 = vrot.lane.b32.xlu0 %v7293, 32
      %v7413 = vpop.permute.xlu0 %7412
      %7414 = vrot.lane.b32.xlu0 %v7342, 32
      %v7415 = vpop.permute.xlu0 %7414
      %7416 = vrot.lane.b32.xlu0 %v7391, 32
      %v7417 = vpop.permute.xlu0 %7416
      %7418 = vrot.lane.b32.xlu0 %v7405, 32
      %v7419 = vpop.permute.xlu0 %7418
      %vm7427 = vcmask 294144
      %7428 = vst.msk [vmem:[%s440] sm:$0xff] %vm7427, %v7407
      %7429 = vst.msk [vmem:[%s440 + $0x8] sm:$0xff] %vm7427, %v7409
      %7430 = vst.msk [vmem:[%s440 + $0x10] sm:$0xff] %vm7427, %v7411
      %7431 = vst.msk [vmem:[%s440 + $0x18] sm:$0xff] %vm7427, %v7413
      %7432 = vst.msk [vmem:[%s440 + $0x20] sm:$0xff] %vm7427, %v7415
      %7433 = vst.msk [vmem:[%s440 + $0x28] sm:$0xff] %vm7427, %v7417
      %vm7434 = vcmask 286976
      %7435 = vst.msk [vmem:[%s440 + $0x30] sm:$0x1] %vm7434, %v7419
      %p7436 = scmp.lt.s32.totalorder %s24, 1
      %s7437 = scalar_select %p7436, %s24, 1
      %s7438 = smul.addr %s7437, 7
      %s7439 = smul.addr %s7438, 8
      %s7440 = scalar_lea.vmem %s13, %s7439
      // Predicated region
      $region73: #{inception_block_d.1} parent=71 // pred_check
        %p7441 = pneg %p320
      $region74: #{inception_block_d.1} parent=71 // pred_check_branch
        %7443 = sbr.rel (%p7441) target = $region76
      $region75: #{inception_block_d.1} parent=71 // pred_region
        _
      $region76: #{inception_block_d.1} parent=71 // pred_fallthru
        _
    $region72: #{inception_block_d.1} parent=5 // pred_fallthru
      _
    %p7444 = scmp.le.s32.totalorder 2, %s19
    // Predicated region
    $region77: #{inception_block_d.1} parent=5 // pred_check
      %p7445 = pneg %p7444
    $region78: #{inception_block_d.1} parent=5 // pred_check_branch
      %7447 = sbr.rel (%p7445) target = $region80
    $region79: #{inception_block_d.1} parent=5 // pred_region
      %s7448 = ssub.s32 %s19, 2
      // Predicated region
      $region81: #{inception_block_d.1} parent=79 // pred_check
        %p7449 = pneg %p326
      $region82: #{inception_block_d.1} parent=79 // pred_check_branch
        %7451 = sbr.rel (%p7449) target = $region84
      $region83: #{inception_block_d.1} parent=79 // pred_region
        %p7452 = scmp.lt.s32.totalorder %s25, 1
        %s7453 = scalar_select %p7452, %s25, 1
        %s7454 = smul.addr %s7453, 7
        %s7455 = smul.addr %s7454, 8
        %s7456 = scalar_lea.vmem %s13, %s7455
      $region84: #{inception_block_d.1} parent=79 // pred_fallthru
        _
    $region80: #{inception_block_d.1} parent=5 // pred_fallthru
      _
  $region6: #{inception_block_d.1} parent=0 // loop_footer
    %s23 = sadd.s32 1, %s19
  $region7: #{inception_block_d.1} parent=0 // loop_footer_branch
    %18 = sbr.rel target = $region3
  $region8: #{inception_block_d.1} parent=0 // loop_exit
    _

</llo_original>
